<compile_context>
chip_gen: v7x
topology: tpu7x:2x2x1
jax: 0.10.0
libtpu: 0.0.40
codegen_flags: <defaults>
</compile_context>

<pallas_src>
import functools
import math

import jax
import jax.numpy as jnp
from jax.experimental import pallas as pl
from jax.experimental.pallas import tpu as pltpu

# ---------------- configuration (small synthetic sizes) ----------------
B = 2                         # batch
OBS_ACTORS = 4                # obs_actors
OCC_ACTORS = 2                # occ_actors
A = OBS_ACTORS + OCC_ACTORS   # actors per batch element
T = 8                         # past_to_current_steps
F = 8                         # 5 node features + 3 vector features
TRAJ_HEADS = 2                # cfg['traj_heads']
NODE_HEAD_SIZE = 64           # fixed in TrajEncoder
HD = TRAJ_HEADS * NODE_HEAD_SIZE     # 128
NODE_OUT = 64 * 5             # node_attention output_size = 320
VEC_DIM = 64                  # vector_feature output width
OUT_DIM = 64                  # cfg['out_dim']
ATT_HEADS = 4                 # cfg['att_heads']
CA_HEAD = OUT_DIM // ATT_HEADS       # 16
LN_EPS = 1e-3                 # matches nn.LayerNorm(eps=0.001)
NEG = -1e9                    # additive penalty for masked positions (reference MHA mask)
XNEG = -2e9                   # stronger penalty for cross-trajectory / cross-batch pairs

NTRAJ = B * A                              # 12 trajectories / actors total
NP = ((NTRAJ + 7) // 8) * 8                # padded actor count (sublane multiple) = 16
TN = T * NP                                # time-major rows = 128


# ---------------- helpers used inside the kernel ----------------
def _elu(x):
    return jnp.where(x > 0, x, jnp.exp(x) - 1.0)


def _layernorm(x, gamma, beta, eps):
    mu = jnp.mean(x, axis=-1, keepdims=True)
    var = jnp.mean(jnp.square(x - mu), axis=-1, keepdims=True)
    return (x - mu) * jax.lax.rsqrt(var + eps) * gamma + beta


def _softmax_rows(s):
    s = s - jnp.max(s, axis=-1, keepdims=True)
    p = jnp.exp(s)
    return p * pl.reciprocal(jnp.sum(p, axis=-1, keepdims=True), approx=True)


# ---------------- fused TrajNet kernel ----------------
def trajnet_kernel(traj_ref,                          # (TN, F) bf16 time-major trajectories
                   mcol_ref, mlane_ref,               # (TN,1), (1,TN) f32 timestep mask
                   amc_ref, aml_ref,                  # (NP,1), (1,NP) f32 actor mask
                   embed_ref,                         # (NP, OUT_DIM) f32 seg_embed(bi_embed)
                   # TrajEncoder weights (per-head stacked, scale folded into wq/bq)
                   wc_ref, bc_ref,                    # (F,64) bf16, (1,64) f32
                   wq_ref, bq_ref, wk_ref, bk_ref, wv_ref, bv_ref,   # (H,64,64)/(H,1,64)
                   wo_ref, bo_ref,                    # (H,64,320) bf16, (1,320) f32
                   wvec_ref,                          # (F,64) bf16 (zero rows 0:5)
                   ws_ref, bs_ref,                    # (384,D) bf16, (1,D) f32
                   # Cross_Attention weights (per-head stacked, scale folded into cwq/cbq)
                   cwq_ref, cbq_ref, cwk_ref, cbk_ref, cwv_ref, cbv_ref,  # (H,D,16)/(H,1,16)
                   cwo_ref, cbo_ref,                  # (H,16,D) bf16, (1,D) f32
                   g1_ref, be1_ref, w1_ref, b1_ref, w2_ref, b2_ref, g2_ref, be2_ref,
                   # obs_norm / occ_norm
                   gobs_ref, bobs_ref, gocc_ref, bocc_ref,
                   o_ref):                            # (NP, OUT_DIM) f32
    x = traj_ref[...]                                 # (TN, F) bf16

    # ---- TrajEncoder: Conv1d(5,64,k=1)+ELU; wc zero-padded so no lane slice of x ----
    nodes = _elu(jnp.dot(x, wc_ref[...], preferred_element_type=jnp.float32)
                 + bc_ref[...])                                                   # (TN,64)
    nodes_bf = nodes.astype(jnp.bfloat16)

    # Additive attention bias built in-kernel:
    #   -1e9  where the timestep pair is masked (reference MHA mask),
    #   -2e9  for cross-trajectory pairs (strictly dominated, so a fully masked
    #         trajectory still softmaxes uniformly over its OWN T steps).
    # Trajectory id of a time-major row r is r % NP -> derived from iota, not DMA'd.
    tr = jax.lax.broadcasted_iota(jnp.int32, (TN, 1), 0)
    tc = jax.lax.broadcasted_iota(jnp.int32, (1, TN), 1)
    if NP & (NP - 1) == 0:
        same_traj = (tr & (NP - 1)) == (tc & (NP - 1))
    else:
        same_traj = (tr % NP) == (tc % NP)
    pair_valid = mcol_ref[...] * mlane_ref[...]                                    # (TN,TN)
    enc_bias = jnp.where(same_traj, (1.0 - pair_valid) * NEG, XNEG)

    # per-head attention; W_o accumulation interleaved; scale already folded into wq/bq
    attn = None
    for h in range(TRAJ_HEADS):
        q = jnp.dot(nodes_bf, wq_ref[h], preferred_element_type=jnp.float32) + bq_ref[h]
        k = jnp.dot(nodes_bf, wk_ref[h], preferred_element_type=jnp.float32) + bk_ref[h]
        v = jnp.dot(nodes_bf, wv_ref[h], preferred_element_type=jnp.float32) + bv_ref[h]
        s = jax.lax.dot_general(q.astype(jnp.bfloat16), k.astype(jnp.bfloat16),
                                (((1,), (1,)), ((), ())),
                                preferred_element_type=jnp.float32) + enc_bias
        p = _softmax_rows(s)
        oh = jnp.dot(p.astype(jnp.bfloat16), v.astype(jnp.bfloat16),
                     preferred_element_type=jnp.float32)
        part = jnp.dot(oh.astype(jnp.bfloat16), wo_ref[h],
                       preferred_element_type=jnp.float32)
        attn = part if attn is None else attn + part
    attn = attn + bo_ref[...]                                                      # (TN,320)

    # max-pool over time: time-major layout -> sublane-aligned static slices
    pooled = attn[0:NP, :]
    for t in range(1, T):
        pooled = jnp.maximum(pooled, attn[t * NP:(t + 1) * NP, :])                 # (NP,320)

    # vector feature uses timestep 0 (first NP rows); wvec zero-padded -> no lane slice
    vector = jnp.dot(x[0:NP, :], wvec_ref[...],
                     preferred_element_type=jnp.float32)                           # (NP,64)

    # sublayer(concat([pooled, vector])) as two matmuls on sublane-aligned W slices
    feats = _elu(jnp.dot(pooled.astype(jnp.bfloat16), ws_ref[0:NODE_OUT, :],
                         preferred_element_type=jnp.float32)
                 + jnp.dot(vector.astype(jnp.bfloat16),
                           ws_ref[NODE_OUT:NODE_OUT + VEC_DIM, :],
                           preferred_element_type=jnp.float32)
                 + bs_ref[...])                                                    # (NP,D)

    # ---- Cross_Attention over actors (per-batch groups via -2e9 cross-batch bias) ----
    amask = amc_ref[...]                                                           # (NP,1)
    masked = feats * amask                 # concat_actors = c_attn_mask * feats
    query = masked + embed_ref[...]        # query = concat_actors + embed
    masked_bf = masked.astype(jnp.bfloat16)
    query_bf = query.astype(jnp.bfloat16)

    # batch id of actor slot built from iota + compares (padding gets its own group)
    ar = jax.lax.broadcasted_iota(jnp.int32, (NP, 1), 0)
    ac = jax.lax.broadcasted_iota(jnp.int32, (1, NP), 1)

    def _batch_id(idx):
        bid = jnp.zeros_like(idx)
        for kk in range(1, B):
            bid = bid + (idx >= kk * A).astype(jnp.int32)
        return bid + B * (idx >= NTRAJ).astype(jnp.int32)

    same_batch = _batch_id(ar) == _batch_id(ac)                                    # (NP,NP)
    a_valid = amask * aml_ref[...]                                                 # (NP,NP)
    ca_bias = jnp.where(same_batch, (1.0 - a_valid) * NEG, XNEG)

    attn_c = None
    for h in range(ATT_HEADS):
        qc = jnp.dot(query_bf, cwq_ref[h], preferred_element_type=jnp.float32) + cbq_ref[h]
        kc = jnp.dot(masked_bf, cwk_ref[h], preferred_element_type=jnp.float32) + cbk_ref[h]
        vc = jnp.dot(masked_bf, cwv_ref[h], preferred_element_type=jnp.float32) + cbv_ref[h]
        s = jax.lax.dot_general(qc.astype(jnp.bfloat16), kc.astype(jnp.bfloat16),
                                (((1,), (1,)), ((), ())),
                                preferred_element_type=jnp.float32) + ca_bias
        p = _softmax_rows(s)
        oh = jnp.dot(p.astype(jnp.bfloat16), vc.astype(jnp.bfloat16),
                     preferred_element_type=jnp.float32)
        part = jnp.dot(oh.astype(jnp.bfloat16), cwo_ref[h],
                       preferred_element_type=jnp.float32)
        attn_c = part if attn_c is None else attn_c + part
    attn_c = attn_c + cbo_ref[...]                                                 # (NP,D)

    v1 = _layernorm(attn_c, g1_ref[...], be1_ref[...], LN_EPS)                     # norm1
    f1 = _elu(jnp.dot(v1.astype(jnp.bfloat16), w1_ref[...],
                      preferred_element_type=jnp.float32) + b1_ref[...])
    f2 = _elu(jnp.dot(f1.astype(jnp.bfloat16), w2_ref[...],
                      preferred_element_type=jnp.float32) + b2_ref[...])
    value = _layernorm(f2, g2_ref[...], be2_ref[...], LN_EPS)                      # norm2

    # residual + embed, then obs_norm / occ_norm selected per row (is_obs from iota)
    is_obs = jnp.zeros((NP, 1), jnp.float32)
    for b in range(B):
        lo, hi = b * A, b * A + OBS_ACTORS
        is_obs = jnp.maximum(is_obs, ((ar >= lo) & (ar < hi)).astype(jnp.float32))

    resid = feats + value + embed_ref[...]
    gamma = is_obs * gobs_ref[...] + (1.0 - is_obs) * gocc_ref[...]
    beta = is_obs * bobs_ref[...] + (1.0 - is_obs) * bocc_ref[...]
    o_ref[...] = _layernorm(resid, gamma, beta, LN_EPS)


# ---------------- wrapper ----------------
def _fullspec(a):
    nd = a.ndim
    return pl.BlockSpec(a.shape, lambda i, _nd=nd: (0,) * _nd)


def trajnet_forward(obs_traj, occ_traj, params):
    enc = params['enc']
    cross = params['cross']
    bf = lambda a: a.astype(jnp.bfloat16)

    all_traj = jnp.concatenate([obs_traj, occ_traj], axis=1)              # (B, A, T, F)
    all_mask = (all_traj[..., 0] != 0).astype(jnp.float32)                # (B, A, T)
    c_attn_mask = (jnp.max(all_mask, axis=-1) > 0).astype(jnp.float32)    # (B, A)

    # pack trajectories time-major: row = t * NP + (b * A + a)
    flat = all_traj.reshape(NTRAJ, T, F)
    padded = jnp.pad(flat, ((0, NP - NTRAJ), (0, 0), (0, 0)))
    traj_tm = jnp.transpose(padded, (1, 0, 2)).reshape(TN, F)
    traj_bf = bf(traj_tm)

    # the only per-example operands besides the trajectory slab and the embed
    mask_tm = (traj_tm[:, 0] != 0).astype(jnp.float32)                    # (TN,)
    amask = jnp.pad(c_attn_mask.reshape(NTRAJ), (0, NP - NTRAJ))          # (NP,)

    # bi_embed + seg_embed (tiny constant per actor slot; identical across batch)
    bi_embed = jnp.concatenate(
        [jnp.tile(jnp.array([[1.0, 0.0]], jnp.float32), (OBS_ACTORS, 1)),
         jnp.tile(jnp.array([[0.0, 1.0]], jnp.float32), (OCC_ACTORS, 1))], axis=0)
    embed_a = bi_embed @ params['seg_embed'].T                            # (A, OUT_DIM)
    embed_pad = jnp.pad(jnp.tile(embed_a, (B, 1)), ((0, NP - NTRAJ), (0, 0)))

    # ---- weight preprocessing (free XLA ops, constant-folded under jit) ----
    def split_cols(w, b, heads, hd, scale=1.0):
        wh = (w * scale).reshape(w.shape[0], heads, hd).transpose(1, 0, 2)   # (H,in,hd)
        bh = (b * scale).reshape(1, heads, hd).transpose(1, 0, 2)            # (H,1,hd)
        return bf(wh), bh.astype(jnp.float32)

    escale = 1.0 / math.sqrt(NODE_HEAD_SIZE)
    cscale = 1.0 / math.sqrt(CA_HEAD)

    wc_p = bf(jnp.pad(enc['wc'], ((0, F - 5), (0, 0))))                     # (8,64)
    wvec_p = bf(jnp.pad(enc['wvec'], ((5, 0), (0, 0))))                     # (8,64)

    wq_h, bq_h = split_cols(enc['wq'], enc['bq'], TRAJ_HEADS, NODE_HEAD_SIZE, escale)
    wk_h, bk_h = split_cols(enc['wk'], enc['bk'], TRAJ_HEADS, NODE_HEAD_SIZE)
    wv_h, bv_h = split_cols(enc['wv'], enc['bv'], TRAJ_HEADS, NODE_HEAD_SIZE)
    wo_h = bf(enc['wo'].reshape(TRAJ_HEADS, NODE_HEAD_SIZE, NODE_OUT))

    cwq_h, cbq_h = split_cols(cross['wq'], cross['bq'], ATT_HEADS, CA_HEAD, cscale)
    cwk_h, cbk_h = split_cols(cross['wk'], cross['bk'], ATT_HEADS, CA_HEAD)
    cwv_h, cbv_h = split_cols(cross['wv'], cross['bv'], ATT_HEADS, CA_HEAD)
    cwo_h = bf(cross['wo'].reshape(ATT_HEADS, CA_HEAD, OUT_DIM))

    data = [traj_bf,
            mask_tm[:, None], mask_tm[None, :],
            amask[:, None], amask[None, :],
            embed_pad]
    weights = [wc_p, enc['bc'],
               wq_h, bq_h, wk_h, bk_h, wv_h, bv_h, wo_h, enc['bo'],
               wvec_p, bf(enc['ws']), enc['bs'],
               cwq_h, cbq_h, cwk_h, cbk_h, cwv_h, cbv_h, cwo_h, cross['bo'],
               cross['g1'], cross['be1'], bf(cross['w1']), cross['b1'],
               bf(cross['w2']), cross['b2'], cross['g2'], cross['be2'],
               params['obs_norm']['g'], params['obs_norm']['b'],
               params['occ_norm']['g'], params['occ_norm']['b']]

    out = pl.pallas_call(
        trajnet_kernel,
        out_shape=jax.ShapeDtypeStruct((NP, OUT_DIM), jnp.float32),
        grid_spec=pltpu.PrefetchScalarGridSpec(
            num_scalar_prefetch=0,
            grid=(1,),                                   # whole net = one fused step
            in_specs=[_fullspec(a) for a in data + weights],
            out_specs=pl.BlockSpec((NP, OUT_DIM), lambda i: (0, 0)),
        ),
    )(*data, *weights)

    feats = out[:NTRAJ].reshape(B, A, OUT_DIM)
    return feats[:, :OBS_ACTORS], feats[:, OBS_ACTORS:], c_attn_mask


# ---------------- parameter initialization (deterministic, synthetic) ----------------
def init_params(key):
    keys = iter(jax.random.split(key, 64))

    def w(shape, scale=0.05):
        return (scale * jax.random.normal(next(keys), shape)).astype(jnp.float32)

    enc = dict(
        wc=w((5, 64)), bc=w((1, 64)),
        wq=w((64, HD)), bq=w((1, HD)),
        wk=w((64, HD)), bk=w((1, HD)),
        wv=w((64, HD)), bv=w((1, HD)),
        wo=w((HD, NODE_OUT)), bo=w((1, NODE_OUT)),
        wvec=w((3, VEC_DIM)),
        ws=w((NODE_OUT + VEC_DIM, OUT_DIM)), bs=w((1, OUT_DIM)),
    )
    D = OUT_DIM
    cross = dict(
        wq=w((D, D)), bq=w((1, D)),
        wk=w((D, D)), bk=w((1, D)),
        wv=w((D, D)), bv=w((1, D)),
        wo=w((D, D)), bo=w((1, D)),
        g1=jnp.ones((1, D), jnp.float32), be1=jnp.zeros((1, D), jnp.float32),
        w1=w((D, 4 * D)), b1=w((1, 4 * D)),
        w2=w((4 * D, D)), b2=w((1, D)),
        g2=jnp.ones((1, D), jnp.float32), be2=jnp.zeros((1, D), jnp.float32),
    )
    return dict(
        enc=enc,
        cross=cross,
        seg_embed=w((OUT_DIM, 2)),                   # nn.Linear(2, out_dim, bias=False)
        obs_norm=dict(g=jnp.ones((1, D), jnp.float32), b=jnp.zeros((1, D), jnp.float32)),
        occ_norm=dict(g=jnp.ones((1, D), jnp.float32), b=jnp.zeros((1, D), jnp.float32)),
    )


# ---------------- main ----------------
if __name__ == "__main__":
    key = jax.random.PRNGKey(0)
    k_obs, k_occ, k_par = jax.random.split(key, 3)

    obs_traj = jax.random.normal(k_obs, (B, OBS_ACTORS, T, F), jnp.float32)
    occ_traj = jax.random.normal(k_occ, (B, OCC_ACTORS, T, F), jnp.float32)
    # zero out trailing timesteps / a whole actor to exercise the masking paths
    obs_traj = obs_traj.at[:, :, T - 2:, :].set(0.0)
    occ_traj = occ_traj.at[:, -1, :, :].set(0.0)

    params = init_params(k_par)

    fwd = jax.jit(functools.partial(trajnet_forward, params=params))
    obs_out, occ_out, c_mask = fwd(obs_traj, occ_traj)
    jax.block_until_ready((obs_out, occ_out, c_mask))

    assert obs_out.shape == (B, OBS_ACTORS, OUT_DIM)
    assert occ_out.shape == (B, OCC_ACTORS, OUT_DIM)
    assert c_mask.shape == (B, A)
    assert bool(jnp.isfinite(obs_out).all()) and bool(jnp.isfinite(occ_out).all())
    print("KERNEL_OK")
</pallas_src>

<mosaic_0001>
module attributes {stable_mosaic.version = 11 : i64} {
  func.func @trajnet_kernel(%arg0: i32, %arg1: memref<128x8xbf16, #tpu.memory_space<vmem>>, %arg2: memref<128x1xf32, #tpu.memory_space<vmem>>, %arg3: memref<1x128xf32, #tpu.memory_space<vmem>>, %arg4: memref<16x1xf32, #tpu.memory_space<vmem>>, %arg5: memref<1x16xf32, #tpu.memory_space<vmem>>, %arg6: memref<16x64xf32, #tpu.memory_space<vmem>>, %arg7: memref<8x64xbf16, #tpu.memory_space<vmem>>, %arg8: memref<1x64xf32, #tpu.memory_space<vmem>>, %arg9: memref<2x64x64xbf16, #tpu.memory_space<vmem>>, %arg10: memref<2x1x64xf32, #tpu.memory_space<vmem>>, %arg11: memref<2x64x64xbf16, #tpu.memory_space<vmem>>, %arg12: memref<2x1x64xf32, #tpu.memory_space<vmem>>, %arg13: memref<2x64x64xbf16, #tpu.memory_space<vmem>>, %arg14: memref<2x1x64xf32, #tpu.memory_space<vmem>>, %arg15: memref<2x64x320xbf16, #tpu.memory_space<vmem>>, %arg16: memref<1x320xf32, #tpu.memory_space<vmem>>, %arg17: memref<8x64xbf16, #tpu.memory_space<vmem>>, %arg18: memref<384x64xbf16, #tpu.memory_space<vmem>>, %arg19: memref<1x64xf32, #tpu.memory_space<vmem>>, %arg20: memref<4x64x16xbf16, #tpu.memory_space<vmem>>, %arg21: memref<4x1x16xf32, #tpu.memory_space<vmem>>, %arg22: memref<4x64x16xbf16, #tpu.memory_space<vmem>>, %arg23: memref<4x1x16xf32, #tpu.memory_space<vmem>>, %arg24: memref<4x64x16xbf16, #tpu.memory_space<vmem>>, %arg25: memref<4x1x16xf32, #tpu.memory_space<vmem>>, %arg26: memref<4x16x64xbf16, #tpu.memory_space<vmem>>, %arg27: memref<1x64xf32, #tpu.memory_space<vmem>>, %arg28: memref<1x64xf32, #tpu.memory_space<vmem>>, %arg29: memref<1x64xf32, #tpu.memory_space<vmem>>, %arg30: memref<64x256xbf16, #tpu.memory_space<vmem>>, %arg31: memref<1x256xf32, #tpu.memory_space<vmem>>, %arg32: memref<256x64xbf16, #tpu.memory_space<vmem>>, %arg33: memref<1x64xf32, #tpu.memory_space<vmem>>, %arg34: memref<1x64xf32, #tpu.memory_space<vmem>>, %arg35: memref<1x64xf32, #tpu.memory_space<vmem>>, %arg36: memref<1x64xf32, #tpu.memory_space<vmem>>, %arg37: memref<1x64xf32, #tpu.memory_space<vmem>>, %arg38: memref<1x64xf32, #tpu.memory_space<vmem>>, %arg39: memref<1x64xf32, #tpu.memory_space<vmem>>, %arg40: memref<16x64xf32, #tpu.memory_space<vmem>>) attributes {dimension_semantics = [#tpu.dimension_semantics<arbitrary>], iteration_bounds = array<i64: 1>, scalar_prefetch = 0 : i64, scratch_operands = 0 : i64, tpu.core_type = #tpu.core_type<tc>, window_params = [{pipeline_mode = #tpu.pipeline_mode<synchronous>, transform_indices = @transform_0, window_bounds = array<i64: 128, 8>}, {pipeline_mode = #tpu.pipeline_mode<synchronous>, transform_indices = @transform_1, window_bounds = array<i64: 128, 1>}, {pipeline_mode = #tpu.pipeline_mode<synchronous>, transform_indices = @transform_2, window_bounds = array<i64: 1, 128>}, {pipeline_mode = #tpu.pipeline_mode<synchronous>, transform_indices = @transform_3, window_bounds = array<i64: 16, 1>}, {pipeline_mode = #tpu.pipeline_mode<synchronous>, transform_indices = @transform_4, window_bounds = array<i64: 1, 16>}, {pipeline_mode = #tpu.pipeline_mode<synchronous>, transform_indices = @transform_5, window_bounds = array<i64: 16, 64>}, {pipeline_mode = #tpu.pipeline_mode<synchronous>, transform_indices = @transform_6, window_bounds = array<i64: 8, 64>}, {pipeline_mode = #tpu.pipeline_mode<synchronous>, transform_indices = @transform_7, window_bounds = array<i64: 1, 64>}, {pipeline_mode = #tpu.pipeline_mode<synchronous>, transform_indices = @transform_8, window_bounds = array<i64: 2, 64, 64>}, {pipeline_mode = #tpu.pipeline_mode<synchronous>, transform_indices = @transform_9, window_bounds = array<i64: 2, 1, 64>}, {pipeline_mode = #tpu.pipeline_mode<synchronous>, transform_indices = @transform_10, window_bounds = array<i64: 2, 64, 64>}, {pipeline_mode = #tpu.pipeline_mode<synchronous>, transform_indices = @transform_11, window_bounds = array<i64: 2, 1, 64>}, {pipeline_mode = #tpu.pipeline_mode<synchronous>, transform_indices = @transform_12, window_bounds = array<i64: 2, 64, 64>}, {pipeline_mode = #tpu.pipeline_mode<synchronous>, transform_indices = @transform_13, window_bounds = array<i64: 2, 1, 64>}, {pipeline_mode = #tpu.pipeline_mode<synchronous>, transform_indices = @transform_14, window_bounds = array<i64: 2, 64, 320>}, {pipeline_mode = #tpu.pipeline_mode<synchronous>, transform_indices = @transform_15, window_bounds = array<i64: 1, 320>}, {pipeline_mode = #tpu.pipeline_mode<synchronous>, transform_indices = @transform_16, window_bounds = array<i64: 8, 64>}, {pipeline_mode = #tpu.pipeline_mode<synchronous>, transform_indices = @transform_17, window_bounds = array<i64: 384, 64>}, {pipeline_mode = #tpu.pipeline_mode<synchronous>, transform_indices = @transform_18, window_bounds = array<i64: 1, 64>}, {pipeline_mode = #tpu.pipeline_mode<synchronous>, transform_indices = @transform_19, window_bounds = array<i64: 4, 64, 16>}, {pipeline_mode = #tpu.pipeline_mode<synchronous>, transform_indices = @transform_20, window_bounds = array<i64: 4, 1, 16>}, {pipeline_mode = #tpu.pipeline_mode<synchronous>, transform_indices = @transform_21, window_bounds = array<i64: 4, 64, 16>}, {pipeline_mode = #tpu.pipeline_mode<synchronous>, transform_indices = @transform_22, window_bounds = array<i64: 4, 1, 16>}, {pipeline_mode = #tpu.pipeline_mode<synchronous>, transform_indices = @transform_23, window_bounds = array<i64: 4, 64, 16>}, {pipeline_mode = #tpu.pipeline_mode<synchronous>, transform_indices = @transform_24, window_bounds = array<i64: 4, 1, 16>}, {pipeline_mode = #tpu.pipeline_mode<synchronous>, transform_indices = @transform_25, window_bounds = array<i64: 4, 16, 64>}, {pipeline_mode = #tpu.pipeline_mode<synchronous>, transform_indices = @transform_26, window_bounds = array<i64: 1, 64>}, {pipeline_mode = #tpu.pipeline_mode<synchronous>, transform_indices = @transform_27, window_bounds = array<i64: 1, 64>}, {pipeline_mode = #tpu.pipeline_mode<synchronous>, transform_indices = @transform_28, window_bounds = array<i64: 1, 64>}, {pipeline_mode = #tpu.pipeline_mode<synchronous>, transform_indices = @transform_29, window_bounds = array<i64: 64, 256>}, {pipeline_mode = #tpu.pipeline_mode<synchronous>, transform_indices = @transform_30, window_bounds = array<i64: 1, 256>}, {pipeline_mode = #tpu.pipeline_mode<synchronous>, transform_indices = @transform_31, window_bounds = array<i64: 256, 64>}, {pipeline_mode = #tpu.pipeline_mode<synchronous>, transform_indices = @transform_32, window_bounds = array<i64: 1, 64>}, {pipeline_mode = #tpu.pipeline_mode<synchronous>, transform_indices = @transform_33, window_bounds = array<i64: 1, 64>}, {pipeline_mode = #tpu.pipeline_mode<synchronous>, transform_indices = @transform_34, window_bounds = array<i64: 1, 64>}, {pipeline_mode = #tpu.pipeline_mode<synchronous>, transform_indices = @transform_35, window_bounds = array<i64: 1, 64>}, {pipeline_mode = #tpu.pipeline_mode<synchronous>, transform_indices = @transform_36, window_bounds = array<i64: 1, 64>}, {pipeline_mode = #tpu.pipeline_mode<synchronous>, transform_indices = @transform_37, window_bounds = array<i64: 1, 64>}, {pipeline_mode = #tpu.pipeline_mode<synchronous>, transform_indices = @transform_38, window_bounds = array<i64: 1, 64>}, {pipeline_mode = #tpu.pipeline_mode<synchronous>, transform_indices = @transform_39, window_bounds = array<i64: 16, 64>}]} {
    %c0 = arith.constant 0 : index
    %c0_0 = arith.constant 0 : index
    %0 = vector.load %arg1[%c0, %c0_0] : memref<128x8xbf16, #tpu.memory_space<vmem>>, vector<128x8xbf16>
    %c0_1 = arith.constant 0 : index
    %c0_2 = arith.constant 0 : index
    %1 = vector.load %arg7[%c0_1, %c0_2] : memref<8x64xbf16, #tpu.memory_space<vmem>>, vector<8x64xbf16>
    %cst = arith.constant dense<0.000000e+00> : vector<128x64xf32>
    %2 = tpu.matmul %0, %1, %cst {dimension_numbers = #tpu.dot_dimension_numbers<[1], [0], [0], [1], [0, 0, 1, 1], [], []>} : vector<128x8xbf16>, vector<8x64xbf16>, vector<128x64xf32> -> vector<128x64xf32>
    %c0_3 = arith.constant 0 : index
    %c0_4 = arith.constant 0 : index
    %3 = vector.load %arg8[%c0_3, %c0_4] : memref<1x64xf32, #tpu.memory_space<vmem>>, vector<1x64xf32>
    %4 = vector.broadcast %3 : vector<1x64xf32> to vector<128x64xf32>
    %5 = arith.addf %2, %4 : vector<128x64xf32>
    %cst_5 = arith.constant 0.000000e+00 : f32
    %6 = vector.broadcast %cst_5 : f32 to vector<128x64xf32>
    %7 = arith.cmpf ogt, %5, %6 : vector<128x64xf32>
    %8 = math.exp %5 : vector<128x64xf32>
    %cst_6 = arith.constant 1.000000e+00 : f32
    %9 = vector.broadcast %cst_6 : f32 to vector<128x64xf32>
    %10 = arith.subf %8, %9 : vector<128x64xf32>
    %11 = arith.select %7, %5, %10 : vector<128x64xi1>, vector<128x64xf32>
    %12 = arith.truncf %11 : vector<128x64xf32> to vector<128x64xbf16>
    %13 = tpu.iota {dimensions = array<i32: 0>} : vector<128x1xi32>
    %14 = tpu.iota {dimensions = array<i32: 1>} : vector<1x128xi32>
    %c15_i32 = arith.constant 15 : i32
    %15 = vector.broadcast %c15_i32 : i32 to vector<128x1xi32>
    %16 = arith.andi %13, %15 : vector<128x1xi32>
    %c15_i32_7 = arith.constant 15 : i32
    %17 = vector.broadcast %c15_i32_7 : i32 to vector<1x128xi32>
    %18 = arith.andi %14, %17 : vector<1x128xi32>
    %19 = vector.broadcast %16 : vector<128x1xi32> to vector<128x128xi32>
    %20 = vector.broadcast %18 : vector<1x128xi32> to vector<128x128xi32>
    %21 = arith.cmpi eq, %19, %20 : vector<128x128xi32>
    %c0_8 = arith.constant 0 : index
    %c0_9 = arith.constant 0 : index
    %22 = vector.load %arg2[%c0_8, %c0_9] : memref<128x1xf32, #tpu.memory_space<vmem>>, vector<128x1xf32>
    %c0_10 = arith.constant 0 : index
    %c0_11 = arith.constant 0 : index
    %23 = vector.load %arg3[%c0_10, %c0_11] : memref<1x128xf32, #tpu.memory_space<vmem>>, vector<1x128xf32>
    %24 = vector.broadcast %22 : vector<128x1xf32> to vector<128x128xf32>
    %25 = vector.broadcast %23 : vector<1x128xf32> to vector<128x128xf32>
    %26 = arith.mulf %24, %25 : vector<128x128xf32>
    %cst_12 = arith.constant 1.000000e+00 : f32
    %27 = vector.broadcast %cst_12 : f32 to vector<128x128xf32>
    %28 = arith.subf %27, %26 : vector<128x128xf32>
    %cst_13 = arith.constant -1.000000e+09 : f32
    %29 = vector.broadcast %cst_13 : f32 to vector<128x128xf32>
    %30 = arith.mulf %28, %29 : vector<128x128xf32>
    %cst_14 = arith.constant -2.000000e+09 : f32
    %31 = vector.broadcast %cst_14 : f32 to vector<128x128xf32>
    %32 = arith.select %21, %30, %31 : vector<128x128xi1>, vector<128x128xf32>
    %c0_15 = arith.constant 0 : index
    %c0_16 = arith.constant 0 : index
    %c0_17 = arith.constant 0 : index
    %33 = vector.load %arg9[%c0_15, %c0_16, %c0_17] : memref<2x64x64xbf16, #tpu.memory_space<vmem>>, vector<1x64x64xbf16>
    %34 = vector.shape_cast %33 : vector<1x64x64xbf16> to vector<64x64xbf16>
    %cst_18 = arith.constant dense<0.000000e+00> : vector<128x64xf32>
    %35 = tpu.matmul %12, %34, %cst_18 {dimension_numbers = #tpu.dot_dimension_numbers<[1], [0], [0], [1], [0, 0, 1, 1], [], []>} : vector<128x64xbf16>, vector<64x64xbf16>, vector<128x64xf32> -> vector<128x64xf32>
    %c0_19 = arith.constant 0 : index
    %c0_20 = arith.constant 0 : index
    %c0_21 = arith.constant 0 : index
    %36 = vector.load %arg10[%c0_19, %c0_20, %c0_21] : memref<2x1x64xf32, #tpu.memory_space<vmem>>, vector<1x1x64xf32>
    %37 = vector.shape_cast %36 : vector<1x1x64xf32> to vector<1x64xf32>
    %38 = vector.broadcast %37 : vector<1x64xf32> to vector<128x64xf32>
    %39 = arith.addf %35, %38 : vector<128x64xf32>
    %c0_22 = arith.constant 0 : index
    %c0_23 = arith.constant 0 : index
    %c0_24 = arith.constant 0 : index
    %40 = vector.load %arg11[%c0_22, %c0_23, %c0_24] : memref<2x64x64xbf16, #tpu.memory_space<vmem>>, vector<1x64x64xbf16>
    %41 = vector.shape_cast %40 : vector<1x64x64xbf16> to vector<64x64xbf16>
    %cst_25 = arith.constant dense<0.000000e+00> : vector<128x64xf32>
    %42 = tpu.matmul %12, %41, %cst_25 {dimension_numbers = #tpu.dot_dimension_numbers<[1], [0], [0], [1], [0, 0, 1, 1], [], []>} : vector<128x64xbf16>, vector<64x64xbf16>, vector<128x64xf32> -> vector<128x64xf32>
    %c0_26 = arith.constant 0 : index
    %c0_27 = arith.constant 0 : index
    %c0_28 = arith.constant 0 : index
    %43 = vector.load %arg12[%c0_26, %c0_27, %c0_28] : memref<2x1x64xf32, #tpu.memory_space<vmem>>, vector<1x1x64xf32>
    %44 = vector.shape_cast %43 : vector<1x1x64xf32> to vector<1x64xf32>
    %45 = vector.broadcast %44 : vector<1x64xf32> to vector<128x64xf32>
    %46 = arith.addf %42, %45 : vector<128x64xf32>
    %c0_29 = arith.constant 0 : index
    %c0_30 = arith.constant 0 : index
    %c0_31 = arith.constant 0 : index
    %47 = vector.load %arg13[%c0_29, %c0_30, %c0_31] : memref<2x64x64xbf16, #tpu.memory_space<vmem>>, vector<1x64x64xbf16>
    %48 = vector.shape_cast %47 : vector<1x64x64xbf16> to vector<64x64xbf16>
    %cst_32 = arith.constant dense<0.000000e+00> : vector<128x64xf32>
    %49 = tpu.matmul %12, %48, %cst_32 {dimension_numbers = #tpu.dot_dimension_numbers<[1], [0], [0], [1], [0, 0, 1, 1], [], []>} : vector<128x64xbf16>, vector<64x64xbf16>, vector<128x64xf32> -> vector<128x64xf32>
    %c0_33 = arith.constant 0 : index
    %c0_34 = arith.constant 0 : index
    %c0_35 = arith.constant 0 : index
    %50 = vector.load %arg14[%c0_33, %c0_34, %c0_35] : memref<2x1x64xf32, #tpu.memory_space<vmem>>, vector<1x1x64xf32>
    %51 = vector.shape_cast %50 : vector<1x1x64xf32> to vector<1x64xf32>
    %52 = vector.broadcast %51 : vector<1x64xf32> to vector<128x64xf32>
    %53 = arith.addf %49, %52 : vector<128x64xf32>
    %54 = arith.truncf %39 : vector<128x64xf32> to vector<128x64xbf16>
    %55 = arith.truncf %46 : vector<128x64xf32> to vector<128x64xbf16>
    %cst_36 = arith.constant dense<0.000000e+00> : vector<128x128xf32>
    %56 = tpu.matmul %54, %55, %cst_36 {dimension_numbers = #tpu.dot_dimension_numbers<[1], [1], [0], [0], [0, 0, 1, 0], [], []>} : vector<128x64xbf16>, vector<128x64xbf16>, vector<128x128xf32> -> vector<128x128xf32>
    %57 = arith.addf %56, %32 : vector<128x128xf32>
    %cst_37 = arith.constant dense<0xFF800000> : vector<128xf32>
    %58 = vector.multi_reduction <maximumf>, %57, %cst_37 [1] : vector<128x128xf32> to vector<128xf32>
    %59 = vector.shape_cast %58 : vector<128xf32> to vector<128x1xf32>
    %60 = vector.broadcast %59 : vector<128x1xf32> to vector<128x128xf32>
    %61 = arith.subf %57, %60 : vector<128x128xf32>
    %62 = math.exp %61 : vector<128x128xf32>
    %cst_38 = arith.constant dense<0.000000e+00> : vector<128xf32>
    %63 = vector.multi_reduction <add>, %62, %cst_38 [1] : vector<128x128xf32> to vector<128xf32>
    %64 = vector.shape_cast %63 : vector<128xf32> to vector<128x1xf32>
    %65 = tpu.reciprocal %64 {approx = true} : vector<128x1xf32> -> vector<128x1xf32>
    %66 = vector.broadcast %65 : vector<128x1xf32> to vector<128x128xf32>
    %67 = arith.mulf %62, %66 : vector<128x128xf32>
    %68 = arith.truncf %67 : vector<128x128xf32> to vector<128x128xbf16>
    %69 = arith.truncf %53 : vector<128x64xf32> to vector<128x64xbf16>
    %cst_39 = arith.constant dense<0.000000e+00> : vector<128x64xf32>
    %70 = tpu.matmul %68, %69, %cst_39 {dimension_numbers = #tpu.dot_dimension_numbers<[1], [0], [0], [1], [0, 0, 1, 1], [], []>} : vector<128x128xbf16>, vector<128x64xbf16>, vector<128x64xf32> -> vector<128x64xf32>
    %71 = arith.truncf %70 : vector<128x64xf32> to vector<128x64xbf16>
    %c0_40 = arith.constant 0 : index
    %c0_41 = arith.constant 0 : index
    %c0_42 = arith.constant 0 : index
    %72 = vector.load %arg15[%c0_40, %c0_41, %c0_42] : memref<2x64x320xbf16, #tpu.memory_space<vmem>>, vector<1x64x320xbf16>
    %73 = vector.shape_cast %72 : vector<1x64x320xbf16> to vector<64x320xbf16>
    %cst_43 = arith.constant dense<0.000000e+00> : vector<128x320xf32>
    %74 = tpu.matmul %71, %73, %cst_43 {dimension_numbers = #tpu.dot_dimension_numbers<[1], [0], [0], [1], [0, 0, 1, 1], [], []>} : vector<128x64xbf16>, vector<64x320xbf16>, vector<128x320xf32> -> vector<128x320xf32>
    %c1 = arith.constant 1 : index
    %c0_44 = arith.constant 0 : index
    %c0_45 = arith.constant 0 : index
    %75 = vector.load %arg9[%c1, %c0_44, %c0_45] : memref<2x64x64xbf16, #tpu.memory_space<vmem>>, vector<1x64x64xbf16>
    %76 = vector.shape_cast %75 : vector<1x64x64xbf16> to vector<64x64xbf16>
    %cst_46 = arith.constant dense<0.000000e+00> : vector<128x64xf32>
    %77 = tpu.matmul %12, %76, %cst_46 {dimension_numbers = #tpu.dot_dimension_numbers<[1], [0], [0], [1], [0, 0, 1, 1], [], []>} : vector<128x64xbf16>, vector<64x64xbf16>, vector<128x64xf32> -> vector<128x64xf32>
    %c1_47 = arith.constant 1 : index
    %c0_48 = arith.constant 0 : index
    %c0_49 = arith.constant 0 : index
    %78 = vector.load %arg10[%c1_47, %c0_48, %c0_49] : memref<2x1x64xf32, #tpu.memory_space<vmem>>, vector<1x1x64xf32>
    %79 = vector.shape_cast %78 : vector<1x1x64xf32> to vector<1x64xf32>
    %80 = vector.broadcast %79 : vector<1x64xf32> to vector<128x64xf32>
    %81 = arith.addf %77, %80 : vector<128x64xf32>
    %c1_50 = arith.constant 1 : index
    %c0_51 = arith.constant 0 : index
    %c0_52 = arith.constant 0 : index
    %82 = vector.load %arg11[%c1_50, %c0_51, %c0_52] : memref<2x64x64xbf16, #tpu.memory_space<vmem>>, vector<1x64x64xbf16>
    %83 = vector.shape_cast %82 : vector<1x64x64xbf16> to vector<64x64xbf16>
    %cst_53 = arith.constant dense<0.000000e+00> : vector<128x64xf32>
    %84 = tpu.matmul %12, %83, %cst_53 {dimension_numbers = #tpu.dot_dimension_numbers<[1], [0], [0], [1], [0, 0, 1, 1], [], []>} : vector<128x64xbf16>, vector<64x64xbf16>, vector<128x64xf32> -> vector<128x64xf32>
    %c1_54 = arith.constant 1 : index
    %c0_55 = arith.constant 0 : index
    %c0_56 = arith.constant 0 : index
    %85 = vector.load %arg12[%c1_54, %c0_55, %c0_56] : memref<2x1x64xf32, #tpu.memory_space<vmem>>, vector<1x1x64xf32>
    %86 = vector.shape_cast %85 : vector<1x1x64xf32> to vector<1x64xf32>
    %87 = vector.broadcast %86 : vector<1x64xf32> to vector<128x64xf32>
    %88 = arith.addf %84, %87 : vector<128x64xf32>
    %c1_57 = arith.constant 1 : index
    %c0_58 = arith.constant 0 : index
    %c0_59 = arith.constant 0 : index
    %89 = vector.load %arg13[%c1_57, %c0_58, %c0_59] : memref<2x64x64xbf16, #tpu.memory_space<vmem>>, vector<1x64x64xbf16>
    %90 = vector.shape_cast %89 : vector<1x64x64xbf16> to vector<64x64xbf16>
    %cst_60 = arith.constant dense<0.000000e+00> : vector<128x64xf32>
    %91 = tpu.matmul %12, %90, %cst_60 {dimension_numbers = #tpu.dot_dimension_numbers<[1], [0], [0], [1], [0, 0, 1, 1], [], []>} : vector<128x64xbf16>, vector<64x64xbf16>, vector<128x64xf32> -> vector<128x64xf32>
    %c1_61 = arith.constant 1 : index
    %c0_62 = arith.constant 0 : index
    %c0_63 = arith.constant 0 : index
    %92 = vector.load %arg14[%c1_61, %c0_62, %c0_63] : memref<2x1x64xf32, #tpu.memory_space<vmem>>, vector<1x1x64xf32>
    %93 = vector.shape_cast %92 : vector<1x1x64xf32> to vector<1x64xf32>
    %94 = vector.broadcast %93 : vector<1x64xf32> to vector<128x64xf32>
    %95 = arith.addf %91, %94 : vector<128x64xf32>
    %96 = arith.truncf %81 : vector<128x64xf32> to vector<128x64xbf16>
    %97 = arith.truncf %88 : vector<128x64xf32> to vector<128x64xbf16>
    %cst_64 = arith.constant dense<0.000000e+00> : vector<128x128xf32>
    %98 = tpu.matmul %96, %97, %cst_64 {dimension_numbers = #tpu.dot_dimension_numbers<[1], [1], [0], [0], [0, 0, 1, 0], [], []>} : vector<128x64xbf16>, vector<128x64xbf16>, vector<128x128xf32> -> vector<128x128xf32>
    %99 = arith.addf %98, %32 : vector<128x128xf32>
    %cst_65 = arith.constant dense<0xFF800000> : vector<128xf32>
    %100 = vector.multi_reduction <maximumf>, %99, %cst_65 [1] : vector<128x128xf32> to vector<128xf32>
    %101 = vector.shape_cast %100 : vector<128xf32> to vector<128x1xf32>
    %102 = vector.broadcast %101 : vector<128x1xf32> to vector<128x128xf32>
    %103 = arith.subf %99, %102 : vector<128x128xf32>
    %104 = math.exp %103 : vector<128x128xf32>
    %cst_66 = arith.constant dense<0.000000e+00> : vector<128xf32>
    %105 = vector.multi_reduction <add>, %104, %cst_66 [1] : vector<128x128xf32> to vector<128xf32>
    %106 = vector.shape_cast %105 : vector<128xf32> to vector<128x1xf32>
    %107 = tpu.reciprocal %106 {approx = true} : vector<128x1xf32> -> vector<128x1xf32>
    %108 = vector.broadcast %107 : vector<128x1xf32> to vector<128x128xf32>
    %109 = arith.mulf %104, %108 : vector<128x128xf32>
    %110 = arith.truncf %109 : vector<128x128xf32> to vector<128x128xbf16>
    %111 = arith.truncf %95 : vector<128x64xf32> to vector<128x64xbf16>
    %cst_67 = arith.constant dense<0.000000e+00> : vector<128x64xf32>
    %112 = tpu.matmul %110, %111, %cst_67 {dimension_numbers = #tpu.dot_dimension_numbers<[1], [0], [0], [1], [0, 0, 1, 1], [], []>} : vector<128x128xbf16>, vector<128x64xbf16>, vector<128x64xf32> -> vector<128x64xf32>
    %113 = arith.truncf %112 : vector<128x64xf32> to vector<128x64xbf16>
    %c1_68 = arith.constant 1 : index
    %c0_69 = arith.constant 0 : index
    %c0_70 = arith.constant 0 : index
    %114 = vector.load %arg15[%c1_68, %c0_69, %c0_70] : memref<2x64x320xbf16, #tpu.memory_space<vmem>>, vector<1x64x320xbf16>
    %115 = vector.shape_cast %114 : vector<1x64x320xbf16> to vector<64x320xbf16>
    %cst_71 = arith.constant dense<0.000000e+00> : vector<128x320xf32>
    %116 = tpu.matmul %113, %115, %cst_71 {dimension_numbers = #tpu.dot_dimension_numbers<[1], [0], [0], [1], [0, 0, 1, 1], [], []>} : vector<128x64xbf16>, vector<64x320xbf16>, vector<128x320xf32> -> vector<128x320xf32>
    %117 = arith.addf %74, %116 : vector<128x320xf32>
    %c0_72 = arith.constant 0 : index
    %c0_73 = arith.constant 0 : index
    %118 = vector.load %arg16[%c0_72, %c0_73] : memref<1x320xf32, #tpu.memory_space<vmem>>, vector<1x320xf32>
    %119 = vector.broadcast %118 : vector<1x320xf32> to vector<128x320xf32>
    %120 = arith.addf %117, %119 : vector<128x320xf32>
    %121 = vector.extract_strided_slice %120 {offsets = [0, 0], sizes = [16, 320], strides = [1, 1]} : vector<128x320xf32> to vector<16x320xf32>
    %122 = vector.extract_strided_slice %120 {offsets = [16, 0], sizes = [16, 320], strides = [1, 1]} : vector<128x320xf32> to vector<16x320xf32>
    %123 = arith.maximumf %121, %122 : vector<16x320xf32>
    %124 = vector.extract_strided_slice %120 {offsets = [32, 0], sizes = [16, 320], strides = [1, 1]} : vector<128x320xf32> to vector<16x320xf32>
    %125 = arith.maximumf %123, %124 : vector<16x320xf32>
    %126 = vector.extract_strided_slice %120 {offsets = [48, 0], sizes = [16, 320], strides = [1, 1]} : vector<128x320xf32> to vector<16x320xf32>
    %127 = arith.maximumf %125, %126 : vector<16x320xf32>
    %128 = vector.extract_strided_slice %120 {offsets = [64, 0], sizes = [16, 320], strides = [1, 1]} : vector<128x320xf32> to vector<16x320xf32>
    %129 = arith.maximumf %127, %128 : vector<16x320xf32>
    %130 = vector.extract_strided_slice %120 {offsets = [80, 0], sizes = [16, 320], strides = [1, 1]} : vector<128x320xf32> to vector<16x320xf32>
    %131 = arith.maximumf %129, %130 : vector<16x320xf32>
    %132 = vector.extract_strided_slice %120 {offsets = [96, 0], sizes = [16, 320], strides = [1, 1]} : vector<128x320xf32> to vector<16x320xf32>
    %133 = arith.maximumf %131, %132 : vector<16x320xf32>
    %134 = vector.extract_strided_slice %120 {offsets = [112, 0], sizes = [16, 320], strides = [1, 1]} : vector<128x320xf32> to vector<16x320xf32>
    %135 = arith.maximumf %133, %134 : vector<16x320xf32>
    %136 = vector.extract_strided_slice %0 {offsets = [0, 0], sizes = [16, 8], strides = [1, 1]} : vector<128x8xbf16> to vector<16x8xbf16>
    %c0_74 = arith.constant 0 : index
    %c0_75 = arith.constant 0 : index
    %137 = vector.load %arg17[%c0_74, %c0_75] : memref<8x64xbf16, #tpu.memory_space<vmem>>, vector<8x64xbf16>
    %cst_76 = arith.constant dense<0.000000e+00> : vector<16x64xf32>
    %138 = tpu.matmul %136, %137, %cst_76 {dimension_numbers = #tpu.dot_dimension_numbers<[1], [0], [0], [1], [0, 0, 1, 1], [], []>} : vector<16x8xbf16>, vector<8x64xbf16>, vector<16x64xf32> -> vector<16x64xf32>
    %139 = arith.truncf %135 : vector<16x320xf32> to vector<16x320xbf16>
    %c0_77 = arith.constant 0 : index
    %c0_78 = arith.constant 0 : index
    %140 = vector.load %arg18[%c0_77, %c0_78] : memref<384x64xbf16, #tpu.memory_space<vmem>>, vector<320x64xbf16>
    %cst_79 = arith.constant dense<0.000000e+00> : vector<16x64xf32>
    %141 = tpu.matmul %139, %140, %cst_79 {dimension_numbers = #tpu.dot_dimension_numbers<[1], [0], [0], [1], [0, 0, 1, 1], [], []>} : vector<16x320xbf16>, vector<320x64xbf16>, vector<16x64xf32> -> vector<16x64xf32>
    %142 = arith.truncf %138 : vector<16x64xf32> to vector<16x64xbf16>
    %c320 = arith.constant 320 : index
    %c0_80 = arith.constant 0 : index
    %143 = vector.load %arg18[%c320, %c0_80] : memref<384x64xbf16, #tpu.memory_space<vmem>>, vector<64x64xbf16>
    %cst_81 = arith.constant dense<0.000000e+00> : vector<16x64xf32>
    %144 = tpu.matmul %142, %143, %cst_81 {dimension_numbers = #tpu.dot_dimension_numbers<[1], [0], [0], [1], [0, 0, 1, 1], [], []>} : vector<16x64xbf16>, vector<64x64xbf16>, vector<16x64xf32> -> vector<16x64xf32>
    %145 = arith.addf %141, %144 : vector<16x64xf32>
    %c0_82 = arith.constant 0 : index
    %c0_83 = arith.constant 0 : index
    %146 = vector.load %arg19[%c0_82, %c0_83] : memref<1x64xf32, #tpu.memory_space<vmem>>, vector<1x64xf32>
    %147 = vector.broadcast %146 : vector<1x64xf32> to vector<16x64xf32>
    %148 = arith.addf %145, %147 : vector<16x64xf32>
    %cst_84 = arith.constant 0.000000e+00 : f32
    %149 = vector.broadcast %cst_84 : f32 to vector<16x64xf32>
    %150 = arith.cmpf ogt, %148, %149 : vector<16x64xf32>
    %151 = math.exp %148 : vector<16x64xf32>
    %cst_85 = arith.constant 1.000000e+00 : f32
    %152 = vector.broadcast %cst_85 : f32 to vector<16x64xf32>
    %153 = arith.subf %151, %152 : vector<16x64xf32>
    %154 = arith.select %150, %148, %153 : vector<16x64xi1>, vector<16x64xf32>
    %c0_86 = arith.constant 0 : index
    %c0_87 = arith.constant 0 : index
    %155 = vector.load %arg4[%c0_86, %c0_87] : memref<16x1xf32, #tpu.memory_space<vmem>>, vector<16x1xf32>
    %156 = vector.broadcast %155 : vector<16x1xf32> to vector<16x64xf32>
    %157 = arith.mulf %154, %156 : vector<16x64xf32>
    %c0_88 = arith.constant 0 : index
    %c0_89 = arith.constant 0 : index
    %158 = vector.load %arg6[%c0_88, %c0_89] : memref<16x64xf32, #tpu.memory_space<vmem>>, vector<16x64xf32>
    %159 = arith.addf %157, %158 : vector<16x64xf32>
    %160 = arith.truncf %157 : vector<16x64xf32> to vector<16x64xbf16>
    %161 = arith.truncf %159 : vector<16x64xf32> to vector<16x64xbf16>
    %162 = tpu.iota {dimensions = array<i32: 0>} : vector<16x1xi32>
    %163 = tpu.iota {dimensions = array<i32: 1>} : vector<1x16xi32>
    %c0_i32 = arith.constant 0 : i32
    %164 = vector.broadcast %c0_i32 : i32 to vector<16x1xi32>
    %c6_i32 = arith.constant 6 : i32
    %165 = vector.broadcast %c6_i32 : i32 to vector<16x1xi32>
    %166 = arith.cmpi sge, %162, %165 : vector<16x1xi32>
    %167 = arith.extui %166 : vector<16x1xi1> to vector<16x1xi32>
    %168 = arith.addi %164, %167 : vector<16x1xi32>
    %c12_i32 = arith.constant 12 : i32
    %169 = vector.broadcast %c12_i32 : i32 to vector<16x1xi32>
    %170 = arith.cmpi sge, %162, %169 : vector<16x1xi32>
    %171 = arith.extui %170 : vector<16x1xi1> to vector<16x1xi32>
    %c2_i32 = arith.constant 2 : i32
    %172 = vector.broadcast %c2_i32 : i32 to vector<16x1xi32>
    %173 = arith.muli %172, %171 : vector<16x1xi32>
    %174 = arith.addi %168, %173 : vector<16x1xi32>
    %c0_i32_90 = arith.constant 0 : i32
    %175 = vector.broadcast %c0_i32_90 : i32 to vector<1x16xi32>
    %c6_i32_91 = arith.constant 6 : i32
    %176 = vector.broadcast %c6_i32_91 : i32 to vector<1x16xi32>
    %177 = arith.cmpi sge, %163, %176 : vector<1x16xi32>
    %178 = arith.extui %177 : vector<1x16xi1> to vector<1x16xi32>
    %179 = arith.addi %175, %178 : vector<1x16xi32>
    %c12_i32_92 = arith.constant 12 : i32
    %180 = vector.broadcast %c12_i32_92 : i32 to vector<1x16xi32>
    %181 = arith.cmpi sge, %163, %180 : vector<1x16xi32>
    %182 = arith.extui %181 : vector<1x16xi1> to vector<1x16xi32>
    %c2_i32_93 = arith.constant 2 : i32
    %183 = vector.broadcast %c2_i32_93 : i32 to vector<1x16xi32>
    %184 = arith.muli %183, %182 : vector<1x16xi32>
    %185 = arith.addi %179, %184 : vector<1x16xi32>
    %186 = vector.broadcast %174 : vector<16x1xi32> to vector<16x16xi32>
    %187 = vector.broadcast %185 : vector<1x16xi32> to vector<16x16xi32>
    %188 = arith.cmpi eq, %186, %187 : vector<16x16xi32>
    %c0_94 = arith.constant 0 : index
    %c0_95 = arith.constant 0 : index
    %189 = vector.load %arg5[%c0_94, %c0_95] : memref<1x16xf32, #tpu.memory_space<vmem>>, vector<1x16xf32>
    %190 = vector.broadcast %155 : vector<16x1xf32> to vector<16x16xf32>
    %191 = vector.broadcast %189 : vector<1x16xf32> to vector<16x16xf32>
    %192 = arith.mulf %190, %191 : vector<16x16xf32>
    %cst_96 = arith.constant 1.000000e+00 : f32
    %193 = vector.broadcast %cst_96 : f32 to vector<16x16xf32>
    %194 = arith.subf %193, %192 : vector<16x16xf32>
    %cst_97 = arith.constant -1.000000e+09 : f32
    %195 = vector.broadcast %cst_97 : f32 to vector<16x16xf32>
    %196 = arith.mulf %194, %195 : vector<16x16xf32>
    %cst_98 = arith.constant -2.000000e+09 : f32
    %197 = vector.broadcast %cst_98 : f32 to vector<16x16xf32>
    %198 = arith.select %188, %196, %197 : vector<16x16xi1>, vector<16x16xf32>
    %c0_99 = arith.constant 0 : index
    %c0_100 = arith.constant 0 : index
    %c0_101 = arith.constant 0 : index
    %199 = vector.load %arg20[%c0_99, %c0_100, %c0_101] : memref<4x64x16xbf16, #tpu.memory_space<vmem>>, vector<1x64x16xbf16>
    %200 = vector.shape_cast %199 : vector<1x64x16xbf16> to vector<64x16xbf16>
    %cst_102 = arith.constant dense<0.000000e+00> : vector<16x16xf32>
    %201 = tpu.matmul %161, %200, %cst_102 {dimension_numbers = #tpu.dot_dimension_numbers<[1], [0], [0], [1], [0, 0, 1, 1], [], []>} : vector<16x64xbf16>, vector<64x16xbf16>, vector<16x16xf32> -> vector<16x16xf32>
    %c0_103 = arith.constant 0 : index
    %c0_104 = arith.constant 0 : index
    %c0_105 = arith.constant 0 : index
    %202 = vector.load %arg21[%c0_103, %c0_104, %c0_105] : memref<4x1x16xf32, #tpu.memory_space<vmem>>, vector<1x1x16xf32>
    %203 = vector.shape_cast %202 : vector<1x1x16xf32> to vector<1x16xf32>
    %204 = vector.broadcast %203 : vector<1x16xf32> to vector<16x16xf32>
    %205 = arith.addf %201, %204 : vector<16x16xf32>
    %c0_106 = arith.constant 0 : index
    %c0_107 = arith.constant 0 : index
    %c0_108 = arith.constant 0 : index
    %206 = vector.load %arg22[%c0_106, %c0_107, %c0_108] : memref<4x64x16xbf16, #tpu.memory_space<vmem>>, vector<1x64x16xbf16>
    %207 = vector.shape_cast %206 : vector<1x64x16xbf16> to vector<64x16xbf16>
    %cst_109 = arith.constant dense<0.000000e+00> : vector<16x16xf32>
    %208 = tpu.matmul %160, %207, %cst_109 {dimension_numbers = #tpu.dot_dimension_numbers<[1], [0], [0], [1], [0, 0, 1, 1], [], []>} : vector<16x64xbf16>, vector<64x16xbf16>, vector<16x16xf32> -> vector<16x16xf32>
    %c0_110 = arith.constant 0 : index
    %c0_111 = arith.constant 0 : index
    %c0_112 = arith.constant 0 : index
    %209 = vector.load %arg23[%c0_110, %c0_111, %c0_112] : memref<4x1x16xf32, #tpu.memory_space<vmem>>, vector<1x1x16xf32>
    %210 = vector.shape_cast %209 : vector<1x1x16xf32> to vector<1x16xf32>
    %211 = vector.broadcast %210 : vector<1x16xf32> to vector<16x16xf32>
    %212 = arith.addf %208, %211 : vector<16x16xf32>
    %c0_113 = arith.constant 0 : index
    %c0_114 = arith.constant 0 : index
    %c0_115 = arith.constant 0 : index
    %213 = vector.load %arg24[%c0_113, %c0_114, %c0_115] : memref<4x64x16xbf16, #tpu.memory_space<vmem>>, vector<1x64x16xbf16>
    %214 = vector.shape_cast %213 : vector<1x64x16xbf16> to vector<64x16xbf16>
    %cst_116 = arith.constant dense<0.000000e+00> : vector<16x16xf32>
    %215 = tpu.matmul %160, %214, %cst_116 {dimension_numbers = #tpu.dot_dimension_numbers<[1], [0], [0], [1], [0, 0, 1, 1], [], []>} : vector<16x64xbf16>, vector<64x16xbf16>, vector<16x16xf32> -> vector<16x16xf32>
    %c0_117 = arith.constant 0 : index
    %c0_118 = arith.constant 0 : index
    %c0_119 = arith.constant 0 : index
    %216 = vector.load %arg25[%c0_117, %c0_118, %c0_119] : memref<4x1x16xf32, #tpu.memory_space<vmem>>, vector<1x1x16xf32>
    %217 = vector.shape_cast %216 : vector<1x1x16xf32> to vector<1x16xf32>
    %218 = vector.broadcast %217 : vector<1x16xf32> to vector<16x16xf32>
    %219 = arith.addf %215, %218 : vector<16x16xf32>
    %220 = arith.truncf %205 : vector<16x16xf32> to vector<16x16xbf16>
    %221 = arith.truncf %212 : vector<16x16xf32> to vector<16x16xbf16>
    %cst_120 = arith.constant dense<0.000000e+00> : vector<16x16xf32>
    %222 = tpu.matmul %220, %221, %cst_120 {dimension_numbers = #tpu.dot_dimension_numbers<[1], [1], [0], [0], [0, 0, 1, 0], [], []>} : vector<16x16xbf16>, vector<16x16xbf16>, vector<16x16xf32> -> vector<16x16xf32>
    %223 = arith.addf %222, %198 : vector<16x16xf32>
    %cst_121 = arith.constant dense<0xFF800000> : vector<16xf32>
    %224 = vector.multi_reduction <maximumf>, %223, %cst_121 [1] : vector<16x16xf32> to vector<16xf32>
    %225 = vector.shape_cast %224 : vector<16xf32> to vector<16x1xf32>
    %226 = vector.broadcast %225 : vector<16x1xf32> to vector<16x16xf32>
    %227 = arith.subf %223, %226 : vector<16x16xf32>
    %228 = math.exp %227 : vector<16x16xf32>
    %cst_122 = arith.constant dense<0.000000e+00> : vector<16xf32>
    %229 = vector.multi_reduction <add>, %228, %cst_122 [1] : vector<16x16xf32> to vector<16xf32>
    %230 = vector.shape_cast %229 : vector<16xf32> to vector<16x1xf32>
    %231 = tpu.reciprocal %230 {approx = true} : vector<16x1xf32> -> vector<16x1xf32>
    %232 = vector.broadcast %231 : vector<16x1xf32> to vector<16x16xf32>
    %233 = arith.mulf %228, %232 : vector<16x16xf32>
    %234 = arith.truncf %233 : vector<16x16xf32> to vector<16x16xbf16>
    %235 = arith.truncf %219 : vector<16x16xf32> to vector<16x16xbf16>
    %cst_123 = arith.constant dense<0.000000e+00> : vector<16x16xf32>
    %236 = tpu.matmul %234, %235, %cst_123 {dimension_numbers = #tpu.dot_dimension_numbers<[1], [0], [0], [1], [0, 0, 1, 1], [], []>} : vector<16x16xbf16>, vector<16x16xbf16>, vector<16x16xf32> -> vector<16x16xf32>
    %237 = arith.truncf %236 : vector<16x16xf32> to vector<16x16xbf16>
    %c0_124 = arith.constant 0 : index
    %c0_125 = arith.constant 0 : index
    %c0_126 = arith.constant 0 : index
    %238 = vector.load %arg26[%c0_124, %c0_125, %c0_126] : memref<4x16x64xbf16, #tpu.memory_space<vmem>>, vector<1x16x64xbf16>
    %239 = vector.shape_cast %238 : vector<1x16x64xbf16> to vector<16x64xbf16>
    %cst_127 = arith.constant dense<0.000000e+00> : vector<16x64xf32>
    %240 = tpu.matmul %237, %239, %cst_127 {dimension_numbers = #tpu.dot_dimension_numbers<[1], [0], [0], [1], [0, 0, 1, 1], [], []>} : vector<16x16xbf16>, vector<16x64xbf16>, vector<16x64xf32> -> vector<16x64xf32>
    %c1_128 = arith.constant 1 : index
    %c0_129 = arith.constant 0 : index
    %c0_130 = arith.constant 0 : index
    %241 = vector.load %arg20[%c1_128, %c0_129, %c0_130] : memref<4x64x16xbf16, #tpu.memory_space<vmem>>, vector<1x64x16xbf16>
    %242 = vector.shape_cast %241 : vector<1x64x16xbf16> to vector<64x16xbf16>
    %cst_131 = arith.constant dense<0.000000e+00> : vector<16x16xf32>
    %243 = tpu.matmul %161, %242, %cst_131 {dimension_numbers = #tpu.dot_dimension_numbers<[1], [0], [0], [1], [0, 0, 1, 1], [], []>} : vector<16x64xbf16>, vector<64x16xbf16>, vector<16x16xf32> -> vector<16x16xf32>
    %c1_132 = arith.constant 1 : index
    %c0_133 = arith.constant 0 : index
    %c0_134 = arith.constant 0 : index
    %244 = vector.load %arg21[%c1_132, %c0_133, %c0_134] : memref<4x1x16xf32, #tpu.memory_space<vmem>>, vector<1x1x16xf32>
    %245 = vector.shape_cast %244 : vector<1x1x16xf32> to vector<1x16xf32>
    %246 = vector.broadcast %245 : vector<1x16xf32> to vector<16x16xf32>
    %247 = arith.addf %243, %246 : vector<16x16xf32>
    %c1_135 = arith.constant 1 : index
    %c0_136 = arith.constant 0 : index
    %c0_137 = arith.constant 0 : index
    %248 = vector.load %arg22[%c1_135, %c0_136, %c0_137] : memref<4x64x16xbf16, #tpu.memory_space<vmem>>, vector<1x64x16xbf16>
    %249 = vector.shape_cast %248 : vector<1x64x16xbf16> to vector<64x16xbf16>
    %cst_138 = arith.constant dense<0.000000e+00> : vector<16x16xf32>
    %250 = tpu.matmul %160, %249, %cst_138 {dimension_numbers = #tpu.dot_dimension_numbers<[1], [0], [0], [1], [0, 0, 1, 1], [], []>} : vector<16x64xbf16>, vector<64x16xbf16>, vector<16x16xf32> -> vector<16x16xf32>
    %c1_139 = arith.constant 1 : index
    %c0_140 = arith.constant 0 : index
    %c0_141 = arith.constant 0 : index
    %251 = vector.load %arg23[%c1_139, %c0_140, %c0_141] : memref<4x1x16xf32, #tpu.memory_space<vmem>>, vector<1x1x16xf32>
    %252 = vector.shape_cast %251 : vector<1x1x16xf32> to vector<1x16xf32>
    %253 = vector.broadcast %252 : vector<1x16xf32> to vector<16x16xf32>
    %254 = arith.addf %250, %253 : vector<16x16xf32>
    %c1_142 = arith.constant 1 : index
    %c0_143 = arith.constant 0 : index
    %c0_144 = arith.constant 0 : index
    %255 = vector.load %arg24[%c1_142, %c0_143, %c0_144] : memref<4x64x16xbf16, #tpu.memory_space<vmem>>, vector<1x64x16xbf16>
    %256 = vector.shape_cast %255 : vector<1x64x16xbf16> to vector<64x16xbf16>
    %cst_145 = arith.constant dense<0.000000e+00> : vector<16x16xf32>
    %257 = tpu.matmul %160, %256, %cst_145 {dimension_numbers = #tpu.dot_dimension_numbers<[1], [0], [0], [1], [0, 0, 1, 1], [], []>} : vector<16x64xbf16>, vector<64x16xbf16>, vector<16x16xf32> -> vector<16x16xf32>
    %c1_146 = arith.constant 1 : index
    %c0_147 = arith.constant 0 : index
    %c0_148 = arith.constant 0 : index
    %258 = vector.load %arg25[%c1_146, %c0_147, %c0_148] : memref<4x1x16xf32, #tpu.memory_space<vmem>>, vector<1x1x16xf32>
    %259 = vector.shape_cast %258 : vector<1x1x16xf32> to vector<1x16xf32>
    %260 = vector.broadcast %259 : vector<1x16xf32> to vector<16x16xf32>
    %261 = arith.addf %257, %260 : vector<16x16xf32>
    %262 = arith.truncf %247 : vector<16x16xf32> to vector<16x16xbf16>
    %263 = arith.truncf %254 : vector<16x16xf32> to vector<16x16xbf16>
    %cst_149 = arith.constant dense<0.000000e+00> : vector<16x16xf32>
    %264 = tpu.matmul %262, %263, %cst_149 {dimension_numbers = #tpu.dot_dimension_numbers<[1], [1], [0], [0], [0, 0, 1, 0], [], []>} : vector<16x16xbf16>, vector<16x16xbf16>, vector<16x16xf32> -> vector<16x16xf32>
    %265 = arith.addf %264, %198 : vector<16x16xf32>
    %cst_150 = arith.constant dense<0xFF800000> : vector<16xf32>
    %266 = vector.multi_reduction <maximumf>, %265, %cst_150 [1] : vector<16x16xf32> to vector<16xf32>
    %267 = vector.shape_cast %266 : vector<16xf32> to vector<16x1xf32>
    %268 = vector.broadcast %267 : vector<16x1xf32> to vector<16x16xf32>
    %269 = arith.subf %265, %268 : vector<16x16xf32>
    %270 = math.exp %269 : vector<16x16xf32>
    %cst_151 = arith.constant dense<0.000000e+00> : vector<16xf32>
    %271 = vector.multi_reduction <add>, %270, %cst_151 [1] : vector<16x16xf32> to vector<16xf32>
    %272 = vector.shape_cast %271 : vector<16xf32> to vector<16x1xf32>
    %273 = tpu.reciprocal %272 {approx = true} : vector<16x1xf32> -> vector<16x1xf32>
    %274 = vector.broadcast %273 : vector<16x1xf32> to vector<16x16xf32>
    %275 = arith.mulf %270, %274 : vector<16x16xf32>
    %276 = arith.truncf %275 : vector<16x16xf32> to vector<16x16xbf16>
    %277 = arith.truncf %261 : vector<16x16xf32> to vector<16x16xbf16>
    %cst_152 = arith.constant dense<0.000000e+00> : vector<16x16xf32>
    %278 = tpu.matmul %276, %277, %cst_152 {dimension_numbers = #tpu.dot_dimension_numbers<[1], [0], [0], [1], [0, 0, 1, 1], [], []>} : vector<16x16xbf16>, vector<16x16xbf16>, vector<16x16xf32> -> vector<16x16xf32>
    %279 = arith.truncf %278 : vector<16x16xf32> to vector<16x16xbf16>
    %c1_153 = arith.constant 1 : index
    %c0_154 = arith.constant 0 : index
    %c0_155 = arith.constant 0 : index
    %280 = vector.load %arg26[%c1_153, %c0_154, %c0_155] : memref<4x16x64xbf16, #tpu.memory_space<vmem>>, vector<1x16x64xbf16>
    %281 = vector.shape_cast %280 : vector<1x16x64xbf16> to vector<16x64xbf16>
    %cst_156 = arith.constant dense<0.000000e+00> : vector<16x64xf32>
    %282 = tpu.matmul %279, %281, %cst_156 {dimension_numbers = #tpu.dot_dimension_numbers<[1], [0], [0], [1], [0, 0, 1, 1], [], []>} : vector<16x16xbf16>, vector<16x64xbf16>, vector<16x64xf32> -> vector<16x64xf32>
    %283 = arith.addf %240, %282 : vector<16x64xf32>
    %c2 = arith.constant 2 : index
    %c0_157 = arith.constant 0 : index
    %c0_158 = arith.constant 0 : index
    %284 = vector.load %arg20[%c2, %c0_157, %c0_158] : memref<4x64x16xbf16, #tpu.memory_space<vmem>>, vector<1x64x16xbf16>
    %285 = vector.shape_cast %284 : vector<1x64x16xbf16> to vector<64x16xbf16>
    %cst_159 = arith.constant dense<0.000000e+00> : vector<16x16xf32>
    %286 = tpu.matmul %161, %285, %cst_159 {dimension_numbers = #tpu.dot_dimension_numbers<[1], [0], [0], [1], [0, 0, 1, 1], [], []>} : vector<16x64xbf16>, vector<64x16xbf16>, vector<16x16xf32> -> vector<16x16xf32>
    %c2_160 = arith.constant 2 : index
    %c0_161 = arith.constant 0 : index
    %c0_162 = arith.constant 0 : index
    %287 = vector.load %arg21[%c2_160, %c0_161, %c0_162] : memref<4x1x16xf32, #tpu.memory_space<vmem>>, vector<1x1x16xf32>
    %288 = vector.shape_cast %287 : vector<1x1x16xf32> to vector<1x16xf32>
    %289 = vector.broadcast %288 : vector<1x16xf32> to vector<16x16xf32>
    %290 = arith.addf %286, %289 : vector<16x16xf32>
    %c2_163 = arith.constant 2 : index
    %c0_164 = arith.constant 0 : index
    %c0_165 = arith.constant 0 : index
    %291 = vector.load %arg22[%c2_163, %c0_164, %c0_165] : memref<4x64x16xbf16, #tpu.memory_space<vmem>>, vector<1x64x16xbf16>
    %292 = vector.shape_cast %291 : vector<1x64x16xbf16> to vector<64x16xbf16>
    %cst_166 = arith.constant dense<0.000000e+00> : vector<16x16xf32>
    %293 = tpu.matmul %160, %292, %cst_166 {dimension_numbers = #tpu.dot_dimension_numbers<[1], [0], [0], [1], [0, 0, 1, 1], [], []>} : vector<16x64xbf16>, vector<64x16xbf16>, vector<16x16xf32> -> vector<16x16xf32>
    %c2_167 = arith.constant 2 : index
    %c0_168 = arith.constant 0 : index
    %c0_169 = arith.constant 0 : index
    %294 = vector.load %arg23[%c2_167, %c0_168, %c0_169] : memref<4x1x16xf32, #tpu.memory_space<vmem>>, vector<1x1x16xf32>
    %295 = vector.shape_cast %294 : vector<1x1x16xf32> to vector<1x16xf32>
    %296 = vector.broadcast %295 : vector<1x16xf32> to vector<16x16xf32>
    %297 = arith.addf %293, %296 : vector<16x16xf32>
    %c2_170 = arith.constant 2 : index
    %c0_171 = arith.constant 0 : index
    %c0_172 = arith.constant 0 : index
    %298 = vector.load %arg24[%c2_170, %c0_171, %c0_172] : memref<4x64x16xbf16, #tpu.memory_space<vmem>>, vector<1x64x16xbf16>
    %299 = vector.shape_cast %298 : vector<1x64x16xbf16> to vector<64x16xbf16>
    %cst_173 = arith.constant dense<0.000000e+00> : vector<16x16xf32>
    %300 = tpu.matmul %160, %299, %cst_173 {dimension_numbers = #tpu.dot_dimension_numbers<[1], [0], [0], [1], [0, 0, 1, 1], [], []>} : vector<16x64xbf16>, vector<64x16xbf16>, vector<16x16xf32> -> vector<16x16xf32>
    %c2_174 = arith.constant 2 : index
    %c0_175 = arith.constant 0 : index
    %c0_176 = arith.constant 0 : index
    %301 = vector.load %arg25[%c2_174, %c0_175, %c0_176] : memref<4x1x16xf32, #tpu.memory_space<vmem>>, vector<1x1x16xf32>
    %302 = vector.shape_cast %301 : vector<1x1x16xf32> to vector<1x16xf32>
    %303 = vector.broadcast %302 : vector<1x16xf32> to vector<16x16xf32>
    %304 = arith.addf %300, %303 : vector<16x16xf32>
    %305 = arith.truncf %290 : vector<16x16xf32> to vector<16x16xbf16>
    %306 = arith.truncf %297 : vector<16x16xf32> to vector<16x16xbf16>
    %cst_177 = arith.constant dense<0.000000e+00> : vector<16x16xf32>
    %307 = tpu.matmul %305, %306, %cst_177 {dimension_numbers = #tpu.dot_dimension_numbers<[1], [1], [0], [0], [0, 0, 1, 0], [], []>} : vector<16x16xbf16>, vector<16x16xbf16>, vector<16x16xf32> -> vector<16x16xf32>
    %308 = arith.addf %307, %198 : vector<16x16xf32>
    %cst_178 = arith.constant dense<0xFF800000> : vector<16xf32>
    %309 = vector.multi_reduction <maximumf>, %308, %cst_178 [1] : vector<16x16xf32> to vector<16xf32>
    %310 = vector.shape_cast %309 : vector<16xf32> to vector<16x1xf32>
    %311 = vector.broadcast %310 : vector<16x1xf32> to vector<16x16xf32>
    %312 = arith.subf %308, %311 : vector<16x16xf32>
    %313 = math.exp %312 : vector<16x16xf32>
    %cst_179 = arith.constant dense<0.000000e+00> : vector<16xf32>
    %314 = vector.multi_reduction <add>, %313, %cst_179 [1] : vector<16x16xf32> to vector<16xf32>
    %315 = vector.shape_cast %314 : vector<16xf32> to vector<16x1xf32>
    %316 = tpu.reciprocal %315 {approx = true} : vector<16x1xf32> -> vector<16x1xf32>
    %317 = vector.broadcast %316 : vector<16x1xf32> to vector<16x16xf32>
    %318 = arith.mulf %313, %317 : vector<16x16xf32>
    %319 = arith.truncf %318 : vector<16x16xf32> to vector<16x16xbf16>
    %320 = arith.truncf %304 : vector<16x16xf32> to vector<16x16xbf16>
    %cst_180 = arith.constant dense<0.000000e+00> : vector<16x16xf32>
    %321 = tpu.matmul %319, %320, %cst_180 {dimension_numbers = #tpu.dot_dimension_numbers<[1], [0], [0], [1], [0, 0, 1, 1], [], []>} : vector<16x16xbf16>, vector<16x16xbf16>, vector<16x16xf32> -> vector<16x16xf32>
    %322 = arith.truncf %321 : vector<16x16xf32> to vector<16x16xbf16>
    %c2_181 = arith.constant 2 : index
    %c0_182 = arith.constant 0 : index
    %c0_183 = arith.constant 0 : index
    %323 = vector.load %arg26[%c2_181, %c0_182, %c0_183] : memref<4x16x64xbf16, #tpu.memory_space<vmem>>, vector<1x16x64xbf16>
    %324 = vector.shape_cast %323 : vector<1x16x64xbf16> to vector<16x64xbf16>
    %cst_184 = arith.constant dense<0.000000e+00> : vector<16x64xf32>
    %325 = tpu.matmul %322, %324, %cst_184 {dimension_numbers = #tpu.dot_dimension_numbers<[1], [0], [0], [1], [0, 0, 1, 1], [], []>} : vector<16x16xbf16>, vector<16x64xbf16>, vector<16x64xf32> -> vector<16x64xf32>
    %326 = arith.addf %283, %325 : vector<16x64xf32>
    %c3 = arith.constant 3 : index
    %c0_185 = arith.constant 0 : index
    %c0_186 = arith.constant 0 : index
    %327 = vector.load %arg20[%c3, %c0_185, %c0_186] : memref<4x64x16xbf16, #tpu.memory_space<vmem>>, vector<1x64x16xbf16>
    %328 = vector.shape_cast %327 : vector<1x64x16xbf16> to vector<64x16xbf16>
    %cst_187 = arith.constant dense<0.000000e+00> : vector<16x16xf32>
    %329 = tpu.matmul %161, %328, %cst_187 {dimension_numbers = #tpu.dot_dimension_numbers<[1], [0], [0], [1], [0, 0, 1, 1], [], []>} : vector<16x64xbf16>, vector<64x16xbf16>, vector<16x16xf32> -> vector<16x16xf32>
    %c3_188 = arith.constant 3 : index
    %c0_189 = arith.constant 0 : index
    %c0_190 = arith.constant 0 : index
    %330 = vector.load %arg21[%c3_188, %c0_189, %c0_190] : memref<4x1x16xf32, #tpu.memory_space<vmem>>, vector<1x1x16xf32>
    %331 = vector.shape_cast %330 : vector<1x1x16xf32> to vector<1x16xf32>
    %332 = vector.broadcast %331 : vector<1x16xf32> to vector<16x16xf32>
    %333 = arith.addf %329, %332 : vector<16x16xf32>
    %c3_191 = arith.constant 3 : index
    %c0_192 = arith.constant 0 : index
    %c0_193 = arith.constant 0 : index
    %334 = vector.load %arg22[%c3_191, %c0_192, %c0_193] : memref<4x64x16xbf16, #tpu.memory_space<vmem>>, vector<1x64x16xbf16>
    %335 = vector.shape_cast %334 : vector<1x64x16xbf16> to vector<64x16xbf16>
    %cst_194 = arith.constant dense<0.000000e+00> : vector<16x16xf32>
    %336 = tpu.matmul %160, %335, %cst_194 {dimension_numbers = #tpu.dot_dimension_numbers<[1], [0], [0], [1], [0, 0, 1, 1], [], []>} : vector<16x64xbf16>, vector<64x16xbf16>, vector<16x16xf32> -> vector<16x16xf32>
    %c3_195 = arith.constant 3 : index
    %c0_196 = arith.constant 0 : index
    %c0_197 = arith.constant 0 : index
    %337 = vector.load %arg23[%c3_195, %c0_196, %c0_197] : memref<4x1x16xf32, #tpu.memory_space<vmem>>, vector<1x1x16xf32>
    %338 = vector.shape_cast %337 : vector<1x1x16xf32> to vector<1x16xf32>
    %339 = vector.broadcast %338 : vector<1x16xf32> to vector<16x16xf32>
    %340 = arith.addf %336, %339 : vector<16x16xf32>
    %c3_198 = arith.constant 3 : index
    %c0_199 = arith.constant 0 : index
    %c0_200 = arith.constant 0 : index
    %341 = vector.load %arg24[%c3_198, %c0_199, %c0_200] : memref<4x64x16xbf16, #tpu.memory_space<vmem>>, vector<1x64x16xbf16>
    %342 = vector.shape_cast %341 : vector<1x64x16xbf16> to vector<64x16xbf16>
    %cst_201 = arith.constant dense<0.000000e+00> : vector<16x16xf32>
    %343 = tpu.matmul %160, %342, %cst_201 {dimension_numbers = #tpu.dot_dimension_numbers<[1], [0], [0], [1], [0, 0, 1, 1], [], []>} : vector<16x64xbf16>, vector<64x16xbf16>, vector<16x16xf32> -> vector<16x16xf32>
    %c3_202 = arith.constant 3 : index
    %c0_203 = arith.constant 0 : index
    %c0_204 = arith.constant 0 : index
    %344 = vector.load %arg25[%c3_202, %c0_203, %c0_204] : memref<4x1x16xf32, #tpu.memory_space<vmem>>, vector<1x1x16xf32>
    %345 = vector.shape_cast %344 : vector<1x1x16xf32> to vector<1x16xf32>
    %346 = vector.broadcast %345 : vector<1x16xf32> to vector<16x16xf32>
    %347 = arith.addf %343, %346 : vector<16x16xf32>
    %348 = arith.truncf %333 : vector<16x16xf32> to vector<16x16xbf16>
    %349 = arith.truncf %340 : vector<16x16xf32> to vector<16x16xbf16>
    %cst_205 = arith.constant dense<0.000000e+00> : vector<16x16xf32>
    %350 = tpu.matmul %348, %349, %cst_205 {dimension_numbers = #tpu.dot_dimension_numbers<[1], [1], [0], [0], [0, 0, 1, 0], [], []>} : vector<16x16xbf16>, vector<16x16xbf16>, vector<16x16xf32> -> vector<16x16xf32>
    %351 = arith.addf %350, %198 : vector<16x16xf32>
    %cst_206 = arith.constant dense<0xFF800000> : vector<16xf32>
    %352 = vector.multi_reduction <maximumf>, %351, %cst_206 [1] : vector<16x16xf32> to vector<16xf32>
    %353 = vector.shape_cast %352 : vector<16xf32> to vector<16x1xf32>
    %354 = vector.broadcast %353 : vector<16x1xf32> to vector<16x16xf32>
    %355 = arith.subf %351, %354 : vector<16x16xf32>
    %356 = math.exp %355 : vector<16x16xf32>
    %cst_207 = arith.constant dense<0.000000e+00> : vector<16xf32>
    %357 = vector.multi_reduction <add>, %356, %cst_207 [1] : vector<16x16xf32> to vector<16xf32>
    %358 = vector.shape_cast %357 : vector<16xf32> to vector<16x1xf32>
    %359 = tpu.reciprocal %358 {approx = true} : vector<16x1xf32> -> vector<16x1xf32>
    %360 = vector.broadcast %359 : vector<16x1xf32> to vector<16x16xf32>
    %361 = arith.mulf %356, %360 : vector<16x16xf32>
    %362 = arith.truncf %361 : vector<16x16xf32> to vector<16x16xbf16>
    %363 = arith.truncf %347 : vector<16x16xf32> to vector<16x16xbf16>
    %cst_208 = arith.constant dense<0.000000e+00> : vector<16x16xf32>
    %364 = tpu.matmul %362, %363, %cst_208 {dimension_numbers = #tpu.dot_dimension_numbers<[1], [0], [0], [1], [0, 0, 1, 1], [], []>} : vector<16x16xbf16>, vector<16x16xbf16>, vector<16x16xf32> -> vector<16x16xf32>
    %365 = arith.truncf %364 : vector<16x16xf32> to vector<16x16xbf16>
    %c3_209 = arith.constant 3 : index
    %c0_210 = arith.constant 0 : index
    %c0_211 = arith.constant 0 : index
    %366 = vector.load %arg26[%c3_209, %c0_210, %c0_211] : memref<4x16x64xbf16, #tpu.memory_space<vmem>>, vector<1x16x64xbf16>
    %367 = vector.shape_cast %366 : vector<1x16x64xbf16> to vector<16x64xbf16>
    %cst_212 = arith.constant dense<0.000000e+00> : vector<16x64xf32>
    %368 = tpu.matmul %365, %367, %cst_212 {dimension_numbers = #tpu.dot_dimension_numbers<[1], [0], [0], [1], [0, 0, 1, 1], [], []>} : vector<16x16xbf16>, vector<16x64xbf16>, vector<16x64xf32> -> vector<16x64xf32>
    %369 = arith.addf %326, %368 : vector<16x64xf32>
    %c0_213 = arith.constant 0 : index
    %c0_214 = arith.constant 0 : index
    %370 = vector.load %arg27[%c0_213, %c0_214] : memref<1x64xf32, #tpu.memory_space<vmem>>, vector<1x64xf32>
    %371 = vector.broadcast %370 : vector<1x64xf32> to vector<16x64xf32>
    %372 = arith.addf %369, %371 : vector<16x64xf32>
    %c0_215 = arith.constant 0 : index
    %c0_216 = arith.constant 0 : index
    %373 = vector.load %arg28[%c0_215, %c0_216] : memref<1x64xf32, #tpu.memory_space<vmem>>, vector<1x64xf32>
    %c0_217 = arith.constant 0 : index
    %c0_218 = arith.constant 0 : index
    %374 = vector.load %arg29[%c0_217, %c0_218] : memref<1x64xf32, #tpu.memory_space<vmem>>, vector<1x64xf32>
    %cst_219 = arith.constant dense<0.000000e+00> : vector<16xf32>
    %375 = vector.multi_reduction <add>, %372, %cst_219 [1] : vector<16x64xf32> to vector<16xf32>
    %376 = vector.shape_cast %375 : vector<16xf32> to vector<16x1xf32>
    %cst_220 = arith.constant 6.400000e+01 : f32
    %377 = vector.broadcast %cst_220 : f32 to vector<16x1xf32>
    %378 = arith.divf %376, %377 : vector<16x1xf32>
    %379 = vector.broadcast %378 : vector<16x1xf32> to vector<16x64xf32>
    %380 = arith.subf %372, %379 : vector<16x64xf32>
    %381 = arith.mulf %380, %380 : vector<16x64xf32>
    %cst_221 = arith.constant dense<0.000000e+00> : vector<16xf32>
    %382 = vector.multi_reduction <add>, %381, %cst_221 [1] : vector<16x64xf32> to vector<16xf32>
    %383 = vector.shape_cast %382 : vector<16xf32> to vector<16x1xf32>
    %cst_222 = arith.constant 6.400000e+01 : f32
    %384 = vector.broadcast %cst_222 : f32 to vector<16x1xf32>
    %385 = arith.divf %383, %384 : vector<16x1xf32>
    %386 = vector.broadcast %378 : vector<16x1xf32> to vector<16x64xf32>
    %387 = arith.subf %372, %386 : vector<16x64xf32>
    %cst_223 = arith.constant 1.000000e-03 : f32
    %388 = vector.broadcast %cst_223 : f32 to vector<16x1xf32>
    %389 = arith.addf %385, %388 : vector<16x1xf32>
    %390 = math.rsqrt %389 : vector<16x1xf32>
    %391 = vector.broadcast %390 : vector<16x1xf32> to vector<16x64xf32>
    %392 = arith.mulf %387, %391 : vector<16x64xf32>
    %393 = vector.broadcast %373 : vector<1x64xf32> to vector<16x64xf32>
    %394 = arith.mulf %392, %393 : vector<16x64xf32>
    %395 = vector.broadcast %374 : vector<1x64xf32> to vector<16x64xf32>
    %396 = arith.addf %394, %395 : vector<16x64xf32>
    %397 = arith.truncf %396 : vector<16x64xf32> to vector<16x64xbf16>
    %c0_224 = arith.constant 0 : index
    %c0_225 = arith.constant 0 : index
    %398 = vector.load %arg30[%c0_224, %c0_225] : memref<64x256xbf16, #tpu.memory_space<vmem>>, vector<64x256xbf16>
    %cst_226 = arith.constant dense<0.000000e+00> : vector<16x256xf32>
    %399 = tpu.matmul %397, %398, %cst_226 {dimension_numbers = #tpu.dot_dimension_numbers<[1], [0], [0], [1], [0, 0, 1, 1], [], []>} : vector<16x64xbf16>, vector<64x256xbf16>, vector<16x256xf32> -> vector<16x256xf32>
    %c0_227 = arith.constant 0 : index
    %c0_228 = arith.constant 0 : index
    %400 = vector.load %arg31[%c0_227, %c0_228] : memref<1x256xf32, #tpu.memory_space<vmem>>, vector<1x256xf32>
    %401 = vector.broadcast %400 : vector<1x256xf32> to vector<16x256xf32>
    %402 = arith.addf %399, %401 : vector<16x256xf32>
    %cst_229 = arith.constant 0.000000e+00 : f32
    %403 = vector.broadcast %cst_229 : f32 to vector<16x256xf32>
    %404 = arith.cmpf ogt, %402, %403 : vector<16x256xf32>
    %405 = math.exp %402 : vector<16x256xf32>
    %cst_230 = arith.constant 1.000000e+00 : f32
    %406 = vector.broadcast %cst_230 : f32 to vector<16x256xf32>
    %407 = arith.subf %405, %406 : vector<16x256xf32>
    %408 = arith.select %404, %402, %407 : vector<16x256xi1>, vector<16x256xf32>
    %409 = arith.truncf %408 : vector<16x256xf32> to vector<16x256xbf16>
    %c0_231 = arith.constant 0 : index
    %c0_232 = arith.constant 0 : index
    %410 = vector.load %arg32[%c0_231, %c0_232] : memref<256x64xbf16, #tpu.memory_space<vmem>>, vector<256x64xbf16>
    %cst_233 = arith.constant dense<0.000000e+00> : vector<16x64xf32>
    %411 = tpu.matmul %409, %410, %cst_233 {dimension_numbers = #tpu.dot_dimension_numbers<[1], [0], [0], [1], [0, 0, 1, 1], [], []>} : vector<16x256xbf16>, vector<256x64xbf16>, vector<16x64xf32> -> vector<16x64xf32>
    %c0_234 = arith.constant 0 : index
    %c0_235 = arith.constant 0 : index
    %412 = vector.load %arg33[%c0_234, %c0_235] : memref<1x64xf32, #tpu.memory_space<vmem>>, vector<1x64xf32>
    %413 = vector.broadcast %412 : vector<1x64xf32> to vector<16x64xf32>
    %414 = arith.addf %411, %413 : vector<16x64xf32>
    %cst_236 = arith.constant 0.000000e+00 : f32
    %415 = vector.broadcast %cst_236 : f32 to vector<16x64xf32>
    %416 = arith.cmpf ogt, %414, %415 : vector<16x64xf32>
    %417 = math.exp %414 : vector<16x64xf32>
    %cst_237 = arith.constant 1.000000e+00 : f32
    %418 = vector.broadcast %cst_237 : f32 to vector<16x64xf32>
    %419 = arith.subf %417, %418 : vector<16x64xf32>
    %420 = arith.select %416, %414, %419 : vector<16x64xi1>, vector<16x64xf32>
    %c0_238 = arith.constant 0 : index
    %c0_239 = arith.constant 0 : index
    %421 = vector.load %arg34[%c0_238, %c0_239] : memref<1x64xf32, #tpu.memory_space<vmem>>, vector<1x64xf32>
    %c0_240 = arith.constant 0 : index
    %c0_241 = arith.constant 0 : index
    %422 = vector.load %arg35[%c0_240, %c0_241] : memref<1x64xf32, #tpu.memory_space<vmem>>, vector<1x64xf32>
    %cst_242 = arith.constant dense<0.000000e+00> : vector<16xf32>
    %423 = vector.multi_reduction <add>, %420, %cst_242 [1] : vector<16x64xf32> to vector<16xf32>
    %424 = vector.shape_cast %423 : vector<16xf32> to vector<16x1xf32>
    %cst_243 = arith.constant 6.400000e+01 : f32
    %425 = vector.broadcast %cst_243 : f32 to vector<16x1xf32>
    %426 = arith.divf %424, %425 : vector<16x1xf32>
    %427 = vector.broadcast %426 : vector<16x1xf32> to vector<16x64xf32>
    %428 = arith.subf %420, %427 : vector<16x64xf32>
    %429 = arith.mulf %428, %428 : vector<16x64xf32>
    %cst_244 = arith.constant dense<0.000000e+00> : vector<16xf32>
    %430 = vector.multi_reduction <add>, %429, %cst_244 [1] : vector<16x64xf32> to vector<16xf32>
    %431 = vector.shape_cast %430 : vector<16xf32> to vector<16x1xf32>
    %cst_245 = arith.constant 6.400000e+01 : f32
    %432 = vector.broadcast %cst_245 : f32 to vector<16x1xf32>
    %433 = arith.divf %431, %432 : vector<16x1xf32>
    %434 = vector.broadcast %426 : vector<16x1xf32> to vector<16x64xf32>
    %435 = arith.subf %420, %434 : vector<16x64xf32>
    %cst_246 = arith.constant 1.000000e-03 : f32
    %436 = vector.broadcast %cst_246 : f32 to vector<16x1xf32>
    %437 = arith.addf %433, %436 : vector<16x1xf32>
    %438 = math.rsqrt %437 : vector<16x1xf32>
    %439 = vector.broadcast %438 : vector<16x1xf32> to vector<16x64xf32>
    %440 = arith.mulf %435, %439 : vector<16x64xf32>
    %441 = vector.broadcast %421 : vector<1x64xf32> to vector<16x64xf32>
    %442 = arith.mulf %440, %441 : vector<16x64xf32>
    %443 = vector.broadcast %422 : vector<1x64xf32> to vector<16x64xf32>
    %444 = arith.addf %442, %443 : vector<16x64xf32>
    %cst_247 = arith.constant 0.000000e+00 : f32
    %445 = vector.broadcast %cst_247 : f32 to vector<16x1xf32>
    %c0_i32_248 = arith.constant 0 : i32
    %446 = vector.broadcast %c0_i32_248 : i32 to vector<16x1xi32>
    %447 = arith.cmpi sge, %162, %446 : vector<16x1xi32>
    %c4_i32 = arith.constant 4 : i32
    %448 = vector.broadcast %c4_i32 : i32 to vector<16x1xi32>
    %449 = arith.cmpi slt, %162, %448 : vector<16x1xi32>
    %450 = arith.andi %447, %449 : vector<16x1xi1>
    %451 = arith.extui %450 : vector<16x1xi1> to vector<16x1xi32>
    %452 = arith.sitofp %451 : vector<16x1xi32> to vector<16x1xf32>
    %453 = arith.maximumf %445, %452 : vector<16x1xf32>
    %c6_i32_249 = arith.constant 6 : i32
    %454 = vector.broadcast %c6_i32_249 : i32 to vector<16x1xi32>
    %455 = arith.cmpi sge, %162, %454 : vector<16x1xi32>
    %c10_i32 = arith.constant 10 : i32
    %456 = vector.broadcast %c10_i32 : i32 to vector<16x1xi32>
    %457 = arith.cmpi slt, %162, %456 : vector<16x1xi32>
    %458 = arith.andi %455, %457 : vector<16x1xi1>
    %459 = arith.extui %458 : vector<16x1xi1> to vector<16x1xi32>
    %460 = arith.sitofp %459 : vector<16x1xi32> to vector<16x1xf32>
    %461 = arith.maximumf %453, %460 : vector<16x1xf32>
    %462 = arith.addf %154, %444 : vector<16x64xf32>
    %c0_250 = arith.constant 0 : index
    %c0_251 = arith.constant 0 : index
    %463 = vector.load %arg6[%c0_250, %c0_251] : memref<16x64xf32, #tpu.memory_space<vmem>>, vector<16x64xf32>
    %464 = arith.addf %462, %463 : vector<16x64xf32>
    %c0_252 = arith.constant 0 : index
    %c0_253 = arith.constant 0 : index
    %465 = vector.load %arg36[%c0_252, %c0_253] : memref<1x64xf32, #tpu.memory_space<vmem>>, vector<1x64xf32>
    %466 = vector.broadcast %461 : vector<16x1xf32> to vector<16x64xf32>
    %467 = vector.broadcast %465 : vector<1x64xf32> to vector<16x64xf32>
    %468 = arith.mulf %466, %467 : vector<16x64xf32>
    %cst_254 = arith.constant 1.000000e+00 : f32
    %469 = vector.broadcast %cst_254 : f32 to vector<16x1xf32>
    %470 = arith.subf %469, %461 : vector<16x1xf32>
    %c0_255 = arith.constant 0 : index
    %c0_256 = arith.constant 0 : index
    %471 = vector.load %arg38[%c0_255, %c0_256] : memref<1x64xf32, #tpu.memory_space<vmem>>, vector<1x64xf32>
    %472 = vector.broadcast %470 : vector<16x1xf32> to vector<16x64xf32>
    %473 = vector.broadcast %471 : vector<1x64xf32> to vector<16x64xf32>
    %474 = arith.mulf %472, %473 : vector<16x64xf32>
    %475 = arith.addf %468, %474 : vector<16x64xf32>
    %c0_257 = arith.constant 0 : index
    %c0_258 = arith.constant 0 : index
    %476 = vector.load %arg37[%c0_257, %c0_258] : memref<1x64xf32, #tpu.memory_space<vmem>>, vector<1x64xf32>
    %477 = vector.broadcast %461 : vector<16x1xf32> to vector<16x64xf32>
    %478 = vector.broadcast %476 : vector<1x64xf32> to vector<16x64xf32>
    %479 = arith.mulf %477, %478 : vector<16x64xf32>
    %cst_259 = arith.constant 1.000000e+00 : f32
    %480 = vector.broadcast %cst_259 : f32 to vector<16x1xf32>
    %481 = arith.subf %480, %461 : vector<16x1xf32>
    %c0_260 = arith.constant 0 : index
    %c0_261 = arith.constant 0 : index
    %482 = vector.load %arg39[%c0_260, %c0_261] : memref<1x64xf32, #tpu.memory_space<vmem>>, vector<1x64xf32>
    %483 = vector.broadcast %481 : vector<16x1xf32> to vector<16x64xf32>
    %484 = vector.broadcast %482 : vector<1x64xf32> to vector<16x64xf32>
    %485 = arith.mulf %483, %484 : vector<16x64xf32>
    %486 = arith.addf %479, %485 : vector<16x64xf32>
    %cst_262 = arith.constant dense<0.000000e+00> : vector<16xf32>
    %487 = vector.multi_reduction <add>, %464, %cst_262 [1] : vector<16x64xf32> to vector<16xf32>
    %488 = vector.shape_cast %487 : vector<16xf32> to vector<16x1xf32>
    %cst_263 = arith.constant 6.400000e+01 : f32
    %489 = vector.broadcast %cst_263 : f32 to vector<16x1xf32>
    %490 = arith.divf %488, %489 : vector<16x1xf32>
    %491 = vector.broadcast %490 : vector<16x1xf32> to vector<16x64xf32>
    %492 = arith.subf %464, %491 : vector<16x64xf32>
    %493 = arith.mulf %492, %492 : vector<16x64xf32>
    %cst_264 = arith.constant dense<0.000000e+00> : vector<16xf32>
    %494 = vector.multi_reduction <add>, %493, %cst_264 [1] : vector<16x64xf32> to vector<16xf32>
    %495 = vector.shape_cast %494 : vector<16xf32> to vector<16x1xf32>
    %cst_265 = arith.constant 6.400000e+01 : f32
    %496 = vector.broadcast %cst_265 : f32 to vector<16x1xf32>
    %497 = arith.divf %495, %496 : vector<16x1xf32>
    %498 = vector.broadcast %490 : vector<16x1xf32> to vector<16x64xf32>
    %499 = arith.subf %464, %498 : vector<16x64xf32>
    %cst_266 = arith.constant 1.000000e-03 : f32
    %500 = vector.broadcast %cst_266 : f32 to vector<16x1xf32>
    %501 = arith.addf %497, %500 : vector<16x1xf32>
    %502 = math.rsqrt %501 : vector<16x1xf32>
    %503 = vector.broadcast %502 : vector<16x1xf32> to vector<16x64xf32>
    %504 = arith.mulf %499, %503 : vector<16x64xf32>
    %505 = arith.mulf %504, %475 : vector<16x64xf32>
    %506 = arith.addf %505, %486 : vector<16x64xf32>
    %c0_267 = arith.constant 0 : index
    %c0_268 = arith.constant 0 : index
    %507 = vector.load %arg40[%c0_267, %c0_268] : memref<16x64xf32, #tpu.memory_space<vmem>>, vector<16x64xf32>
    tpu.vector_store %arg40[%c0_267, %c0_268], %506 {strides = array<i32>} : memref<16x64xf32, #tpu.memory_space<vmem>>, vector<16x64xf32>,
    return
  }
  func.func @transform_0(%arg0: i32) -> (i32, i32) {
    %c0_i32 = arith.constant 0 : i32
    %c0_i32_0 = arith.constant 0 : i32
    %c0_i32_1 = arith.constant 0 : i32
    return %c0_i32, %c0_i32_0 : i32, i32
  }
  func.func @transform_1(%arg0: i32) -> (i32, i32) {
    %c0_i32 = arith.constant 0 : i32
    %c0_i32_0 = arith.constant 0 : i32
    %c0_i32_1 = arith.constant 0 : i32
    return %c0_i32, %c0_i32_0 : i32, i32
  }
  func.func @transform_2(%arg0: i32) -> (i32, i32) {
    %c0_i32 = arith.constant 0 : i32
    %c0_i32_0 = arith.constant 0 : i32
    %c0_i32_1 = arith.constant 0 : i32
    return %c0_i32, %c0_i32_0 : i32, i32
  }
  func.func @transform_3(%arg0: i32) -> (i32, i32) {
    %c0_i32 = arith.constant 0 : i32
    %c0_i32_0 = arith.constant 0 : i32
    %c0_i32_1 = arith.constant 0 : i32
    return %c0_i32, %c0_i32_0 : i32, i32
  }
  func.func @transform_4(%arg0: i32) -> (i32, i32) {
    %c0_i32 = arith.constant 0 : i32
    %c0_i32_0 = arith.constant 0 : i32
    %c0_i32_1 = arith.constant 0 : i32
    return %c0_i32, %c0_i32_0 : i32, i32
  }
  func.func @transform_5(%arg0: i32) -> (i32, i32) {
    %c0_i32 = arith.constant 0 : i32
    %c0_i32_0 = arith.constant 0 : i32
    %c0_i32_1 = arith.constant 0 : i32
    return %c0_i32, %c0_i32_0 : i32, i32
  }
  func.func @transform_6(%arg0: i32) -> (i32, i32) {
    %c0_i32 = arith.constant 0 : i32
    %c0_i32_0 = arith.constant 0 : i32
    %c0_i32_1 = arith.constant 0 : i32
    return %c0_i32, %c0_i32_0 : i32, i32
  }
  func.func @transform_7(%arg0: i32) -> (i32, i32) {
    %c0_i32 = arith.constant 0 : i32
    %c0_i32_0 = arith.constant 0 : i32
    %c0_i32_1 = arith.constant 0 : i32
    return %c0_i32, %c0_i32_0 : i32, i32
  }
  func.func @transform_8(%arg0: i32) -> (i32, i32, i32) {
    %c0_i32 = arith.constant 0 : i32
    %c0_i32_0 = arith.constant 0 : i32
    %c0_i32_1 = arith.constant 0 : i32
    %c0_i32_2 = arith.constant 0 : i32
    return %c0_i32, %c0_i32_0, %c0_i32_1 : i32, i32, i32
  }
  func.func @transform_9(%arg0: i32) -> (i32, i32, i32) {
    %c0_i32 = arith.constant 0 : i32
    %c0_i32_0 = arith.constant 0 : i32
    %c0_i32_1 = arith.constant 0 : i32
    %c0_i32_2 = arith.constant 0 : i32
    return %c0_i32, %c0_i32_0, %c0_i32_1 : i32, i32, i32
  }
  func.func @transform_10(%arg0: i32) -> (i32, i32, i32) {
    %c0_i32 = arith.constant 0 : i32
    %c0_i32_0 = arith.constant 0 : i32
    %c0_i32_1 = arith.constant 0 : i32
    %c0_i32_2 = arith.constant 0 : i32
    return %c0_i32, %c0_i32_0, %c0_i32_1 : i32, i32, i32
  }
  func.func @transform_11(%arg0: i32) -> (i32, i32, i32) {
    %c0_i32 = arith.constant 0 : i32
    %c0_i32_0 = arith.constant 0 : i32
    %c0_i32_1 = arith.constant 0 : i32
    %c0_i32_2 = arith.constant 0 : i32
    return %c0_i32, %c0_i32_0, %c0_i32_1 : i32, i32, i32
  }
  func.func @transform_12(%arg0: i32) -> (i32, i32, i32) {
    %c0_i32 = arith.constant 0 : i32
    %c0_i32_0 = arith.constant 0 : i32
    %c0_i32_1 = arith.constant 0 : i32
    %c0_i32_2 = arith.constant 0 : i32
    return %c0_i32, %c0_i32_0, %c0_i32_1 : i32, i32, i32
  }
  func.func @transform_13(%arg0: i32) -> (i32, i32, i32) {
    %c0_i32 = arith.constant 0 : i32
    %c0_i32_0 = arith.constant 0 : i32
    %c0_i32_1 = arith.constant 0 : i32
    %c0_i32_2 = arith.constant 0 : i32
    return %c0_i32, %c0_i32_0, %c0_i32_1 : i32, i32, i32
  }
  func.func @transform_14(%arg0: i32) -> (i32, i32, i32) {
    %c0_i32 = arith.constant 0 : i32
    %c0_i32_0 = arith.constant 0 : i32
    %c0_i32_1 = arith.constant 0 : i32
    %c0_i32_2 = arith.constant 0 : i32
    return %c0_i32, %c0_i32_0, %c0_i32_1 : i32, i32, i32
  }
  func.func @transform_15(%arg0: i32) -> (i32, i32) {
    %c0_i32 = arith.constant 0 : i32
    %c0_i32_0 = arith.constant 0 : i32
    %c0_i32_1 = arith.constant 0 : i32
    return %c0_i32, %c0_i32_0 : i32, i32
  }
  func.func @transform_16(%arg0: i32) -> (i32, i32) {
    %c0_i32 = arith.constant 0 : i32
    %c0_i32_0 = arith.constant 0 : i32
    %c0_i32_1 = arith.constant 0 : i32
    return %c0_i32, %c0_i32_0 : i32, i32
  }
  func.func @transform_17(%arg0: i32) -> (i32, i32) {
    %c0_i32 = arith.constant 0 : i32
    %c0_i32_0 = arith.constant 0 : i32
    %c0_i32_1 = arith.constant 0 : i32
    return %c0_i32, %c0_i32_0 : i32, i32
  }
  func.func @transform_18(%arg0: i32) -> (i32, i32) {
    %c0_i32 = arith.constant 0 : i32
    %c0_i32_0 = arith.constant 0 : i32
    %c0_i32_1 = arith.constant 0 : i32
    return %c0_i32, %c0_i32_0 : i32, i32
  }
  func.func @transform_19(%arg0: i32) -> (i32, i32, i32) {
    %c0_i32 = arith.constant 0 : i32
    %c0_i32_0 = arith.constant 0 : i32
    %c0_i32_1 = arith.constant 0 : i32
    %c0_i32_2 = arith.constant 0 : i32
    return %c0_i32, %c0_i32_0, %c0_i32_1 : i32, i32, i32
  }
  func.func @transform_20(%arg0: i32) -> (i32, i32, i32) {
    %c0_i32 = arith.constant 0 : i32
    %c0_i32_0 = arith.constant 0 : i32
    %c0_i32_1 = arith.constant 0 : i32
    %c0_i32_2 = arith.constant 0 : i32
    return %c0_i32, %c0_i32_0, %c0_i32_1 : i32, i32, i32
  }
  func.func @transform_21(%arg0: i32) -> (i32, i32, i32) {
    %c0_i32 = arith.constant 0 : i32
    %c0_i32_0 = arith.constant 0 : i32
    %c0_i32_1 = arith.constant 0 : i32
    %c0_i32_2 = arith.constant 0 : i32
    return %c0_i32, %c0_i32_0, %c0_i32_1 : i32, i32, i32
  }
  func.func @transform_22(%arg0: i32) -> (i32, i32, i32) {
    %c0_i32 = arith.constant 0 : i32
    %c0_i32_0 = arith.constant 0 : i32
    %c0_i32_1 = arith.constant 0 : i32
    %c0_i32_2 = arith.constant 0 : i32
    return %c0_i32, %c0_i32_0, %c0_i32_1 : i32, i32, i32
  }
  func.func @transform_23(%arg0: i32) -> (i32, i32, i32) {
    %c0_i32 = arith.constant 0 : i32
    %c0_i32_0 = arith.constant 0 : i32
    %c0_i32_1 = arith.constant 0 : i32
    %c0_i32_2 = arith.constant 0 : i32
    return %c0_i32, %c0_i32_0, %c0_i32_1 : i32, i32, i32
  }
  func.func @transform_24(%arg0: i32) -> (i32, i32, i32) {
    %c0_i32 = arith.constant 0 : i32
    %c0_i32_0 = arith.constant 0 : i32
    %c0_i32_1 = arith.constant 0 : i32
    %c0_i32_2 = arith.constant 0 : i32
    return %c0_i32, %c0_i32_0, %c0_i32_1 : i32, i32, i32
  }
  func.func @transform_25(%arg0: i32) -> (i32, i32, i32) {
    %c0_i32 = arith.constant 0 : i32
    %c0_i32_0 = arith.constant 0 : i32
    %c0_i32_1 = arith.constant 0 : i32
    %c0_i32_2 = arith.constant 0 : i32
    return %c0_i32, %c0_i32_0, %c0_i32_1 : i32, i32, i32
  }
  func.func @transform_26(%arg0: i32) -> (i32, i32) {
    %c0_i32 = arith.constant 0 : i32
    %c0_i32_0 = arith.constant 0 : i32
    %c0_i32_1 = arith.constant 0 : i32
    return %c0_i32, %c0_i32_0 : i32, i32
  }
  func.func @transform_27(%arg0: i32) -> (i32, i32) {
    %c0_i32 = arith.constant 0 : i32
    %c0_i32_0 = arith.constant 0 : i32
    %c0_i32_1 = arith.constant 0 : i32
    return %c0_i32, %c0_i32_0 : i32, i32
  }
  func.func @transform_28(%arg0: i32) -> (i32, i32) {
    %c0_i32 = arith.constant 0 : i32
    %c0_i32_0 = arith.constant 0 : i32
    %c0_i32_1 = arith.constant 0 : i32
    return %c0_i32, %c0_i32_0 : i32, i32
  }
  func.func @transform_29(%arg0: i32) -> (i32, i32) {
    %c0_i32 = arith.constant 0 : i32
    %c0_i32_0 = arith.constant 0 : i32
    %c0_i32_1 = arith.constant 0 : i32
    return %c0_i32, %c0_i32_0 : i32, i32
  }
  func.func @transform_30(%arg0: i32) -> (i32, i32) {
    %c0_i32 = arith.constant 0 : i32
    %c0_i32_0 = arith.constant 0 : i32
    %c0_i32_1 = arith.constant 0 : i32
    return %c0_i32, %c0_i32_0 : i32, i32
  }
  func.func @transform_31(%arg0: i32) -> (i32, i32) {
    %c0_i32 = arith.constant 0 : i32
    %c0_i32_0 = arith.constant 0 : i32
    %c0_i32_1 = arith.constant 0 : i32
    return %c0_i32, %c0_i32_0 : i32, i32
  }
  func.func @transform_32(%arg0: i32) -> (i32, i32) {
    %c0_i32 = arith.constant 0 : i32
    %c0_i32_0 = arith.constant 0 : i32
    %c0_i32_1 = arith.constant 0 : i32
    return %c0_i32, %c0_i32_0 : i32, i32
  }
  func.func @transform_33(%arg0: i32) -> (i32, i32) {
    %c0_i32 = arith.constant 0 : i32
    %c0_i32_0 = arith.constant 0 : i32
    %c0_i32_1 = arith.constant 0 : i32
    return %c0_i32, %c0_i32_0 : i32, i32
  }
  func.func @transform_34(%arg0: i32) -> (i32, i32) {
    %c0_i32 = arith.constant 0 : i32
    %c0_i32_0 = arith.constant 0 : i32
    %c0_i32_1 = arith.constant 0 : i32
    return %c0_i32, %c0_i32_0 : i32, i32
  }
  func.func @transform_35(%arg0: i32) -> (i32, i32) {
    %c0_i32 = arith.constant 0 : i32
    %c0_i32_0 = arith.constant 0 : i32
    %c0_i32_1 = arith.constant 0 : i32
    return %c0_i32, %c0_i32_0 : i32, i32
  }
  func.func @transform_36(%arg0: i32) -> (i32, i32) {
    %c0_i32 = arith.constant 0 : i32
    %c0_i32_0 = arith.constant 0 : i32
    %c0_i32_1 = arith.constant 0 : i32
    return %c0_i32, %c0_i32_0 : i32, i32
  }
  func.func @transform_37(%arg0: i32) -> (i32, i32) {
    %c0_i32 = arith.constant 0 : i32
    %c0_i32_0 = arith.constant 0 : i32
    %c0_i32_1 = arith.constant 0 : i32
    return %c0_i32, %c0_i32_0 : i32, i32
  }
  func.func @transform_38(%arg0: i32) -> (i32, i32) {
    %c0_i32 = arith.constant 0 : i32
    %c0_i32_0 = arith.constant 0 : i32
    %c0_i32_1 = arith.constant 0 : i32
    return %c0_i32, %c0_i32_0 : i32, i32
  }
  func.func @transform_39(%arg0: i32) -> (i32, i32) {
    %c0_i32 = arith.constant 0 : i32
    %c0_i32_0 = arith.constant 0 : i32
    %c0_i32_1 = arith.constant 0 : i32
    return %c0_i32, %c0_i32_0 : i32, i32
  }
}

</mosaic_0001>

<llo_original>
// kernel: tile.25
$region0: #{tile.25}
  %s0 = inlined_call_operand.vmem [shape: f32[2,6,64], index: 0, kind: input, shape index: {}]
  %s1 = inlined_call_operand.vmem [shape: f32[12,64], index: 1, kind: output, shape index: {}]
  %v2 = vld [vmem:[%s0] sm:$0x3f]
  %vm3 = vcmask 523264
  %4 = vst.msk [vmem:[%s1] sm:$0x3f] %vm3, %v2
  %s5 = scalar_lea.vmem %s0, 8
  %v6 = vld [vmem:[%s5] sm:$0x3f]
  %vm7 = vcmask 523264
  %s8 = scalar_lea.vmem %s1, 6
  %9 = vst.msk [vmem:[%s8] sm:$0x3f] %vm7, %v6

// kernel: trajnet_forward.1
$region0: #{trajnet_forward.1}
  #allocation0 [shape = 'u32[]', space=smem, size = 0x4, offset = 0x4, fixed_abs, tag = 'smem constant byte address 0x4 - core index']
  #allocation1 [shape = 'u32[144,128]{1,0:T(1,128)}', space=vmem, size = 0x12000, scoped, tag = 'internal scratch']
  %s0 = inlined_call_operand.smem [shape: u32[40], index: -1, kind: input, shape index: {}]
  %s1 = sld [smem:[%s0]]
  %s2 = scalar_lea.smem %s0, 1
  %s3 = sld [smem:[%s2]]
  %s4 = scalar_lea.smem %s0, 2
  %s5 = sld [smem:[%s4]]
  %s6 = scalar_lea.smem %s0, 3
  %s7 = sld [smem:[%s6]]
  %s8 = scalar_lea.smem %s0, 4
  %s9 = sld [smem:[%s8]]
  %s10 = scalar_lea.smem %s0, 5
  %s11 = sld [smem:[%s10]]
  %s12 = scalar_lea.smem %s0, 6
  %s13 = sld [smem:[%s12]]
  %s14 = scalar_lea.smem %s0, 7
  %s15 = sld [smem:[%s14]]
  %s16 = scalar_lea.smem %s0, 8
  %s17 = sld [smem:[%s16]]
  %s18 = scalar_lea.smem %s0, 9
  %s19 = sld [smem:[%s18]]
  %s20 = scalar_lea.smem %s0, 10
  %s21 = sld [smem:[%s20]]
  %s22 = scalar_lea.smem %s0, 11
  %s23 = sld [smem:[%s22]]
  %s24 = scalar_lea.smem %s0, 12
  %s25 = sld [smem:[%s24]]
  %s26 = scalar_lea.smem %s0, 13
  %s27 = sld [smem:[%s26]]
  %s28 = scalar_lea.smem %s0, 14
  %s29 = sld [smem:[%s28]]
  %s30 = scalar_lea.smem %s0, 15
  %s31 = sld [smem:[%s30]]
  %s32 = scalar_lea.smem %s0, 16
  %s33 = sld [smem:[%s32]]
  %s34 = scalar_lea.smem %s0, 17
  %s35 = sld [smem:[%s34]]
  %s36 = scalar_lea.smem %s0, 18
  %s37 = sld [smem:[%s36]]
  %s38 = scalar_lea.smem %s0, 19
  %s39 = sld [smem:[%s38]]
  %s40 = scalar_lea.smem %s0, 20
  %s41 = sld [smem:[%s40]]
  %s42 = scalar_lea.smem %s0, 21
  %s43 = sld [smem:[%s42]]
  %s44 = scalar_lea.smem %s0, 22
  %s45 = sld [smem:[%s44]]
  %s46 = scalar_lea.smem %s0, 23
  %s47 = sld [smem:[%s46]]
  %s48 = scalar_lea.smem %s0, 24
  %s49 = sld [smem:[%s48]]
  %s50 = scalar_lea.smem %s0, 25
  %s51 = sld [smem:[%s50]]
  %s52 = scalar_lea.smem %s0, 26
  %s53 = sld [smem:[%s52]]
  %s54 = scalar_lea.smem %s0, 27
  %s55 = sld [smem:[%s54]]
  %s56 = scalar_lea.smem %s0, 28
  %s57 = sld [smem:[%s56]]
  %s58 = scalar_lea.smem %s0, 29
  %s59 = sld [smem:[%s58]]
  %s60 = scalar_lea.smem %s0, 30
  %s61 = sld [smem:[%s60]]
  %s62 = scalar_lea.smem %s0, 31
  %s63 = sld [smem:[%s62]]
  %s64 = scalar_lea.smem %s0, 32
  %s65 = sld [smem:[%s64]]
  %s66 = scalar_lea.smem %s0, 33
  %s67 = sld [smem:[%s66]]
  %s68 = scalar_lea.smem %s0, 34
  %s69 = sld [smem:[%s68]]
  %s70 = scalar_lea.smem %s0, 35
  %s71 = sld [smem:[%s70]]
  %s72 = scalar_lea.smem %s0, 36
  %s73 = sld [smem:[%s72]]
  %s74 = scalar_lea.smem %s0, 37
  %s75 = sld [smem:[%s74]]
  %s76 = scalar_lea.smem %s0, 38
  %s77 = sld [smem:[%s76]]
  %s78 = scalar_lea.smem %s0, 39
  %s79 = sld [smem:[%s78]]
  %s80 = sld [smem:[#allocation0]]
  $region166: #{trajnet_forward.1} parent=0
    _
  %s82 = ssub.s32 1, %s80
  %s83 = scalar_select 0, %s82, %s80
  // Predicated region
  $region2: #{trajnet_forward.1} parent=0 // pred_check
    _
  $region3: #{trajnet_forward.1} parent=0 // pred_check_branch
    %85 = sbr.rel (0) target = $region5
  $region4: #{trajnet_forward.1} parent=0 // pred_region
    _
  $region5: #{trajnet_forward.1} parent=0 // pred_fallthru
    _
  // Predicated region
  $region6: #{trajnet_forward.1} parent=0 // pred_check
    _
  $region7: #{trajnet_forward.1} parent=0 // pred_check_branch
    %87 = sbr.rel (0) target = $region9
  $region8: #{trajnet_forward.1} parent=0 // pred_region
    _
  $region9: #{trajnet_forward.1} parent=0 // pred_fallthru
    _
  // Predicated region
  $region10: #{trajnet_forward.1} parent=0 // pred_check
    _
  $region11: #{trajnet_forward.1} parent=0 // pred_check_branch
    %89 = sbr.rel (0) target = $region13
  $region12: #{trajnet_forward.1} parent=0 // pred_region
    _
  $region13: #{trajnet_forward.1} parent=0 // pred_fallthru
    _
  // Predicated region
  $region14: #{trajnet_forward.1} parent=0 // pred_check
    _
  $region15: #{trajnet_forward.1} parent=0 // pred_check_branch
    %91 = sbr.rel (0) target = $region17
  $region16: #{trajnet_forward.1} parent=0 // pred_region
    _
  $region17: #{trajnet_forward.1} parent=0 // pred_fallthru
    _
  // Predicated region
  $region18: #{trajnet_forward.1} parent=0 // pred_check
    _
  $region19: #{trajnet_forward.1} parent=0 // pred_check_branch
    %93 = sbr.rel (0) target = $region21
  $region20: #{trajnet_forward.1} parent=0 // pred_region
    _
  $region21: #{trajnet_forward.1} parent=0 // pred_fallthru
    _
  // Predicated region
  $region22: #{trajnet_forward.1} parent=0 // pred_check
    _
  $region23: #{trajnet_forward.1} parent=0 // pred_check_branch
    %95 = sbr.rel (0) target = $region25
  $region24: #{trajnet_forward.1} parent=0 // pred_region
    _
  $region25: #{trajnet_forward.1} parent=0 // pred_fallthru
    _
  // Predicated region
  $region26: #{trajnet_forward.1} parent=0 // pred_check
    _
  $region27: #{trajnet_forward.1} parent=0 // pred_check_branch
    %97 = sbr.rel (0) target = $region29
  $region28: #{trajnet_forward.1} parent=0 // pred_region
    _
  $region29: #{trajnet_forward.1} parent=0 // pred_fallthru
    _
  // Predicated region
  $region30: #{trajnet_forward.1} parent=0 // pred_check
    _
  $region31: #{trajnet_forward.1} parent=0 // pred_check_branch
    %99 = sbr.rel (0) target = $region33
  $region32: #{trajnet_forward.1} parent=0 // pred_region
    _
  $region33: #{trajnet_forward.1} parent=0 // pred_fallthru
    _
  // Predicated region
  $region34: #{trajnet_forward.1} parent=0 // pred_check
    _
  $region35: #{trajnet_forward.1} parent=0 // pred_check_branch
    %101 = sbr.rel (0) target = $region37
  $region36: #{trajnet_forward.1} parent=0 // pred_region
    _
  $region37: #{trajnet_forward.1} parent=0 // pred_fallthru
    _
  // Predicated region
  $region38: #{trajnet_forward.1} parent=0 // pred_check
    _
  $region39: #{trajnet_forward.1} parent=0 // pred_check_branch
    %103 = sbr.rel (0) target = $region41
  $region40: #{trajnet_forward.1} parent=0 // pred_region
    _
  $region41: #{trajnet_forward.1} parent=0 // pred_fallthru
    _
  // Predicated region
  $region42: #{trajnet_forward.1} parent=0 // pred_check
    _
  $region43: #{trajnet_forward.1} parent=0 // pred_check_branch
    %105 = sbr.rel (0) target = $region45
  $region44: #{trajnet_forward.1} parent=0 // pred_region
    _
  $region45: #{trajnet_forward.1} parent=0 // pred_fallthru
    _
  // Predicated region
  $region46: #{trajnet_forward.1} parent=0 // pred_check
    _
  $region47: #{trajnet_forward.1} parent=0 // pred_check_branch
    %107 = sbr.rel (0) target = $region49
  $region48: #{trajnet_forward.1} parent=0 // pred_region
    _
  $region49: #{trajnet_forward.1} parent=0 // pred_fallthru
    _
  // Predicated region
  $region50: #{trajnet_forward.1} parent=0 // pred_check
    _
  $region51: #{trajnet_forward.1} parent=0 // pred_check_branch
    %109 = sbr.rel (0) target = $region53
  $region52: #{trajnet_forward.1} parent=0 // pred_region
    _
  $region53: #{trajnet_forward.1} parent=0 // pred_fallthru
    _
  // Predicated region
  $region54: #{trajnet_forward.1} parent=0 // pred_check
    _
  $region55: #{trajnet_forward.1} parent=0 // pred_check_branch
    %111 = sbr.rel (0) target = $region57
  $region56: #{trajnet_forward.1} parent=0 // pred_region
    _
  $region57: #{trajnet_forward.1} parent=0 // pred_fallthru
    _
  // Predicated region
  $region58: #{trajnet_forward.1} parent=0 // pred_check
    _
  $region59: #{trajnet_forward.1} parent=0 // pred_check_branch
    %113 = sbr.rel (0) target = $region61
  $region60: #{trajnet_forward.1} parent=0 // pred_region
    _
  $region61: #{trajnet_forward.1} parent=0 // pred_fallthru
    _
  // Predicated region
  $region62: #{trajnet_forward.1} parent=0 // pred_check
    _
  $region63: #{trajnet_forward.1} parent=0 // pred_check_branch
    %115 = sbr.rel (0) target = $region65
  $region64: #{trajnet_forward.1} parent=0 // pred_region
    _
  $region65: #{trajnet_forward.1} parent=0 // pred_fallthru
    _
  // Predicated region
  $region66: #{trajnet_forward.1} parent=0 // pred_check
    _
  $region67: #{trajnet_forward.1} parent=0 // pred_check_branch
    %117 = sbr.rel (0) target = $region69
  $region68: #{trajnet_forward.1} parent=0 // pred_region
    _
  $region69: #{trajnet_forward.1} parent=0 // pred_fallthru
    _
  // Predicated region
  $region70: #{trajnet_forward.1} parent=0 // pred_check
    _
  $region71: #{trajnet_forward.1} parent=0 // pred_check_branch
    %119 = sbr.rel (0) target = $region73
  $region72: #{trajnet_forward.1} parent=0 // pred_region
    _
  $region73: #{trajnet_forward.1} parent=0 // pred_fallthru
    _
  // Predicated region
  $region74: #{trajnet_forward.1} parent=0 // pred_check
    _
  $region75: #{trajnet_forward.1} parent=0 // pred_check_branch
    %121 = sbr.rel (0) target = $region77
  $region76: #{trajnet_forward.1} parent=0 // pred_region
    _
  $region77: #{trajnet_forward.1} parent=0 // pred_fallthru
    _
  // Predicated region
  $region78: #{trajnet_forward.1} parent=0 // pred_check
    _
  $region79: #{trajnet_forward.1} parent=0 // pred_check_branch
    %123 = sbr.rel (0) target = $region81
  $region80: #{trajnet_forward.1} parent=0 // pred_region
    _
  $region81: #{trajnet_forward.1} parent=0 // pred_fallthru
    _
  // Predicated region
  $region82: #{trajnet_forward.1} parent=0 // pred_check
    _
  $region83: #{trajnet_forward.1} parent=0 // pred_check_branch
    %125 = sbr.rel (0) target = $region85
  $region84: #{trajnet_forward.1} parent=0 // pred_region
    _
  $region85: #{trajnet_forward.1} parent=0 // pred_fallthru
    _
  // Predicated region
  $region86: #{trajnet_forward.1} parent=0 // pred_check
    _
  $region87: #{trajnet_forward.1} parent=0 // pred_check_branch
    %127 = sbr.rel (0) target = $region89
  $region88: #{trajnet_forward.1} parent=0 // pred_region
    _
  $region89: #{trajnet_forward.1} parent=0 // pred_fallthru
    _
  // Predicated region
  $region90: #{trajnet_forward.1} parent=0 // pred_check
    _
  $region91: #{trajnet_forward.1} parent=0 // pred_check_branch
    %129 = sbr.rel (0) target = $region93
  $region92: #{trajnet_forward.1} parent=0 // pred_region
    _
  $region93: #{trajnet_forward.1} parent=0 // pred_fallthru
    _
  // Predicated region
  $region94: #{trajnet_forward.1} parent=0 // pred_check
    _
  $region95: #{trajnet_forward.1} parent=0 // pred_check_branch
    %131 = sbr.rel (0) target = $region97
  $region96: #{trajnet_forward.1} parent=0 // pred_region
    _
  $region97: #{trajnet_forward.1} parent=0 // pred_fallthru
    _
  // Predicated region
  $region98: #{trajnet_forward.1} parent=0 // pred_check
    _
  $region99: #{trajnet_forward.1} parent=0 // pred_check_branch
    %133 = sbr.rel (0) target = $region101
  $region100: #{trajnet_forward.1} parent=0 // pred_region
    _
  $region101: #{trajnet_forward.1} parent=0 // pred_fallthru
    _
  // Predicated region
  $region102: #{trajnet_forward.1} parent=0 // pred_check
    _
  $region103: #{trajnet_forward.1} parent=0 // pred_check_branch
    %135 = sbr.rel (0) target = $region105
  $region104: #{trajnet_forward.1} parent=0 // pred_region
    _
  $region105: #{trajnet_forward.1} parent=0 // pred_fallthru
    _
  // Predicated region
  $region106: #{trajnet_forward.1} parent=0 // pred_check
    _
  $region107: #{trajnet_forward.1} parent=0 // pred_check_branch
    %137 = sbr.rel (0) target = $region109
  $region108: #{trajnet_forward.1} parent=0 // pred_region
    _
  $region109: #{trajnet_forward.1} parent=0 // pred_fallthru
    _
  // Predicated region
  $region110: #{trajnet_forward.1} parent=0 // pred_check
    _
  $region111: #{trajnet_forward.1} parent=0 // pred_check_branch
    %139 = sbr.rel (0) target = $region113
  $region112: #{trajnet_forward.1} parent=0 // pred_region
    _
  $region113: #{trajnet_forward.1} parent=0 // pred_fallthru
    _
  // Predicated region
  $region114: #{trajnet_forward.1} parent=0 // pred_check
    _
  $region115: #{trajnet_forward.1} parent=0 // pred_check_branch
    %141 = sbr.rel (0) target = $region117
  $region116: #{trajnet_forward.1} parent=0 // pred_region
    _
  $region117: #{trajnet_forward.1} parent=0 // pred_fallthru
    _
  // Predicated region
  $region118: #{trajnet_forward.1} parent=0 // pred_check
    _
  $region119: #{trajnet_forward.1} parent=0 // pred_check_branch
    %143 = sbr.rel (0) target = $region121
  $region120: #{trajnet_forward.1} parent=0 // pred_region
    _
  $region121: #{trajnet_forward.1} parent=0 // pred_fallthru
    _
  // Predicated region
  $region122: #{trajnet_forward.1} parent=0 // pred_check
    _
  $region123: #{trajnet_forward.1} parent=0 // pred_check_branch
    %145 = sbr.rel (0) target = $region125
  $region124: #{trajnet_forward.1} parent=0 // pred_region
    _
  $region125: #{trajnet_forward.1} parent=0 // pred_fallthru
    _
  // Predicated region
  $region126: #{trajnet_forward.1} parent=0 // pred_check
    _
  $region127: #{trajnet_forward.1} parent=0 // pred_check_branch
    %147 = sbr.rel (0) target = $region129
  $region128: #{trajnet_forward.1} parent=0 // pred_region
    _
  $region129: #{trajnet_forward.1} parent=0 // pred_fallthru
    _
  // Predicated region
  $region130: #{trajnet_forward.1} parent=0 // pred_check
    _
  $region131: #{trajnet_forward.1} parent=0 // pred_check_branch
    %149 = sbr.rel (0) target = $region133
  $region132: #{trajnet_forward.1} parent=0 // pred_region
    _
  $region133: #{trajnet_forward.1} parent=0 // pred_fallthru
    _
  // Predicated region
  $region134: #{trajnet_forward.1} parent=0 // pred_check
    _
  $region135: #{trajnet_forward.1} parent=0 // pred_check_branch
    %151 = sbr.rel (0) target = $region137
  $region136: #{trajnet_forward.1} parent=0 // pred_region
    _
  $region137: #{trajnet_forward.1} parent=0 // pred_fallthru
    _
  // Predicated region
  $region138: #{trajnet_forward.1} parent=0 // pred_check
    _
  $region139: #{trajnet_forward.1} parent=0 // pred_check_branch
    %153 = sbr.rel (0) target = $region141
  $region140: #{trajnet_forward.1} parent=0 // pred_region
    _
  $region141: #{trajnet_forward.1} parent=0 // pred_fallthru
    _
  // Predicated region
  $region142: #{trajnet_forward.1} parent=0 // pred_check
    _
  $region143: #{trajnet_forward.1} parent=0 // pred_check_branch
    %155 = sbr.rel (0) target = $region145
  $region144: #{trajnet_forward.1} parent=0 // pred_region
    _
  $region145: #{trajnet_forward.1} parent=0 // pred_fallthru
    _
  // Predicated region
  $region146: #{trajnet_forward.1} parent=0 // pred_check
    _
  $region147: #{trajnet_forward.1} parent=0 // pred_check_branch
    %157 = sbr.rel (0) target = $region149
  $region148: #{trajnet_forward.1} parent=0 // pred_region
    _
  $region149: #{trajnet_forward.1} parent=0 // pred_fallthru
    _
  // Predicated region
  $region150: #{trajnet_forward.1} parent=0 // pred_check
    _
  $region151: #{trajnet_forward.1} parent=0 // pred_check_branch
    %159 = sbr.rel (0) target = $region153
  $region152: #{trajnet_forward.1} parent=0 // pred_region
    _
  $region153: #{trajnet_forward.1} parent=0 // pred_fallthru
    _
  // Predicated region
  $region154: #{trajnet_forward.1} parent=0 // pred_check
    _
  $region155: #{trajnet_forward.1} parent=0 // pred_check_branch
    %161 = sbr.rel (0) target = $region157
  $region156: #{trajnet_forward.1} parent=0 // pred_region
    _
  $region157: #{trajnet_forward.1} parent=0 // pred_fallthru
    _
  %v163 = vld [vmem:[%s1] sm:$0xf]
  %v164 = vld [vmem:[%s1 + $0x4] sm:$0xf]
  %v165 = vld [vmem:[%s1 + $0x8] sm:$0xf]
  %v166 = vld [vmem:[%s1 + $0xc] sm:$0xf]
  %v167 = vld [vmem:[%s1 + $0x10] sm:$0xf]
  %v168 = vld [vmem:[%s1 + $0x14] sm:$0xf]
  %v169 = vld [vmem:[%s1 + $0x18] sm:$0xf]
  %v170 = vld [vmem:[%s1 + $0x1c] sm:$0xf]
  %v171 = vld [vmem:[%s1 + $0x20] sm:$0xf]
  %v172 = vld [vmem:[%s1 + $0x24] sm:$0xf]
  %v173 = vld [vmem:[%s1 + $0x28] sm:$0xf]
  %v174 = vld [vmem:[%s1 + $0x2c] sm:$0xf]
  %v175 = vld [vmem:[%s1 + $0x30] sm:$0xf]
  %v176 = vld [vmem:[%s1 + $0x34] sm:$0xf]
  %v177 = vld [vmem:[%s1 + $0x38] sm:$0xf]
  %v178 = vld [vmem:[%s1 + $0x3c] sm:$0xf]
  %v179 = vld [vmem:[%s13] sm:$0xf]
  %v180 = vld [vmem:[%s15] sm:$0x1]
  %v182 = vlaneseq
  %v183 = vshrl.u32 %v182, 7
  %v184 = vsub.s32 0, %v183
  %v185 = vrot.slane %v180, %v184
  %v203 = vunpack.c.l.b16 %v163
  %v204 = vunpack.c.l.b16 %v164
  %v205 = vunpack.c.l.b16 %v165
  %v206 = vunpack.c.l.b16 %v166
  %v207 = vunpack.c.l.b16 %v167
  %v208 = vunpack.c.l.b16 %v168
  %v209 = vunpack.c.l.b16 %v169
  %v210 = vunpack.c.l.b16 %v170
  %v211 = vunpack.c.l.b16 %v171
  %v212 = vunpack.c.l.b16 %v172
  %v213 = vunpack.c.l.b16 %v173
  %v214 = vunpack.c.l.b16 %v174
  %v215 = vunpack.c.l.b16 %v175
  %v216 = vunpack.c.l.b16 %v176
  %v217 = vunpack.c.l.b16 %v177
  %v218 = vunpack.c.l.b16 %v178
  %v219 = vpack.c.b16 %v204, %v203
  %v220 = vpack.c.b16 %v206, %v205
  %v221 = vpack.c.b16 %v208, %v207
  %v222 = vpack.c.b16 %v210, %v209
  %v223 = vpack.c.b16 %v212, %v211
  %v224 = vpack.c.b16 %v214, %v213
  %v225 = vpack.c.b16 %v216, %v215
  %v226 = vpack.c.b16 %v218, %v217
  %vm227 = vcmask 64512
  %v229 = vsel %vm227, %v219, 0
  %v232 = vsel %vm227, %v220, 0
  %v235 = vsel %vm227, %v221, 0
  %v238 = vsel %vm227, %v222, 0
  %v241 = vsel %vm227, %v223, 0
  %v244 = vsel %vm227, %v224, 0
  %v247 = vsel %vm227, %v225, 0
  %v250 = vsel %vm227, %v226, 0
  %vm252 = vcmask 1043456
  %v254 = vsel %vm252, %v179, 0
  %256 = vmatprep.subr.bf16.mxu0 0
  %257 = vmatpush1.bf16.msra.mxu0 %v254
  %258 = vmatprep.subr.bf16.mxu0 0
  %259 = vmatpush1.bf16.msra.mxu0 0
  %260 = vmatprep.subr.bf16.mxu0 0
  %261 = vmatpush1.bf16.msra.mxu0 0
  %262 = vmatprep.subr.bf16.mxu0 0
  %263 = vmatpush1.bf16.msra.mxu0 0
  %264 = vmatprep.subr.bf16.mxu0 0
  %265 = vmatpush1.bf16.msra.mxu0 0
  %266 = vmatprep.subr.bf16.mxu0 0
  %267 = vmatpush1.bf16.msra.mxu0 0
  %268 = vmatprep.subr.bf16.mxu0 0
  %269 = vmatpush1.bf16.msra.mxu0 0
  %270 = vmatprep.subr.bf16.mxu0 0
  %271 = vmatpush1.bf16.msra.mxu0 0
  %272 = vmatprep.subr.bf16.mxu0 0
  %273 = vmatpush1.bf16.msra.mxu0 0
  %274 = vmatprep.subr.bf16.mxu0 0
  %275 = vmatpush1.bf16.msra.mxu0 0
  %276 = vmatprep.subr.bf16.mxu0 0
  %277 = vmatpush1.bf16.msra.mxu0 0
  %278 = vmatprep.subr.bf16.mxu0 0
  %279 = vmatpush1.bf16.msra.mxu0 0
  %280 = vmatprep.subr.bf16.mxu0 0
  %281 = vmatpush1.bf16.msra.mxu0 0
  %282 = vmatprep.subr.bf16.mxu0 0
  %283 = vmatpush1.bf16.msra.mxu0 0
  %284 = vmatprep.subr.bf16.mxu0 0
  %285 = vmatpush1.bf16.msra.mxu0 0
  %286 = vmatprep.subr.bf16.mxu0 0
  %287 = vmatpush1.bf16.msra.mxu0 0
  %288 = vmatprep.mubr.bf16.mxu0 0
  %289 = vmatmul.mubr.bf16.gmra.mrb[0].mxu0 %v229
  %v290 = vpop.f32.mrb[0].mxu0
  %v291 = vadd.f32 %v185, %v290
  %v292 = vpop.f32.mrb[0].mxu0
  %v293 = vpop.f32.mrb[0].mxu0
  %v294 = vadd.f32 %v185, %v293
  %v295 = vpop.f32.mrb[0].mxu0
  %296 = vmatprep.mubr.bf16.mxu0 0
  %297 = vmatmul.mubr.bf16.gmra.mrb[0].mxu0 %v232
  %v298 = vpop.f32.mrb[0].mxu0
  %v299 = vadd.f32 %v185, %v298
  %v300 = vpop.f32.mrb[0].mxu0
  %v301 = vpop.f32.mrb[0].mxu0
  %v302 = vadd.f32 %v185, %v301
  %v303 = vpop.f32.mrb[0].mxu0
  %304 = vmatprep.mubr.bf16.mxu0 0
  %305 = vmatmul.mubr.bf16.gmra.mrb[0].mxu0 %v235
  %v306 = vpop.f32.mrb[0].mxu0
  %v307 = vadd.f32 %v185, %v306
  %v308 = vpop.f32.mrb[0].mxu0
  %v309 = vpop.f32.mrb[0].mxu0
  %v310 = vadd.f32 %v185, %v309
  %v311 = vpop.f32.mrb[0].mxu0
  %312 = vmatprep.mubr.bf16.mxu0 0
  %313 = vmatmul.mubr.bf16.gmra.mrb[0].mxu0 %v238
  %v314 = vpop.f32.mrb[0].mxu0
  %v315 = vadd.f32 %v185, %v314
  %v316 = vpop.f32.mrb[0].mxu0
  %v317 = vpop.f32.mrb[0].mxu0
  %v318 = vadd.f32 %v185, %v317
  %v319 = vpop.f32.mrb[0].mxu0
  %320 = vmatprep.mubr.bf16.mxu0 0
  %321 = vmatmul.mubr.bf16.gmra.mrb[0].mxu0 %v241
  %v322 = vpop.f32.mrb[0].mxu0
  %v323 = vadd.f32 %v185, %v322
  %v324 = vpop.f32.mrb[0].mxu0
  %v325 = vpop.f32.mrb[0].mxu0
  %v326 = vadd.f32 %v185, %v325
  %v327 = vpop.f32.mrb[0].mxu0
  %328 = vmatprep.mubr.bf16.mxu0 0
  %329 = vmatmul.mubr.bf16.gmra.mrb[0].mxu0 %v244
  %v330 = vpop.f32.mrb[0].mxu0
  %v331 = vadd.f32 %v185, %v330
  %v332 = vpop.f32.mrb[0].mxu0
  %v333 = vpop.f32.mrb[0].mxu0
  %v334 = vadd.f32 %v185, %v333
  %v335 = vpop.f32.mrb[0].mxu0
  %336 = vmatprep.mubr.bf16.mxu0 0
  %337 = vmatmul.mubr.bf16.gmra.mrb[0].mxu0 %v247
  %v338 = vpop.f32.mrb[0].mxu0
  %v339 = vadd.f32 %v185, %v338
  %v340 = vpop.f32.mrb[0].mxu0
  %v341 = vpop.f32.mrb[0].mxu0
  %v342 = vadd.f32 %v185, %v341
  %v343 = vpop.f32.mrb[0].mxu0
  %344 = vmatprep.mubr.bf16.mxu0 0
  %345 = vmatmul.mubr.bf16.gmra.mrb[0].mxu0 %v250
  %v346 = vpop.f32.mrb[0].mxu0
  %v347 = vadd.f32 %v185, %v346
  %v348 = vpop.f32.mrb[0].mxu0
  %v349 = vpop.f32.mrb[0].mxu0
  %v350 = vadd.f32 %v185, %v349
  %v351 = vpop.f32.mrb[0].mxu0
  %352 = vdwg.mxu0
  %vm353 = vcmp.gt.f32.partialorder %v291, 0.0
  %vm354 = vcmp.gt.f32.partialorder %v294, 0.0
  %vm355 = vcmp.gt.f32.partialorder %v299, 0.0
  %vm356 = vcmp.gt.f32.partialorder %v302, 0.0
  %vm357 = vcmp.gt.f32.partialorder %v307, 0.0
  %vm358 = vcmp.gt.f32.partialorder %v310, 0.0
  %vm359 = vcmp.gt.f32.partialorder %v315, 0.0
  %vm360 = vcmp.gt.f32.partialorder %v318, 0.0
  %vm361 = vcmp.gt.f32.partialorder %v323, 0.0
  %vm362 = vcmp.gt.f32.partialorder %v326, 0.0
  %vm363 = vcmp.gt.f32.partialorder %v331, 0.0
  %vm364 = vcmp.gt.f32.partialorder %v334, 0.0
  %vm365 = vcmp.gt.f32.partialorder %v339, 0.0
  %vm366 = vcmp.gt.f32.partialorder %v342, 0.0
  %vm367 = vcmp.gt.f32.partialorder %v347, 0.0
  %vm368 = vcmp.gt.f32.partialorder %v350, 0.0
  %v369 = vmul.f32 %v291, 1.442695
  %v370 = vpow.pop %v369
  %v371 = vmul.f32 %v294, 1.442695
  %v372 = vpow.pop %v371
  %v373 = vmul.f32 %v299, 1.442695
  %v374 = vpow.pop %v373
  %v375 = vmul.f32 %v302, 1.442695
  %v376 = vpow.pop %v375
  %v377 = vmul.f32 %v307, 1.442695
  %v378 = vpow.pop %v377
  %v379 = vmul.f32 %v310, 1.442695
  %v380 = vpow.pop %v379
  %v381 = vmul.f32 %v315, 1.442695
  %v382 = vpow.pop %v381
  %v383 = vmul.f32 %v318, 1.442695
  %v384 = vpow.pop %v383
  %v385 = vmul.f32 %v323, 1.442695
  %v386 = vpow.pop %v385
  %v387 = vmul.f32 %v326, 1.442695
  %v388 = vpow.pop %v387
  %v389 = vmul.f32 %v331, 1.442695
  %v390 = vpow.pop %v389
  %v391 = vmul.f32 %v334, 1.442695
  %v392 = vpow.pop %v391
  %v393 = vmul.f32 %v339, 1.442695
  %v394 = vpow.pop %v393
  %v395 = vmul.f32 %v342, 1.442695
  %v396 = vpow.pop %v395
  %v397 = vmul.f32 %v347, 1.442695
  %v398 = vpow.pop %v397
  %v399 = vmul.f32 %v350, 1.442695
  %v400 = vpow.pop %v399
  %v401 = vsub.f32 %v370, 1.0
  %v402 = vsub.f32 %v372, 1.0
  %v403 = vsub.f32 %v374, 1.0
  %v404 = vsub.f32 %v376, 1.0
  %v405 = vsub.f32 %v378, 1.0
  %v406 = vsub.f32 %v380, 1.0
  %v407 = vsub.f32 %v382, 1.0
  %v408 = vsub.f32 %v384, 1.0
  %v409 = vsub.f32 %v386, 1.0
  %v410 = vsub.f32 %v388, 1.0
  %v411 = vsub.f32 %v390, 1.0
  %v412 = vsub.f32 %v392, 1.0
  %v413 = vsub.f32 %v394, 1.0
  %v414 = vsub.f32 %v396, 1.0
  %v415 = vsub.f32 %v398, 1.0
  %v416 = vsub.f32 %v400, 1.0
  %v417 = vsel %vm353, %v291, %v401
  %v418 = vsel %vm354, %v294, %v402
  %v419 = vsel %vm355, %v299, %v403
  %v420 = vsel %vm356, %v302, %v404
  %v421 = vsel %vm357, %v307, %v405
  %v422 = vsel %vm358, %v310, %v406
  %v423 = vsel %vm359, %v315, %v407
  %v424 = vsel %vm360, %v318, %v408
  %v425 = vsel %vm361, %v323, %v409
  %v426 = vsel %vm362, %v326, %v410
  %v427 = vsel %vm363, %v331, %v411
  %v428 = vsel %vm364, %v334, %v412
  %v429 = vsel %vm365, %v339, %v413
  %v430 = vsel %vm366, %v342, %v414
  %v431 = vsel %vm367, %v347, %v415
  %v432 = vsel %vm368, %v350, %v416
  %v433 = vpack.c.bf16 %v418, %v417
  %v434 = vpack.c.bf16 %v420, %v419
  %v435 = vpack.c.bf16 %v422, %v421
  %v436 = vpack.c.bf16 %v424, %v423
  %v437 = vpack.c.bf16 %v426, %v425
  %v438 = vpack.c.bf16 %v428, %v427
  %v439 = vpack.c.bf16 %v430, %v429
  %v440 = vpack.c.bf16 %v432, %v431
  %v441 = vlaneseq
  %v442 = vshrl.u32 %v441, 7
  %v443 = vadd.s32 %v442, 8
  %v444 = vadd.s32 %v442, 16
  %v445 = vadd.s32 %v442, 24
  %v446 = vadd.s32 %v442, 32
  %v447 = vadd.s32 %v442, 40
  %v448 = vadd.s32 %v442, 48
  %v449 = vadd.s32 %v442, 56
  %v450 = vadd.s32 %v442, 64
  %v451 = vadd.s32 %v442, 72
  %v452 = vadd.s32 %v442, 80
  %v453 = vadd.s32 %v442, 88
  %v454 = vadd.s32 %v442, 96
  %v455 = vadd.s32 %v442, 104
  %v456 = vadd.s32 %v442, 112
  %v457 = vadd.s32 %v442, 120
  %v458 = vlaneseq
  %v459 = vand.u32 %v458, 127
  %v460 = vand.u32 %v442, 15
  %v461 = vand.u32 %v443, 15
  %v462 = vand.u32 %v444, 15
  %v463 = vand.u32 %v445, 15
  %v464 = vand.u32 %v446, 15
  %v465 = vand.u32 %v447, 15
  %v466 = vand.u32 %v448, 15
  %v467 = vand.u32 %v449, 15
  %v468 = vand.u32 %v450, 15
  %v469 = vand.u32 %v451, 15
  %v470 = vand.u32 %v452, 15
  %v471 = vand.u32 %v453, 15
  %v472 = vand.u32 %v454, 15
  %v473 = vand.u32 %v455, 15
  %v474 = vand.u32 %v456, 15
  %v475 = vand.u32 %v457, 15
  %v476 = vand.u32 %v459, 15
  %vm477 = vcmp.eq.s32.totalorder %v460, %v476
  %vm478 = vcmp.eq.s32.totalorder %v461, %v476
  %vm479 = vcmp.eq.s32.totalorder %v462, %v476
  %vm480 = vcmp.eq.s32.totalorder %v463, %v476
  %vm481 = vcmp.eq.s32.totalorder %v464, %v476
  %vm482 = vcmp.eq.s32.totalorder %v465, %v476
  %vm483 = vcmp.eq.s32.totalorder %v466, %v476
  %vm484 = vcmp.eq.s32.totalorder %v467, %v476
  %vm485 = vcmp.eq.s32.totalorder %v468, %v476
  %vm486 = vcmp.eq.s32.totalorder %v469, %v476
  %vm487 = vcmp.eq.s32.totalorder %v470, %v476
  %vm488 = vcmp.eq.s32.totalorder %v471, %v476
  %vm489 = vcmp.eq.s32.totalorder %v472, %v476
  %vm490 = vcmp.eq.s32.totalorder %v473, %v476
  %vm491 = vcmp.eq.s32.totalorder %v474, %v476
  %vm492 = vcmp.eq.s32.totalorder %v475, %v476
  %v493 = vld [vmem:[%s3] sm:$0xff]
  %v494 = vld [vmem:[%s3 + $0x8] sm:$0xff]
  %v495 = vld [vmem:[%s3 + $0x10] sm:$0xff]
  %v496 = vld [vmem:[%s3 + $0x18] sm:$0xff]
  %v497 = vld [vmem:[%s3 + $0x20] sm:$0xff]
  %v498 = vld [vmem:[%s3 + $0x28] sm:$0xff]
  %v499 = vld [vmem:[%s3 + $0x30] sm:$0xff]
  %v500 = vld [vmem:[%s3 + $0x38] sm:$0xff]
  %v501 = vld [vmem:[%s3 + $0x40] sm:$0xff]
  %v502 = vld [vmem:[%s3 + $0x48] sm:$0xff]
  %v503 = vld [vmem:[%s3 + $0x50] sm:$0xff]
  %v504 = vld [vmem:[%s3 + $0x58] sm:$0xff]
  %v505 = vld [vmem:[%s3 + $0x60] sm:$0xff]
  %v506 = vld [vmem:[%s3 + $0x68] sm:$0xff]
  %v507 = vld [vmem:[%s3 + $0x70] sm:$0xff]
  %v508 = vld [vmem:[%s3 + $0x78] sm:$0xff]
  %v509 = vld [vmem:[%s5] sm:$0x1]
  %511 = vset.pattern.permute.xlu0 0
  %512 = vperm.xlu0 %511, %v493
  %v513 = vpop.permute.xlu0 %512
  %516 = vset.pattern.permute.xlu0 0
  %517 = vperm.xlu0 %516, %v494
  %v518 = vpop.permute.xlu0 %517
  %521 = vset.pattern.permute.xlu0 0
  %522 = vperm.xlu0 %521, %v495
  %v523 = vpop.permute.xlu0 %522
  %526 = vset.pattern.permute.xlu0 0
  %527 = vperm.xlu0 %526, %v496
  %v528 = vpop.permute.xlu0 %527
  %531 = vset.pattern.permute.xlu0 0
  %532 = vperm.xlu0 %531, %v497
  %v533 = vpop.permute.xlu0 %532
  %536 = vset.pattern.permute.xlu0 0
  %537 = vperm.xlu0 %536, %v498
  %v538 = vpop.permute.xlu0 %537
  %541 = vset.pattern.permute.xlu0 0
  %542 = vperm.xlu0 %541, %v499
  %v543 = vpop.permute.xlu0 %542
  %546 = vset.pattern.permute.xlu0 0
  %547 = vperm.xlu0 %546, %v500
  %v548 = vpop.permute.xlu0 %547
  %551 = vset.pattern.permute.xlu0 0
  %552 = vperm.xlu0 %551, %v501
  %v553 = vpop.permute.xlu0 %552
  %556 = vset.pattern.permute.xlu0 0
  %557 = vperm.xlu0 %556, %v502
  %v558 = vpop.permute.xlu0 %557
  %561 = vset.pattern.permute.xlu0 0
  %562 = vperm.xlu0 %561, %v503
  %v563 = vpop.permute.xlu0 %562
  %566 = vset.pattern.permute.xlu0 0
  %567 = vperm.xlu0 %566, %v504
  %v568 = vpop.permute.xlu0 %567
  %571 = vset.pattern.permute.xlu0 0
  %572 = vperm.xlu0 %571, %v505
  %v573 = vpop.permute.xlu0 %572
  %576 = vset.pattern.permute.xlu0 0
  %577 = vperm.xlu0 %576, %v506
  %v578 = vpop.permute.xlu0 %577
  %581 = vset.pattern.permute.xlu0 0
  %582 = vperm.xlu0 %581, %v507
  %v583 = vpop.permute.xlu0 %582
  %586 = vset.pattern.permute.xlu0 0
  %587 = vperm.xlu0 %586, %v508
  %v588 = vpop.permute.xlu0 %587
  %v591 = vlaneseq
  %v592 = vshrl.u32 %v591, 7
  %v593 = vsub.s32 0, %v592
  %v594 = vrot.slane %v509, %v593
  %v596 = vmul.f32 %v513, %v594
  %v597 = vmul.f32 %v518, %v594
  %v598 = vmul.f32 %v523, %v594
  %v599 = vmul.f32 %v528, %v594
  %v600 = vmul.f32 %v533, %v594
  %v601 = vmul.f32 %v538, %v594
  %v602 = vmul.f32 %v543, %v594
  %v603 = vmul.f32 %v548, %v594
  %v604 = vmul.f32 %v553, %v594
  %v605 = vmul.f32 %v558, %v594
  %v606 = vmul.f32 %v563, %v594
  %v607 = vmul.f32 %v568, %v594
  %v608 = vmul.f32 %v573, %v594
  %v609 = vmul.f32 %v578, %v594
  %v610 = vmul.f32 %v583, %v594
  %v611 = vmul.f32 %v588, %v594
  %v612 = vsub.f32 1.0, %v596
  %v613 = vsub.f32 1.0, %v597
  %v614 = vsub.f32 1.0, %v598
  %v615 = vsub.f32 1.0, %v599
  %v616 = vsub.f32 1.0, %v600
  %v617 = vsub.f32 1.0, %v601
  %v618 = vsub.f32 1.0, %v602
  %v619 = vsub.f32 1.0, %v603
  %v620 = vsub.f32 1.0, %v604
  %v621 = vsub.f32 1.0, %v605
  %v622 = vsub.f32 1.0, %v606
  %v623 = vsub.f32 1.0, %v607
  %v624 = vsub.f32 1.0, %v608
  %v625 = vsub.f32 1.0, %v609
  %v626 = vsub.f32 1.0, %v610
  %v627 = vsub.f32 1.0, %v611
  %v628 = vmul.f32 %v612, -1e+09
  %v629 = vmul.f32 %v613, -1e+09
  %v630 = vmul.f32 %v614, -1e+09
  %v631 = vmul.f32 %v615, -1e+09
  %v632 = vmul.f32 %v616, -1e+09
  %v633 = vmul.f32 %v617, -1e+09
  %v634 = vmul.f32 %v618, -1e+09
  %v635 = vmul.f32 %v619, -1e+09
  %v636 = vmul.f32 %v620, -1e+09
  %v637 = vmul.f32 %v621, -1e+09
  %v638 = vmul.f32 %v622, -1e+09
  %v639 = vmul.f32 %v623, -1e+09
  %v640 = vmul.f32 %v624, -1e+09
  %v641 = vmul.f32 %v625, -1e+09
  %v642 = vmul.f32 %v626, -1e+09
  %v643 = vmul.f32 %v627, -1e+09
  %v644 = vsel %vm477, %v628, -2e+09
  %v645 = vsel %vm478, %v629, -2e+09
  %v646 = vsel %vm479, %v630, -2e+09
  %v647 = vsel %vm480, %v631, -2e+09
  %v648 = vsel %vm481, %v632, -2e+09
  %v649 = vsel %vm482, %v633, -2e+09
  %v650 = vsel %vm483, %v634, -2e+09
  %v651 = vsel %vm484, %v635, -2e+09
  %v652 = vsel %vm485, %v636, -2e+09
  %v653 = vsel %vm486, %v637, -2e+09
  %v654 = vsel %vm487, %v638, -2e+09
  %v655 = vsel %vm488, %v639, -2e+09
  %v656 = vsel %vm489, %v640, -2e+09
  %v657 = vsel %vm490, %v641, -2e+09
  %v658 = vsel %vm491, %v642, -2e+09
  %v659 = vsel %vm492, %v643, -2e+09
  %v660 = vld [vmem:[%s17] sm:$0xf]
  %v661 = vld [vmem:[%s17 + $0x4] sm:$0xf]
  %v662 = vld [vmem:[%s17 + $0x8] sm:$0xf]
  %v663 = vld [vmem:[%s17 + $0xc] sm:$0xf]
  %v664 = vld [vmem:[%s17 + $0x10] sm:$0xf]
  %v665 = vld [vmem:[%s17 + $0x14] sm:$0xf]
  %v666 = vld [vmem:[%s17 + $0x18] sm:$0xf]
  %v667 = vld [vmem:[%s17 + $0x1c] sm:$0xf]
  %v668 = vld [vmem:[%s19] sm:$0x1]
  %v670 = vlaneseq
  %v671 = vshrl.u32 %v670, 7
  %v672 = vsub.s32 0, %v671
  %v673 = vrot.slane %v668, %v672
  %v683 = vunpack.c.l.b16 %v660
  %v684 = vunpack.c.l.b16 %v661
  %v685 = vunpack.c.l.b16 %v662
  %v686 = vunpack.c.l.b16 %v663
  %v687 = vunpack.c.l.b16 %v664
  %v688 = vunpack.c.l.b16 %v665
  %v689 = vunpack.c.l.b16 %v666
  %v690 = vunpack.c.l.b16 %v667
  %v691 = vpack.c.b16 %v684, %v683
  %v692 = vpack.c.b16 %v686, %v685
  %v693 = vpack.c.b16 %v688, %v687
  %v694 = vpack.c.b16 %v690, %v689
  %vm699 = vcmask 523264
  %v701 = vsel %vm699, %v433, 0
  %v704 = vsel %vm699, %v434, 0
  %v707 = vsel %vm699, %v435, 0
  %v710 = vsel %vm699, %v436, 0
  %v713 = vsel %vm699, %v437, 0
  %v716 = vsel %vm699, %v438, 0
  %v719 = vsel %vm699, %v439, 0
  %v722 = vsel %vm699, %v440, 0
  %724 = vmatprep.subr.bf16.mxu0 0
  %725 = vmatpush1.bf16.msra.mxu0 %v691
  %726 = vmatprep.subr.bf16.mxu0 0
  %727 = vmatpush1.bf16.msra.mxu0 %v692
  %728 = vmatprep.subr.bf16.mxu0 0
  %729 = vmatpush1.bf16.msra.mxu0 %v693
  %730 = vmatprep.subr.bf16.mxu0 0
  %731 = vmatpush1.bf16.msra.mxu0 %v694
  %732 = vmatprep.subr.bf16.mxu0 0
  %733 = vmatpush1.bf16.msra.mxu0 0
  %734 = vmatprep.subr.bf16.mxu0 0
  %735 = vmatpush1.bf16.msra.mxu0 0
  %736 = vmatprep.subr.bf16.mxu0 0
  %737 = vmatpush1.bf16.msra.mxu0 0
  %738 = vmatprep.subr.bf16.mxu0 0
  %739 = vmatpush1.bf16.msra.mxu0 0
  %740 = vmatprep.subr.bf16.mxu0 0
  %741 = vmatpush1.bf16.msra.mxu0 0
  %742 = vmatprep.subr.bf16.mxu0 0
  %743 = vmatpush1.bf16.msra.mxu0 0
  %744 = vmatprep.subr.bf16.mxu0 0
  %745 = vmatpush1.bf16.msra.mxu0 0
  %746 = vmatprep.subr.bf16.mxu0 0
  %747 = vmatpush1.bf16.msra.mxu0 0
  %748 = vmatprep.subr.bf16.mxu0 0
  %749 = vmatpush1.bf16.msra.mxu0 0
  %750 = vmatprep.subr.bf16.mxu0 0
  %751 = vmatpush1.bf16.msra.mxu0 0
  %752 = vmatprep.subr.bf16.mxu0 0
  %753 = vmatpush1.bf16.msra.mxu0 0
  %754 = vmatprep.subr.bf16.mxu0 0
  %755 = vmatpush1.bf16.msra.mxu0 0
  %756 = vmatprep.mubr.bf16.mxu0 0
  %757 = vmatmul.mubr.bf16.gmra.mrb[0].mxu0 %v701
  %v758 = vpop.f32.mrb[0].mxu0
  %v759 = vadd.f32 %v673, %v758
  %v760 = vpop.f32.mrb[0].mxu0
  %v761 = vpop.f32.mrb[0].mxu0
  %v762 = vadd.f32 %v673, %v761
  %v763 = vpop.f32.mrb[0].mxu0
  %764 = vmatprep.mubr.bf16.mxu0 0
  %765 = vmatmul.mubr.bf16.gmra.mrb[0].mxu0 %v704
  %v766 = vpop.f32.mrb[0].mxu0
  %v767 = vadd.f32 %v673, %v766
  %v768 = vpop.f32.mrb[0].mxu0
  %v769 = vpop.f32.mrb[0].mxu0
  %v770 = vadd.f32 %v673, %v769
  %v771 = vpop.f32.mrb[0].mxu0
  %772 = vmatprep.mubr.bf16.mxu0 0
  %773 = vmatmul.mubr.bf16.gmra.mrb[0].mxu0 %v707
  %v774 = vpop.f32.mrb[0].mxu0
  %v775 = vadd.f32 %v673, %v774
  %v776 = vpop.f32.mrb[0].mxu0
  %v777 = vpop.f32.mrb[0].mxu0
  %v778 = vadd.f32 %v673, %v777
  %v779 = vpop.f32.mrb[0].mxu0
  %780 = vmatprep.mubr.bf16.mxu0 0
  %781 = vmatmul.mubr.bf16.gmra.mrb[0].mxu0 %v710
  %v782 = vpop.f32.mrb[0].mxu0
  %v783 = vadd.f32 %v673, %v782
  %v784 = vpop.f32.mrb[0].mxu0
  %v785 = vpop.f32.mrb[0].mxu0
  %v786 = vadd.f32 %v673, %v785
  %v787 = vpop.f32.mrb[0].mxu0
  %788 = vmatprep.mubr.bf16.mxu0 0
  %789 = vmatmul.mubr.bf16.gmra.mrb[0].mxu0 %v713
  %v790 = vpop.f32.mrb[0].mxu0
  %v791 = vadd.f32 %v673, %v790
  %v792 = vpop.f32.mrb[0].mxu0
  %v793 = vpop.f32.mrb[0].mxu0
  %v794 = vadd.f32 %v673, %v793
  %v795 = vpop.f32.mrb[0].mxu0
  %796 = vmatprep.mubr.bf16.mxu0 0
  %797 = vmatmul.mubr.bf16.gmra.mrb[0].mxu0 %v716
  %v798 = vpop.f32.mrb[0].mxu0
  %v799 = vadd.f32 %v673, %v798
  %v800 = vpop.f32.mrb[0].mxu0
  %v801 = vpop.f32.mrb[0].mxu0
  %v802 = vadd.f32 %v673, %v801
  %v803 = vpop.f32.mrb[0].mxu0
  %804 = vmatprep.mubr.bf16.mxu0 0
  %805 = vmatmul.mubr.bf16.gmra.mrb[0].mxu0 %v719
  %v806 = vpop.f32.mrb[0].mxu0
  %v807 = vadd.f32 %v673, %v806
  %v808 = vpop.f32.mrb[0].mxu0
  %v809 = vpop.f32.mrb[0].mxu0
  %v810 = vadd.f32 %v673, %v809
  %v811 = vpop.f32.mrb[0].mxu0
  %812 = vmatprep.mubr.bf16.mxu0 0
  %813 = vmatmul.mubr.bf16.gmra.mrb[0].mxu0 %v722
  %v814 = vpop.f32.mrb[0].mxu0
  %v815 = vadd.f32 %v673, %v814
  %v816 = vpop.f32.mrb[0].mxu0
  %v817 = vpop.f32.mrb[0].mxu0
  %v818 = vadd.f32 %v673, %v817
  %v819 = vpop.f32.mrb[0].mxu0
  %820 = vdwg.mxu0
  %v821 = vld [vmem:[%s21] sm:$0xf]
  %v822 = vld [vmem:[%s21 + $0x4] sm:$0xf]
  %v823 = vld [vmem:[%s21 + $0x8] sm:$0xf]
  %v824 = vld [vmem:[%s21 + $0xc] sm:$0xf]
  %v825 = vld [vmem:[%s21 + $0x10] sm:$0xf]
  %v826 = vld [vmem:[%s21 + $0x14] sm:$0xf]
  %v827 = vld [vmem:[%s21 + $0x18] sm:$0xf]
  %v828 = vld [vmem:[%s21 + $0x1c] sm:$0xf]
  %v829 = vld [vmem:[%s23] sm:$0x1]
  %v831 = vlaneseq
  %v832 = vshrl.u32 %v831, 7
  %v833 = vsub.s32 0, %v832
  %v834 = vrot.slane %v829, %v833
  %v844 = vunpack.c.l.b16 %v821
  %v845 = vunpack.c.l.b16 %v822
  %v846 = vunpack.c.l.b16 %v823
  %v847 = vunpack.c.l.b16 %v824
  %v848 = vunpack.c.l.b16 %v825
  %v849 = vunpack.c.l.b16 %v826
  %v850 = vunpack.c.l.b16 %v827
  %v851 = vunpack.c.l.b16 %v828
  %v852 = vpack.c.b16 %v845, %v844
  %v853 = vpack.c.b16 %v847, %v846
  %v854 = vpack.c.b16 %v849, %v848
  %v855 = vpack.c.b16 %v851, %v850
  %860 = vmatprep.subr.bf16.mxu0 0
  %861 = vmatpush1.bf16.msra.mxu0 %v852
  %862 = vmatprep.subr.bf16.mxu0 0
  %863 = vmatpush1.bf16.msra.mxu0 %v853
  %864 = vmatprep.subr.bf16.mxu0 0
  %865 = vmatpush1.bf16.msra.mxu0 %v854
  %866 = vmatprep.subr.bf16.mxu0 0
  %867 = vmatpush1.bf16.msra.mxu0 %v855
  %868 = vmatprep.subr.bf16.mxu0 0
  %869 = vmatpush1.bf16.msra.mxu0 0
  %870 = vmatprep.subr.bf16.mxu0 0
  %871 = vmatpush1.bf16.msra.mxu0 0
  %872 = vmatprep.subr.bf16.mxu0 0
  %873 = vmatpush1.bf16.msra.mxu0 0
  %874 = vmatprep.subr.bf16.mxu0 0
  %875 = vmatpush1.bf16.msra.mxu0 0
  %876 = vmatprep.subr.bf16.mxu0 0
  %877 = vmatpush1.bf16.msra.mxu0 0
  %878 = vmatprep.subr.bf16.mxu0 0
  %879 = vmatpush1.bf16.msra.mxu0 0
  %880 = vmatprep.subr.bf16.mxu0 0
  %881 = vmatpush1.bf16.msra.mxu0 0
  %882 = vmatprep.subr.bf16.mxu0 0
  %883 = vmatpush1.bf16.msra.mxu0 0
  %884 = vmatprep.subr.bf16.mxu0 0
  %885 = vmatpush1.bf16.msra.mxu0 0
  %886 = vmatprep.subr.bf16.mxu0 0
  %887 = vmatpush1.bf16.msra.mxu0 0
  %888 = vmatprep.subr.bf16.mxu0 0
  %889 = vmatpush1.bf16.msra.mxu0 0
  %890 = vmatprep.subr.bf16.mxu0 0
  %891 = vmatpush1.bf16.msra.mxu0 0
  %892 = vmatprep.mubr.bf16.mxu0 0
  %893 = vmatmul.mubr.bf16.gmra.mrb[0].mxu0 %v701
  %v894 = vpop.f32.mrb[0].mxu0
  %v895 = vadd.f32 %v834, %v894
  %v896 = vpop.f32.mrb[0].mxu0
  %v897 = vpop.f32.mrb[0].mxu0
  %v898 = vadd.f32 %v834, %v897
  %v899 = vpop.f32.mrb[0].mxu0
  %900 = vmatprep.mubr.bf16.mxu0 0
  %901 = vmatmul.mubr.bf16.gmra.mrb[0].mxu0 %v704
  %v902 = vpop.f32.mrb[0].mxu0
  %v903 = vadd.f32 %v834, %v902
  %v904 = vpop.f32.mrb[0].mxu0
  %v905 = vpop.f32.mrb[0].mxu0
  %v906 = vadd.f32 %v834, %v905
  %v907 = vpop.f32.mrb[0].mxu0
  %908 = vmatprep.mubr.bf16.mxu0 0
  %909 = vmatmul.mubr.bf16.gmra.mrb[0].mxu0 %v707
  %v910 = vpop.f32.mrb[0].mxu0
  %v911 = vadd.f32 %v834, %v910
  %v912 = vpop.f32.mrb[0].mxu0
  %v913 = vpop.f32.mrb[0].mxu0
  %v914 = vadd.f32 %v834, %v913
  %v915 = vpop.f32.mrb[0].mxu0
  %916 = vmatprep.mubr.bf16.mxu0 0
  %917 = vmatmul.mubr.bf16.gmra.mrb[0].mxu0 %v710
  %v918 = vpop.f32.mrb[0].mxu0
  %v919 = vadd.f32 %v834, %v918
  %v920 = vpop.f32.mrb[0].mxu0
  %v921 = vpop.f32.mrb[0].mxu0
  %v922 = vadd.f32 %v834, %v921
  %v923 = vpop.f32.mrb[0].mxu0
  %924 = vmatprep.mubr.bf16.mxu0 0
  %925 = vmatmul.mubr.bf16.gmra.mrb[0].mxu0 %v713
  %v926 = vpop.f32.mrb[0].mxu0
  %v927 = vadd.f32 %v834, %v926
  %v928 = vpop.f32.mrb[0].mxu0
  %v929 = vpop.f32.mrb[0].mxu0
  %v930 = vadd.f32 %v834, %v929
  %v931 = vpop.f32.mrb[0].mxu0
  %932 = vmatprep.mubr.bf16.mxu0 0
  %933 = vmatmul.mubr.bf16.gmra.mrb[0].mxu0 %v716
  %v934 = vpop.f32.mrb[0].mxu0
  %v935 = vadd.f32 %v834, %v934
  %v936 = vpop.f32.mrb[0].mxu0
  %v937 = vpop.f32.mrb[0].mxu0
  %v938 = vadd.f32 %v834, %v937
  %v939 = vpop.f32.mrb[0].mxu0
  %940 = vmatprep.mubr.bf16.mxu0 0
  %941 = vmatmul.mubr.bf16.gmra.mrb[0].mxu0 %v719
  %v942 = vpop.f32.mrb[0].mxu0
  %v943 = vadd.f32 %v834, %v942
  %v944 = vpop.f32.mrb[0].mxu0
  %v945 = vpop.f32.mrb[0].mxu0
  %v946 = vadd.f32 %v834, %v945
  %v947 = vpop.f32.mrb[0].mxu0
  %948 = vmatprep.mubr.bf16.mxu0 0
  %949 = vmatmul.mubr.bf16.gmra.mrb[0].mxu0 %v722
  %v950 = vpop.f32.mrb[0].mxu0
  %v951 = vadd.f32 %v834, %v950
  %v952 = vpop.f32.mrb[0].mxu0
  %v953 = vpop.f32.mrb[0].mxu0
  %v954 = vadd.f32 %v834, %v953
  %v955 = vpop.f32.mrb[0].mxu0
  %956 = vdwg.mxu0
  %v957 = vld [vmem:[%s25] sm:$0xf]
  %v958 = vld [vmem:[%s25 + $0x4] sm:$0xf]
  %v959 = vld [vmem:[%s25 + $0x8] sm:$0xf]
  %v960 = vld [vmem:[%s25 + $0xc] sm:$0xf]
  %v961 = vld [vmem:[%s25 + $0x10] sm:$0xf]
  %v962 = vld [vmem:[%s25 + $0x14] sm:$0xf]
  %v963 = vld [vmem:[%s25 + $0x18] sm:$0xf]
  %v964 = vld [vmem:[%s25 + $0x1c] sm:$0xf]
  %v965 = vld [vmem:[%s27] sm:$0x1]
  %v967 = vlaneseq
  %v968 = vshrl.u32 %v967, 7
  %v969 = vsub.s32 0, %v968
  %v970 = vrot.slane %v965, %v969
  %v980 = vunpack.c.l.b16 %v957
  %v981 = vunpack.c.l.b16 %v958
  %v982 = vunpack.c.l.b16 %v959
  %v983 = vunpack.c.l.b16 %v960
  %v984 = vunpack.c.l.b16 %v961
  %v985 = vunpack.c.l.b16 %v962
  %v986 = vunpack.c.l.b16 %v963
  %v987 = vunpack.c.l.b16 %v964
  %v988 = vpack.c.b16 %v981, %v980
  %v989 = vpack.c.b16 %v983, %v982
  %v990 = vpack.c.b16 %v985, %v984
  %v991 = vpack.c.b16 %v987, %v986
  %996 = vmatprep.subr.bf16.mxu0 0
  %997 = vmatpush1.bf16.msra.mxu0 %v988
  %998 = vmatprep.subr.bf16.mxu0 0
  %999 = vmatpush1.bf16.msra.mxu0 %v989
  %1000 = vmatprep.subr.bf16.mxu0 0
  %1001 = vmatpush1.bf16.msra.mxu0 %v990
  %1002 = vmatprep.subr.bf16.mxu0 0
  %1003 = vmatpush1.bf16.msra.mxu0 %v991
  %1004 = vmatprep.subr.bf16.mxu0 0
  %1005 = vmatpush1.bf16.msra.mxu0 0
  %1006 = vmatprep.subr.bf16.mxu0 0
  %1007 = vmatpush1.bf16.msra.mxu0 0
  %1008 = vmatprep.subr.bf16.mxu0 0
  %1009 = vmatpush1.bf16.msra.mxu0 0
  %1010 = vmatprep.subr.bf16.mxu0 0
  %1011 = vmatpush1.bf16.msra.mxu0 0
  %1012 = vmatprep.subr.bf16.mxu0 0
  %1013 = vmatpush1.bf16.msra.mxu0 0
  %1014 = vmatprep.subr.bf16.mxu0 0
  %1015 = vmatpush1.bf16.msra.mxu0 0
  %1016 = vmatprep.subr.bf16.mxu0 0
  %1017 = vmatpush1.bf16.msra.mxu0 0
  %1018 = vmatprep.subr.bf16.mxu0 0
  %1019 = vmatpush1.bf16.msra.mxu0 0
  %1020 = vmatprep.subr.bf16.mxu0 0
  %1021 = vmatpush1.bf16.msra.mxu0 0
  %1022 = vmatprep.subr.bf16.mxu0 0
  %1023 = vmatpush1.bf16.msra.mxu0 0
  %1024 = vmatprep.subr.bf16.mxu0 0
  %1025 = vmatpush1.bf16.msra.mxu0 0
  %1026 = vmatprep.subr.bf16.mxu0 0
  %1027 = vmatpush1.bf16.msra.mxu0 0
  %1028 = vmatprep.mubr.bf16.mxu0 0
  %1029 = vmatmul.mubr.bf16.gmra.mrb[0].mxu0 %v701
  %v1030 = vpop.f32.mrb[0].mxu0
  %v1031 = vadd.f32 %v970, %v1030
  %v1032 = vpop.f32.mrb[0].mxu0
  %v1033 = vpop.f32.mrb[0].mxu0
  %v1034 = vadd.f32 %v970, %v1033
  %v1035 = vpop.f32.mrb[0].mxu0
  %1036 = vmatprep.mubr.bf16.mxu0 0
  %1037 = vmatmul.mubr.bf16.gmra.mrb[0].mxu0 %v704
  %v1038 = vpop.f32.mrb[0].mxu0
  %v1039 = vadd.f32 %v970, %v1038
  %v1040 = vpop.f32.mrb[0].mxu0
  %v1041 = vpop.f32.mrb[0].mxu0
  %v1042 = vadd.f32 %v970, %v1041
  %v1043 = vpop.f32.mrb[0].mxu0
  %1044 = vmatprep.mubr.bf16.mxu0 0
  %1045 = vmatmul.mubr.bf16.gmra.mrb[0].mxu0 %v707
  %v1046 = vpop.f32.mrb[0].mxu0
  %v1047 = vadd.f32 %v970, %v1046
  %v1048 = vpop.f32.mrb[0].mxu0
  %v1049 = vpop.f32.mrb[0].mxu0
  %v1050 = vadd.f32 %v970, %v1049
  %v1051 = vpop.f32.mrb[0].mxu0
  %1052 = vmatprep.mubr.bf16.mxu0 0
  %1053 = vmatmul.mubr.bf16.gmra.mrb[0].mxu0 %v710
  %v1054 = vpop.f32.mrb[0].mxu0
  %v1055 = vadd.f32 %v970, %v1054
  %v1056 = vpop.f32.mrb[0].mxu0
  %v1057 = vpop.f32.mrb[0].mxu0
  %v1058 = vadd.f32 %v970, %v1057
  %v1059 = vpop.f32.mrb[0].mxu0
  %1060 = vmatprep.mubr.bf16.mxu0 0
  %1061 = vmatmul.mubr.bf16.gmra.mrb[0].mxu0 %v713
  %v1062 = vpop.f32.mrb[0].mxu0
  %v1063 = vadd.f32 %v970, %v1062
  %v1064 = vpop.f32.mrb[0].mxu0
  %v1065 = vpop.f32.mrb[0].mxu0
  %v1066 = vadd.f32 %v970, %v1065
  %v1067 = vpop.f32.mrb[0].mxu0
  %1068 = vmatprep.mubr.bf16.mxu0 0
  %1069 = vmatmul.mubr.bf16.gmra.mrb[0].mxu0 %v716
  %v1070 = vpop.f32.mrb[0].mxu0
  %v1071 = vadd.f32 %v970, %v1070
  %v1072 = vpop.f32.mrb[0].mxu0
  %v1073 = vpop.f32.mrb[0].mxu0
  %v1074 = vadd.f32 %v970, %v1073
  %v1075 = vpop.f32.mrb[0].mxu0
  %1076 = vmatprep.mubr.bf16.mxu0 0
  %1077 = vmatmul.mubr.bf16.gmra.mrb[0].mxu0 %v719
  %v1078 = vpop.f32.mrb[0].mxu0
  %v1079 = vadd.f32 %v970, %v1078
  %v1080 = vpop.f32.mrb[0].mxu0
  %v1081 = vpop.f32.mrb[0].mxu0
  %v1082 = vadd.f32 %v970, %v1081
  %v1083 = vpop.f32.mrb[0].mxu0
  %1084 = vmatprep.mubr.bf16.mxu0 0
  %1085 = vmatmul.mubr.bf16.gmra.mrb[0].mxu0 %v722
  %v1086 = vpop.f32.mrb[0].mxu0
  %v1087 = vadd.f32 %v970, %v1086
  %v1088 = vpop.f32.mrb[0].mxu0
  %v1089 = vpop.f32.mrb[0].mxu0
  %v1090 = vadd.f32 %v970, %v1089
  %v1091 = vpop.f32.mrb[0].mxu0
  %1092 = vdwg.mxu0
  %v1093 = vpack.c.bf16 %v762, %v759
  %v1094 = vpack.c.bf16 %v770, %v767
  %v1095 = vpack.c.bf16 %v778, %v775
  %v1096 = vpack.c.bf16 %v786, %v783
  %v1097 = vpack.c.bf16 %v794, %v791
  %v1098 = vpack.c.bf16 %v802, %v799
  %v1099 = vpack.c.bf16 %v810, %v807
  %v1100 = vpack.c.bf16 %v818, %v815
  %v1101 = vpack.c.bf16 %v898, %v895
  %v1102 = vpack.c.bf16 %v906, %v903
  %v1103 = vpack.c.bf16 %v914, %v911
  %v1104 = vpack.c.bf16 %v922, %v919
  %v1105 = vpack.c.bf16 %v930, %v927
  %v1106 = vpack.c.bf16 %v938, %v935
  %v1107 = vpack.c.bf16 %v946, %v943
  %v1108 = vpack.c.bf16 %v954, %v951
  %v1110 = vsel %vm699, %v1093, 0
  %v1113 = vsel %vm699, %v1094, 0
  %v1116 = vsel %vm699, %v1095, 0
  %v1119 = vsel %vm699, %v1096, 0
  %v1122 = vsel %vm699, %v1097, 0
  %v1125 = vsel %vm699, %v1098, 0
  %v1128 = vsel %vm699, %v1099, 0
  %v1131 = vsel %vm699, %v1100, 0
  %v1134 = vsel %vm699, %v1101, 0
  %v1137 = vsel %vm699, %v1102, 0
  %v1140 = vsel %vm699, %v1103, 0
  %v1143 = vsel %vm699, %v1104, 0
  %v1146 = vsel %vm699, %v1105, 0
  %v1149 = vsel %vm699, %v1106, 0
  %v1152 = vsel %vm699, %v1107, 0
  %v1155 = vsel %vm699, %v1108, 0
  %1157 = vmatprep.subr.bf16.mxu0 0
  %1158 = vmatpush1.bf16.xpose.msra.mxu0 %v1134
  %1159 = vmatprep.subr.bf16.mxu0 0
  %1160 = vmatpush1.bf16.xpose.msra.mxu0 %v1137
  %1161 = vmatprep.subr.bf16.mxu0 0
  %1162 = vmatpush1.bf16.xpose.msra.mxu0 %v1140
  %1163 = vmatprep.subr.bf16.mxu0 0
  %1164 = vmatpush1.bf16.xpose.msra.mxu0 %v1143
  %1165 = vmatprep.subr.bf16.mxu0 0
  %1166 = vmatpush1.bf16.xpose.msra.mxu0 %v1146
  %1167 = vmatprep.subr.bf16.mxu0 0
  %1168 = vmatpush1.bf16.xpose.msra.mxu0 %v1149
  %1169 = vmatprep.subr.bf16.mxu0 0
  %1170 = vmatpush1.bf16.xpose.msra.mxu0 %v1152
  %1171 = vmatprep.subr.bf16.mxu0 0
  %1172 = vmatpush1.bf16.xpose.msra.mxu0 %v1155
  %1173 = vmatprep.subr.bf16.mxu0 0
  %1174 = vmatpush1.bf16.xpose.msra.mxu0 0
  %1175 = vmatprep.subr.bf16.mxu0 0
  %1176 = vmatpush1.bf16.xpose.msra.mxu0 0
  %1177 = vmatprep.subr.bf16.mxu0 0
  %1178 = vmatpush1.bf16.xpose.msra.mxu0 0
  %1179 = vmatprep.subr.bf16.mxu0 0
  %1180 = vmatpush1.bf16.xpose.msra.mxu0 0
  %1181 = vmatprep.subr.bf16.mxu0 0
  %1182 = vmatpush1.bf16.xpose.msra.mxu0 0
  %1183 = vmatprep.subr.bf16.mxu0 0
  %1184 = vmatpush1.bf16.xpose.msra.mxu0 0
  %1185 = vmatprep.subr.bf16.mxu0 0
  %1186 = vmatpush1.bf16.xpose.msra.mxu0 0
  %1187 = vmatprep.subr.bf16.mxu0 0
  %1188 = vmatpush1.bf16.xpose.msra.mxu0 0
  %1189 = vmatprep.mubr.bf16.mxu0 0
  %1190 = vmatmul.mubr.bf16.gmra.mrb[0].mxu0 %v1110
  %v1191 = vpop.f32.mrb[0].mxu0
  %v1192 = vadd.f32 %v644, %v1191
  %v1193 = vpop.f32.mrb[0].mxu0
  %v1194 = vpop.f32.mrb[0].mxu0
  %v1195 = vadd.f32 %v645, %v1194
  %v1196 = vpop.f32.mrb[0].mxu0
  %1197 = vmatprep.mubr.bf16.mxu0 0
  %1198 = vmatmul.mubr.bf16.gmra.mrb[0].mxu0 %v1113
  %v1199 = vpop.f32.mrb[0].mxu0
  %v1200 = vadd.f32 %v646, %v1199
  %v1201 = vpop.f32.mrb[0].mxu0
  %v1202 = vpop.f32.mrb[0].mxu0
  %v1203 = vadd.f32 %v647, %v1202
  %v1204 = vpop.f32.mrb[0].mxu0
  %1205 = vmatprep.mubr.bf16.mxu0 0
  %1206 = vmatmul.mubr.bf16.gmra.mrb[0].mxu0 %v1116
  %v1207 = vpop.f32.mrb[0].mxu0
  %v1208 = vadd.f32 %v648, %v1207
  %v1209 = vpop.f32.mrb[0].mxu0
  %v1210 = vpop.f32.mrb[0].mxu0
  %v1211 = vadd.f32 %v649, %v1210
  %v1212 = vpop.f32.mrb[0].mxu0
  %1213 = vmatprep.mubr.bf16.mxu0 0
  %1214 = vmatmul.mubr.bf16.gmra.mrb[0].mxu0 %v1119
  %v1215 = vpop.f32.mrb[0].mxu0
  %v1216 = vadd.f32 %v650, %v1215
  %v1217 = vpop.f32.mrb[0].mxu0
  %v1218 = vpop.f32.mrb[0].mxu0
  %v1219 = vadd.f32 %v651, %v1218
  %v1220 = vpop.f32.mrb[0].mxu0
  %1221 = vmatprep.mubr.bf16.mxu0 0
  %1222 = vmatmul.mubr.bf16.gmra.mrb[0].mxu0 %v1122
  %v1223 = vpop.f32.mrb[0].mxu0
  %v1224 = vadd.f32 %v652, %v1223
  %v1225 = vpop.f32.mrb[0].mxu0
  %v1226 = vpop.f32.mrb[0].mxu0
  %v1227 = vadd.f32 %v653, %v1226
  %v1228 = vpop.f32.mrb[0].mxu0
  %1229 = vmatprep.mubr.bf16.mxu0 0
  %1230 = vmatmul.mubr.bf16.gmra.mrb[0].mxu0 %v1125
  %v1231 = vpop.f32.mrb[0].mxu0
  %v1232 = vadd.f32 %v654, %v1231
  %v1233 = vpop.f32.mrb[0].mxu0
  %v1234 = vpop.f32.mrb[0].mxu0
  %v1235 = vadd.f32 %v655, %v1234
  %v1236 = vpop.f32.mrb[0].mxu0
  %1237 = vmatprep.mubr.bf16.mxu0 0
  %1238 = vmatmul.mubr.bf16.gmra.mrb[0].mxu0 %v1128
  %v1239 = vpop.f32.mrb[0].mxu0
  %v1240 = vadd.f32 %v656, %v1239
  %v1241 = vpop.f32.mrb[0].mxu0
  %v1242 = vpop.f32.mrb[0].mxu0
  %v1243 = vadd.f32 %v657, %v1242
  %v1244 = vpop.f32.mrb[0].mxu0
  %1245 = vmatprep.mubr.bf16.mxu0 0
  %1246 = vmatmul.mubr.bf16.gmra.mrb[0].mxu0 %v1131
  %v1247 = vpop.f32.mrb[0].mxu0
  %v1248 = vadd.f32 %v658, %v1247
  %v1249 = vpop.f32.mrb[0].mxu0
  %v1250 = vpop.f32.mrb[0].mxu0
  %v1251 = vadd.f32 %v659, %v1250
  %v1252 = vpop.f32.mrb[0].mxu0
  %1253 = vdwg.mxu0
  %1254 = vmax.xlane.f32.xlu0 %v1192
  %v1255 = vpop.xlane.xlu0 %1254
  %1256 = vmax.xlane.f32.xlu0 %v1195
  %v1257 = vpop.xlane.xlu0 %1256
  %1258 = vmax.xlane.f32.xlu0 %v1200
  %v1259 = vpop.xlane.xlu0 %1258
  %1260 = vmax.xlane.f32.xlu0 %v1203
  %v1261 = vpop.xlane.xlu0 %1260
  %1262 = vmax.xlane.f32.xlu0 %v1208
  %v1263 = vpop.xlane.xlu0 %1262
  %1264 = vmax.xlane.f32.xlu0 %v1211
  %v1265 = vpop.xlane.xlu0 %1264
  %1266 = vmax.xlane.f32.xlu0 %v1216
  %v1267 = vpop.xlane.xlu0 %1266
  %1268 = vmax.xlane.f32.xlu0 %v1219
  %v1269 = vpop.xlane.xlu0 %1268
  %1270 = vmax.xlane.f32.xlu0 %v1224
  %v1271 = vpop.xlane.xlu0 %1270
  %1272 = vmax.xlane.f32.xlu0 %v1227
  %v1273 = vpop.xlane.xlu0 %1272
  %1274 = vmax.xlane.f32.xlu0 %v1232
  %v1275 = vpop.xlane.xlu0 %1274
  %1276 = vmax.xlane.f32.xlu0 %v1235
  %v1277 = vpop.xlane.xlu0 %1276
  %1278 = vmax.xlane.f32.xlu0 %v1240
  %v1279 = vpop.xlane.xlu0 %1278
  %1280 = vmax.xlane.f32.xlu0 %v1243
  %v1281 = vpop.xlane.xlu0 %1280
  %1282 = vmax.xlane.f32.xlu0 %v1248
  %v1283 = vpop.xlane.xlu0 %1282
  %1284 = vmax.xlane.f32.xlu0 %v1251
  %v1285 = vpop.xlane.xlu0 %1284
  %v1286 = vsub.f32 %v1192, %v1255
  %v1287 = vsub.f32 %v1195, %v1257
  %v1288 = vsub.f32 %v1200, %v1259
  %v1289 = vsub.f32 %v1203, %v1261
  %v1290 = vsub.f32 %v1208, %v1263
  %v1291 = vsub.f32 %v1211, %v1265
  %v1292 = vsub.f32 %v1216, %v1267
  %v1293 = vsub.f32 %v1219, %v1269
  %v1294 = vsub.f32 %v1224, %v1271
  %v1295 = vsub.f32 %v1227, %v1273
  %v1296 = vsub.f32 %v1232, %v1275
  %v1297 = vsub.f32 %v1235, %v1277
  %v1298 = vsub.f32 %v1240, %v1279
  %v1299 = vsub.f32 %v1243, %v1281
  %v1300 = vsub.f32 %v1248, %v1283
  %v1301 = vsub.f32 %v1251, %v1285
  %v1302 = vmul.f32 %v1286, 1.442695
  %v1303 = vpow.pop %v1302
  %v1304 = vmul.f32 %v1287, 1.442695
  %v1305 = vpow.pop %v1304
  %v1306 = vmul.f32 %v1288, 1.442695
  %v1307 = vpow.pop %v1306
  %v1308 = vmul.f32 %v1289, 1.442695
  %v1309 = vpow.pop %v1308
  %v1310 = vmul.f32 %v1290, 1.442695
  %v1311 = vpow.pop %v1310
  %v1312 = vmul.f32 %v1291, 1.442695
  %v1313 = vpow.pop %v1312
  %v1314 = vmul.f32 %v1292, 1.442695
  %v1315 = vpow.pop %v1314
  %v1316 = vmul.f32 %v1293, 1.442695
  %v1317 = vpow.pop %v1316
  %v1318 = vmul.f32 %v1294, 1.442695
  %v1319 = vpow.pop %v1318
  %v1320 = vmul.f32 %v1295, 1.442695
  %v1321 = vpow.pop %v1320
  %v1322 = vmul.f32 %v1296, 1.442695
  %v1323 = vpow.pop %v1322
  %v1324 = vmul.f32 %v1297, 1.442695
  %v1325 = vpow.pop %v1324
  %v1326 = vmul.f32 %v1298, 1.442695
  %v1327 = vpow.pop %v1326
  %v1328 = vmul.f32 %v1299, 1.442695
  %v1329 = vpow.pop %v1328
  %v1330 = vmul.f32 %v1300, 1.442695
  %v1331 = vpow.pop %v1330
  %v1332 = vmul.f32 %v1301, 1.442695
  %v1333 = vpow.pop %v1332
  %1334 = vadd.xlane.f32.xlu0 %v1303
  %v1335 = vpop.xlane.xlu0 %1334
  %1336 = vadd.xlane.f32.xlu0 %v1305
  %v1337 = vpop.xlane.xlu0 %1336
  %1338 = vadd.xlane.f32.xlu0 %v1307
  %v1339 = vpop.xlane.xlu0 %1338
  %1340 = vadd.xlane.f32.xlu0 %v1309
  %v1341 = vpop.xlane.xlu0 %1340
  %1342 = vadd.xlane.f32.xlu0 %v1311
  %v1343 = vpop.xlane.xlu0 %1342
  %1344 = vadd.xlane.f32.xlu0 %v1313
  %v1345 = vpop.xlane.xlu0 %1344
  %1346 = vadd.xlane.f32.xlu0 %v1315
  %v1347 = vpop.xlane.xlu0 %1346
  %1348 = vadd.xlane.f32.xlu0 %v1317
  %v1349 = vpop.xlane.xlu0 %1348
  %1350 = vadd.xlane.f32.xlu0 %v1319
  %v1351 = vpop.xlane.xlu0 %1350
  %1352 = vadd.xlane.f32.xlu0 %v1321
  %v1353 = vpop.xlane.xlu0 %1352
  %1354 = vadd.xlane.f32.xlu0 %v1323
  %v1355 = vpop.xlane.xlu0 %1354
  %1356 = vadd.xlane.f32.xlu0 %v1325
  %v1357 = vpop.xlane.xlu0 %1356
  %1358 = vadd.xlane.f32.xlu0 %v1327
  %v1359 = vpop.xlane.xlu0 %1358
  %1360 = vadd.xlane.f32.xlu0 %v1329
  %v1361 = vpop.xlane.xlu0 %1360
  %1362 = vadd.xlane.f32.xlu0 %v1331
  %v1363 = vpop.xlane.xlu0 %1362
  %1364 = vadd.xlane.f32.xlu0 %v1333
  %v1365 = vpop.xlane.xlu0 %1364
  %v1366 = vrcp.pop %v1335
  %v1367 = vrcp.pop %v1337
  %v1368 = vrcp.pop %v1339
  %v1369 = vrcp.pop %v1341
  %v1370 = vrcp.pop %v1343
  %v1371 = vrcp.pop %v1345
  %v1372 = vrcp.pop %v1347
  %v1373 = vrcp.pop %v1349
  %v1374 = vrcp.pop %v1351
  %v1375 = vrcp.pop %v1353
  %v1376 = vrcp.pop %v1355
  %v1377 = vrcp.pop %v1357
  %v1378 = vrcp.pop %v1359
  %v1379 = vrcp.pop %v1361
  %v1380 = vrcp.pop %v1363
  %v1381 = vrcp.pop %v1365
  %v1382 = vmul.f32 %v1303, %v1366
  %v1383 = vmul.f32 %v1305, %v1367
  %v1384 = vmul.f32 %v1307, %v1368
  %v1385 = vmul.f32 %v1309, %v1369
  %v1386 = vmul.f32 %v1311, %v1370
  %v1387 = vmul.f32 %v1313, %v1371
  %v1388 = vmul.f32 %v1315, %v1372
  %v1389 = vmul.f32 %v1317, %v1373
  %v1390 = vmul.f32 %v1319, %v1374
  %v1391 = vmul.f32 %v1321, %v1375
  %v1392 = vmul.f32 %v1323, %v1376
  %v1393 = vmul.f32 %v1325, %v1377
  %v1394 = vmul.f32 %v1327, %v1378
  %v1395 = vmul.f32 %v1329, %v1379
  %v1396 = vmul.f32 %v1331, %v1380
  %v1397 = vmul.f32 %v1333, %v1381
  %v1398 = vpack.c.bf16 %v1383, %v1382
  %v1399 = vpack.c.bf16 %v1385, %v1384
  %v1400 = vpack.c.bf16 %v1387, %v1386
  %v1401 = vpack.c.bf16 %v1389, %v1388
  %v1402 = vpack.c.bf16 %v1391, %v1390
  %v1403 = vpack.c.bf16 %v1393, %v1392
  %v1404 = vpack.c.bf16 %v1395, %v1394
  %v1405 = vpack.c.bf16 %v1397, %v1396
  %v1406 = vpack.c.bf16 %v1034, %v1031
  %v1407 = vpack.c.bf16 %v1042, %v1039
  %v1408 = vpack.c.bf16 %v1050, %v1047
  %v1409 = vpack.c.bf16 %v1058, %v1055
  %v1410 = vpack.c.bf16 %v1066, %v1063
  %v1411 = vpack.c.bf16 %v1074, %v1071
  %v1412 = vpack.c.bf16 %v1082, %v1079
  %v1413 = vpack.c.bf16 %v1090, %v1087
  %1414 = vmatprep.subr.bf16.mxu0 0
  %1415 = vmatpush1.bf16.msra.mxu0 %v1406
  %1416 = vmatprep.subr.bf16.mxu0 0
  %1417 = vmatpush1.bf16.msra.mxu0 %v1407
  %1418 = vmatprep.subr.bf16.mxu0 0
  %1419 = vmatpush1.bf16.msra.mxu0 %v1408
  %1420 = vmatprep.subr.bf16.mxu0 0
  %1421 = vmatpush1.bf16.msra.mxu0 %v1409
  %1422 = vmatprep.subr.bf16.mxu0 0
  %1423 = vmatpush1.bf16.msra.mxu0 %v1410
  %1424 = vmatprep.subr.bf16.mxu0 0
  %1425 = vmatpush1.bf16.msra.mxu0 %v1411
  %1426 = vmatprep.subr.bf16.mxu0 0
  %1427 = vmatpush1.bf16.msra.mxu0 %v1412
  %1428 = vmatprep.subr.bf16.mxu0 0
  %1429 = vmatpush1.bf16.msra.mxu0 %v1413
  %1430 = vmatprep.subr.bf16.mxu0 0
  %1431 = vmatpush1.bf16.msra.mxu0 0
  %1432 = vmatprep.subr.bf16.mxu0 0
  %1433 = vmatpush1.bf16.msra.mxu0 0
  %1434 = vmatprep.subr.bf16.mxu0 0
  %1435 = vmatpush1.bf16.msra.mxu0 0
  %1436 = vmatprep.subr.bf16.mxu0 0
  %1437 = vmatpush1.bf16.msra.mxu0 0
  %1438 = vmatprep.subr.bf16.mxu0 0
  %1439 = vmatpush1.bf16.msra.mxu0 0
  %1440 = vmatprep.subr.bf16.mxu0 0
  %1441 = vmatpush1.bf16.msra.mxu0 0
  %1442 = vmatprep.subr.bf16.mxu0 0
  %1443 = vmatpush1.bf16.msra.mxu0 0
  %1444 = vmatprep.subr.bf16.mxu0 0
  %1445 = vmatpush1.bf16.msra.mxu0 0
  %1446 = vmatprep.mubr.bf16.mxu0 0
  %1447 = vmatmul.mubr.bf16.gmra.mrb[0].mxu0 %v1398
  %v1448 = vpop.f32.mrb[0].mxu0
  %v1449 = vadd.f32 0.0, %v1448
  %v1450 = vpop.f32.mrb[0].mxu0
  %v1451 = vpop.f32.mrb[0].mxu0
  %v1452 = vadd.f32 0.0, %v1451
  %v1453 = vpop.f32.mrb[0].mxu0
  %1454 = vmatprep.mubr.bf16.mxu0 0
  %1455 = vmatmul.mubr.bf16.gmra.mrb[0].mxu0 %v1399
  %v1456 = vpop.f32.mrb[0].mxu0
  %v1457 = vadd.f32 0.0, %v1456
  %v1458 = vpop.f32.mrb[0].mxu0
  %v1459 = vpop.f32.mrb[0].mxu0
  %v1460 = vadd.f32 0.0, %v1459
  %v1461 = vpop.f32.mrb[0].mxu0
  %1462 = vmatprep.mubr.bf16.mxu0 0
  %1463 = vmatmul.mubr.bf16.gmra.mrb[0].mxu0 %v1400
  %v1464 = vpop.f32.mrb[0].mxu0
  %v1465 = vadd.f32 0.0, %v1464
  %v1466 = vpop.f32.mrb[0].mxu0
  %v1467 = vpop.f32.mrb[0].mxu0
  %v1468 = vadd.f32 0.0, %v1467
  %v1469 = vpop.f32.mrb[0].mxu0
  %1470 = vmatprep.mubr.bf16.mxu0 0
  %1471 = vmatmul.mubr.bf16.gmra.mrb[0].mxu0 %v1401
  %v1472 = vpop.f32.mrb[0].mxu0
  %v1473 = vadd.f32 0.0, %v1472
  %v1474 = vpop.f32.mrb[0].mxu0
  %v1475 = vpop.f32.mrb[0].mxu0
  %v1476 = vadd.f32 0.0, %v1475
  %v1477 = vpop.f32.mrb[0].mxu0
  %1478 = vmatprep.mubr.bf16.mxu0 0
  %1479 = vmatmul.mubr.bf16.gmra.mrb[0].mxu0 %v1402
  %v1480 = vpop.f32.mrb[0].mxu0
  %v1481 = vadd.f32 0.0, %v1480
  %v1482 = vpop.f32.mrb[0].mxu0
  %v1483 = vpop.f32.mrb[0].mxu0
  %v1484 = vadd.f32 0.0, %v1483
  %v1485 = vpop.f32.mrb[0].mxu0
  %1486 = vmatprep.mubr.bf16.mxu0 0
  %1487 = vmatmul.mubr.bf16.gmra.mrb[0].mxu0 %v1403
  %v1488 = vpop.f32.mrb[0].mxu0
  %v1489 = vadd.f32 0.0, %v1488
  %v1490 = vpop.f32.mrb[0].mxu0
  %v1491 = vpop.f32.mrb[0].mxu0
  %v1492 = vadd.f32 0.0, %v1491
  %v1493 = vpop.f32.mrb[0].mxu0
  %1494 = vmatprep.mubr.bf16.mxu0 0
  %1495 = vmatmul.mubr.bf16.gmra.mrb[0].mxu0 %v1404
  %v1496 = vpop.f32.mrb[0].mxu0
  %v1497 = vadd.f32 0.0, %v1496
  %v1498 = vpop.f32.mrb[0].mxu0
  %v1499 = vpop.f32.mrb[0].mxu0
  %v1500 = vadd.f32 0.0, %v1499
  %v1501 = vpop.f32.mrb[0].mxu0
  %1502 = vmatprep.mubr.bf16.mxu0 0
  %1503 = vmatmul.mubr.bf16.gmra.mrb[0].mxu0 %v1405
  %v1504 = vpop.f32.mrb[0].mxu0
  %v1505 = vadd.f32 0.0, %v1504
  %v1506 = vpop.f32.mrb[0].mxu0
  %v1507 = vpop.f32.mrb[0].mxu0
  %v1508 = vadd.f32 0.0, %v1507
  %v1509 = vpop.f32.mrb[0].mxu0
  %1510 = vdwg.mxu0
  %v1511 = vpack.c.bf16 %v1452, %v1449
  %v1512 = vpack.c.bf16 %v1460, %v1457
  %v1513 = vpack.c.bf16 %v1468, %v1465
  %v1514 = vpack.c.bf16 %v1476, %v1473
  %v1515 = vpack.c.bf16 %v1484, %v1481
  %v1516 = vpack.c.bf16 %v1492, %v1489
  %v1517 = vpack.c.bf16 %v1500, %v1497
  %v1518 = vpack.c.bf16 %v1508, %v1505
  %v1519 = vld [vmem:[%s29] sm:$0xff]
  %v1520 = vld [vmem:[%s29 + $0x8] sm:$0xf]
  %v1521 = vld [vmem:[%s29 + $0xc] sm:$0xff]
  %v1522 = vld [vmem:[%s29 + $0x14] sm:$0xf]
  %v1523 = vld [vmem:[%s29 + $0x18] sm:$0xff]
  %v1524 = vld [vmem:[%s29 + $0x20] sm:$0xf]
  %v1525 = vld [vmem:[%s29 + $0x24] sm:$0xff]
  %v1526 = vld [vmem:[%s29 + $0x2c] sm:$0xf]
  %v1527 = vld [vmem:[%s29 + $0x30] sm:$0xff]
  %v1528 = vld [vmem:[%s29 + $0x38] sm:$0xf]
  %v1529 = vld [vmem:[%s29 + $0x3c] sm:$0xff]
  %v1530 = vld [vmem:[%s29 + $0x44] sm:$0xf]
  %v1531 = vld [vmem:[%s29 + $0x48] sm:$0xff]
  %v1532 = vld [vmem:[%s29 + $0x50] sm:$0xf]
  %v1533 = vld [vmem:[%s29 + $0x54] sm:$0xff]
  %v1534 = vld [vmem:[%s29 + $0x5c] sm:$0xf]
  %s1535 = scalar_lea.vmem %s17, 32
  %v1536 = vld [vmem:[%s1535] sm:$0xf]
  %v1537 = vld [vmem:[%s1535 + $0x4] sm:$0xf]
  %v1538 = vld [vmem:[%s1535 + $0x8] sm:$0xf]
  %v1539 = vld [vmem:[%s1535 + $0xc] sm:$0xf]
  %v1540 = vld [vmem:[%s1535 + $0x10] sm:$0xf]
  %v1541 = vld [vmem:[%s1535 + $0x14] sm:$0xf]
  %v1542 = vld [vmem:[%s1535 + $0x18] sm:$0xf]
  %v1543 = vld [vmem:[%s1535 + $0x1c] sm:$0xf]
  %s1544 = scalar_lea.vmem %s19, 1
  %v1545 = vld [vmem:[%s1544] sm:$0x1]
  %v1547 = vlaneseq
  %v1548 = vshrl.u32 %v1547, 7
  %v1549 = vsub.s32 0, %v1548
  %v1550 = vrot.slane %v1545, %v1549
  %v1560 = vunpack.c.l.b16 %v1536
  %v1561 = vunpack.c.l.b16 %v1537
  %v1562 = vunpack.c.l.b16 %v1538
  %v1563 = vunpack.c.l.b16 %v1539
  %v1564 = vunpack.c.l.b16 %v1540
  %v1565 = vunpack.c.l.b16 %v1541
  %v1566 = vunpack.c.l.b16 %v1542
  %v1567 = vunpack.c.l.b16 %v1543
  %v1568 = vpack.c.b16 %v1561, %v1560
  %v1569 = vpack.c.b16 %v1563, %v1562
  %v1570 = vpack.c.b16 %v1565, %v1564
  %v1571 = vpack.c.b16 %v1567, %v1566
  %1576 = vmatprep.subr.bf16.mxu0 0
  %1577 = vmatpush1.bf16.msra.mxu0 %v1568
  %1578 = vmatprep.subr.bf16.mxu0 0
  %1579 = vmatpush1.bf16.msra.mxu0 %v1569
  %1580 = vmatprep.subr.bf16.mxu0 0
  %1581 = vmatpush1.bf16.msra.mxu0 %v1570
  %1582 = vmatprep.subr.bf16.mxu0 0
  %1583 = vmatpush1.bf16.msra.mxu0 %v1571
  %1584 = vmatprep.subr.bf16.mxu0 0
  %1585 = vmatpush1.bf16.msra.mxu0 0
  %1586 = vmatprep.subr.bf16.mxu0 0
  %1587 = vmatpush1.bf16.msra.mxu0 0
  %1588 = vmatprep.subr.bf16.mxu0 0
  %1589 = vmatpush1.bf16.msra.mxu0 0
  %1590 = vmatprep.subr.bf16.mxu0 0
  %1591 = vmatpush1.bf16.msra.mxu0 0
  %1592 = vmatprep.subr.bf16.mxu0 0
  %1593 = vmatpush1.bf16.msra.mxu0 0
  %1594 = vmatprep.subr.bf16.mxu0 0
  %1595 = vmatpush1.bf16.msra.mxu0 0
  %1596 = vmatprep.subr.bf16.mxu0 0
  %1597 = vmatpush1.bf16.msra.mxu0 0
  %1598 = vmatprep.subr.bf16.mxu0 0
  %1599 = vmatpush1.bf16.msra.mxu0 0
  %1600 = vmatprep.subr.bf16.mxu0 0
  %1601 = vmatpush1.bf16.msra.mxu0 0
  %1602 = vmatprep.subr.bf16.mxu0 0
  %1603 = vmatpush1.bf16.msra.mxu0 0
  %1604 = vmatprep.subr.bf16.mxu0 0
  %1605 = vmatpush1.bf16.msra.mxu0 0
  %1606 = vmatprep.subr.bf16.mxu0 0
  %1607 = vmatpush1.bf16.msra.mxu0 0
  %1608 = vmatprep.mubr.bf16.mxu0 0
  %1609 = vmatmul.mubr.bf16.gmra.mrb[0].mxu0 %v701
  %v1610 = vpop.f32.mrb[0].mxu0
  %v1611 = vadd.f32 %v1550, %v1610
  %v1612 = vpop.f32.mrb[0].mxu0
  %v1613 = vpop.f32.mrb[0].mxu0
  %v1614 = vadd.f32 %v1550, %v1613
  %v1615 = vpop.f32.mrb[0].mxu0
  %1616 = vmatprep.mubr.bf16.mxu0 0
  %1617 = vmatmul.mubr.bf16.gmra.mrb[0].mxu0 %v704
  %v1618 = vpop.f32.mrb[0].mxu0
  %v1619 = vadd.f32 %v1550, %v1618
  %v1620 = vpop.f32.mrb[0].mxu0
  %v1621 = vpop.f32.mrb[0].mxu0
  %v1622 = vadd.f32 %v1550, %v1621
  %v1623 = vpop.f32.mrb[0].mxu0
  %1624 = vmatprep.mubr.bf16.mxu0 0
  %1625 = vmatmul.mubr.bf16.gmra.mrb[0].mxu0 %v707
  %v1626 = vpop.f32.mrb[0].mxu0
  %v1627 = vadd.f32 %v1550, %v1626
  %v1628 = vpop.f32.mrb[0].mxu0
  %v1629 = vpop.f32.mrb[0].mxu0
  %v1630 = vadd.f32 %v1550, %v1629
  %v1631 = vpop.f32.mrb[0].mxu0
  %1632 = vmatprep.mubr.bf16.mxu0 0
  %1633 = vmatmul.mubr.bf16.gmra.mrb[0].mxu0 %v710
  %v1634 = vpop.f32.mrb[0].mxu0
  %v1635 = vadd.f32 %v1550, %v1634
  %v1636 = vpop.f32.mrb[0].mxu0
  %v1637 = vpop.f32.mrb[0].mxu0
  %v1638 = vadd.f32 %v1550, %v1637
  %v1639 = vpop.f32.mrb[0].mxu0
  %1640 = vmatprep.mubr.bf16.mxu0 0
  %1641 = vmatmul.mubr.bf16.gmra.mrb[0].mxu0 %v713
  %v1642 = vpop.f32.mrb[0].mxu0
  %v1643 = vadd.f32 %v1550, %v1642
  %v1644 = vpop.f32.mrb[0].mxu0
  %v1645 = vpop.f32.mrb[0].mxu0
  %v1646 = vadd.f32 %v1550, %v1645
  %v1647 = vpop.f32.mrb[0].mxu0
  %1648 = vmatprep.mubr.bf16.mxu0 0
  %1649 = vmatmul.mubr.bf16.gmra.mrb[0].mxu0 %v716
  %v1650 = vpop.f32.mrb[0].mxu0
  %v1651 = vadd.f32 %v1550, %v1650
  %v1652 = vpop.f32.mrb[0].mxu0
  %v1653 = vpop.f32.mrb[0].mxu0
  %v1654 = vadd.f32 %v1550, %v1653
  %v1655 = vpop.f32.mrb[0].mxu0
  %1656 = vmatprep.mubr.bf16.mxu0 0
  %1657 = vmatmul.mubr.bf16.gmra.mrb[0].mxu0 %v719
  %v1658 = vpop.f32.mrb[0].mxu0
  %v1659 = vadd.f32 %v1550, %v1658
  %v1660 = vpop.f32.mrb[0].mxu0
  %v1661 = vpop.f32.mrb[0].mxu0
  %v1662 = vadd.f32 %v1550, %v1661
  %v1663 = vpop.f32.mrb[0].mxu0
  %1664 = vmatprep.mubr.bf16.mxu0 0
  %1665 = vmatmul.mubr.bf16.gmra.mrb[0].mxu0 %v722
  %v1666 = vpop.f32.mrb[0].mxu0
  %v1667 = vadd.f32 %v1550, %v1666
  %v1668 = vpop.f32.mrb[0].mxu0
  %v1669 = vpop.f32.mrb[0].mxu0
  %v1670 = vadd.f32 %v1550, %v1669
  %v1671 = vpop.f32.mrb[0].mxu0
  %1672 = vdwg.mxu0
  %s1673 = scalar_lea.vmem %s21, 32
  %v1674 = vld [vmem:[%s1673] sm:$0xf]
  %v1675 = vld [vmem:[%s1673 + $0x4] sm:$0xf]
  %v1676 = vld [vmem:[%s1673 + $0x8] sm:$0xf]
  %v1677 = vld [vmem:[%s1673 + $0xc] sm:$0xf]
  %v1678 = vld [vmem:[%s1673 + $0x10] sm:$0xf]
  %v1679 = vld [vmem:[%s1673 + $0x14] sm:$0xf]
  %v1680 = vld [vmem:[%s1673 + $0x18] sm:$0xf]
  %v1681 = vld [vmem:[%s1673 + $0x1c] sm:$0xf]
  %s1682 = scalar_lea.vmem %s23, 1
  %v1683 = vld [vmem:[%s1682] sm:$0x1]
  %v1685 = vlaneseq
  %v1686 = vshrl.u32 %v1685, 7
  %v1687 = vsub.s32 0, %v1686
  %v1688 = vrot.slane %v1683, %v1687
  %v1698 = vunpack.c.l.b16 %v1674
  %v1699 = vunpack.c.l.b16 %v1675
  %v1700 = vunpack.c.l.b16 %v1676
  %v1701 = vunpack.c.l.b16 %v1677
  %v1702 = vunpack.c.l.b16 %v1678
  %v1703 = vunpack.c.l.b16 %v1679
  %v1704 = vunpack.c.l.b16 %v1680
  %v1705 = vunpack.c.l.b16 %v1681
  %v1706 = vpack.c.b16 %v1699, %v1698
  %v1707 = vpack.c.b16 %v1701, %v1700
  %v1708 = vpack.c.b16 %v1703, %v1702
  %v1709 = vpack.c.b16 %v1705, %v1704
  %1714 = vmatprep.subr.bf16.mxu0 0
  %1715 = vmatpush1.bf16.msra.mxu0 %v1706
  %1716 = vmatprep.subr.bf16.mxu0 0
  %1717 = vmatpush1.bf16.msra.mxu0 %v1707
  %1718 = vmatprep.subr.bf16.mxu0 0
  %1719 = vmatpush1.bf16.msra.mxu0 %v1708
  %1720 = vmatprep.subr.bf16.mxu0 0
  %1721 = vmatpush1.bf16.msra.mxu0 %v1709
  %1722 = vmatprep.subr.bf16.mxu0 0
  %1723 = vmatpush1.bf16.msra.mxu0 0
  %1724 = vmatprep.subr.bf16.mxu0 0
  %1725 = vmatpush1.bf16.msra.mxu0 0
  %1726 = vmatprep.subr.bf16.mxu0 0
  %1727 = vmatpush1.bf16.msra.mxu0 0
  %1728 = vmatprep.subr.bf16.mxu0 0
  %1729 = vmatpush1.bf16.msra.mxu0 0
  %1730 = vmatprep.subr.bf16.mxu0 0
  %1731 = vmatpush1.bf16.msra.mxu0 0
  %1732 = vmatprep.subr.bf16.mxu0 0
  %1733 = vmatpush1.bf16.msra.mxu0 0
  %1734 = vmatprep.subr.bf16.mxu0 0
  %1735 = vmatpush1.bf16.msra.mxu0 0
  %1736 = vmatprep.subr.bf16.mxu0 0
  %1737 = vmatpush1.bf16.msra.mxu0 0
  %1738 = vmatprep.subr.bf16.mxu0 0
  %1739 = vmatpush1.bf16.msra.mxu0 0
  %1740 = vmatprep.subr.bf16.mxu0 0
  %1741 = vmatpush1.bf16.msra.mxu0 0
  %1742 = vmatprep.subr.bf16.mxu0 0
  %1743 = vmatpush1.bf16.msra.mxu0 0
  %1744 = vmatprep.subr.bf16.mxu0 0
  %1745 = vmatpush1.bf16.msra.mxu0 0
  %1746 = vmatprep.mubr.bf16.mxu0 0
  %1747 = vmatmul.mubr.bf16.gmra.mrb[0].mxu0 %v701
  %v1748 = vpop.f32.mrb[0].mxu0
  %v1749 = vadd.f32 %v1688, %v1748
  %v1750 = vpop.f32.mrb[0].mxu0
  %v1751 = vpop.f32.mrb[0].mxu0
  %v1752 = vadd.f32 %v1688, %v1751
  %v1753 = vpop.f32.mrb[0].mxu0
  %1754 = vmatprep.mubr.bf16.mxu0 0
  %1755 = vmatmul.mubr.bf16.gmra.mrb[0].mxu0 %v704
  %v1756 = vpop.f32.mrb[0].mxu0
  %v1757 = vadd.f32 %v1688, %v1756
  %v1758 = vpop.f32.mrb[0].mxu0
  %v1759 = vpop.f32.mrb[0].mxu0
  %v1760 = vadd.f32 %v1688, %v1759
  %v1761 = vpop.f32.mrb[0].mxu0
  %1762 = vmatprep.mubr.bf16.mxu0 0
  %1763 = vmatmul.mubr.bf16.gmra.mrb[0].mxu0 %v707
  %v1764 = vpop.f32.mrb[0].mxu0
  %v1765 = vadd.f32 %v1688, %v1764
  %v1766 = vpop.f32.mrb[0].mxu0
  %v1767 = vpop.f32.mrb[0].mxu0
  %v1768 = vadd.f32 %v1688, %v1767
  %v1769 = vpop.f32.mrb[0].mxu0
  %1770 = vmatprep.mubr.bf16.mxu0 0
  %1771 = vmatmul.mubr.bf16.gmra.mrb[0].mxu0 %v710
  %v1772 = vpop.f32.mrb[0].mxu0
  %v1773 = vadd.f32 %v1688, %v1772
  %v1774 = vpop.f32.mrb[0].mxu0
  %v1775 = vpop.f32.mrb[0].mxu0
  %v1776 = vadd.f32 %v1688, %v1775
  %v1777 = vpop.f32.mrb[0].mxu0
  %1778 = vmatprep.mubr.bf16.mxu0 0
  %1779 = vmatmul.mubr.bf16.gmra.mrb[0].mxu0 %v713
  %v1780 = vpop.f32.mrb[0].mxu0
  %v1781 = vadd.f32 %v1688, %v1780
  %v1782 = vpop.f32.mrb[0].mxu0
  %v1783 = vpop.f32.mrb[0].mxu0
  %v1784 = vadd.f32 %v1688, %v1783
  %v1785 = vpop.f32.mrb[0].mxu0
  %1786 = vmatprep.mubr.bf16.mxu0 0
  %1787 = vmatmul.mubr.bf16.gmra.mrb[0].mxu0 %v716
  %v1788 = vpop.f32.mrb[0].mxu0
  %v1789 = vadd.f32 %v1688, %v1788
  %v1790 = vpop.f32.mrb[0].mxu0
  %v1791 = vpop.f32.mrb[0].mxu0
  %v1792 = vadd.f32 %v1688, %v1791
  %v1793 = vpop.f32.mrb[0].mxu0
  %1794 = vmatprep.mubr.bf16.mxu0 0
  %1795 = vmatmul.mubr.bf16.gmra.mrb[0].mxu0 %v719
  %v1796 = vpop.f32.mrb[0].mxu0
  %v1797 = vadd.f32 %v1688, %v1796
  %v1798 = vpop.f32.mrb[0].mxu0
  %v1799 = vpop.f32.mrb[0].mxu0
  %v1800 = vadd.f32 %v1688, %v1799
  %v1801 = vpop.f32.mrb[0].mxu0
  %1802 = vmatprep.mubr.bf16.mxu0 0
  %1803 = vmatmul.mubr.bf16.gmra.mrb[0].mxu0 %v722
  %v1804 = vpop.f32.mrb[0].mxu0
  %v1805 = vadd.f32 %v1688, %v1804
  %v1806 = vpop.f32.mrb[0].mxu0
  %v1807 = vpop.f32.mrb[0].mxu0
  %v1808 = vadd.f32 %v1688, %v1807
  %v1809 = vpop.f32.mrb[0].mxu0
  %1810 = vdwg.mxu0
  %s1811 = scalar_lea.vmem %s25, 32
  %v1812 = vld [vmem:[%s1811] sm:$0xf]
  %v1813 = vld [vmem:[%s1811 + $0x4] sm:$0xf]
  %v1814 = vld [vmem:[%s1811 + $0x8] sm:$0xf]
  %v1815 = vld [vmem:[%s1811 + $0xc] sm:$0xf]
  %v1816 = vld [vmem:[%s1811 + $0x10] sm:$0xf]
  %v1817 = vld [vmem:[%s1811 + $0x14] sm:$0xf]
  %v1818 = vld [vmem:[%s1811 + $0x18] sm:$0xf]
  %v1819 = vld [vmem:[%s1811 + $0x1c] sm:$0xf]
  %s1820 = scalar_lea.vmem %s27, 1
  %v1821 = vld [vmem:[%s1820] sm:$0x1]
  %v1823 = vlaneseq
  %v1824 = vshrl.u32 %v1823, 7
  %v1825 = vsub.s32 0, %v1824
  %v1826 = vrot.slane %v1821, %v1825
  %v1836 = vunpack.c.l.b16 %v1812
  %v1837 = vunpack.c.l.b16 %v1813
  %v1838 = vunpack.c.l.b16 %v1814
  %v1839 = vunpack.c.l.b16 %v1815
  %v1840 = vunpack.c.l.b16 %v1816
  %v1841 = vunpack.c.l.b16 %v1817
  %v1842 = vunpack.c.l.b16 %v1818
  %v1843 = vunpack.c.l.b16 %v1819
  %v1844 = vpack.c.b16 %v1837, %v1836
  %v1845 = vpack.c.b16 %v1839, %v1838
  %v1846 = vpack.c.b16 %v1841, %v1840
  %v1847 = vpack.c.b16 %v1843, %v1842
  %1852 = vmatprep.subr.bf16.mxu0 0
  %1853 = vmatpush1.bf16.msra.mxu0 %v1844
  %1854 = vmatprep.subr.bf16.mxu0 0
  %1855 = vmatpush1.bf16.msra.mxu0 %v1845
  %1856 = vmatprep.subr.bf16.mxu0 0
  %1857 = vmatpush1.bf16.msra.mxu0 %v1846
  %1858 = vmatprep.subr.bf16.mxu0 0
  %1859 = vmatpush1.bf16.msra.mxu0 %v1847
  %1860 = vmatprep.subr.bf16.mxu0 0
  %1861 = vmatpush1.bf16.msra.mxu0 0
  %1862 = vmatprep.subr.bf16.mxu0 0
  %1863 = vmatpush1.bf16.msra.mxu0 0
  %1864 = vmatprep.subr.bf16.mxu0 0
  %1865 = vmatpush1.bf16.msra.mxu0 0
  %1866 = vmatprep.subr.bf16.mxu0 0
  %1867 = vmatpush1.bf16.msra.mxu0 0
  %1868 = vmatprep.subr.bf16.mxu0 0
  %1869 = vmatpush1.bf16.msra.mxu0 0
  %1870 = vmatprep.subr.bf16.mxu0 0
  %1871 = vmatpush1.bf16.msra.mxu0 0
  %1872 = vmatprep.subr.bf16.mxu0 0
  %1873 = vmatpush1.bf16.msra.mxu0 0
  %1874 = vmatprep.subr.bf16.mxu0 0
  %1875 = vmatpush1.bf16.msra.mxu0 0
  %1876 = vmatprep.subr.bf16.mxu0 0
  %1877 = vmatpush1.bf16.msra.mxu0 0
  %1878 = vmatprep.subr.bf16.mxu0 0
  %1879 = vmatpush1.bf16.msra.mxu0 0
  %1880 = vmatprep.subr.bf16.mxu0 0
  %1881 = vmatpush1.bf16.msra.mxu0 0
  %1882 = vmatprep.subr.bf16.mxu0 0
  %1883 = vmatpush1.bf16.msra.mxu0 0
  %1884 = vmatprep.mubr.bf16.mxu0 0
  %1885 = vmatmul.mubr.bf16.gmra.mrb[0].mxu0 %v701
  %v1886 = vpop.f32.mrb[0].mxu0
  %v1887 = vadd.f32 %v1826, %v1886
  %v1888 = vpop.f32.mrb[0].mxu0
  %v1889 = vpop.f32.mrb[0].mxu0
  %v1890 = vadd.f32 %v1826, %v1889
  %v1891 = vpop.f32.mrb[0].mxu0
  %1892 = vmatprep.mubr.bf16.mxu0 0
  %1893 = vmatmul.mubr.bf16.gmra.mrb[0].mxu0 %v704
  %v1894 = vpop.f32.mrb[0].mxu0
  %v1895 = vadd.f32 %v1826, %v1894
  %v1896 = vpop.f32.mrb[0].mxu0
  %v1897 = vpop.f32.mrb[0].mxu0
  %v1898 = vadd.f32 %v1826, %v1897
  %v1899 = vpop.f32.mrb[0].mxu0
  %1900 = vmatprep.mubr.bf16.mxu0 0
  %1901 = vmatmul.mubr.bf16.gmra.mrb[0].mxu0 %v707
  %v1902 = vpop.f32.mrb[0].mxu0
  %v1903 = vadd.f32 %v1826, %v1902
  %v1904 = vpop.f32.mrb[0].mxu0
  %v1905 = vpop.f32.mrb[0].mxu0
  %v1906 = vadd.f32 %v1826, %v1905
  %v1907 = vpop.f32.mrb[0].mxu0
  %1908 = vmatprep.mubr.bf16.mxu0 0
  %1909 = vmatmul.mubr.bf16.gmra.mrb[0].mxu0 %v710
  %v1910 = vpop.f32.mrb[0].mxu0
  %v1911 = vadd.f32 %v1826, %v1910
  %v1912 = vpop.f32.mrb[0].mxu0
  %v1913 = vpop.f32.mrb[0].mxu0
  %v1914 = vadd.f32 %v1826, %v1913
  %v1915 = vpop.f32.mrb[0].mxu0
  %1916 = vmatprep.mubr.bf16.mxu0 0
  %1917 = vmatmul.mubr.bf16.gmra.mrb[0].mxu0 %v713
  %v1918 = vpop.f32.mrb[0].mxu0
  %v1919 = vadd.f32 %v1826, %v1918
  %v1920 = vpop.f32.mrb[0].mxu0
  %v1921 = vpop.f32.mrb[0].mxu0
  %v1922 = vadd.f32 %v1826, %v1921
  %v1923 = vpop.f32.mrb[0].mxu0
  %1924 = vmatprep.mubr.bf16.mxu0 0
  %1925 = vmatmul.mubr.bf16.gmra.mrb[0].mxu0 %v716
  %v1926 = vpop.f32.mrb[0].mxu0
  %v1927 = vadd.f32 %v1826, %v1926
  %v1928 = vpop.f32.mrb[0].mxu0
  %v1929 = vpop.f32.mrb[0].mxu0
  %v1930 = vadd.f32 %v1826, %v1929
  %v1931 = vpop.f32.mrb[0].mxu0
  %1932 = vmatprep.mubr.bf16.mxu0 0
  %1933 = vmatmul.mubr.bf16.gmra.mrb[0].mxu0 %v719
  %v1934 = vpop.f32.mrb[0].mxu0
  %v1935 = vadd.f32 %v1826, %v1934
  %v1936 = vpop.f32.mrb[0].mxu0
  %v1937 = vpop.f32.mrb[0].mxu0
  %v1938 = vadd.f32 %v1826, %v1937
  %v1939 = vpop.f32.mrb[0].mxu0
  %1940 = vmatprep.mubr.bf16.mxu0 0
  %1941 = vmatmul.mubr.bf16.gmra.mrb[0].mxu0 %v722
  %v1942 = vpop.f32.mrb[0].mxu0
  %v1943 = vadd.f32 %v1826, %v1942
  %v1944 = vpop.f32.mrb[0].mxu0
  %v1945 = vpop.f32.mrb[0].mxu0
  %v1946 = vadd.f32 %v1826, %v1945
  %v1947 = vpop.f32.mrb[0].mxu0
  %1948 = vdwg.mxu0
  %v1949 = vpack.c.bf16 %v1614, %v1611
  %v1950 = vpack.c.bf16 %v1622, %v1619
  %v1951 = vpack.c.bf16 %v1630, %v1627
  %v1952 = vpack.c.bf16 %v1638, %v1635
  %v1953 = vpack.c.bf16 %v1646, %v1643
  %v1954 = vpack.c.bf16 %v1654, %v1651
  %v1955 = vpack.c.bf16 %v1662, %v1659
  %v1956 = vpack.c.bf16 %v1670, %v1667
  %v1957 = vpack.c.bf16 %v1752, %v1749
  %v1958 = vpack.c.bf16 %v1760, %v1757
  %v1959 = vpack.c.bf16 %v1768, %v1765
  %v1960 = vpack.c.bf16 %v1776, %v1773
  %v1961 = vpack.c.bf16 %v1784, %v1781
  %v1962 = vpack.c.bf16 %v1792, %v1789
  %v1963 = vpack.c.bf16 %v1800, %v1797
  %v1964 = vpack.c.bf16 %v1808, %v1805
  %v1966 = vsel %vm699, %v1949, 0
  %v1969 = vsel %vm699, %v1950, 0
  %v1972 = vsel %vm699, %v1951, 0
  %v1975 = vsel %vm699, %v1952, 0
  %v1978 = vsel %vm699, %v1953, 0
  %v1981 = vsel %vm699, %v1954, 0
  %v1984 = vsel %vm699, %v1955, 0
  %v1987 = vsel %vm699, %v1956, 0
  %v1990 = vsel %vm699, %v1957, 0
  %v1993 = vsel %vm699, %v1958, 0
  %v1996 = vsel %vm699, %v1959, 0
  %v1999 = vsel %vm699, %v1960, 0
  %v2002 = vsel %vm699, %v1961, 0
  %v2005 = vsel %vm699, %v1962, 0
  %v2008 = vsel %vm699, %v1963, 0
  %v2011 = vsel %vm699, %v1964, 0
  %2013 = vmatprep.subr.bf16.mxu0 0
  %2014 = vmatpush1.bf16.xpose.msra.mxu0 %v1990
  %2015 = vmatprep.subr.bf16.mxu0 0
  %2016 = vmatpush1.bf16.xpose.msra.mxu0 %v1993
  %2017 = vmatprep.subr.bf16.mxu0 0
  %2018 = vmatpush1.bf16.xpose.msra.mxu0 %v1996
  %2019 = vmatprep.subr.bf16.mxu0 0
  %2020 = vmatpush1.bf16.xpose.msra.mxu0 %v1999
  %2021 = vmatprep.subr.bf16.mxu0 0
  %2022 = vmatpush1.bf16.xpose.msra.mxu0 %v2002
  %2023 = vmatprep.subr.bf16.mxu0 0
  %2024 = vmatpush1.bf16.xpose.msra.mxu0 %v2005
  %2025 = vmatprep.subr.bf16.mxu0 0
  %2026 = vmatpush1.bf16.xpose.msra.mxu0 %v2008
  %2027 = vmatprep.subr.bf16.mxu0 0
  %2028 = vmatpush1.bf16.xpose.msra.mxu0 %v2011
  %2029 = vmatprep.subr.bf16.mxu0 0
  %2030 = vmatpush1.bf16.xpose.msra.mxu0 0
  %2031 = vmatprep.subr.bf16.mxu0 0
  %2032 = vmatpush1.bf16.xpose.msra.mxu0 0
  %2033 = vmatprep.subr.bf16.mxu0 0
  %2034 = vmatpush1.bf16.xpose.msra.mxu0 0
  %2035 = vmatprep.subr.bf16.mxu0 0
  %2036 = vmatpush1.bf16.xpose.msra.mxu0 0
  %2037 = vmatprep.subr.bf16.mxu0 0
  %2038 = vmatpush1.bf16.xpose.msra.mxu0 0
  %2039 = vmatprep.subr.bf16.mxu0 0
  %2040 = vmatpush1.bf16.xpose.msra.mxu0 0
  %2041 = vmatprep.subr.bf16.mxu0 0
  %2042 = vmatpush1.bf16.xpose.msra.mxu0 0
  %2043 = vmatprep.subr.bf16.mxu0 0
  %2044 = vmatpush1.bf16.xpose.msra.mxu0 0
  %2045 = vmatprep.mubr.bf16.mxu0 0
  %2046 = vmatmul.mubr.bf16.gmra.mrb[0].mxu0 %v1966
  %v2047 = vpop.f32.mrb[0].mxu0
  %v2048 = vadd.f32 %v644, %v2047
  %v2049 = vpop.f32.mrb[0].mxu0
  %v2050 = vpop.f32.mrb[0].mxu0
  %v2051 = vadd.f32 %v645, %v2050
  %v2052 = vpop.f32.mrb[0].mxu0
  %2053 = vmatprep.mubr.bf16.mxu0 0
  %2054 = vmatmul.mubr.bf16.gmra.mrb[0].mxu0 %v1969
  %v2055 = vpop.f32.mrb[0].mxu0
  %v2056 = vadd.f32 %v646, %v2055
  %v2057 = vpop.f32.mrb[0].mxu0
  %v2058 = vpop.f32.mrb[0].mxu0
  %v2059 = vadd.f32 %v647, %v2058
  %v2060 = vpop.f32.mrb[0].mxu0
  %2061 = vmatprep.mubr.bf16.mxu0 0
  %2062 = vmatmul.mubr.bf16.gmra.mrb[0].mxu0 %v1972
  %v2063 = vpop.f32.mrb[0].mxu0
  %v2064 = vadd.f32 %v648, %v2063
  %v2065 = vpop.f32.mrb[0].mxu0
  %v2066 = vpop.f32.mrb[0].mxu0
  %v2067 = vadd.f32 %v649, %v2066
  %v2068 = vpop.f32.mrb[0].mxu0
  %2069 = vmatprep.mubr.bf16.mxu0 0
  %2070 = vmatmul.mubr.bf16.gmra.mrb[0].mxu0 %v1975
  %v2071 = vpop.f32.mrb[0].mxu0
  %v2072 = vadd.f32 %v650, %v2071
  %v2073 = vpop.f32.mrb[0].mxu0
  %v2074 = vpop.f32.mrb[0].mxu0
  %v2075 = vadd.f32 %v651, %v2074
  %v2076 = vpop.f32.mrb[0].mxu0
  %2077 = vmatprep.mubr.bf16.mxu0 0
  %2078 = vmatmul.mubr.bf16.gmra.mrb[0].mxu0 %v1978
  %v2079 = vpop.f32.mrb[0].mxu0
  %v2080 = vadd.f32 %v652, %v2079
  %v2081 = vpop.f32.mrb[0].mxu0
  %v2082 = vpop.f32.mrb[0].mxu0
  %v2083 = vadd.f32 %v653, %v2082
  %v2084 = vpop.f32.mrb[0].mxu0
  %2085 = vmatprep.mubr.bf16.mxu0 0
  %2086 = vmatmul.mubr.bf16.gmra.mrb[0].mxu0 %v1981
  %v2087 = vpop.f32.mrb[0].mxu0
  %v2088 = vadd.f32 %v654, %v2087
  %v2089 = vpop.f32.mrb[0].mxu0
  %v2090 = vpop.f32.mrb[0].mxu0
  %v2091 = vadd.f32 %v655, %v2090
  %v2092 = vpop.f32.mrb[0].mxu0
  %2093 = vmatprep.mubr.bf16.mxu0 0
  %2094 = vmatmul.mubr.bf16.gmra.mrb[0].mxu0 %v1984
  %v2095 = vpop.f32.mrb[0].mxu0
  %v2096 = vadd.f32 %v656, %v2095
  %v2097 = vpop.f32.mrb[0].mxu0
  %v2098 = vpop.f32.mrb[0].mxu0
  %v2099 = vadd.f32 %v657, %v2098
  %v2100 = vpop.f32.mrb[0].mxu0
  %2101 = vmatprep.mubr.bf16.mxu0 0
  %2102 = vmatmul.mubr.bf16.gmra.mrb[0].mxu0 %v1987
  %v2103 = vpop.f32.mrb[0].mxu0
  %v2104 = vadd.f32 %v658, %v2103
  %v2105 = vpop.f32.mrb[0].mxu0
  %v2106 = vpop.f32.mrb[0].mxu0
  %v2107 = vadd.f32 %v659, %v2106
  %v2108 = vpop.f32.mrb[0].mxu0
  %2109 = vdwg.mxu0
  %2110 = vmax.xlane.f32.xlu0 %v2048
  %v2111 = vpop.xlane.xlu0 %2110
  %2112 = vmax.xlane.f32.xlu0 %v2051
  %v2113 = vpop.xlane.xlu0 %2112
  %2114 = vmax.xlane.f32.xlu0 %v2056
  %v2115 = vpop.xlane.xlu0 %2114
  %2116 = vmax.xlane.f32.xlu0 %v2059
  %v2117 = vpop.xlane.xlu0 %2116
  %2118 = vmax.xlane.f32.xlu0 %v2064
  %v2119 = vpop.xlane.xlu0 %2118
  %2120 = vmax.xlane.f32.xlu0 %v2067
  %v2121 = vpop.xlane.xlu0 %2120
  %2122 = vmax.xlane.f32.xlu0 %v2072
  %v2123 = vpop.xlane.xlu0 %2122
  %2124 = vmax.xlane.f32.xlu0 %v2075
  %v2125 = vpop.xlane.xlu0 %2124
  %2126 = vmax.xlane.f32.xlu0 %v2080
  %v2127 = vpop.xlane.xlu0 %2126
  %2128 = vmax.xlane.f32.xlu0 %v2083
  %v2129 = vpop.xlane.xlu0 %2128
  %2130 = vmax.xlane.f32.xlu0 %v2088
  %v2131 = vpop.xlane.xlu0 %2130
  %2132 = vmax.xlane.f32.xlu0 %v2091
  %v2133 = vpop.xlane.xlu0 %2132
  %2134 = vmax.xlane.f32.xlu0 %v2096
  %v2135 = vpop.xlane.xlu0 %2134
  %2136 = vmax.xlane.f32.xlu0 %v2099
  %v2137 = vpop.xlane.xlu0 %2136
  %2138 = vmax.xlane.f32.xlu0 %v2104
  %v2139 = vpop.xlane.xlu0 %2138
  %2140 = vmax.xlane.f32.xlu0 %v2107
  %v2141 = vpop.xlane.xlu0 %2140
  %v2142 = vsub.f32 %v2048, %v2111
  %v2143 = vsub.f32 %v2051, %v2113
  %v2144 = vsub.f32 %v2056, %v2115
  %v2145 = vsub.f32 %v2059, %v2117
  %v2146 = vsub.f32 %v2064, %v2119
  %v2147 = vsub.f32 %v2067, %v2121
  %v2148 = vsub.f32 %v2072, %v2123
  %v2149 = vsub.f32 %v2075, %v2125
  %v2150 = vsub.f32 %v2080, %v2127
  %v2151 = vsub.f32 %v2083, %v2129
  %v2152 = vsub.f32 %v2088, %v2131
  %v2153 = vsub.f32 %v2091, %v2133
  %v2154 = vsub.f32 %v2096, %v2135
  %v2155 = vsub.f32 %v2099, %v2137
  %v2156 = vsub.f32 %v2104, %v2139
  %v2157 = vsub.f32 %v2107, %v2141
  %v2158 = vmul.f32 %v2142, 1.442695
  %v2159 = vpow.pop %v2158
  %v2160 = vmul.f32 %v2143, 1.442695
  %v2161 = vpow.pop %v2160
  %v2162 = vmul.f32 %v2144, 1.442695
  %v2163 = vpow.pop %v2162
  %v2164 = vmul.f32 %v2145, 1.442695
  %v2165 = vpow.pop %v2164
  %v2166 = vmul.f32 %v2146, 1.442695
  %v2167 = vpow.pop %v2166
  %v2168 = vmul.f32 %v2147, 1.442695
  %v2169 = vpow.pop %v2168
  %v2170 = vmul.f32 %v2148, 1.442695
  %v2171 = vpow.pop %v2170
  %v2172 = vmul.f32 %v2149, 1.442695
  %v2173 = vpow.pop %v2172
  %v2174 = vmul.f32 %v2150, 1.442695
  %v2175 = vpow.pop %v2174
  %v2176 = vmul.f32 %v2151, 1.442695
  %v2177 = vpow.pop %v2176
  %v2178 = vmul.f32 %v2152, 1.442695
  %v2179 = vpow.pop %v2178
  %v2180 = vmul.f32 %v2153, 1.442695
  %v2181 = vpow.pop %v2180
  %v2182 = vmul.f32 %v2154, 1.442695
  %v2183 = vpow.pop %v2182
  %v2184 = vmul.f32 %v2155, 1.442695
  %v2185 = vpow.pop %v2184
  %v2186 = vmul.f32 %v2156, 1.442695
  %v2187 = vpow.pop %v2186
  %v2188 = vmul.f32 %v2157, 1.442695
  %v2189 = vpow.pop %v2188
  %2190 = vadd.xlane.f32.xlu0 %v2159
  %v2191 = vpop.xlane.xlu0 %2190
  %2192 = vadd.xlane.f32.xlu0 %v2161
  %v2193 = vpop.xlane.xlu0 %2192
  %2194 = vadd.xlane.f32.xlu0 %v2163
  %v2195 = vpop.xlane.xlu0 %2194
  %2196 = vadd.xlane.f32.xlu0 %v2165
  %v2197 = vpop.xlane.xlu0 %2196
  %2198 = vadd.xlane.f32.xlu0 %v2167
  %v2199 = vpop.xlane.xlu0 %2198
  %2200 = vadd.xlane.f32.xlu0 %v2169
  %v2201 = vpop.xlane.xlu0 %2200
  %2202 = vadd.xlane.f32.xlu0 %v2171
  %v2203 = vpop.xlane.xlu0 %2202
  %2204 = vadd.xlane.f32.xlu0 %v2173
  %v2205 = vpop.xlane.xlu0 %2204
  %2206 = vadd.xlane.f32.xlu0 %v2175
  %v2207 = vpop.xlane.xlu0 %2206
  %2208 = vadd.xlane.f32.xlu0 %v2177
  %v2209 = vpop.xlane.xlu0 %2208
  %2210 = vadd.xlane.f32.xlu0 %v2179
  %v2211 = vpop.xlane.xlu0 %2210
  %2212 = vadd.xlane.f32.xlu0 %v2181
  %v2213 = vpop.xlane.xlu0 %2212
  %2214 = vadd.xlane.f32.xlu0 %v2183
  %v2215 = vpop.xlane.xlu0 %2214
  %2216 = vadd.xlane.f32.xlu0 %v2185
  %v2217 = vpop.xlane.xlu0 %2216
  %2218 = vadd.xlane.f32.xlu0 %v2187
  %v2219 = vpop.xlane.xlu0 %2218
  %2220 = vadd.xlane.f32.xlu0 %v2189
  %v2221 = vpop.xlane.xlu0 %2220
  %v2222 = vrcp.pop %v2191
  %v2223 = vrcp.pop %v2193
  %v2224 = vrcp.pop %v2195
  %v2225 = vrcp.pop %v2197
  %v2226 = vrcp.pop %v2199
  %v2227 = vrcp.pop %v2201
  %v2228 = vrcp.pop %v2203
  %v2229 = vrcp.pop %v2205
  %v2230 = vrcp.pop %v2207
  %v2231 = vrcp.pop %v2209
  %v2232 = vrcp.pop %v2211
  %v2233 = vrcp.pop %v2213
  %v2234 = vrcp.pop %v2215
  %v2235 = vrcp.pop %v2217
  %v2236 = vrcp.pop %v2219
  %v2237 = vrcp.pop %v2221
  %v2238 = vmul.f32 %v2159, %v2222
  %v2239 = vmul.f32 %v2161, %v2223
  %v2240 = vmul.f32 %v2163, %v2224
  %v2241 = vmul.f32 %v2165, %v2225
  %v2242 = vmul.f32 %v2167, %v2226
  %v2243 = vmul.f32 %v2169, %v2227
  %v2244 = vmul.f32 %v2171, %v2228
  %v2245 = vmul.f32 %v2173, %v2229
  %v2246 = vmul.f32 %v2175, %v2230
  %v2247 = vmul.f32 %v2177, %v2231
  %v2248 = vmul.f32 %v2179, %v2232
  %v2249 = vmul.f32 %v2181, %v2233
  %v2250 = vmul.f32 %v2183, %v2234
  %v2251 = vmul.f32 %v2185, %v2235
  %v2252 = vmul.f32 %v2187, %v2236
  %v2253 = vmul.f32 %v2189, %v2237
  %v2254 = vpack.c.bf16 %v2239, %v2238
  %v2255 = vpack.c.bf16 %v2241, %v2240
  %v2256 = vpack.c.bf16 %v2243, %v2242
  %v2257 = vpack.c.bf16 %v2245, %v2244
  %v2258 = vpack.c.bf16 %v2247, %v2246
  %v2259 = vpack.c.bf16 %v2249, %v2248
  %v2260 = vpack.c.bf16 %v2251, %v2250
  %v2261 = vpack.c.bf16 %v2253, %v2252
  %v2262 = vpack.c.bf16 %v1890, %v1887
  %v2263 = vpack.c.bf16 %v1898, %v1895
  %v2264 = vpack.c.bf16 %v1906, %v1903
  %v2265 = vpack.c.bf16 %v1914, %v1911
  %v2266 = vpack.c.bf16 %v1922, %v1919
  %v2267 = vpack.c.bf16 %v1930, %v1927
  %v2268 = vpack.c.bf16 %v1938, %v1935
  %v2269 = vpack.c.bf16 %v1946, %v1943
  %2270 = vmatprep.subr.bf16.mxu0 0
  %2271 = vmatpush1.bf16.msra.mxu0 %v2262
  %2272 = vmatprep.subr.bf16.mxu0 0
  %2273 = vmatpush1.bf16.msra.mxu0 %v2263
  %2274 = vmatprep.subr.bf16.mxu0 0
  %2275 = vmatpush1.bf16.msra.mxu0 %v2264
  %2276 = vmatprep.subr.bf16.mxu0 0
  %2277 = vmatpush1.bf16.msra.mxu0 %v2265
  %2278 = vmatprep.subr.bf16.mxu0 0
  %2279 = vmatpush1.bf16.msra.mxu0 %v2266
  %2280 = vmatprep.subr.bf16.mxu0 0
  %2281 = vmatpush1.bf16.msra.mxu0 %v2267
  %2282 = vmatprep.subr.bf16.mxu0 0
  %2283 = vmatpush1.bf16.msra.mxu0 %v2268
  %2284 = vmatprep.subr.bf16.mxu0 0
  %2285 = vmatpush1.bf16.msra.mxu0 %v2269
  %2286 = vmatprep.subr.bf16.mxu0 0
  %2287 = vmatpush1.bf16.msra.mxu0 0
  %2288 = vmatprep.subr.bf16.mxu0 0
  %2289 = vmatpush1.bf16.msra.mxu0 0
  %2290 = vmatprep.subr.bf16.mxu0 0
  %2291 = vmatpush1.bf16.msra.mxu0 0
  %2292 = vmatprep.subr.bf16.mxu0 0
  %2293 = vmatpush1.bf16.msra.mxu0 0
  %2294 = vmatprep.subr.bf16.mxu0 0
  %2295 = vmatpush1.bf16.msra.mxu0 0
  %2296 = vmatprep.subr.bf16.mxu0 0
  %2297 = vmatpush1.bf16.msra.mxu0 0
  %2298 = vmatprep.subr.bf16.mxu0 0
  %2299 = vmatpush1.bf16.msra.mxu0 0
  %2300 = vmatprep.subr.bf16.mxu0 0
  %2301 = vmatpush1.bf16.msra.mxu0 0
  %2302 = vmatprep.mubr.bf16.mxu0 0
  %2303 = vmatmul.mubr.bf16.gmra.mrb[0].mxu0 %v2254
  %v2304 = vpop.f32.mrb[0].mxu0
  %v2305 = vadd.f32 0.0, %v2304
  %v2306 = vpop.f32.mrb[0].mxu0
  %v2307 = vpop.f32.mrb[0].mxu0
  %v2308 = vadd.f32 0.0, %v2307
  %v2309 = vpop.f32.mrb[0].mxu0
  %2310 = vmatprep.mubr.bf16.mxu0 0
  %2311 = vmatmul.mubr.bf16.gmra.mrb[0].mxu0 %v2255
  %v2312 = vpop.f32.mrb[0].mxu0
  %v2313 = vadd.f32 0.0, %v2312
  %v2314 = vpop.f32.mrb[0].mxu0
  %v2315 = vpop.f32.mrb[0].mxu0
  %v2316 = vadd.f32 0.0, %v2315
  %v2317 = vpop.f32.mrb[0].mxu0
  %2318 = vmatprep.mubr.bf16.mxu0 0
  %2319 = vmatmul.mubr.bf16.gmra.mrb[0].mxu0 %v2256
  %v2320 = vpop.f32.mrb[0].mxu0
  %v2321 = vadd.f32 0.0, %v2320
  %v2322 = vpop.f32.mrb[0].mxu0
  %v2323 = vpop.f32.mrb[0].mxu0
  %v2324 = vadd.f32 0.0, %v2323
  %v2325 = vpop.f32.mrb[0].mxu0
  %2326 = vmatprep.mubr.bf16.mxu0 0
  %2327 = vmatmul.mubr.bf16.gmra.mrb[0].mxu0 %v2257
  %v2328 = vpop.f32.mrb[0].mxu0
  %v2329 = vadd.f32 0.0, %v2328
  %v2330 = vpop.f32.mrb[0].mxu0
  %v2331 = vpop.f32.mrb[0].mxu0
  %v2332 = vadd.f32 0.0, %v2331
  %v2333 = vpop.f32.mrb[0].mxu0
  %2334 = vmatprep.mubr.bf16.mxu0 0
  %2335 = vmatmul.mubr.bf16.gmra.mrb[0].mxu0 %v2258
  %v2336 = vpop.f32.mrb[0].mxu0
  %v2337 = vadd.f32 0.0, %v2336
  %v2338 = vpop.f32.mrb[0].mxu0
  %v2339 = vpop.f32.mrb[0].mxu0
  %v2340 = vadd.f32 0.0, %v2339
  %v2341 = vpop.f32.mrb[0].mxu0
  %2342 = vmatprep.mubr.bf16.mxu0 0
  %2343 = vmatmul.mubr.bf16.gmra.mrb[0].mxu0 %v2259
  %v2344 = vpop.f32.mrb[0].mxu0
  %v2345 = vadd.f32 0.0, %v2344
  %v2346 = vpop.f32.mrb[0].mxu0
  %v2347 = vpop.f32.mrb[0].mxu0
  %v2348 = vadd.f32 0.0, %v2347
  %v2349 = vpop.f32.mrb[0].mxu0
  %2350 = vmatprep.mubr.bf16.mxu0 0
  %2351 = vmatmul.mubr.bf16.gmra.mrb[0].mxu0 %v2260
  %v2352 = vpop.f32.mrb[0].mxu0
  %v2353 = vadd.f32 0.0, %v2352
  %v2354 = vpop.f32.mrb[0].mxu0
  %v2355 = vpop.f32.mrb[0].mxu0
  %v2356 = vadd.f32 0.0, %v2355
  %v2357 = vpop.f32.mrb[0].mxu0
  %2358 = vmatprep.mubr.bf16.mxu0 0
  %2359 = vmatmul.mubr.bf16.gmra.mrb[0].mxu0 %v2261
  %v2360 = vpop.f32.mrb[0].mxu0
  %v2361 = vadd.f32 0.0, %v2360
  %v2362 = vpop.f32.mrb[0].mxu0
  %v2363 = vpop.f32.mrb[0].mxu0
  %v2364 = vadd.f32 0.0, %v2363
  %v2365 = vpop.f32.mrb[0].mxu0
  %2366 = vdwg.mxu0
  %v2367 = vpack.c.bf16 %v2308, %v2305
  %v2368 = vpack.c.bf16 %v2316, %v2313
  %v2369 = vpack.c.bf16 %v2324, %v2321
  %v2370 = vpack.c.bf16 %v2332, %v2329
  %v2371 = vpack.c.bf16 %v2340, %v2337
  %v2372 = vpack.c.bf16 %v2348, %v2345
  %v2373 = vpack.c.bf16 %v2356, %v2353
  %v2374 = vpack.c.bf16 %v2364, %v2361
  %s2375 = scalar_lea.vmem %s29, 96
  %v2376 = vld [vmem:[%s2375] sm:$0xff]
  %v2377 = vld [vmem:[%s2375 + $0x8] sm:$0xf]
  %v2378 = vld [vmem:[%s2375 + $0xc] sm:$0xff]
  %v2379 = vld [vmem:[%s2375 + $0x14] sm:$0xf]
  %v2380 = vld [vmem:[%s2375 + $0x18] sm:$0xff]
  %v2381 = vld [vmem:[%s2375 + $0x20] sm:$0xf]
  %v2382 = vld [vmem:[%s2375 + $0x24] sm:$0xff]
  %v2383 = vld [vmem:[%s2375 + $0x2c] sm:$0xf]
  %v2384 = vld [vmem:[%s2375 + $0x30] sm:$0xff]
  %v2385 = vld [vmem:[%s2375 + $0x38] sm:$0xf]
  %v2386 = vld [vmem:[%s2375 + $0x3c] sm:$0xff]
  %v2387 = vld [vmem:[%s2375 + $0x44] sm:$0xf]
  %v2388 = vld [vmem:[%s2375 + $0x48] sm:$0xff]
  %v2389 = vld [vmem:[%s2375 + $0x50] sm:$0xf]
  %v2390 = vld [vmem:[%s2375 + $0x54] sm:$0xff]
  %v2391 = vld [vmem:[%s2375 + $0x5c] sm:$0xf]
  %v2408 = vunpack.c.l.b16 %v2376
  %v2409 = vunpack.c.h.b16 %v2376
  %v2410 = vunpack.c.l.b16 %v2377
  %v2411 = vunpack.c.l.b16 %v2378
  %v2412 = vunpack.c.h.b16 %v2378
  %v2413 = vunpack.c.l.b16 %v2379
  %v2414 = vunpack.c.l.b16 %v2380
  %v2415 = vunpack.c.h.b16 %v2380
  %v2416 = vunpack.c.l.b16 %v2381
  %v2417 = vunpack.c.l.b16 %v2382
  %v2418 = vunpack.c.h.b16 %v2382
  %v2419 = vunpack.c.l.b16 %v2383
  %v2420 = vunpack.c.l.b16 %v2384
  %v2421 = vunpack.c.h.b16 %v2384
  %v2422 = vunpack.c.l.b16 %v2385
  %v2423 = vunpack.c.l.b16 %v2386
  %v2424 = vunpack.c.h.b16 %v2386
  %v2425 = vunpack.c.l.b16 %v2387
  %v2426 = vunpack.c.l.b16 %v2388
  %v2427 = vunpack.c.h.b16 %v2388
  %v2428 = vunpack.c.l.b16 %v2389
  %v2429 = vunpack.c.l.b16 %v2390
  %v2430 = vunpack.c.h.b16 %v2390
  %v2431 = vunpack.c.l.b16 %v2391
  %v2432 = vpack.c.b16 %v2411, %v2408
  %v2433 = vpack.c.b16 %v2412, %v2409
  %v2434 = vpack.c.b16 %v2413, %v2410
  %v2435 = vpack.c.b16 %v2417, %v2414
  %v2436 = vpack.c.b16 %v2418, %v2415
  %v2437 = vpack.c.b16 %v2419, %v2416
  %v2438 = vpack.c.b16 %v2423, %v2420
  %v2439 = vpack.c.b16 %v2424, %v2421
  %v2440 = vpack.c.b16 %v2425, %v2422
  %v2441 = vpack.c.b16 %v2429, %v2426
  %v2442 = vpack.c.b16 %v2430, %v2427
  %v2443 = vpack.c.b16 %v2431, %v2428
  %v2457 = vsel %vm699, %v2367, 0
  %v2460 = vsel %vm699, %v2368, 0
  %v2463 = vsel %vm699, %v2369, 0
  %v2466 = vsel %vm699, %v2370, 0
  %v2469 = vsel %vm699, %v2371, 0
  %v2472 = vsel %vm699, %v2372, 0
  %v2475 = vsel %vm699, %v2373, 0
  %v2478 = vsel %vm699, %v2374, 0
  %2480 = vmatprep.subr.bf16.mxu0 %v2433
  %2481 = vmatpush1.bf16.msra.mxu0 %v2432
  %2482 = vmatprep.subr.bf16.mxu0 %v2436
  %2483 = vmatpush1.bf16.msra.mxu0 %v2435
  %2484 = vmatprep.subr.bf16.mxu0 %v2439
  %2485 = vmatpush1.bf16.msra.mxu0 %v2438
  %2486 = vmatprep.subr.bf16.mxu0 %v2442
  %2487 = vmatpush1.bf16.msra.mxu0 %v2441
  %2488 = vmatprep.subr.bf16.mxu0 0
  %2489 = vmatpush1.bf16.msra.mxu0 0
  %2490 = vmatprep.subr.bf16.mxu0 0
  %2491 = vmatpush1.bf16.msra.mxu0 0
  %2492 = vmatprep.subr.bf16.mxu0 0
  %2493 = vmatpush1.bf16.msra.mxu0 0
  %2494 = vmatprep.subr.bf16.mxu0 0
  %2495 = vmatpush1.bf16.msra.mxu0 0
  %2496 = vmatprep.subr.bf16.mxu0 0
  %2497 = vmatpush1.bf16.msra.mxu0 0
  %2498 = vmatprep.subr.bf16.mxu0 0
  %2499 = vmatpush1.bf16.msra.mxu0 0
  %2500 = vmatprep.subr.bf16.mxu0 0
  %2501 = vmatpush1.bf16.msra.mxu0 0
  %2502 = vmatprep.subr.bf16.mxu0 0
  %2503 = vmatpush1.bf16.msra.mxu0 0
  %2504 = vmatprep.subr.bf16.mxu0 0
  %2505 = vmatpush1.bf16.msra.mxu0 0
  %2506 = vmatprep.subr.bf16.mxu0 0
  %2507 = vmatpush1.bf16.msra.mxu0 0
  %2508 = vmatprep.subr.bf16.mxu0 0
  %2509 = vmatpush1.bf16.msra.mxu0 0
  %2510 = vmatprep.subr.bf16.mxu0 0
  %2511 = vmatpush1.bf16.msra.mxu0 0
  %2512 = vmatprep.mubr.bf16.mxu0 0
  %2513 = vmatmul.mubr.bf16.gmra.mrb[0].mxu0 %v2457
  %v2514 = vpop.f32.mrb[0].mxu0
  %v2515 = vadd.f32 0.0, %v2514
  %v2516 = vpop.f32.mrb[0].mxu0
  %v2517 = vadd.f32 0.0, %v2516
  %v2518 = vpop.f32.mrb[0].mxu0
  %v2519 = vadd.f32 0.0, %v2518
  %v2520 = vpop.f32.mrb[0].mxu0
  %v2521 = vadd.f32 0.0, %v2520
  %2522 = vmatprep.mubr.bf16.mxu0 0
  %2523 = vmatmul.mubr.bf16.gmra.mrb[0].mxu0 %v2460
  %v2524 = vpop.f32.mrb[0].mxu0
  %v2525 = vadd.f32 0.0, %v2524
  %v2526 = vpop.f32.mrb[0].mxu0
  %v2527 = vadd.f32 0.0, %v2526
  %v2528 = vpop.f32.mrb[0].mxu0
  %v2529 = vadd.f32 0.0, %v2528
  %v2530 = vpop.f32.mrb[0].mxu0
  %v2531 = vadd.f32 0.0, %v2530
  %2532 = vmatprep.mubr.bf16.mxu0 0
  %2533 = vmatmul.mubr.bf16.gmra.mrb[0].mxu0 %v2463
  %v2534 = vpop.f32.mrb[0].mxu0
  %v2535 = vadd.f32 0.0, %v2534
  %v2536 = vpop.f32.mrb[0].mxu0
  %v2537 = vadd.f32 0.0, %v2536
  %v2538 = vpop.f32.mrb[0].mxu0
  %v2539 = vadd.f32 0.0, %v2538
  %v2540 = vpop.f32.mrb[0].mxu0
  %v2541 = vadd.f32 0.0, %v2540
  %2542 = vmatprep.mubr.bf16.mxu0 0
  %2543 = vmatmul.mubr.bf16.gmra.mrb[0].mxu0 %v2466
  %v2544 = vpop.f32.mrb[0].mxu0
  %v2545 = vadd.f32 0.0, %v2544
  %v2546 = vpop.f32.mrb[0].mxu0
  %v2547 = vadd.f32 0.0, %v2546
  %v2548 = vpop.f32.mrb[0].mxu0
  %v2549 = vadd.f32 0.0, %v2548
  %v2550 = vpop.f32.mrb[0].mxu0
  %v2551 = vadd.f32 0.0, %v2550
  %2552 = vmatprep.mubr.bf16.mxu0 0
  %2553 = vmatmul.mubr.bf16.gmra.mrb[0].mxu0 %v2469
  %v2554 = vpop.f32.mrb[0].mxu0
  %v2555 = vadd.f32 0.0, %v2554
  %v2556 = vpop.f32.mrb[0].mxu0
  %v2557 = vadd.f32 0.0, %v2556
  %v2558 = vpop.f32.mrb[0].mxu0
  %v2559 = vadd.f32 0.0, %v2558
  %v2560 = vpop.f32.mrb[0].mxu0
  %v2561 = vadd.f32 0.0, %v2560
  %2562 = vmatprep.mubr.bf16.mxu0 0
  %2563 = vmatmul.mubr.bf16.gmra.mrb[0].mxu0 %v2472
  %v2564 = vpop.f32.mrb[0].mxu0
  %v2565 = vadd.f32 0.0, %v2564
  %v2566 = vpop.f32.mrb[0].mxu0
  %v2567 = vadd.f32 0.0, %v2566
  %v2568 = vpop.f32.mrb[0].mxu0
  %v2569 = vadd.f32 0.0, %v2568
  %v2570 = vpop.f32.mrb[0].mxu0
  %v2571 = vadd.f32 0.0, %v2570
  %2572 = vmatprep.mubr.bf16.mxu0 0
  %2573 = vmatmul.mubr.bf16.gmra.mrb[0].mxu0 %v2475
  %v2574 = vpop.f32.mrb[0].mxu0
  %v2575 = vadd.f32 0.0, %v2574
  %v2576 = vpop.f32.mrb[0].mxu0
  %v2577 = vadd.f32 0.0, %v2576
  %v2578 = vpop.f32.mrb[0].mxu0
  %v2579 = vadd.f32 0.0, %v2578
  %v2580 = vpop.f32.mrb[0].mxu0
  %v2581 = vadd.f32 0.0, %v2580
  %2582 = vmatprep.mubr.bf16.mxu0 0
  %2583 = vmatmul.mubr.bf16.gmra.mrb[0].mxu0 %v2478
  %v2584 = vpop.f32.mrb[0].mxu0
  %v2585 = vadd.f32 0.0, %v2584
  %v2586 = vpop.f32.mrb[0].mxu0
  %v2587 = vadd.f32 0.0, %v2586
  %v2588 = vpop.f32.mrb[0].mxu0
  %v2589 = vadd.f32 0.0, %v2588
  %v2590 = vpop.f32.mrb[0].mxu0
  %v2591 = vadd.f32 0.0, %v2590
  %2592 = vdwg.mxu0
  %2593 = vmatprep.subr.bf16.mxu0 0
  %2594 = vmatpush1.bf16.msra.mxu0 %v2434
  %2595 = vmatprep.subr.bf16.mxu0 0
  %2596 = vmatpush1.bf16.msra.mxu0 %v2437
  %2597 = vmatprep.subr.bf16.mxu0 0
  %2598 = vmatpush1.bf16.msra.mxu0 %v2440
  %2599 = vmatprep.subr.bf16.mxu0 0
  %2600 = vmatpush1.bf16.msra.mxu0 %v2443
  %2601 = vmatprep.subr.bf16.mxu0 0
  %2602 = vmatpush1.bf16.msra.mxu0 0
  %2603 = vmatprep.subr.bf16.mxu0 0
  %2604 = vmatpush1.bf16.msra.mxu0 0
  %2605 = vmatprep.subr.bf16.mxu0 0
  %2606 = vmatpush1.bf16.msra.mxu0 0
  %2607 = vmatprep.subr.bf16.mxu0 0
  %2608 = vmatpush1.bf16.msra.mxu0 0
  %2609 = vmatprep.subr.bf16.mxu0 0
  %2610 = vmatpush1.bf16.msra.mxu0 0
  %2611 = vmatprep.subr.bf16.mxu0 0
  %2612 = vmatpush1.bf16.msra.mxu0 0
  %2613 = vmatprep.subr.bf16.mxu0 0
  %2614 = vmatpush1.bf16.msra.mxu0 0
  %2615 = vmatprep.subr.bf16.mxu0 0
  %2616 = vmatpush1.bf16.msra.mxu0 0
  %2617 = vmatprep.subr.bf16.mxu0 0
  %2618 = vmatpush1.bf16.msra.mxu0 0
  %2619 = vmatprep.subr.bf16.mxu0 0
  %2620 = vmatpush1.bf16.msra.mxu0 0
  %2621 = vmatprep.subr.bf16.mxu0 0
  %2622 = vmatpush1.bf16.msra.mxu0 0
  %2623 = vmatprep.subr.bf16.mxu0 0
  %2624 = vmatpush1.bf16.msra.mxu0 0
  %2625 = vmatprep.mubr.bf16.mxu0 0
  %2626 = vmatmul.mubr.bf16.gmra.mrb[0].mxu0 %v2457
  %v2627 = vpop.f32.mrb[0].mxu0
  %v2628 = vadd.f32 0.0, %v2627
  %v2629 = vpop.f32.mrb[0].mxu0
  %v2630 = vpop.f32.mrb[0].mxu0
  %v2631 = vadd.f32 0.0, %v2630
  %v2632 = vpop.f32.mrb[0].mxu0
  %2633 = vmatprep.mubr.bf16.mxu0 0
  %2634 = vmatmul.mubr.bf16.gmra.mrb[0].mxu0 %v2460
  %v2635 = vpop.f32.mrb[0].mxu0
  %v2636 = vadd.f32 0.0, %v2635
  %v2637 = vpop.f32.mrb[0].mxu0
  %v2638 = vpop.f32.mrb[0].mxu0
  %v2639 = vadd.f32 0.0, %v2638
  %v2640 = vpop.f32.mrb[0].mxu0
  %2641 = vmatprep.mubr.bf16.mxu0 0
  %2642 = vmatmul.mubr.bf16.gmra.mrb[0].mxu0 %v2463
  %v2643 = vpop.f32.mrb[0].mxu0
  %v2644 = vadd.f32 0.0, %v2643
  %v2645 = vpop.f32.mrb[0].mxu0
  %v2646 = vpop.f32.mrb[0].mxu0
  %v2647 = vadd.f32 0.0, %v2646
  %v2648 = vpop.f32.mrb[0].mxu0
  %2649 = vmatprep.mubr.bf16.mxu0 0
  %2650 = vmatmul.mubr.bf16.gmra.mrb[0].mxu0 %v2466
  %v2651 = vpop.f32.mrb[0].mxu0
  %v2652 = vadd.f32 0.0, %v2651
  %v2653 = vpop.f32.mrb[0].mxu0
  %v2654 = vpop.f32.mrb[0].mxu0
  %v2655 = vadd.f32 0.0, %v2654
  %v2656 = vpop.f32.mrb[0].mxu0
  %2657 = vmatprep.mubr.bf16.mxu0 0
  %2658 = vmatmul.mubr.bf16.gmra.mrb[0].mxu0 %v2469
  %v2659 = vpop.f32.mrb[0].mxu0
  %v2660 = vadd.f32 0.0, %v2659
  %v2661 = vpop.f32.mrb[0].mxu0
  %v2662 = vpop.f32.mrb[0].mxu0
  %v2663 = vadd.f32 0.0, %v2662
  %v2664 = vpop.f32.mrb[0].mxu0
  %2665 = vmatprep.mubr.bf16.mxu0 0
  %2666 = vmatmul.mubr.bf16.gmra.mrb[0].mxu0 %v2472
  %v2667 = vpop.f32.mrb[0].mxu0
  %v2668 = vadd.f32 0.0, %v2667
  %v2669 = vpop.f32.mrb[0].mxu0
  %v2670 = vpop.f32.mrb[0].mxu0
  %v2671 = vadd.f32 0.0, %v2670
  %v2672 = vpop.f32.mrb[0].mxu0
  %2673 = vmatprep.mubr.bf16.mxu0 0
  %2674 = vmatmul.mubr.bf16.gmra.mrb[0].mxu0 %v2475
  %v2675 = vpop.f32.mrb[0].mxu0
  %v2676 = vadd.f32 0.0, %v2675
  %v2677 = vpop.f32.mrb[0].mxu0
  %v2678 = vpop.f32.mrb[0].mxu0
  %v2679 = vadd.f32 0.0, %v2678
  %v2680 = vpop.f32.mrb[0].mxu0
  %2681 = vmatprep.mubr.bf16.mxu0 0
  %2682 = vmatmul.mubr.bf16.gmra.mrb[0].mxu0 %v2478
  %v2683 = vpop.f32.mrb[0].mxu0
  %v2684 = vadd.f32 0.0, %v2683
  %v2685 = vpop.f32.mrb[0].mxu0
  %v2686 = vpop.f32.mrb[0].mxu0
  %v2687 = vadd.f32 0.0, %v2686
  %v2688 = vpop.f32.mrb[0].mxu0
  %2689 = vdwg.mxu0
  %v2706 = vunpack.c.l.b16 %v1519
  %v2707 = vunpack.c.h.b16 %v1519
  %v2708 = vunpack.c.l.b16 %v1520
  %v2709 = vunpack.c.l.b16 %v1521
  %v2710 = vunpack.c.h.b16 %v1521
  %v2711 = vunpack.c.l.b16 %v1522
  %v2712 = vunpack.c.l.b16 %v1523
  %v2713 = vunpack.c.h.b16 %v1523
  %v2714 = vunpack.c.l.b16 %v1524
  %v2715 = vunpack.c.l.b16 %v1525
  %v2716 = vunpack.c.h.b16 %v1525
  %v2717 = vunpack.c.l.b16 %v1526
  %v2718 = vunpack.c.l.b16 %v1527
  %v2719 = vunpack.c.h.b16 %v1527
  %v2720 = vunpack.c.l.b16 %v1528
  %v2721 = vunpack.c.l.b16 %v1529
  %v2722 = vunpack.c.h.b16 %v1529
  %v2723 = vunpack.c.l.b16 %v1530
  %v2724 = vunpack.c.l.b16 %v1531
  %v2725 = vunpack.c.h.b16 %v1531
  %v2726 = vunpack.c.l.b16 %v1532
  %v2727 = vunpack.c.l.b16 %v1533
  %v2728 = vunpack.c.h.b16 %v1533
  %v2729 = vunpack.c.l.b16 %v1534
  %v2730 = vpack.c.b16 %v2709, %v2706
  %v2731 = vpack.c.b16 %v2710, %v2707
  %v2732 = vpack.c.b16 %v2711, %v2708
  %v2733 = vpack.c.b16 %v2715, %v2712
  %v2734 = vpack.c.b16 %v2716, %v2713
  %v2735 = vpack.c.b16 %v2717, %v2714
  %v2736 = vpack.c.b16 %v2721, %v2718
  %v2737 = vpack.c.b16 %v2722, %v2719
  %v2738 = vpack.c.b16 %v2723, %v2720
  %v2739 = vpack.c.b16 %v2727, %v2724
  %v2740 = vpack.c.b16 %v2728, %v2725
  %v2741 = vpack.c.b16 %v2729, %v2726
  %v2755 = vsel %vm699, %v1511, 0
  %v2758 = vsel %vm699, %v1512, 0
  %v2761 = vsel %vm699, %v1513, 0
  %v2764 = vsel %vm699, %v1514, 0
  %v2767 = vsel %vm699, %v1515, 0
  %v2770 = vsel %vm699, %v1516, 0
  %v2773 = vsel %vm699, %v1517, 0
  %v2776 = vsel %vm699, %v1518, 0
  %2778 = vmatprep.subr.bf16.mxu0 %v2731
  %2779 = vmatpush1.bf16.msra.mxu0 %v2730
  %2780 = vmatprep.subr.bf16.mxu0 %v2734
  %2781 = vmatpush1.bf16.msra.mxu0 %v2733
  %2782 = vmatprep.subr.bf16.mxu0 %v2737
  %2783 = vmatpush1.bf16.msra.mxu0 %v2736
  %2784 = vmatprep.subr.bf16.mxu0 %v2740
  %2785 = vmatpush1.bf16.msra.mxu0 %v2739
  %2786 = vmatprep.subr.bf16.mxu0 0
  %2787 = vmatpush1.bf16.msra.mxu0 0
  %2788 = vmatprep.subr.bf16.mxu0 0
  %2789 = vmatpush1.bf16.msra.mxu0 0
  %2790 = vmatprep.subr.bf16.mxu0 0
  %2791 = vmatpush1.bf16.msra.mxu0 0
  %2792 = vmatprep.subr.bf16.mxu0 0
  %2793 = vmatpush1.bf16.msra.mxu0 0
  %2794 = vmatprep.subr.bf16.mxu0 0
  %2795 = vmatpush1.bf16.msra.mxu0 0
  %2796 = vmatprep.subr.bf16.mxu0 0
  %2797 = vmatpush1.bf16.msra.mxu0 0
  %2798 = vmatprep.subr.bf16.mxu0 0
  %2799 = vmatpush1.bf16.msra.mxu0 0
  %2800 = vmatprep.subr.bf16.mxu0 0
  %2801 = vmatpush1.bf16.msra.mxu0 0
  %2802 = vmatprep.subr.bf16.mxu0 0
  %2803 = vmatpush1.bf16.msra.mxu0 0
  %2804 = vmatprep.subr.bf16.mxu0 0
  %2805 = vmatpush1.bf16.msra.mxu0 0
  %2806 = vmatprep.subr.bf16.mxu0 0
  %2807 = vmatpush1.bf16.msra.mxu0 0
  %2808 = vmatprep.subr.bf16.mxu0 0
  %2809 = vmatpush1.bf16.msra.mxu0 0
  %2810 = vmatprep.mubr.bf16.mxu0 0
  %2811 = vmatmul.mubr.bf16.gmra.mrb[0].mxu0 %v2755
  %v2812 = vpop.f32.mrb[0].mxu0
  %v2813 = vadd.f32 %v2515, %v2812
  %v2814 = vpop.f32.mrb[0].mxu0
  %v2815 = vadd.f32 %v2517, %v2814
  %v2816 = vpop.f32.mrb[0].mxu0
  %v2817 = vadd.f32 %v2519, %v2816
  %v2818 = vpop.f32.mrb[0].mxu0
  %v2819 = vadd.f32 %v2521, %v2818
  %2820 = vmatprep.mubr.bf16.mxu0 0
  %2821 = vmatmul.mubr.bf16.gmra.mrb[0].mxu0 %v2758
  %v2822 = vpop.f32.mrb[0].mxu0
  %v2823 = vadd.f32 %v2525, %v2822
  %v2824 = vpop.f32.mrb[0].mxu0
  %v2825 = vadd.f32 %v2527, %v2824
  %v2826 = vpop.f32.mrb[0].mxu0
  %v2827 = vadd.f32 %v2529, %v2826
  %v2828 = vpop.f32.mrb[0].mxu0
  %v2829 = vadd.f32 %v2531, %v2828
  %2830 = vmatprep.mubr.bf16.mxu0 0
  %2831 = vmatmul.mubr.bf16.gmra.mrb[0].mxu0 %v2761
  %v2832 = vpop.f32.mrb[0].mxu0
  %v2833 = vadd.f32 %v2535, %v2832
  %v2834 = vpop.f32.mrb[0].mxu0
  %v2835 = vadd.f32 %v2537, %v2834
  %v2836 = vpop.f32.mrb[0].mxu0
  %v2837 = vadd.f32 %v2539, %v2836
  %v2838 = vpop.f32.mrb[0].mxu0
  %v2839 = vadd.f32 %v2541, %v2838
  %2840 = vmatprep.mubr.bf16.mxu0 0
  %2841 = vmatmul.mubr.bf16.gmra.mrb[0].mxu0 %v2764
  %v2842 = vpop.f32.mrb[0].mxu0
  %v2843 = vadd.f32 %v2545, %v2842
  %v2844 = vpop.f32.mrb[0].mxu0
  %v2845 = vadd.f32 %v2547, %v2844
  %v2846 = vpop.f32.mrb[0].mxu0
  %v2847 = vadd.f32 %v2549, %v2846
  %v2848 = vpop.f32.mrb[0].mxu0
  %v2849 = vadd.f32 %v2551, %v2848
  %2850 = vmatprep.mubr.bf16.mxu0 0
  %2851 = vmatmul.mubr.bf16.gmra.mrb[0].mxu0 %v2767
  %v2852 = vpop.f32.mrb[0].mxu0
  %v2853 = vadd.f32 %v2555, %v2852
  %v2854 = vpop.f32.mrb[0].mxu0
  %v2855 = vadd.f32 %v2557, %v2854
  %v2856 = vpop.f32.mrb[0].mxu0
  %v2857 = vadd.f32 %v2559, %v2856
  %v2858 = vpop.f32.mrb[0].mxu0
  %v2859 = vadd.f32 %v2561, %v2858
  %2860 = vmatprep.mubr.bf16.mxu0 0
  %2861 = vmatmul.mubr.bf16.gmra.mrb[0].mxu0 %v2770
  %v2862 = vpop.f32.mrb[0].mxu0
  %v2863 = vadd.f32 %v2565, %v2862
  %v2864 = vpop.f32.mrb[0].mxu0
  %v2865 = vadd.f32 %v2567, %v2864
  %v2866 = vpop.f32.mrb[0].mxu0
  %v2867 = vadd.f32 %v2569, %v2866
  %v2868 = vpop.f32.mrb[0].mxu0
  %v2869 = vadd.f32 %v2571, %v2868
  %2870 = vmatprep.mubr.bf16.mxu0 0
  %2871 = vmatmul.mubr.bf16.gmra.mrb[0].mxu0 %v2773
  %v2872 = vpop.f32.mrb[0].mxu0
  %v2873 = vadd.f32 %v2575, %v2872
  %v2874 = vpop.f32.mrb[0].mxu0
  %v2875 = vadd.f32 %v2577, %v2874
  %v2876 = vpop.f32.mrb[0].mxu0
  %v2877 = vadd.f32 %v2579, %v2876
  %v2878 = vpop.f32.mrb[0].mxu0
  %v2879 = vadd.f32 %v2581, %v2878
  %2880 = vmatprep.mubr.bf16.mxu0 0
  %2881 = vmatmul.mubr.bf16.gmra.mrb[0].mxu0 %v2776
  %v2882 = vpop.f32.mrb[0].mxu0
  %v2883 = vadd.f32 %v2585, %v2882
  %v2884 = vpop.f32.mrb[0].mxu0
  %v2885 = vadd.f32 %v2587, %v2884
  %v2886 = vpop.f32.mrb[0].mxu0
  %v2887 = vadd.f32 %v2589, %v2886
  %v2888 = vpop.f32.mrb[0].mxu0
  %v2889 = vadd.f32 %v2591, %v2888
  %2890 = vdwg.mxu0
  %2891 = vmatprep.subr.bf16.mxu0 0
  %2892 = vmatpush1.bf16.msra.mxu0 %v2732
  %2893 = vmatprep.subr.bf16.mxu0 0
  %2894 = vmatpush1.bf16.msra.mxu0 %v2735
  %2895 = vmatprep.subr.bf16.mxu0 0
  %2896 = vmatpush1.bf16.msra.mxu0 %v2738
  %2897 = vmatprep.subr.bf16.mxu0 0
  %2898 = vmatpush1.bf16.msra.mxu0 %v2741
  %2899 = vmatprep.subr.bf16.mxu0 0
  %2900 = vmatpush1.bf16.msra.mxu0 0
  %2901 = vmatprep.subr.bf16.mxu0 0
  %2902 = vmatpush1.bf16.msra.mxu0 0
  %2903 = vmatprep.subr.bf16.mxu0 0
  %2904 = vmatpush1.bf16.msra.mxu0 0
  %2905 = vmatprep.subr.bf16.mxu0 0
  %2906 = vmatpush1.bf16.msra.mxu0 0
  %2907 = vmatprep.subr.bf16.mxu0 0
  %2908 = vmatpush1.bf16.msra.mxu0 0
  %2909 = vmatprep.subr.bf16.mxu0 0
  %2910 = vmatpush1.bf16.msra.mxu0 0
  %2911 = vmatprep.subr.bf16.mxu0 0
  %2912 = vmatpush1.bf16.msra.mxu0 0
  %2913 = vmatprep.subr.bf16.mxu0 0
  %2914 = vmatpush1.bf16.msra.mxu0 0
  %2915 = vmatprep.subr.bf16.mxu0 0
  %2916 = vmatpush1.bf16.msra.mxu0 0
  %2917 = vmatprep.subr.bf16.mxu0 0
  %2918 = vmatpush1.bf16.msra.mxu0 0
  %2919 = vmatprep.subr.bf16.mxu0 0
  %2920 = vmatpush1.bf16.msra.mxu0 0
  %2921 = vmatprep.subr.bf16.mxu0 0
  %2922 = vmatpush1.bf16.msra.mxu0 0
  %2923 = vmatprep.mubr.bf16.mxu0 0
  %2924 = vmatmul.mubr.bf16.gmra.mrb[0].mxu0 %v2755
  %v2925 = vpop.f32.mrb[0].mxu0
  %v2926 = vadd.f32 %v2628, %v2925
  %v2927 = vpop.f32.mrb[0].mxu0
  %v2928 = vpop.f32.mrb[0].mxu0
  %v2929 = vadd.f32 %v2631, %v2928
  %v2930 = vpop.f32.mrb[0].mxu0
  %2931 = vmatprep.mubr.bf16.mxu0 0
  %2932 = vmatmul.mubr.bf16.gmra.mrb[0].mxu0 %v2758
  %v2933 = vpop.f32.mrb[0].mxu0
  %v2934 = vadd.f32 %v2636, %v2933
  %v2935 = vpop.f32.mrb[0].mxu0
  %v2936 = vpop.f32.mrb[0].mxu0
  %v2937 = vadd.f32 %v2639, %v2936
  %v2938 = vpop.f32.mrb[0].mxu0
  %2939 = vmatprep.mubr.bf16.mxu0 0
  %2940 = vmatmul.mubr.bf16.gmra.mrb[0].mxu0 %v2761
  %v2941 = vpop.f32.mrb[0].mxu0
  %v2942 = vadd.f32 %v2644, %v2941
  %v2943 = vpop.f32.mrb[0].mxu0
  %v2944 = vpop.f32.mrb[0].mxu0
  %v2945 = vadd.f32 %v2647, %v2944
  %v2946 = vpop.f32.mrb[0].mxu0
  %2947 = vmatprep.mubr.bf16.mxu0 0
  %2948 = vmatmul.mubr.bf16.gmra.mrb[0].mxu0 %v2764
  %v2949 = vpop.f32.mrb[0].mxu0
  %v2950 = vadd.f32 %v2652, %v2949
  %v2951 = vpop.f32.mrb[0].mxu0
  %v2952 = vpop.f32.mrb[0].mxu0
  %v2953 = vadd.f32 %v2655, %v2952
  %v2954 = vpop.f32.mrb[0].mxu0
  %2955 = vmatprep.mubr.bf16.mxu0 0
  %2956 = vmatmul.mubr.bf16.gmra.mrb[0].mxu0 %v2767
  %v2957 = vpop.f32.mrb[0].mxu0
  %v2958 = vadd.f32 %v2660, %v2957
  %v2959 = vpop.f32.mrb[0].mxu0
  %v2960 = vpop.f32.mrb[0].mxu0
  %v2961 = vadd.f32 %v2663, %v2960
  %v2962 = vpop.f32.mrb[0].mxu0
  %2963 = vmatprep.mubr.bf16.mxu0 0
  %2964 = vmatmul.mubr.bf16.gmra.mrb[0].mxu0 %v2770
  %v2965 = vpop.f32.mrb[0].mxu0
  %v2966 = vadd.f32 %v2668, %v2965
  %v2967 = vpop.f32.mrb[0].mxu0
  %v2968 = vpop.f32.mrb[0].mxu0
  %v2969 = vadd.f32 %v2671, %v2968
  %v2970 = vpop.f32.mrb[0].mxu0
  %2971 = vmatprep.mubr.bf16.mxu0 0
  %2972 = vmatmul.mubr.bf16.gmra.mrb[0].mxu0 %v2773
  %v2973 = vpop.f32.mrb[0].mxu0
  %v2974 = vadd.f32 %v2676, %v2973
  %v2975 = vpop.f32.mrb[0].mxu0
  %v2976 = vpop.f32.mrb[0].mxu0
  %v2977 = vadd.f32 %v2679, %v2976
  %v2978 = vpop.f32.mrb[0].mxu0
  %2979 = vmatprep.mubr.bf16.mxu0 0
  %2980 = vmatmul.mubr.bf16.gmra.mrb[0].mxu0 %v2776
  %v2981 = vpop.f32.mrb[0].mxu0
  %v2982 = vadd.f32 %v2684, %v2981
  %v2983 = vpop.f32.mrb[0].mxu0
  %v2984 = vpop.f32.mrb[0].mxu0
  %v2985 = vadd.f32 %v2687, %v2984
  %v2986 = vpop.f32.mrb[0].mxu0
  %2987 = vdwg.mxu0
  %v2988 = vld [vmem:[%s31] sm:$0x7]
  %v2990 = vlaneseq
  %v2991 = vshrl.u32 %v2990, 7
  %v2992 = vsub.s32 0, %v2991
  %v2993 = vrot.slane %v2988, %v2992
  %v2994 = vlaneseq
  %v2995 = vshrl.u32 %v2994, 7
  %v2996 = vsub.s32 1, %v2995
  %v2997 = vrot.slane %v2988, %v2996
  %v2998 = vlaneseq
  %v2999 = vshrl.u32 %v2998, 7
  %v3000 = vsub.s32 2, %v2999
  %v3001 = vrot.slane %v2988, %v3000
  %v3005 = vadd.f32 %v2813, %v2993
  %v3006 = vadd.f32 %v2815, %v2997
  %v3007 = vadd.f32 %v2926, %v3001
  %v3008 = vadd.f32 %v2817, %v2993
  %v3009 = vadd.f32 %v2819, %v2997
  %v3010 = vadd.f32 %v2929, %v3001
  %v3011 = vadd.f32 %v2823, %v2993
  %v3012 = vadd.f32 %v2825, %v2997
  %v3013 = vadd.f32 %v2934, %v3001
  %v3014 = vadd.f32 %v2827, %v2993
  %v3015 = vadd.f32 %v2829, %v2997
  %v3016 = vadd.f32 %v2937, %v3001
  %v3017 = vadd.f32 %v2833, %v2993
  %v3018 = vadd.f32 %v2835, %v2997
  %v3019 = vadd.f32 %v2942, %v3001
  %v3020 = vadd.f32 %v2837, %v2993
  %v3021 = vadd.f32 %v2839, %v2997
  %v3022 = vadd.f32 %v2945, %v3001
  %v3023 = vadd.f32 %v2843, %v2993
  %v3024 = vadd.f32 %v2845, %v2997
  %v3025 = vadd.f32 %v2950, %v3001
  %v3026 = vadd.f32 %v2847, %v2993
  %v3027 = vadd.f32 %v2849, %v2997
  %v3028 = vadd.f32 %v2953, %v3001
  %v3029 = vadd.f32 %v2853, %v2993
  %v3030 = vadd.f32 %v2855, %v2997
  %v3031 = vadd.f32 %v2958, %v3001
  %v3032 = vadd.f32 %v2857, %v2993
  %v3033 = vadd.f32 %v2859, %v2997
  %v3034 = vadd.f32 %v2961, %v3001
  %v3035 = vadd.f32 %v2863, %v2993
  %v3036 = vadd.f32 %v2865, %v2997
  %v3037 = vadd.f32 %v2966, %v3001
  %v3038 = vadd.f32 %v2867, %v2993
  %v3039 = vadd.f32 %v2869, %v2997
  %v3040 = vadd.f32 %v2969, %v3001
  %v3041 = vadd.f32 %v2873, %v2993
  %v3042 = vadd.f32 %v2875, %v2997
  %v3043 = vadd.f32 %v2974, %v3001
  %v3044 = vadd.f32 %v2877, %v2993
  %v3045 = vadd.f32 %v2879, %v2997
  %v3046 = vadd.f32 %v2977, %v3001
  %v3047 = vadd.f32 %v2883, %v2993
  %v3048 = vadd.f32 %v2885, %v2997
  %v3049 = vadd.f32 %v2982, %v3001
  %v3050 = vadd.f32 %v2887, %v2993
  %v3051 = vadd.f32 %v2889, %v2997
  %v3052 = vadd.f32 %v2985, %v3001
  %v3053 = vmax.f32 %v3005, %v3011
  %v3054 = vmax.f32 %v3006, %v3012
  %v3055 = vmax.f32 %v3007, %v3013
  %v3056 = vmax.f32 %v3008, %v3014
  %v3057 = vmax.f32 %v3009, %v3015
  %v3058 = vmax.f32 %v3010, %v3016
  %v3059 = vmax.f32 %v3053, %v3017
  %v3060 = vmax.f32 %v3054, %v3018
  %v3061 = vmax.f32 %v3055, %v3019
  %v3062 = vmax.f32 %v3056, %v3020
  %v3063 = vmax.f32 %v3057, %v3021
  %v3064 = vmax.f32 %v3058, %v3022
  %v3065 = vmax.f32 %v3059, %v3023
  %v3066 = vmax.f32 %v3060, %v3024
  %v3067 = vmax.f32 %v3061, %v3025
  %v3068 = vmax.f32 %v3062, %v3026
  %v3069 = vmax.f32 %v3063, %v3027
  %v3070 = vmax.f32 %v3064, %v3028
  %v3071 = vmax.f32 %v3065, %v3029
  %v3072 = vmax.f32 %v3066, %v3030
  %v3073 = vmax.f32 %v3067, %v3031
  %v3074 = vmax.f32 %v3068, %v3032
  %v3075 = vmax.f32 %v3069, %v3033
  %v3076 = vmax.f32 %v3070, %v3034
  %v3077 = vmax.f32 %v3071, %v3035
  %v3078 = vmax.f32 %v3072, %v3036
  %v3079 = vmax.f32 %v3073, %v3037
  %v3080 = vmax.f32 %v3074, %v3038
  %v3081 = vmax.f32 %v3075, %v3039
  %v3082 = vmax.f32 %v3076, %v3040
  %v3083 = vmax.f32 %v3077, %v3041
  %v3084 = vmax.f32 %v3078, %v3042
  %v3085 = vmax.f32 %v3079, %v3043
  %v3086 = vmax.f32 %v3080, %v3044
  %v3087 = vmax.f32 %v3081, %v3045
  %v3088 = vmax.f32 %v3082, %v3046
  %v3089 = vmax.f32 %v3083, %v3047
  %v3090 = vmax.f32 %v3084, %v3048
  %v3091 = vmax.f32 %v3085, %v3049
  %v3092 = vmax.f32 %v3086, %v3050
  %v3093 = vmax.f32 %v3087, %v3051
  %v3094 = vmax.f32 %v3088, %v3052
  %v3095 = vld [vmem:[%s33] sm:$0xf]
  %v3097 = vsel %vm252, %v3095, 0
  %3099 = vmatprep.subr.bf16.mxu0 0
  %3100 = vmatpush1.bf16.msra.mxu0 %v3097
  %3101 = vmatprep.subr.bf16.mxu0 0
  %3102 = vmatpush1.bf16.msra.mxu0 0
  %3103 = vmatprep.subr.bf16.mxu0 0
  %3104 = vmatpush1.bf16.msra.mxu0 0
  %3105 = vmatprep.subr.bf16.mxu0 0
  %3106 = vmatpush1.bf16.msra.mxu0 0
  %3107 = vmatprep.subr.bf16.mxu0 0
  %3108 = vmatpush1.bf16.msra.mxu0 0
  %3109 = vmatprep.subr.bf16.mxu0 0
  %3110 = vmatpush1.bf16.msra.mxu0 0
  %3111 = vmatprep.subr.bf16.mxu0 0
  %3112 = vmatpush1.bf16.msra.mxu0 0
  %3113 = vmatprep.subr.bf16.mxu0 0
  %3114 = vmatpush1.bf16.msra.mxu0 0
  %3115 = vmatprep.subr.bf16.mxu0 0
  %3116 = vmatpush1.bf16.msra.mxu0 0
  %3117 = vmatprep.subr.bf16.mxu0 0
  %3118 = vmatpush1.bf16.msra.mxu0 0
  %3119 = vmatprep.subr.bf16.mxu0 0
  %3120 = vmatpush1.bf16.msra.mxu0 0
  %3121 = vmatprep.subr.bf16.mxu0 0
  %3122 = vmatpush1.bf16.msra.mxu0 0
  %3123 = vmatprep.subr.bf16.mxu0 0
  %3124 = vmatpush1.bf16.msra.mxu0 0
  %3125 = vmatprep.subr.bf16.mxu0 0
  %3126 = vmatpush1.bf16.msra.mxu0 0
  %3127 = vmatprep.subr.bf16.mxu0 0
  %3128 = vmatpush1.bf16.msra.mxu0 0
  %3129 = vmatprep.subr.bf16.mxu0 0
  %3130 = vmatpush1.bf16.msra.mxu0 0
  %3131 = vmatprep.mubr.bf16.mxu0 0
  %3132 = vmatmul.mubr.bf16.gmra.mrb[0].mxu0 %v229
  %v3133 = vpop.f32.mrb[0].mxu0
  %v3134 = vadd.f32 0.0, %v3133
  %v3135 = vpop.f32.mrb[0].mxu0
  %v3136 = vpop.f32.mrb[0].mxu0
  %v3137 = vadd.f32 0.0, %v3136
  %v3138 = vpop.f32.mrb[0].mxu0
  %3139 = vdwg.mxu0
  %v3140 = vpack.c.bf16 %v3092, %v3089
  %v3141 = vpack.c.bf16 %v3093, %v3090
  %v3142 = vpack.c.bf16 %v3094, %v3091
  %v3143 = vld [vmem:[%s35] sm:$0xf]
  %v3144 = vld [vmem:[%s35 + $0x4] sm:$0xf]
  %v3145 = vld [vmem:[%s35 + $0x8] sm:$0xf]
  %v3146 = vld [vmem:[%s35 + $0xc] sm:$0xf]
  %v3147 = vld [vmem:[%s35 + $0x10] sm:$0xf]
  %v3148 = vld [vmem:[%s35 + $0x14] sm:$0xf]
  %v3149 = vld [vmem:[%s35 + $0x18] sm:$0xf]
  %v3150 = vld [vmem:[%s35 + $0x1c] sm:$0xf]
  %v3151 = vld [vmem:[%s35 + $0x20] sm:$0xf]
  %v3152 = vld [vmem:[%s35 + $0x24] sm:$0xf]
  %v3153 = vld [vmem:[%s35 + $0x28] sm:$0xf]
  %v3154 = vld [vmem:[%s35 + $0x2c] sm:$0xf]
  %v3155 = vld [vmem:[%s35 + $0x30] sm:$0xf]
  %v3156 = vld [vmem:[%s35 + $0x34] sm:$0xf]
  %v3157 = vld [vmem:[%s35 + $0x38] sm:$0xf]
  %v3158 = vld [vmem:[%s35 + $0x3c] sm:$0xf]
  %v3159 = vld [vmem:[%s35 + $0x40] sm:$0xf]
  %v3160 = vld [vmem:[%s35 + $0x44] sm:$0xf]
  %v3161 = vld [vmem:[%s35 + $0x48] sm:$0xf]
  %v3162 = vld [vmem:[%s35 + $0x4c] sm:$0xf]
  %v3163 = vld [vmem:[%s35 + $0x50] sm:$0xf]
  %v3164 = vld [vmem:[%s35 + $0x54] sm:$0xf]
  %v3165 = vld [vmem:[%s35 + $0x58] sm:$0xf]
  %v3166 = vld [vmem:[%s35 + $0x5c] sm:$0xf]
  %v3167 = vld [vmem:[%s35 + $0x60] sm:$0xf]
  %v3168 = vld [vmem:[%s35 + $0x64] sm:$0xf]
  %v3169 = vld [vmem:[%s35 + $0x68] sm:$0xf]
  %v3170 = vld [vmem:[%s35 + $0x6c] sm:$0xf]
  %v3171 = vld [vmem:[%s35 + $0x70] sm:$0xf]
  %v3172 = vld [vmem:[%s35 + $0x74] sm:$0xf]
  %v3173 = vld [vmem:[%s35 + $0x78] sm:$0xf]
  %v3174 = vld [vmem:[%s35 + $0x7c] sm:$0xf]
  %v3175 = vld [vmem:[%s35 + $0x80] sm:$0xf]
  %v3176 = vld [vmem:[%s35 + $0x84] sm:$0xf]
  %v3177 = vld [vmem:[%s35 + $0x88] sm:$0xf]
  %v3178 = vld [vmem:[%s35 + $0x8c] sm:$0xf]
  %v3179 = vld [vmem:[%s35 + $0x90] sm:$0xf]
  %v3180 = vld [vmem:[%s35 + $0x94] sm:$0xf]
  %v3181 = vld [vmem:[%s35 + $0x98] sm:$0xf]
  %v3182 = vld [vmem:[%s35 + $0x9c] sm:$0xf]
  %v3183 = vpack.c.bf16 %v3137, %v3134
  %v3184 = vld [vmem:[%s35 + $0xa0] sm:$0xf]
  %v3185 = vld [vmem:[%s35 + $0xa4] sm:$0xf]
  %v3186 = vld [vmem:[%s35 + $0xa8] sm:$0xf]
  %v3187 = vld [vmem:[%s35 + $0xac] sm:$0xf]
  %v3188 = vld [vmem:[%s35 + $0xb0] sm:$0xf]
  %v3189 = vld [vmem:[%s35 + $0xb4] sm:$0xf]
  %v3190 = vld [vmem:[%s35 + $0xb8] sm:$0xf]
  %v3191 = vld [vmem:[%s35 + $0xbc] sm:$0xf]
  %v3200 = vunpack.c.l.b16 %v3184
  %v3201 = vunpack.c.l.b16 %v3185
  %v3202 = vunpack.c.l.b16 %v3186
  %v3203 = vunpack.c.l.b16 %v3187
  %v3204 = vunpack.c.l.b16 %v3188
  %v3205 = vunpack.c.l.b16 %v3189
  %v3206 = vunpack.c.l.b16 %v3190
  %v3207 = vunpack.c.l.b16 %v3191
  %v3208 = vpack.c.b16 %v3201, %v3200
  %v3209 = vpack.c.b16 %v3203, %v3202
  %v3210 = vpack.c.b16 %v3205, %v3204
  %v3211 = vpack.c.b16 %v3207, %v3206
  %v3217 = vsel %vm699, %v3183, 0
  %3219 = vmatprep.subr.bf16.mxu0 0
  %3220 = vmatpush1.bf16.msra.mxu0 %v3208
  %3221 = vmatprep.subr.bf16.mxu0 0
  %3222 = vmatpush1.bf16.msra.mxu0 %v3209
  %3223 = vmatprep.subr.bf16.mxu0 0
  %3224 = vmatpush1.bf16.msra.mxu0 %v3210
  %3225 = vmatprep.subr.bf16.mxu0 0
  %3226 = vmatpush1.bf16.msra.mxu0 %v3211
  %3227 = vmatprep.subr.bf16.mxu0 0
  %3228 = vmatpush1.bf16.msra.mxu0 0
  %3229 = vmatprep.subr.bf16.mxu0 0
  %3230 = vmatpush1.bf16.msra.mxu0 0
  %3231 = vmatprep.subr.bf16.mxu0 0
  %3232 = vmatpush1.bf16.msra.mxu0 0
  %3233 = vmatprep.subr.bf16.mxu0 0
  %3234 = vmatpush1.bf16.msra.mxu0 0
  %3235 = vmatprep.subr.bf16.mxu0 0
  %3236 = vmatpush1.bf16.msra.mxu0 0
  %3237 = vmatprep.subr.bf16.mxu0 0
  %3238 = vmatpush1.bf16.msra.mxu0 0
  %3239 = vmatprep.subr.bf16.mxu0 0
  %3240 = vmatpush1.bf16.msra.mxu0 0
  %3241 = vmatprep.subr.bf16.mxu0 0
  %3242 = vmatpush1.bf16.msra.mxu0 0
  %3243 = vmatprep.subr.bf16.mxu0 0
  %3244 = vmatpush1.bf16.msra.mxu0 0
  %3245 = vmatprep.subr.bf16.mxu0 0
  %3246 = vmatpush1.bf16.msra.mxu0 0
  %3247 = vmatprep.subr.bf16.mxu0 0
  %3248 = vmatpush1.bf16.msra.mxu0 0
  %3249 = vmatprep.subr.bf16.mxu0 0
  %3250 = vmatpush1.bf16.msra.mxu0 0
  %3251 = vmatprep.mubr.bf16.mxu0 0
  %3252 = vmatmul.mubr.bf16.gmra.mrb[0].mxu0 %v3217
  %v3253 = vpop.f32.mrb[0].mxu0
  %v3254 = vadd.f32 0.0, %v3253
  %v3255 = vpop.f32.mrb[0].mxu0
  %v3256 = vpop.f32.mrb[0].mxu0
  %v3257 = vadd.f32 0.0, %v3256
  %v3258 = vpop.f32.mrb[0].mxu0
  %3259 = vdwg.mxu0
  %v3300 = vunpack.c.l.b16 %v3143
  %v3301 = vunpack.c.l.b16 %v3144
  %v3302 = vunpack.c.l.b16 %v3145
  %v3303 = vunpack.c.l.b16 %v3146
  %v3304 = vunpack.c.l.b16 %v3147
  %v3305 = vunpack.c.l.b16 %v3148
  %v3306 = vunpack.c.l.b16 %v3149
  %v3307 = vunpack.c.l.b16 %v3150
  %v3308 = vunpack.c.l.b16 %v3151
  %v3309 = vunpack.c.l.b16 %v3152
  %v3310 = vunpack.c.l.b16 %v3153
  %v3311 = vunpack.c.l.b16 %v3154
  %v3312 = vunpack.c.l.b16 %v3155
  %v3313 = vunpack.c.l.b16 %v3156
  %v3314 = vunpack.c.l.b16 %v3157
  %v3315 = vunpack.c.l.b16 %v3158
  %v3316 = vunpack.c.l.b16 %v3159
  %v3317 = vunpack.c.l.b16 %v3160
  %v3318 = vunpack.c.l.b16 %v3161
  %v3319 = vunpack.c.l.b16 %v3162
  %v3320 = vunpack.c.l.b16 %v3163
  %v3321 = vunpack.c.l.b16 %v3164
  %v3322 = vunpack.c.l.b16 %v3165
  %v3323 = vunpack.c.l.b16 %v3166
  %v3324 = vunpack.c.l.b16 %v3167
  %v3325 = vunpack.c.l.b16 %v3168
  %v3326 = vunpack.c.l.b16 %v3169
  %v3327 = vunpack.c.l.b16 %v3170
  %v3328 = vunpack.c.l.b16 %v3171
  %v3329 = vunpack.c.l.b16 %v3172
  %v3330 = vunpack.c.l.b16 %v3173
  %v3331 = vunpack.c.l.b16 %v3174
  %v3332 = vunpack.c.l.b16 %v3175
  %v3333 = vunpack.c.l.b16 %v3176
  %v3334 = vunpack.c.l.b16 %v3177
  %v3335 = vunpack.c.l.b16 %v3178
  %v3336 = vunpack.c.l.b16 %v3179
  %v3337 = vunpack.c.l.b16 %v3180
  %v3338 = vunpack.c.l.b16 %v3181
  %v3339 = vunpack.c.l.b16 %v3182
  %v3340 = vpack.c.b16 %v3301, %v3300
  %v3341 = vpack.c.b16 %v3303, %v3302
  %v3342 = vpack.c.b16 %v3305, %v3304
  %v3343 = vpack.c.b16 %v3307, %v3306
  %v3344 = vpack.c.b16 %v3309, %v3308
  %v3345 = vpack.c.b16 %v3311, %v3310
  %v3346 = vpack.c.b16 %v3313, %v3312
  %v3347 = vpack.c.b16 %v3315, %v3314
  %v3348 = vpack.c.b16 %v3317, %v3316
  %v3349 = vpack.c.b16 %v3319, %v3318
  %v3350 = vpack.c.b16 %v3321, %v3320
  %v3351 = vpack.c.b16 %v3323, %v3322
  %v3352 = vpack.c.b16 %v3325, %v3324
  %v3353 = vpack.c.b16 %v3327, %v3326
  %v3354 = vpack.c.b16 %v3329, %v3328
  %v3355 = vpack.c.b16 %v3331, %v3330
  %v3356 = vpack.c.b16 %v3333, %v3332
  %v3357 = vpack.c.b16 %v3335, %v3334
  %v3358 = vpack.c.b16 %v3337, %v3336
  %v3359 = vpack.c.b16 %v3339, %v3338
  %v3381 = vsel %vm699, %v3142, 0
  %3383 = vmatprep.subr.bf16.mxu0 0
  %3384 = vmatpush1.bf16.msra.mxu0 %v3340
  %3385 = vmatprep.subr.bf16.mxu0 0
  %3386 = vmatpush1.bf16.msra.mxu0 %v3341
  %3387 = vmatprep.subr.bf16.mxu0 0
  %3388 = vmatpush1.bf16.msra.mxu0 %v3342
  %3389 = vmatprep.subr.bf16.mxu0 0
  %3390 = vmatpush1.bf16.msra.mxu0 %v3343
  %3391 = vmatprep.subr.bf16.mxu0 0
  %3392 = vmatpush1.bf16.msra.mxu0 %v3344
  %3393 = vmatprep.subr.bf16.mxu0 0
  %3394 = vmatpush1.bf16.msra.mxu0 %v3345
  %3395 = vmatprep.subr.bf16.mxu0 0
  %3396 = vmatpush1.bf16.msra.mxu0 %v3346
  %3397 = vmatprep.subr.bf16.mxu0 0
  %3398 = vmatpush1.bf16.msra.mxu0 %v3347
  %3399 = vmatprep.subr.bf16.mxu0 0
  %3400 = vmatpush1.bf16.msra.mxu0 %v3348
  %3401 = vmatprep.subr.bf16.mxu0 0
  %3402 = vmatpush1.bf16.msra.mxu0 %v3349
  %3403 = vmatprep.subr.bf16.mxu0 0
  %3404 = vmatpush1.bf16.msra.mxu0 %v3350
  %3405 = vmatprep.subr.bf16.mxu0 0
  %3406 = vmatpush1.bf16.msra.mxu0 %v3351
  %3407 = vmatprep.subr.bf16.mxu0 0
  %3408 = vmatpush1.bf16.msra.mxu0 %v3352
  %3409 = vmatprep.subr.bf16.mxu0 0
  %3410 = vmatpush1.bf16.msra.mxu0 %v3353
  %3411 = vmatprep.subr.bf16.mxu0 0
  %3412 = vmatpush1.bf16.msra.mxu0 %v3354
  %3413 = vmatprep.subr.bf16.mxu0 0
  %3414 = vmatpush1.bf16.msra.mxu0 %v3355
  %3415 = vmatprep.mubr.bf16.mxu0 %v3141
  %3416 = vmatmul.mubr.bf16.gmra.mrb[0].mxu0 %v3140
  %v3417 = vpop.f32.mrb[0].mxu0
  %v3418 = vadd.f32 %v3254, %v3417
  %v3419 = vpop.f32.mrb[0].mxu0
  %v3420 = vpop.f32.mrb[0].mxu0
  %v3421 = vadd.f32 %v3257, %v3420
  %v3422 = vpop.f32.mrb[0].mxu0
  %3423 = vdwg.mxu0
  %3424 = vmatprep.subr.bf16.mxu0 0
  %3425 = vmatpush1.bf16.msra.mxu0 %v3356
  %3426 = vmatprep.subr.bf16.mxu0 0
  %3427 = vmatpush1.bf16.msra.mxu0 %v3357
  %3428 = vmatprep.subr.bf16.mxu0 0
  %3429 = vmatpush1.bf16.msra.mxu0 %v3358
  %3430 = vmatprep.subr.bf16.mxu0 0
  %3431 = vmatpush1.bf16.msra.mxu0 %v3359
  %3432 = vmatprep.subr.bf16.mxu0 0
  %3433 = vmatpush1.bf16.msra.mxu0 0
  %3434 = vmatprep.subr.bf16.mxu0 0
  %3435 = vmatpush1.bf16.msra.mxu0 0
  %3436 = vmatprep.subr.bf16.mxu0 0
  %3437 = vmatpush1.bf16.msra.mxu0 0
  %3438 = vmatprep.subr.bf16.mxu0 0
  %3439 = vmatpush1.bf16.msra.mxu0 0
  %3440 = vmatprep.subr.bf16.mxu0 0
  %3441 = vmatpush1.bf16.msra.mxu0 0
  %3442 = vmatprep.subr.bf16.mxu0 0
  %3443 = vmatpush1.bf16.msra.mxu0 0
  %3444 = vmatprep.subr.bf16.mxu0 0
  %3445 = vmatpush1.bf16.msra.mxu0 0
  %3446 = vmatprep.subr.bf16.mxu0 0
  %3447 = vmatpush1.bf16.msra.mxu0 0
  %3448 = vmatprep.subr.bf16.mxu0 0
  %3449 = vmatpush1.bf16.msra.mxu0 0
  %3450 = vmatprep.subr.bf16.mxu0 0
  %3451 = vmatpush1.bf16.msra.mxu0 0
  %3452 = vmatprep.subr.bf16.mxu0 0
  %3453 = vmatpush1.bf16.msra.mxu0 0
  %3454 = vmatprep.subr.bf16.mxu0 0
  %3455 = vmatpush1.bf16.msra.mxu0 0
  %3456 = vmatprep.mubr.bf16.mxu0 0
  %3457 = vmatmul.mubr.bf16.gmra.mrb[0].mxu0 %v3381
  %v3458 = vpop.f32.mrb[0].mxu0
  %v3459 = vadd.f32 %v3418, %v3458
  %v3460 = vpop.f32.mrb[0].mxu0
  %v3461 = vpop.f32.mrb[0].mxu0
  %v3462 = vadd.f32 %v3421, %v3461
  %v3463 = vpop.f32.mrb[0].mxu0
  %3464 = vdwg.mxu0
  %v3465 = vld [vmem:[%s37] sm:$0x1]
  %v3467 = vlaneseq
  %v3468 = vshrl.u32 %v3467, 7
  %v3469 = vsub.s32 0, %v3468
  %v3470 = vrot.slane %v3465, %v3469
  %v3472 = vadd.f32 %v3459, %v3470
  %v3473 = vadd.f32 %v3462, %v3470
  %vm3474 = vcmp.gt.f32.partialorder %v3472, 0.0
  %vm3475 = vcmp.gt.f32.partialorder %v3473, 0.0
  %v3476 = vmul.f32 %v3472, 1.442695
  %v3477 = vpow.pop %v3476
  %v3478 = vmul.f32 %v3473, 1.442695
  %v3479 = vpow.pop %v3478
  %v3480 = vsub.f32 %v3477, 1.0
  %v3481 = vsub.f32 %v3479, 1.0
  %v3482 = vsel %vm3474, %v3472, %v3480
  %v3483 = vsel %vm3475, %v3473, %v3481
  %v3484 = vld [vmem:[%s7] sm:$0xff]
  %v3485 = vld [vmem:[%s7 + $0x8] sm:$0xff]
  %3487 = vset.pattern.permute.xlu0 0
  %3488 = vperm.xlu0 %3487, %v3484
  %v3489 = vpop.permute.xlu0 %3488
  %3492 = vset.pattern.permute.xlu0 0
  %3493 = vperm.xlu0 %3492, %v3485
  %v3494 = vpop.permute.xlu0 %3493
  %v3496 = vmul.f32 %v3482, %v3489
  %v3497 = vmul.f32 %v3483, %v3494
  %v3498 = vld [vmem:[%s11] sm:$0xff]
  %v3499 = vld [vmem:[%s11 + $0x8] sm:$0xff]
  %v3500 = vadd.f32 %v3496, %v3498
  %v3501 = vadd.f32 %v3497, %v3499
  %v3502 = vpack.c.bf16 %v3497, %v3496
  %v3503 = vpack.c.bf16 %v3501, %v3500
  %vm3504 = vcmp.ge.s32.totalorder %v442, 6
  %vm3505 = vcmp.ge.s32.totalorder %v443, 6
  %v3506 = vsel %vm3504, 1, 0
  %v3507 = vsel %vm3505, 1, 0
  %vm3508 = vcmp.ge.s32.totalorder %v442, 12
  %vm3509 = vcmp.ge.s32.totalorder %v443, 12
  %v3510 = vsel %vm3508, 1, 0
  %v3511 = vsel %vm3509, 1, 0
  %v3512 = vmul.u32 %v3510, 2
  %v3513 = vmul.u32 %v3511, 2
  %v3514 = vadd.s32 %v3506, %v3512
  %v3515 = vadd.s32 %v3507, %v3513
  %vm3516 = vcmp.ge.s32.totalorder %v459, 6
  %v3517 = vsel %vm3516, 1, 0
  %vm3518 = vcmp.ge.s32.totalorder %v459, 12
  %v3519 = vsel %vm3518, 1, 0
  %v3520 = vmul.u32 %v3519, 2
  %v3521 = vadd.s32 %v3517, %v3520
  %vm3522 = vcmp.eq.s32.totalorder %v3514, %v3521
  %vm3523 = vcmp.eq.s32.totalorder %v3515, %v3521
  %v3524 = vld [vmem:[%s9] sm:$0x1]
  %v3526 = vlaneseq
  %v3527 = vshrl.u32 %v3526, 7
  %v3528 = vsub.s32 0, %v3527
  %v3529 = vrot.slane %v3524, %v3528
  %v3531 = vmul.f32 %v3489, %v3529
  %v3532 = vmul.f32 %v3494, %v3529
  %v3533 = vsub.f32 1.0, %v3531
  %v3534 = vsub.f32 1.0, %v3532
  %v3535 = vmul.f32 %v3533, -1e+09
  %v3536 = vmul.f32 %v3534, -1e+09
  %v3537 = vsel %vm3522, %v3535, -2e+09
  %v3538 = vsel %vm3523, %v3536, -2e+09
  %v3539 = vld [vmem:[%s39] sm:$0xf]
  %v3540 = vld [vmem:[%s39 + $0x4] sm:$0xf]
  %v3541 = vld [vmem:[%s39 + $0x8] sm:$0xf]
  %v3542 = vld [vmem:[%s39 + $0xc] sm:$0xf]
  %v3543 = vld [vmem:[%s39 + $0x10] sm:$0xf]
  %v3544 = vld [vmem:[%s39 + $0x14] sm:$0xf]
  %v3545 = vld [vmem:[%s39 + $0x18] sm:$0xf]
  %v3546 = vld [vmem:[%s39 + $0x1c] sm:$0xf]
  %v3547 = vld [vmem:[%s41] sm:$0x1]
  %v3549 = vlaneseq
  %v3550 = vshrl.u32 %v3549, 7
  %v3551 = vsub.s32 0, %v3550
  %v3552 = vrot.slane %v3547, %v3551
  %v3562 = vunpack.c.l.b16 %v3539
  %v3563 = vunpack.c.l.b16 %v3540
  %v3564 = vunpack.c.l.b16 %v3541
  %v3565 = vunpack.c.l.b16 %v3542
  %v3566 = vunpack.c.l.b16 %v3543
  %v3567 = vunpack.c.l.b16 %v3544
  %v3568 = vunpack.c.l.b16 %v3545
  %v3569 = vunpack.c.l.b16 %v3546
  %v3570 = vpack.c.b16 %v3563, %v3562
  %v3571 = vpack.c.b16 %v3565, %v3564
  %v3572 = vpack.c.b16 %v3567, %v3566
  %v3573 = vpack.c.b16 %v3569, %v3568
  %v3579 = vsel %vm699, %v3503, 0
  %3581 = vmatprep.subr.bf16.mxu0 0
  %3582 = vmatpush1.bf16.msra.mxu0 %v3570
  %3583 = vmatprep.subr.bf16.mxu0 0
  %3584 = vmatpush1.bf16.msra.mxu0 %v3571
  %3585 = vmatprep.subr.bf16.mxu0 0
  %3586 = vmatpush1.bf16.msra.mxu0 %v3572
  %3587 = vmatprep.subr.bf16.mxu0 0
  %3588 = vmatpush1.bf16.msra.mxu0 %v3573
  %3589 = vmatprep.subr.bf16.mxu0 0
  %3590 = vmatpush1.bf16.msra.mxu0 0
  %3591 = vmatprep.subr.bf16.mxu0 0
  %3592 = vmatpush1.bf16.msra.mxu0 0
  %3593 = vmatprep.subr.bf16.mxu0 0
  %3594 = vmatpush1.bf16.msra.mxu0 0
  %3595 = vmatprep.subr.bf16.mxu0 0
  %3596 = vmatpush1.bf16.msra.mxu0 0
  %3597 = vmatprep.subr.bf16.mxu0 0
  %3598 = vmatpush1.bf16.msra.mxu0 0
  %3599 = vmatprep.subr.bf16.mxu0 0
  %3600 = vmatpush1.bf16.msra.mxu0 0
  %3601 = vmatprep.subr.bf16.mxu0 0
  %3602 = vmatpush1.bf16.msra.mxu0 0
  %3603 = vmatprep.subr.bf16.mxu0 0
  %3604 = vmatpush1.bf16.msra.mxu0 0
  %3605 = vmatprep.subr.bf16.mxu0 0
  %3606 = vmatpush1.bf16.msra.mxu0 0
  %3607 = vmatprep.subr.bf16.mxu0 0
  %3608 = vmatpush1.bf16.msra.mxu0 0
  %3609 = vmatprep.subr.bf16.mxu0 0
  %3610 = vmatpush1.bf16.msra.mxu0 0
  %3611 = vmatprep.subr.bf16.mxu0 0
  %3612 = vmatpush1.bf16.msra.mxu0 0
  %3613 = vmatprep.mubr.bf16.mxu0 0
  %3614 = vmatmul.mubr.bf16.gmra.mrb[0].mxu0 %v3579
  %v3615 = vpop.f32.mrb[0].mxu0
  %v3616 = vadd.f32 %v3552, %v3615
  %v3617 = vpop.f32.mrb[0].mxu0
  %v3618 = vpop.f32.mrb[0].mxu0
  %v3619 = vadd.f32 %v3552, %v3618
  %v3620 = vpop.f32.mrb[0].mxu0
  %3621 = vdwg.mxu0
  %v3622 = vld [vmem:[%s43] sm:$0xf]
  %v3623 = vld [vmem:[%s43 + $0x4] sm:$0xf]
  %v3624 = vld [vmem:[%s43 + $0x8] sm:$0xf]
  %v3625 = vld [vmem:[%s43 + $0xc] sm:$0xf]
  %v3626 = vld [vmem:[%s43 + $0x10] sm:$0xf]
  %v3627 = vld [vmem:[%s43 + $0x14] sm:$0xf]
  %v3628 = vld [vmem:[%s43 + $0x18] sm:$0xf]
  %v3629 = vld [vmem:[%s43 + $0x1c] sm:$0xf]
  %v3630 = vld [vmem:[%s45] sm:$0x1]
  %v3632 = vlaneseq
  %v3633 = vshrl.u32 %v3632, 7
  %v3634 = vsub.s32 0, %v3633
  %v3635 = vrot.slane %v3630, %v3634
  %v3645 = vunpack.c.l.b16 %v3622
  %v3646 = vunpack.c.l.b16 %v3623
  %v3647 = vunpack.c.l.b16 %v3624
  %v3648 = vunpack.c.l.b16 %v3625
  %v3649 = vunpack.c.l.b16 %v3626
  %v3650 = vunpack.c.l.b16 %v3627
  %v3651 = vunpack.c.l.b16 %v3628
  %v3652 = vunpack.c.l.b16 %v3629
  %v3653 = vpack.c.b16 %v3646, %v3645
  %v3654 = vpack.c.b16 %v3648, %v3647
  %v3655 = vpack.c.b16 %v3650, %v3649
  %v3656 = vpack.c.b16 %v3652, %v3651
  %v3662 = vsel %vm699, %v3502, 0
  %3664 = vmatprep.subr.bf16.mxu0 0
  %3665 = vmatpush1.bf16.msra.mxu0 %v3653
  %3666 = vmatprep.subr.bf16.mxu0 0
  %3667 = vmatpush1.bf16.msra.mxu0 %v3654
  %3668 = vmatprep.subr.bf16.mxu0 0
  %3669 = vmatpush1.bf16.msra.mxu0 %v3655
  %3670 = vmatprep.subr.bf16.mxu0 0
  %3671 = vmatpush1.bf16.msra.mxu0 %v3656
  %3672 = vmatprep.subr.bf16.mxu0 0
  %3673 = vmatpush1.bf16.msra.mxu0 0
  %3674 = vmatprep.subr.bf16.mxu0 0
  %3675 = vmatpush1.bf16.msra.mxu0 0
  %3676 = vmatprep.subr.bf16.mxu0 0
  %3677 = vmatpush1.bf16.msra.mxu0 0
  %3678 = vmatprep.subr.bf16.mxu0 0
  %3679 = vmatpush1.bf16.msra.mxu0 0
  %3680 = vmatprep.subr.bf16.mxu0 0
  %3681 = vmatpush1.bf16.msra.mxu0 0
  %3682 = vmatprep.subr.bf16.mxu0 0
  %3683 = vmatpush1.bf16.msra.mxu0 0
  %3684 = vmatprep.subr.bf16.mxu0 0
  %3685 = vmatpush1.bf16.msra.mxu0 0
  %3686 = vmatprep.subr.bf16.mxu0 0
  %3687 = vmatpush1.bf16.msra.mxu0 0
  %3688 = vmatprep.subr.bf16.mxu0 0
  %3689 = vmatpush1.bf16.msra.mxu0 0
  %3690 = vmatprep.subr.bf16.mxu0 0
  %3691 = vmatpush1.bf16.msra.mxu0 0
  %3692 = vmatprep.subr.bf16.mxu0 0
  %3693 = vmatpush1.bf16.msra.mxu0 0
  %3694 = vmatprep.subr.bf16.mxu0 0
  %3695 = vmatpush1.bf16.msra.mxu0 0
  %3696 = vmatprep.mubr.bf16.mxu0 0
  %3697 = vmatmul.mubr.bf16.gmra.mrb[0].mxu0 %v3662
  %v3698 = vpop.f32.mrb[0].mxu0
  %v3699 = vadd.f32 %v3635, %v3698
  %v3700 = vpop.f32.mrb[0].mxu0
  %v3701 = vpop.f32.mrb[0].mxu0
  %v3702 = vadd.f32 %v3635, %v3701
  %v3703 = vpop.f32.mrb[0].mxu0
  %3704 = vdwg.mxu0
  %v3705 = vld [vmem:[%s47] sm:$0xf]
  %v3706 = vld [vmem:[%s47 + $0x4] sm:$0xf]
  %v3707 = vld [vmem:[%s47 + $0x8] sm:$0xf]
  %v3708 = vld [vmem:[%s47 + $0xc] sm:$0xf]
  %v3709 = vld [vmem:[%s47 + $0x10] sm:$0xf]
  %v3710 = vld [vmem:[%s47 + $0x14] sm:$0xf]
  %v3711 = vld [vmem:[%s47 + $0x18] sm:$0xf]
  %v3712 = vld [vmem:[%s47 + $0x1c] sm:$0xf]
  %v3713 = vld [vmem:[%s49] sm:$0x1]
  %v3715 = vlaneseq
  %v3716 = vshrl.u32 %v3715, 7
  %v3717 = vsub.s32 0, %v3716
  %v3718 = vrot.slane %v3713, %v3717
  %v3728 = vunpack.c.l.b16 %v3705
  %v3729 = vunpack.c.l.b16 %v3706
  %v3730 = vunpack.c.l.b16 %v3707
  %v3731 = vunpack.c.l.b16 %v3708
  %v3732 = vunpack.c.l.b16 %v3709
  %v3733 = vunpack.c.l.b16 %v3710
  %v3734 = vunpack.c.l.b16 %v3711
  %v3735 = vunpack.c.l.b16 %v3712
  %v3736 = vpack.c.b16 %v3729, %v3728
  %v3737 = vpack.c.b16 %v3731, %v3730
  %v3738 = vpack.c.b16 %v3733, %v3732
  %v3739 = vpack.c.b16 %v3735, %v3734
  %3744 = vmatprep.subr.bf16.mxu0 0
  %3745 = vmatpush1.bf16.msra.mxu0 %v3736
  %3746 = vmatprep.subr.bf16.mxu0 0
  %3747 = vmatpush1.bf16.msra.mxu0 %v3737
  %3748 = vmatprep.subr.bf16.mxu0 0
  %3749 = vmatpush1.bf16.msra.mxu0 %v3738
  %3750 = vmatprep.subr.bf16.mxu0 0
  %3751 = vmatpush1.bf16.msra.mxu0 %v3739
  %3752 = vmatprep.subr.bf16.mxu0 0
  %3753 = vmatpush1.bf16.msra.mxu0 0
  %3754 = vmatprep.subr.bf16.mxu0 0
  %3755 = vmatpush1.bf16.msra.mxu0 0
  %3756 = vmatprep.subr.bf16.mxu0 0
  %3757 = vmatpush1.bf16.msra.mxu0 0
  %3758 = vmatprep.subr.bf16.mxu0 0
  %3759 = vmatpush1.bf16.msra.mxu0 0
  %3760 = vmatprep.subr.bf16.mxu0 0
  %3761 = vmatpush1.bf16.msra.mxu0 0
  %3762 = vmatprep.subr.bf16.mxu0 0
  %3763 = vmatpush1.bf16.msra.mxu0 0
  %3764 = vmatprep.subr.bf16.mxu0 0
  %3765 = vmatpush1.bf16.msra.mxu0 0
  %3766 = vmatprep.subr.bf16.mxu0 0
  %3767 = vmatpush1.bf16.msra.mxu0 0
  %3768 = vmatprep.subr.bf16.mxu0 0
  %3769 = vmatpush1.bf16.msra.mxu0 0
  %3770 = vmatprep.subr.bf16.mxu0 0
  %3771 = vmatpush1.bf16.msra.mxu0 0
  %3772 = vmatprep.subr.bf16.mxu0 0
  %3773 = vmatpush1.bf16.msra.mxu0 0
  %3774 = vmatprep.subr.bf16.mxu0 0
  %3775 = vmatpush1.bf16.msra.mxu0 0
  %3776 = vmatprep.mubr.bf16.mxu0 0
  %3777 = vmatmul.mubr.bf16.gmra.mrb[0].mxu0 %v3662
  %v3778 = vpop.f32.mrb[0].mxu0
  %v3779 = vadd.f32 %v3718, %v3778
  %v3780 = vpop.f32.mrb[0].mxu0
  %v3781 = vpop.f32.mrb[0].mxu0
  %v3782 = vadd.f32 %v3718, %v3781
  %v3783 = vpop.f32.mrb[0].mxu0
  %3784 = vdwg.mxu0
  %v3785 = vpack.c.bf16 %v3619, %v3616
  %v3786 = vpack.c.bf16 %v3702, %v3699
  %vm3787 = vcmask 130048
  %v3789 = vsel %vm3787, %v3785, 0
  %v3792 = vsel %vm3787, %v3786, 0
  %3794 = vmatprep.subr.bf16.mxu0 0
  %3795 = vmatpush1.bf16.xpose.msra.mxu0 %v3792
  %3796 = vmatprep.subr.bf16.mxu0 0
  %3797 = vmatpush1.bf16.xpose.msra.mxu0 0
  %3798 = vmatprep.subr.bf16.mxu0 0
  %3799 = vmatpush1.bf16.xpose.msra.mxu0 0
  %3800 = vmatprep.subr.bf16.mxu0 0
  %3801 = vmatpush1.bf16.xpose.msra.mxu0 0
  %3802 = vmatprep.subr.bf16.mxu0 0
  %3803 = vmatpush1.bf16.xpose.msra.mxu0 0
  %3804 = vmatprep.subr.bf16.mxu0 0
  %3805 = vmatpush1.bf16.xpose.msra.mxu0 0
  %3806 = vmatprep.subr.bf16.mxu0 0
  %3807 = vmatpush1.bf16.xpose.msra.mxu0 0
  %3808 = vmatprep.subr.bf16.mxu0 0
  %3809 = vmatpush1.bf16.xpose.msra.mxu0 0
  %3810 = vmatprep.subr.bf16.mxu0 0
  %3811 = vmatpush1.bf16.xpose.msra.mxu0 0
  %3812 = vmatprep.subr.bf16.mxu0 0
  %3813 = vmatpush1.bf16.xpose.msra.mxu0 0
  %3814 = vmatprep.subr.bf16.mxu0 0
  %3815 = vmatpush1.bf16.xpose.msra.mxu0 0
  %3816 = vmatprep.subr.bf16.mxu0 0
  %3817 = vmatpush1.bf16.xpose.msra.mxu0 0
  %3818 = vmatprep.subr.bf16.mxu0 0
  %3819 = vmatpush1.bf16.xpose.msra.mxu0 0
  %3820 = vmatprep.subr.bf16.mxu0 0
  %3821 = vmatpush1.bf16.xpose.msra.mxu0 0
  %3822 = vmatprep.subr.bf16.mxu0 0
  %3823 = vmatpush1.bf16.xpose.msra.mxu0 0
  %3824 = vmatprep.subr.bf16.mxu0 0
  %3825 = vmatpush1.bf16.xpose.msra.mxu0 0
  %3826 = vmatprep.mubr.bf16.mxu0 0
  %3827 = vmatmul.mubr.bf16.gmra.mrb[0].mxu0 %v3789
  %v3828 = vpop.f32.mrb[0].mxu0
  %v3829 = vadd.f32 %v3537, %v3828
  %v3830 = vpop.f32.mrb[0].mxu0
  %v3831 = vpop.f32.mrb[0].mxu0
  %v3832 = vadd.f32 %v3538, %v3831
  %v3833 = vpop.f32.mrb[0].mxu0
  %3834 = vdwg.mxu0
  %v3835 = vsel %vm3787, %v3829, -inf
  %3836 = vmax.xlane.f32.xlu0 %v3835
  %v3837 = vpop.xlane.xlu0 %3836
  %v3838 = vsel %vm3787, %v3832, -inf
  %3839 = vmax.xlane.f32.xlu0 %v3838
  %v3840 = vpop.xlane.xlu0 %3839
  %v3841 = vsub.f32 %v3829, %v3837
  %v3842 = vsub.f32 %v3832, %v3840
  %v3843 = vmul.f32 %v3841, 1.442695
  %v3844 = vpow.pop %v3843
  %v3845 = vmul.f32 %v3842, 1.442695
  %v3846 = vpow.pop %v3845
  %v3847 = vsel %vm3787, %v3844, 0.0
  %3848 = vadd.xlane.f32.xlu0 %v3847
  %v3849 = vpop.xlane.xlu0 %3848
  %v3850 = vsel %vm3787, %v3846, 0.0
  %3851 = vadd.xlane.f32.xlu0 %v3850
  %v3852 = vpop.xlane.xlu0 %3851
  %v3853 = vrcp.pop %v3849
  %v3854 = vrcp.pop %v3852
  %v3855 = vmul.f32 %v3844, %v3853
  %v3856 = vmul.f32 %v3846, %v3854
  %v3857 = vpack.c.bf16 %v3856, %v3855
  %v3858 = vpack.c.bf16 %v3782, %v3779
  %v3860 = vsel %vm3787, %v3857, 0
  %3862 = vmatprep.subr.bf16.mxu0 0
  %3863 = vmatpush1.bf16.msra.mxu0 %v3858
  %3864 = vmatprep.subr.bf16.mxu0 0
  %3865 = vmatpush1.bf16.msra.mxu0 0
  %3866 = vmatprep.subr.bf16.mxu0 0
  %3867 = vmatpush1.bf16.msra.mxu0 0
  %3868 = vmatprep.subr.bf16.mxu0 0
  %3869 = vmatpush1.bf16.msra.mxu0 0
  %3870 = vmatprep.subr.bf16.mxu0 0
  %3871 = vmatpush1.bf16.msra.mxu0 0
  %3872 = vmatprep.subr.bf16.mxu0 0
  %3873 = vmatpush1.bf16.msra.mxu0 0
  %3874 = vmatprep.subr.bf16.mxu0 0
  %3875 = vmatpush1.bf16.msra.mxu0 0
  %3876 = vmatprep.subr.bf16.mxu0 0
  %3877 = vmatpush1.bf16.msra.mxu0 0
  %3878 = vmatprep.subr.bf16.mxu0 0
  %3879 = vmatpush1.bf16.msra.mxu0 0
  %3880 = vmatprep.subr.bf16.mxu0 0
  %3881 = vmatpush1.bf16.msra.mxu0 0
  %3882 = vmatprep.subr.bf16.mxu0 0
  %3883 = vmatpush1.bf16.msra.mxu0 0
  %3884 = vmatprep.subr.bf16.mxu0 0
  %3885 = vmatpush1.bf16.msra.mxu0 0
  %3886 = vmatprep.subr.bf16.mxu0 0
  %3887 = vmatpush1.bf16.msra.mxu0 0
  %3888 = vmatprep.subr.bf16.mxu0 0
  %3889 = vmatpush1.bf16.msra.mxu0 0
  %3890 = vmatprep.subr.bf16.mxu0 0
  %3891 = vmatpush1.bf16.msra.mxu0 0
  %3892 = vmatprep.subr.bf16.mxu0 0
  %3893 = vmatpush1.bf16.msra.mxu0 0
  %3894 = vmatprep.mubr.bf16.mxu0 0
  %3895 = vmatmul.mubr.bf16.gmra.mrb[0].mxu0 %v3860
  %v3896 = vpop.f32.mrb[0].mxu0
  %v3897 = vadd.f32 0.0, %v3896
  %v3898 = vpop.f32.mrb[0].mxu0
  %v3899 = vpop.f32.mrb[0].mxu0
  %v3900 = vadd.f32 0.0, %v3899
  %v3901 = vpop.f32.mrb[0].mxu0
  %3902 = vdwg.mxu0
  %v3903 = vpack.c.bf16 %v3900, %v3897
  %v3904 = vld [vmem:[%s51] sm:$0xf]
  %v3905 = vld [vmem:[%s51 + $0x4] sm:$0xf]
  %s3906 = scalar_lea.vmem %s39, 32
  %v3907 = vld [vmem:[%s3906] sm:$0xf]
  %v3908 = vld [vmem:[%s3906 + $0x4] sm:$0xf]
  %v3909 = vld [vmem:[%s3906 + $0x8] sm:$0xf]
  %v3910 = vld [vmem:[%s3906 + $0xc] sm:$0xf]
  %v3911 = vld [vmem:[%s3906 + $0x10] sm:$0xf]
  %v3912 = vld [vmem:[%s3906 + $0x14] sm:$0xf]
  %v3913 = vld [vmem:[%s3906 + $0x18] sm:$0xf]
  %v3914 = vld [vmem:[%s3906 + $0x1c] sm:$0xf]
  %s3915 = scalar_lea.vmem %s41, 1
  %v3916 = vld [vmem:[%s3915] sm:$0x1]
  %v3918 = vlaneseq
  %v3919 = vshrl.u32 %v3918, 7
  %v3920 = vsub.s32 0, %v3919
  %v3921 = vrot.slane %v3916, %v3920
  %v3931 = vunpack.c.l.b16 %v3907
  %v3932 = vunpack.c.l.b16 %v3908
  %v3933 = vunpack.c.l.b16 %v3909
  %v3934 = vunpack.c.l.b16 %v3910
  %v3935 = vunpack.c.l.b16 %v3911
  %v3936 = vunpack.c.l.b16 %v3912
  %v3937 = vunpack.c.l.b16 %v3913
  %v3938 = vunpack.c.l.b16 %v3914
  %v3939 = vpack.c.b16 %v3932, %v3931
  %v3940 = vpack.c.b16 %v3934, %v3933
  %v3941 = vpack.c.b16 %v3936, %v3935
  %v3942 = vpack.c.b16 %v3938, %v3937
  %3947 = vmatprep.subr.bf16.mxu0 0
  %3948 = vmatpush1.bf16.msra.mxu0 %v3939
  %3949 = vmatprep.subr.bf16.mxu0 0
  %3950 = vmatpush1.bf16.msra.mxu0 %v3940
  %3951 = vmatprep.subr.bf16.mxu0 0
  %3952 = vmatpush1.bf16.msra.mxu0 %v3941
  %3953 = vmatprep.subr.bf16.mxu0 0
  %3954 = vmatpush1.bf16.msra.mxu0 %v3942
  %3955 = vmatprep.subr.bf16.mxu0 0
  %3956 = vmatpush1.bf16.msra.mxu0 0
  %3957 = vmatprep.subr.bf16.mxu0 0
  %3958 = vmatpush1.bf16.msra.mxu0 0
  %3959 = vmatprep.subr.bf16.mxu0 0
  %3960 = vmatpush1.bf16.msra.mxu0 0
  %3961 = vmatprep.subr.bf16.mxu0 0
  %3962 = vmatpush1.bf16.msra.mxu0 0
  %3963 = vmatprep.subr.bf16.mxu0 0
  %3964 = vmatpush1.bf16.msra.mxu0 0
  %3965 = vmatprep.subr.bf16.mxu0 0
  %3966 = vmatpush1.bf16.msra.mxu0 0
  %3967 = vmatprep.subr.bf16.mxu0 0
  %3968 = vmatpush1.bf16.msra.mxu0 0
  %3969 = vmatprep.subr.bf16.mxu0 0
  %3970 = vmatpush1.bf16.msra.mxu0 0
  %3971 = vmatprep.subr.bf16.mxu0 0
  %3972 = vmatpush1.bf16.msra.mxu0 0
  %3973 = vmatprep.subr.bf16.mxu0 0
  %3974 = vmatpush1.bf16.msra.mxu0 0
  %3975 = vmatprep.subr.bf16.mxu0 0
  %3976 = vmatpush1.bf16.msra.mxu0 0
  %3977 = vmatprep.subr.bf16.mxu0 0
  %3978 = vmatpush1.bf16.msra.mxu0 0
  %3979 = vmatprep.mubr.bf16.mxu0 0
  %3980 = vmatmul.mubr.bf16.gmra.mrb[0].mxu0 %v3579
  %v3981 = vpop.f32.mrb[0].mxu0
  %v3982 = vadd.f32 %v3921, %v3981
  %v3983 = vpop.f32.mrb[0].mxu0
  %v3984 = vpop.f32.mrb[0].mxu0
  %v3985 = vadd.f32 %v3921, %v3984
  %v3986 = vpop.f32.mrb[0].mxu0
  %3987 = vdwg.mxu0
  %s3988 = scalar_lea.vmem %s43, 32
  %v3989 = vld [vmem:[%s3988] sm:$0xf]
  %v3990 = vld [vmem:[%s3988 + $0x4] sm:$0xf]
  %v3991 = vld [vmem:[%s3988 + $0x8] sm:$0xf]
  %v3992 = vld [vmem:[%s3988 + $0xc] sm:$0xf]
  %v3993 = vld [vmem:[%s3988 + $0x10] sm:$0xf]
  %v3994 = vld [vmem:[%s3988 + $0x14] sm:$0xf]
  %v3995 = vld [vmem:[%s3988 + $0x18] sm:$0xf]
  %v3996 = vld [vmem:[%s3988 + $0x1c] sm:$0xf]
  %s3997 = scalar_lea.vmem %s45, 1
  %v3998 = vld [vmem:[%s3997] sm:$0x1]
  %v4000 = vlaneseq
  %v4001 = vshrl.u32 %v4000, 7
  %v4002 = vsub.s32 0, %v4001
  %v4003 = vrot.slane %v3998, %v4002
  %v4013 = vunpack.c.l.b16 %v3989
  %v4014 = vunpack.c.l.b16 %v3990
  %v4015 = vunpack.c.l.b16 %v3991
  %v4016 = vunpack.c.l.b16 %v3992
  %v4017 = vunpack.c.l.b16 %v3993
  %v4018 = vunpack.c.l.b16 %v3994
  %v4019 = vunpack.c.l.b16 %v3995
  %v4020 = vunpack.c.l.b16 %v3996
  %v4021 = vpack.c.b16 %v4014, %v4013
  %v4022 = vpack.c.b16 %v4016, %v4015
  %v4023 = vpack.c.b16 %v4018, %v4017
  %v4024 = vpack.c.b16 %v4020, %v4019
  %4029 = vmatprep.subr.bf16.mxu0 0
  %4030 = vmatpush1.bf16.msra.mxu0 %v4021
  %4031 = vmatprep.subr.bf16.mxu0 0
  %4032 = vmatpush1.bf16.msra.mxu0 %v4022
  %4033 = vmatprep.subr.bf16.mxu0 0
  %4034 = vmatpush1.bf16.msra.mxu0 %v4023
  %4035 = vmatprep.subr.bf16.mxu0 0
  %4036 = vmatpush1.bf16.msra.mxu0 %v4024
  %4037 = vmatprep.subr.bf16.mxu0 0
  %4038 = vmatpush1.bf16.msra.mxu0 0
  %4039 = vmatprep.subr.bf16.mxu0 0
  %4040 = vmatpush1.bf16.msra.mxu0 0
  %4041 = vmatprep.subr.bf16.mxu0 0
  %4042 = vmatpush1.bf16.msra.mxu0 0
  %4043 = vmatprep.subr.bf16.mxu0 0
  %4044 = vmatpush1.bf16.msra.mxu0 0
  %4045 = vmatprep.subr.bf16.mxu0 0
  %4046 = vmatpush1.bf16.msra.mxu0 0
  %4047 = vmatprep.subr.bf16.mxu0 0
  %4048 = vmatpush1.bf16.msra.mxu0 0
  %4049 = vmatprep.subr.bf16.mxu0 0
  %4050 = vmatpush1.bf16.msra.mxu0 0
  %4051 = vmatprep.subr.bf16.mxu0 0
  %4052 = vmatpush1.bf16.msra.mxu0 0
  %4053 = vmatprep.subr.bf16.mxu0 0
  %4054 = vmatpush1.bf16.msra.mxu0 0
  %4055 = vmatprep.subr.bf16.mxu0 0
  %4056 = vmatpush1.bf16.msra.mxu0 0
  %4057 = vmatprep.subr.bf16.mxu0 0
  %4058 = vmatpush1.bf16.msra.mxu0 0
  %4059 = vmatprep.subr.bf16.mxu0 0
  %4060 = vmatpush1.bf16.msra.mxu0 0
  %4061 = vmatprep.mubr.bf16.mxu0 0
  %4062 = vmatmul.mubr.bf16.gmra.mrb[0].mxu0 %v3662
  %v4063 = vpop.f32.mrb[0].mxu0
  %v4064 = vadd.f32 %v4003, %v4063
  %v4065 = vpop.f32.mrb[0].mxu0
  %v4066 = vpop.f32.mrb[0].mxu0
  %v4067 = vadd.f32 %v4003, %v4066
  %v4068 = vpop.f32.mrb[0].mxu0
  %4069 = vdwg.mxu0
  %s4070 = scalar_lea.vmem %s47, 32
  %v4071 = vld [vmem:[%s4070] sm:$0xf]
  %v4072 = vld [vmem:[%s4070 + $0x4] sm:$0xf]
  %v4073 = vld [vmem:[%s4070 + $0x8] sm:$0xf]
  %v4074 = vld [vmem:[%s4070 + $0xc] sm:$0xf]
  %v4075 = vld [vmem:[%s4070 + $0x10] sm:$0xf]
  %v4076 = vld [vmem:[%s4070 + $0x14] sm:$0xf]
  %v4077 = vld [vmem:[%s4070 + $0x18] sm:$0xf]
  %v4078 = vld [vmem:[%s4070 + $0x1c] sm:$0xf]
  %s4079 = scalar_lea.vmem %s49, 1
  %v4080 = vld [vmem:[%s4079] sm:$0x1]
  %v4082 = vlaneseq
  %v4083 = vshrl.u32 %v4082, 7
  %v4084 = vsub.s32 0, %v4083
  %v4085 = vrot.slane %v4080, %v4084
  %v4095 = vunpack.c.l.b16 %v4071
  %v4096 = vunpack.c.l.b16 %v4072
  %v4097 = vunpack.c.l.b16 %v4073
  %v4098 = vunpack.c.l.b16 %v4074
  %v4099 = vunpack.c.l.b16 %v4075
  %v4100 = vunpack.c.l.b16 %v4076
  %v4101 = vunpack.c.l.b16 %v4077
  %v4102 = vunpack.c.l.b16 %v4078
  %v4103 = vpack.c.b16 %v4096, %v4095
  %v4104 = vpack.c.b16 %v4098, %v4097
  %v4105 = vpack.c.b16 %v4100, %v4099
  %v4106 = vpack.c.b16 %v4102, %v4101
  %4111 = vmatprep.subr.bf16.mxu0 0
  %4112 = vmatpush1.bf16.msra.mxu0 %v4103
  %4113 = vmatprep.subr.bf16.mxu0 0
  %4114 = vmatpush1.bf16.msra.mxu0 %v4104
  %4115 = vmatprep.subr.bf16.mxu0 0
  %4116 = vmatpush1.bf16.msra.mxu0 %v4105
  %4117 = vmatprep.subr.bf16.mxu0 0
  %4118 = vmatpush1.bf16.msra.mxu0 %v4106
  %4119 = vmatprep.subr.bf16.mxu0 0
  %4120 = vmatpush1.bf16.msra.mxu0 0
  %4121 = vmatprep.subr.bf16.mxu0 0
  %4122 = vmatpush1.bf16.msra.mxu0 0
  %4123 = vmatprep.subr.bf16.mxu0 0
  %4124 = vmatpush1.bf16.msra.mxu0 0
  %4125 = vmatprep.subr.bf16.mxu0 0
  %4126 = vmatpush1.bf16.msra.mxu0 0
  %4127 = vmatprep.subr.bf16.mxu0 0
  %4128 = vmatpush1.bf16.msra.mxu0 0
  %4129 = vmatprep.subr.bf16.mxu0 0
  %4130 = vmatpush1.bf16.msra.mxu0 0
  %4131 = vmatprep.subr.bf16.mxu0 0
  %4132 = vmatpush1.bf16.msra.mxu0 0
  %4133 = vmatprep.subr.bf16.mxu0 0
  %4134 = vmatpush1.bf16.msra.mxu0 0
  %4135 = vmatprep.subr.bf16.mxu0 0
  %4136 = vmatpush1.bf16.msra.mxu0 0
  %4137 = vmatprep.subr.bf16.mxu0 0
  %4138 = vmatpush1.bf16.msra.mxu0 0
  %4139 = vmatprep.subr.bf16.mxu0 0
  %4140 = vmatpush1.bf16.msra.mxu0 0
  %4141 = vmatprep.subr.bf16.mxu0 0
  %4142 = vmatpush1.bf16.msra.mxu0 0
  %4143 = vmatprep.mubr.bf16.mxu0 0
  %4144 = vmatmul.mubr.bf16.gmra.mrb[0].mxu0 %v3662
  %v4145 = vpop.f32.mrb[0].mxu0
  %v4146 = vadd.f32 %v4085, %v4145
  %v4147 = vpop.f32.mrb[0].mxu0
  %v4148 = vpop.f32.mrb[0].mxu0
  %v4149 = vadd.f32 %v4085, %v4148
  %v4150 = vpop.f32.mrb[0].mxu0
  %4151 = vdwg.mxu0
  %v4152 = vpack.c.bf16 %v3985, %v3982
  %v4153 = vpack.c.bf16 %v4067, %v4064
  %v4155 = vsel %vm3787, %v4152, 0
  %v4158 = vsel %vm3787, %v4153, 0
  %4160 = vmatprep.subr.bf16.mxu0 0
  %4161 = vmatpush1.bf16.xpose.msra.mxu0 %v4158
  %4162 = vmatprep.subr.bf16.mxu0 0
  %4163 = vmatpush1.bf16.xpose.msra.mxu0 0
  %4164 = vmatprep.subr.bf16.mxu0 0
  %4165 = vmatpush1.bf16.xpose.msra.mxu0 0
  %4166 = vmatprep.subr.bf16.mxu0 0
  %4167 = vmatpush1.bf16.xpose.msra.mxu0 0
  %4168 = vmatprep.subr.bf16.mxu0 0
  %4169 = vmatpush1.bf16.xpose.msra.mxu0 0
  %4170 = vmatprep.subr.bf16.mxu0 0
  %4171 = vmatpush1.bf16.xpose.msra.mxu0 0
  %4172 = vmatprep.subr.bf16.mxu0 0
  %4173 = vmatpush1.bf16.xpose.msra.mxu0 0
  %4174 = vmatprep.subr.bf16.mxu0 0
  %4175 = vmatpush1.bf16.xpose.msra.mxu0 0
  %4176 = vmatprep.subr.bf16.mxu0 0
  %4177 = vmatpush1.bf16.xpose.msra.mxu0 0
  %4178 = vmatprep.subr.bf16.mxu0 0
  %4179 = vmatpush1.bf16.xpose.msra.mxu0 0
  %4180 = vmatprep.subr.bf16.mxu0 0
  %4181 = vmatpush1.bf16.xpose.msra.mxu0 0
  %4182 = vmatprep.subr.bf16.mxu0 0
  %4183 = vmatpush1.bf16.xpose.msra.mxu0 0
  %4184 = vmatprep.subr.bf16.mxu0 0
  %4185 = vmatpush1.bf16.xpose.msra.mxu0 0
  %4186 = vmatprep.subr.bf16.mxu0 0
  %4187 = vmatpush1.bf16.xpose.msra.mxu0 0
  %4188 = vmatprep.subr.bf16.mxu0 0
  %4189 = vmatpush1.bf16.xpose.msra.mxu0 0
  %4190 = vmatprep.subr.bf16.mxu0 0
  %4191 = vmatpush1.bf16.xpose.msra.mxu0 0
  %4192 = vmatprep.mubr.bf16.mxu0 0
  %4193 = vmatmul.mubr.bf16.gmra.mrb[0].mxu0 %v4155
  %v4194 = vpop.f32.mrb[0].mxu0
  %v4195 = vadd.f32 %v3537, %v4194
  %v4196 = vpop.f32.mrb[0].mxu0
  %v4197 = vpop.f32.mrb[0].mxu0
  %v4198 = vadd.f32 %v3538, %v4197
  %v4199 = vpop.f32.mrb[0].mxu0
  %4200 = vdwg.mxu0
  %v4201 = vsel %vm3787, %v4195, -inf
  %4202 = vmax.xlane.f32.xlu0 %v4201
  %v4203 = vpop.xlane.xlu0 %4202
  %v4204 = vsel %vm3787, %v4198, -inf
  %4205 = vmax.xlane.f32.xlu0 %v4204
  %v4206 = vpop.xlane.xlu0 %4205
  %v4207 = vsub.f32 %v4195, %v4203
  %v4208 = vsub.f32 %v4198, %v4206
  %v4209 = vmul.f32 %v4207, 1.442695
  %v4210 = vpow.pop %v4209
  %v4211 = vmul.f32 %v4208, 1.442695
  %v4212 = vpow.pop %v4211
  %v4213 = vsel %vm3787, %v4210, 0.0
  %4214 = vadd.xlane.f32.xlu0 %v4213
  %v4215 = vpop.xlane.xlu0 %4214
  %v4216 = vsel %vm3787, %v4212, 0.0
  %4217 = vadd.xlane.f32.xlu0 %v4216
  %v4218 = vpop.xlane.xlu0 %4217
  %v4219 = vrcp.pop %v4215
  %v4220 = vrcp.pop %v4218
  %v4221 = vmul.f32 %v4210, %v4219
  %v4222 = vmul.f32 %v4212, %v4220
  %v4223 = vpack.c.bf16 %v4222, %v4221
  %v4224 = vpack.c.bf16 %v4149, %v4146
  %v4226 = vsel %vm3787, %v4223, 0
  %4228 = vmatprep.subr.bf16.mxu0 0
  %4229 = vmatpush1.bf16.msra.mxu0 %v4224
  %4230 = vmatprep.subr.bf16.mxu0 0
  %4231 = vmatpush1.bf16.msra.mxu0 0
  %4232 = vmatprep.subr.bf16.mxu0 0
  %4233 = vmatpush1.bf16.msra.mxu0 0
  %4234 = vmatprep.subr.bf16.mxu0 0
  %4235 = vmatpush1.bf16.msra.mxu0 0
  %4236 = vmatprep.subr.bf16.mxu0 0
  %4237 = vmatpush1.bf16.msra.mxu0 0
  %4238 = vmatprep.subr.bf16.mxu0 0
  %4239 = vmatpush1.bf16.msra.mxu0 0
  %4240 = vmatprep.subr.bf16.mxu0 0
  %4241 = vmatpush1.bf16.msra.mxu0 0
  %4242 = vmatprep.subr.bf16.mxu0 0
  %4243 = vmatpush1.bf16.msra.mxu0 0
  %4244 = vmatprep.subr.bf16.mxu0 0
  %4245 = vmatpush1.bf16.msra.mxu0 0
  %4246 = vmatprep.subr.bf16.mxu0 0
  %4247 = vmatpush1.bf16.msra.mxu0 0
  %4248 = vmatprep.subr.bf16.mxu0 0
  %4249 = vmatpush1.bf16.msra.mxu0 0
  %4250 = vmatprep.subr.bf16.mxu0 0
  %4251 = vmatpush1.bf16.msra.mxu0 0
  %4252 = vmatprep.subr.bf16.mxu0 0
  %4253 = vmatpush1.bf16.msra.mxu0 0
  %4254 = vmatprep.subr.bf16.mxu0 0
  %4255 = vmatpush1.bf16.msra.mxu0 0
  %4256 = vmatprep.subr.bf16.mxu0 0
  %4257 = vmatpush1.bf16.msra.mxu0 0
  %4258 = vmatprep.subr.bf16.mxu0 0
  %4259 = vmatpush1.bf16.msra.mxu0 0
  %4260 = vmatprep.mubr.bf16.mxu0 0
  %4261 = vmatmul.mubr.bf16.gmra.mrb[0].mxu0 %v4226
  %v4262 = vpop.f32.mrb[0].mxu0
  %v4263 = vadd.f32 0.0, %v4262
  %v4264 = vpop.f32.mrb[0].mxu0
  %v4265 = vpop.f32.mrb[0].mxu0
  %v4266 = vadd.f32 0.0, %v4265
  %v4267 = vpop.f32.mrb[0].mxu0
  %4268 = vdwg.mxu0
  %v4269 = vpack.c.bf16 %v4266, %v4263
  %s4270 = scalar_lea.vmem %s51, 8
  %v4271 = vld [vmem:[%s4270] sm:$0xf]
  %v4272 = vld [vmem:[%s4270 + $0x4] sm:$0xf]
  %v4275 = vunpack.c.l.b16 %v4271
  %v4276 = vunpack.c.l.b16 %v4272
  %v4277 = vpack.c.b16 %v4276, %v4275
  %v4280 = vsel %vm3787, %v4269, 0
  %4282 = vmatprep.subr.bf16.mxu0 0
  %4283 = vmatpush1.bf16.msra.mxu0 %v4277
  %4284 = vmatprep.subr.bf16.mxu0 0
  %4285 = vmatpush1.bf16.msra.mxu0 0
  %4286 = vmatprep.subr.bf16.mxu0 0
  %4287 = vmatpush1.bf16.msra.mxu0 0
  %4288 = vmatprep.subr.bf16.mxu0 0
  %4289 = vmatpush1.bf16.msra.mxu0 0
  %4290 = vmatprep.subr.bf16.mxu0 0
  %4291 = vmatpush1.bf16.msra.mxu0 0
  %4292 = vmatprep.subr.bf16.mxu0 0
  %4293 = vmatpush1.bf16.msra.mxu0 0
  %4294 = vmatprep.subr.bf16.mxu0 0
  %4295 = vmatpush1.bf16.msra.mxu0 0
  %4296 = vmatprep.subr.bf16.mxu0 0
  %4297 = vmatpush1.bf16.msra.mxu0 0
  %4298 = vmatprep.subr.bf16.mxu0 0
  %4299 = vmatpush1.bf16.msra.mxu0 0
  %4300 = vmatprep.subr.bf16.mxu0 0
  %4301 = vmatpush1.bf16.msra.mxu0 0
  %4302 = vmatprep.subr.bf16.mxu0 0
  %4303 = vmatpush1.bf16.msra.mxu0 0
  %4304 = vmatprep.subr.bf16.mxu0 0
  %4305 = vmatpush1.bf16.msra.mxu0 0
  %4306 = vmatprep.subr.bf16.mxu0 0
  %4307 = vmatpush1.bf16.msra.mxu0 0
  %4308 = vmatprep.subr.bf16.mxu0 0
  %4309 = vmatpush1.bf16.msra.mxu0 0
  %4310 = vmatprep.subr.bf16.mxu0 0
  %4311 = vmatpush1.bf16.msra.mxu0 0
  %4312 = vmatprep.subr.bf16.mxu0 0
  %4313 = vmatpush1.bf16.msra.mxu0 0
  %4314 = vmatprep.mubr.bf16.mxu0 0
  %4315 = vmatmul.mubr.bf16.gmra.mrb[0].mxu0 %v4280
  %v4316 = vpop.f32.mrb[0].mxu0
  %v4317 = vadd.f32 0.0, %v4316
  %v4318 = vpop.f32.mrb[0].mxu0
  %v4319 = vpop.f32.mrb[0].mxu0
  %v4320 = vadd.f32 0.0, %v4319
  %v4321 = vpop.f32.mrb[0].mxu0
  %4322 = vdwg.mxu0
  %v4325 = vunpack.c.l.b16 %v3904
  %v4326 = vunpack.c.l.b16 %v3905
  %v4327 = vpack.c.b16 %v4326, %v4325
  %v4330 = vsel %vm3787, %v3903, 0
  %4332 = vmatprep.subr.bf16.mxu0 0
  %4333 = vmatpush1.bf16.msra.mxu0 %v4327
  %4334 = vmatprep.subr.bf16.mxu0 0
  %4335 = vmatpush1.bf16.msra.mxu0 0
  %4336 = vmatprep.subr.bf16.mxu0 0
  %4337 = vmatpush1.bf16.msra.mxu0 0
  %4338 = vmatprep.subr.bf16.mxu0 0
  %4339 = vmatpush1.bf16.msra.mxu0 0
  %4340 = vmatprep.subr.bf16.mxu0 0
  %4341 = vmatpush1.bf16.msra.mxu0 0
  %4342 = vmatprep.subr.bf16.mxu0 0
  %4343 = vmatpush1.bf16.msra.mxu0 0
  %4344 = vmatprep.subr.bf16.mxu0 0
  %4345 = vmatpush1.bf16.msra.mxu0 0
  %4346 = vmatprep.subr.bf16.mxu0 0
  %4347 = vmatpush1.bf16.msra.mxu0 0
  %4348 = vmatprep.subr.bf16.mxu0 0
  %4349 = vmatpush1.bf16.msra.mxu0 0
  %4350 = vmatprep.subr.bf16.mxu0 0
  %4351 = vmatpush1.bf16.msra.mxu0 0
  %4352 = vmatprep.subr.bf16.mxu0 0
  %4353 = vmatpush1.bf16.msra.mxu0 0
  %4354 = vmatprep.subr.bf16.mxu0 0
  %4355 = vmatpush1.bf16.msra.mxu0 0
  %4356 = vmatprep.subr.bf16.mxu0 0
  %4357 = vmatpush1.bf16.msra.mxu0 0
  %4358 = vmatprep.subr.bf16.mxu0 0
  %4359 = vmatpush1.bf16.msra.mxu0 0
  %4360 = vmatprep.subr.bf16.mxu0 0
  %4361 = vmatpush1.bf16.msra.mxu0 0
  %4362 = vmatprep.subr.bf16.mxu0 0
  %4363 = vmatpush1.bf16.msra.mxu0 0
  %4364 = vmatprep.mubr.bf16.mxu0 0
  %4365 = vmatmul.mubr.bf16.gmra.mrb[0].mxu0 %v4330
  %v4366 = vpop.f32.mrb[0].mxu0
  %v4367 = vadd.f32 %v4317, %v4366
  %v4368 = vpop.f32.mrb[0].mxu0
  %v4369 = vpop.f32.mrb[0].mxu0
  %v4370 = vadd.f32 %v4320, %v4369
  %v4371 = vpop.f32.mrb[0].mxu0
  %4372 = vdwg.mxu0
  %s4373 = scalar_lea.vmem %s39, 64
  %v4374 = vld [vmem:[%s4373] sm:$0xf]
  %v4375 = vld [vmem:[%s4373 + $0x4] sm:$0xf]
  %v4376 = vld [vmem:[%s4373 + $0x8] sm:$0xf]
  %v4377 = vld [vmem:[%s4373 + $0xc] sm:$0xf]
  %v4378 = vld [vmem:[%s4373 + $0x10] sm:$0xf]
  %v4379 = vld [vmem:[%s4373 + $0x14] sm:$0xf]
  %v4380 = vld [vmem:[%s4373 + $0x18] sm:$0xf]
  %v4381 = vld [vmem:[%s4373 + $0x1c] sm:$0xf]
  %s4382 = scalar_lea.vmem %s41, 2
  %v4383 = vld [vmem:[%s4382] sm:$0x1]
  %v4385 = vlaneseq
  %v4386 = vshrl.u32 %v4385, 7
  %v4387 = vsub.s32 0, %v4386
  %v4388 = vrot.slane %v4383, %v4387
  %v4398 = vunpack.c.l.b16 %v4374
  %v4399 = vunpack.c.l.b16 %v4375
  %v4400 = vunpack.c.l.b16 %v4376
  %v4401 = vunpack.c.l.b16 %v4377
  %v4402 = vunpack.c.l.b16 %v4378
  %v4403 = vunpack.c.l.b16 %v4379
  %v4404 = vunpack.c.l.b16 %v4380
  %v4405 = vunpack.c.l.b16 %v4381
  %v4406 = vpack.c.b16 %v4399, %v4398
  %v4407 = vpack.c.b16 %v4401, %v4400
  %v4408 = vpack.c.b16 %v4403, %v4402
  %v4409 = vpack.c.b16 %v4405, %v4404
  %4414 = vmatprep.subr.bf16.mxu0 0
  %4415 = vmatpush1.bf16.msra.mxu0 %v4406
  %4416 = vmatprep.subr.bf16.mxu0 0
  %4417 = vmatpush1.bf16.msra.mxu0 %v4407
  %4418 = vmatprep.subr.bf16.mxu0 0
  %4419 = vmatpush1.bf16.msra.mxu0 %v4408
  %4420 = vmatprep.subr.bf16.mxu0 0
  %4421 = vmatpush1.bf16.msra.mxu0 %v4409
  %4422 = vmatprep.subr.bf16.mxu0 0
  %4423 = vmatpush1.bf16.msra.mxu0 0
  %4424 = vmatprep.subr.bf16.mxu0 0
  %4425 = vmatpush1.bf16.msra.mxu0 0
  %4426 = vmatprep.subr.bf16.mxu0 0
  %4427 = vmatpush1.bf16.msra.mxu0 0
  %4428 = vmatprep.subr.bf16.mxu0 0
  %4429 = vmatpush1.bf16.msra.mxu0 0
  %4430 = vmatprep.subr.bf16.mxu0 0
  %4431 = vmatpush1.bf16.msra.mxu0 0
  %4432 = vmatprep.subr.bf16.mxu0 0
  %4433 = vmatpush1.bf16.msra.mxu0 0
  %4434 = vmatprep.subr.bf16.mxu0 0
  %4435 = vmatpush1.bf16.msra.mxu0 0
  %4436 = vmatprep.subr.bf16.mxu0 0
  %4437 = vmatpush1.bf16.msra.mxu0 0
  %4438 = vmatprep.subr.bf16.mxu0 0
  %4439 = vmatpush1.bf16.msra.mxu0 0
  %4440 = vmatprep.subr.bf16.mxu0 0
  %4441 = vmatpush1.bf16.msra.mxu0 0
  %4442 = vmatprep.subr.bf16.mxu0 0
  %4443 = vmatpush1.bf16.msra.mxu0 0
  %4444 = vmatprep.subr.bf16.mxu0 0
  %4445 = vmatpush1.bf16.msra.mxu0 0
  %4446 = vmatprep.mubr.bf16.mxu0 0
  %4447 = vmatmul.mubr.bf16.gmra.mrb[0].mxu0 %v3579
  %v4448 = vpop.f32.mrb[0].mxu0
  %v4449 = vadd.f32 %v4388, %v4448
  %v4450 = vpop.f32.mrb[0].mxu0
  %v4451 = vpop.f32.mrb[0].mxu0
  %v4452 = vadd.f32 %v4388, %v4451
  %v4453 = vpop.f32.mrb[0].mxu0
  %4454 = vdwg.mxu0
  %s4455 = scalar_lea.vmem %s43, 64
  %v4456 = vld [vmem:[%s4455] sm:$0xf]
  %v4457 = vld [vmem:[%s4455 + $0x4] sm:$0xf]
  %v4458 = vld [vmem:[%s4455 + $0x8] sm:$0xf]
  %v4459 = vld [vmem:[%s4455 + $0xc] sm:$0xf]
  %v4460 = vld [vmem:[%s4455 + $0x10] sm:$0xf]
  %v4461 = vld [vmem:[%s4455 + $0x14] sm:$0xf]
  %v4462 = vld [vmem:[%s4455 + $0x18] sm:$0xf]
  %v4463 = vld [vmem:[%s4455 + $0x1c] sm:$0xf]
  %s4464 = scalar_lea.vmem %s45, 2
  %v4465 = vld [vmem:[%s4464] sm:$0x1]
  %v4467 = vlaneseq
  %v4468 = vshrl.u32 %v4467, 7
  %v4469 = vsub.s32 0, %v4468
  %v4470 = vrot.slane %v4465, %v4469
  %v4480 = vunpack.c.l.b16 %v4456
  %v4481 = vunpack.c.l.b16 %v4457
  %v4482 = vunpack.c.l.b16 %v4458
  %v4483 = vunpack.c.l.b16 %v4459
  %v4484 = vunpack.c.l.b16 %v4460
  %v4485 = vunpack.c.l.b16 %v4461
  %v4486 = vunpack.c.l.b16 %v4462
  %v4487 = vunpack.c.l.b16 %v4463
  %v4488 = vpack.c.b16 %v4481, %v4480
  %v4489 = vpack.c.b16 %v4483, %v4482
  %v4490 = vpack.c.b16 %v4485, %v4484
  %v4491 = vpack.c.b16 %v4487, %v4486
  %4496 = vmatprep.subr.bf16.mxu0 0
  %4497 = vmatpush1.bf16.msra.mxu0 %v4488
  %4498 = vmatprep.subr.bf16.mxu0 0
  %4499 = vmatpush1.bf16.msra.mxu0 %v4489
  %4500 = vmatprep.subr.bf16.mxu0 0
  %4501 = vmatpush1.bf16.msra.mxu0 %v4490
  %4502 = vmatprep.subr.bf16.mxu0 0
  %4503 = vmatpush1.bf16.msra.mxu0 %v4491
  %4504 = vmatprep.subr.bf16.mxu0 0
  %4505 = vmatpush1.bf16.msra.mxu0 0
  %4506 = vmatprep.subr.bf16.mxu0 0
  %4507 = vmatpush1.bf16.msra.mxu0 0
  %4508 = vmatprep.subr.bf16.mxu0 0
  %4509 = vmatpush1.bf16.msra.mxu0 0
  %4510 = vmatprep.subr.bf16.mxu0 0
  %4511 = vmatpush1.bf16.msra.mxu0 0
  %4512 = vmatprep.subr.bf16.mxu0 0
  %4513 = vmatpush1.bf16.msra.mxu0 0
  %4514 = vmatprep.subr.bf16.mxu0 0
  %4515 = vmatpush1.bf16.msra.mxu0 0
  %4516 = vmatprep.subr.bf16.mxu0 0
  %4517 = vmatpush1.bf16.msra.mxu0 0
  %4518 = vmatprep.subr.bf16.mxu0 0
  %4519 = vmatpush1.bf16.msra.mxu0 0
  %4520 = vmatprep.subr.bf16.mxu0 0
  %4521 = vmatpush1.bf16.msra.mxu0 0
  %4522 = vmatprep.subr.bf16.mxu0 0
  %4523 = vmatpush1.bf16.msra.mxu0 0
  %4524 = vmatprep.subr.bf16.mxu0 0
  %4525 = vmatpush1.bf16.msra.mxu0 0
  %4526 = vmatprep.subr.bf16.mxu0 0
  %4527 = vmatpush1.bf16.msra.mxu0 0
  %4528 = vmatprep.mubr.bf16.mxu0 0
  %4529 = vmatmul.mubr.bf16.gmra.mrb[0].mxu0 %v3662
  %v4530 = vpop.f32.mrb[0].mxu0
  %v4531 = vadd.f32 %v4470, %v4530
  %v4532 = vpop.f32.mrb[0].mxu0
  %v4533 = vpop.f32.mrb[0].mxu0
  %v4534 = vadd.f32 %v4470, %v4533
  %v4535 = vpop.f32.mrb[0].mxu0
  %4536 = vdwg.mxu0
  %s4537 = scalar_lea.vmem %s47, 64
  %v4538 = vld [vmem:[%s4537] sm:$0xf]
  %v4539 = vld [vmem:[%s4537 + $0x4] sm:$0xf]
  %v4540 = vld [vmem:[%s4537 + $0x8] sm:$0xf]
  %v4541 = vld [vmem:[%s4537 + $0xc] sm:$0xf]
  %v4542 = vld [vmem:[%s4537 + $0x10] sm:$0xf]
  %v4543 = vld [vmem:[%s4537 + $0x14] sm:$0xf]
  %v4544 = vld [vmem:[%s4537 + $0x18] sm:$0xf]
  %v4545 = vld [vmem:[%s4537 + $0x1c] sm:$0xf]
  %s4546 = scalar_lea.vmem %s49, 2
  %v4547 = vld [vmem:[%s4546] sm:$0x1]
  %v4549 = vlaneseq
  %v4550 = vshrl.u32 %v4549, 7
  %v4551 = vsub.s32 0, %v4550
  %v4552 = vrot.slane %v4547, %v4551
  %v4562 = vunpack.c.l.b16 %v4538
  %v4563 = vunpack.c.l.b16 %v4539
  %v4564 = vunpack.c.l.b16 %v4540
  %v4565 = vunpack.c.l.b16 %v4541
  %v4566 = vunpack.c.l.b16 %v4542
  %v4567 = vunpack.c.l.b16 %v4543
  %v4568 = vunpack.c.l.b16 %v4544
  %v4569 = vunpack.c.l.b16 %v4545
  %v4570 = vpack.c.b16 %v4563, %v4562
  %v4571 = vpack.c.b16 %v4565, %v4564
  %v4572 = vpack.c.b16 %v4567, %v4566
  %v4573 = vpack.c.b16 %v4569, %v4568
  %4578 = vmatprep.subr.bf16.mxu0 0
  %4579 = vmatpush1.bf16.msra.mxu0 %v4570
  %4580 = vmatprep.subr.bf16.mxu0 0
  %4581 = vmatpush1.bf16.msra.mxu0 %v4571
  %4582 = vmatprep.subr.bf16.mxu0 0
  %4583 = vmatpush1.bf16.msra.mxu0 %v4572
  %4584 = vmatprep.subr.bf16.mxu0 0
  %4585 = vmatpush1.bf16.msra.mxu0 %v4573
  %4586 = vmatprep.subr.bf16.mxu0 0
  %4587 = vmatpush1.bf16.msra.mxu0 0
  %4588 = vmatprep.subr.bf16.mxu0 0
  %4589 = vmatpush1.bf16.msra.mxu0 0
  %4590 = vmatprep.subr.bf16.mxu0 0
  %4591 = vmatpush1.bf16.msra.mxu0 0
  %4592 = vmatprep.subr.bf16.mxu0 0
  %4593 = vmatpush1.bf16.msra.mxu0 0
  %4594 = vmatprep.subr.bf16.mxu0 0
  %4595 = vmatpush1.bf16.msra.mxu0 0
  %4596 = vmatprep.subr.bf16.mxu0 0
  %4597 = vmatpush1.bf16.msra.mxu0 0
  %4598 = vmatprep.subr.bf16.mxu0 0
  %4599 = vmatpush1.bf16.msra.mxu0 0
  %4600 = vmatprep.subr.bf16.mxu0 0
  %4601 = vmatpush1.bf16.msra.mxu0 0
  %4602 = vmatprep.subr.bf16.mxu0 0
  %4603 = vmatpush1.bf16.msra.mxu0 0
  %4604 = vmatprep.subr.bf16.mxu0 0
  %4605 = vmatpush1.bf16.msra.mxu0 0
  %4606 = vmatprep.subr.bf16.mxu0 0
  %4607 = vmatpush1.bf16.msra.mxu0 0
  %4608 = vmatprep.subr.bf16.mxu0 0
  %4609 = vmatpush1.bf16.msra.mxu0 0
  %4610 = vmatprep.mubr.bf16.mxu0 0
  %4611 = vmatmul.mubr.bf16.gmra.mrb[0].mxu0 %v3662
  %v4612 = vpop.f32.mrb[0].mxu0
  %v4613 = vadd.f32 %v4552, %v4612
  %v4614 = vpop.f32.mrb[0].mxu0
  %v4615 = vpop.f32.mrb[0].mxu0
  %v4616 = vadd.f32 %v4552, %v4615
  %v4617 = vpop.f32.mrb[0].mxu0
  %4618 = vdwg.mxu0
  %v4619 = vpack.c.bf16 %v4452, %v4449
  %v4620 = vpack.c.bf16 %v4534, %v4531
  %v4622 = vsel %vm3787, %v4619, 0
  %v4625 = vsel %vm3787, %v4620, 0
  %4627 = vmatprep.subr.bf16.mxu0 0
  %4628 = vmatpush1.bf16.xpose.msra.mxu0 %v4625
  %4629 = vmatprep.subr.bf16.mxu0 0
  %4630 = vmatpush1.bf16.xpose.msra.mxu0 0
  %4631 = vmatprep.subr.bf16.mxu0 0
  %4632 = vmatpush1.bf16.xpose.msra.mxu0 0
  %4633 = vmatprep.subr.bf16.mxu0 0
  %4634 = vmatpush1.bf16.xpose.msra.mxu0 0
  %4635 = vmatprep.subr.bf16.mxu0 0
  %4636 = vmatpush1.bf16.xpose.msra.mxu0 0
  %4637 = vmatprep.subr.bf16.mxu0 0
  %4638 = vmatpush1.bf16.xpose.msra.mxu0 0
  %4639 = vmatprep.subr.bf16.mxu0 0
  %4640 = vmatpush1.bf16.xpose.msra.mxu0 0
  %4641 = vmatprep.subr.bf16.mxu0 0
  %4642 = vmatpush1.bf16.xpose.msra.mxu0 0
  %4643 = vmatprep.subr.bf16.mxu0 0
  %4644 = vmatpush1.bf16.xpose.msra.mxu0 0
  %4645 = vmatprep.subr.bf16.mxu0 0
  %4646 = vmatpush1.bf16.xpose.msra.mxu0 0
  %4647 = vmatprep.subr.bf16.mxu0 0
  %4648 = vmatpush1.bf16.xpose.msra.mxu0 0
  %4649 = vmatprep.subr.bf16.mxu0 0
  %4650 = vmatpush1.bf16.xpose.msra.mxu0 0
  %4651 = vmatprep.subr.bf16.mxu0 0
  %4652 = vmatpush1.bf16.xpose.msra.mxu0 0
  %4653 = vmatprep.subr.bf16.mxu0 0
  %4654 = vmatpush1.bf16.xpose.msra.mxu0 0
  %4655 = vmatprep.subr.bf16.mxu0 0
  %4656 = vmatpush1.bf16.xpose.msra.mxu0 0
  %4657 = vmatprep.subr.bf16.mxu0 0
  %4658 = vmatpush1.bf16.xpose.msra.mxu0 0
  %4659 = vmatprep.mubr.bf16.mxu0 0
  %4660 = vmatmul.mubr.bf16.gmra.mrb[0].mxu0 %v4622
  %v4661 = vpop.f32.mrb[0].mxu0
  %v4662 = vadd.f32 %v3537, %v4661
  %v4663 = vpop.f32.mrb[0].mxu0
  %v4664 = vpop.f32.mrb[0].mxu0
  %v4665 = vadd.f32 %v3538, %v4664
  %v4666 = vpop.f32.mrb[0].mxu0
  %4667 = vdwg.mxu0
  %v4668 = vsel %vm3787, %v4662, -inf
  %4669 = vmax.xlane.f32.xlu0 %v4668
  %v4670 = vpop.xlane.xlu0 %4669
  %v4671 = vsel %vm3787, %v4665, -inf
  %4672 = vmax.xlane.f32.xlu0 %v4671
  %v4673 = vpop.xlane.xlu0 %4672
  %v4674 = vsub.f32 %v4662, %v4670
  %v4675 = vsub.f32 %v4665, %v4673
  %v4676 = vmul.f32 %v4674, 1.442695
  %v4677 = vpow.pop %v4676
  %v4678 = vmul.f32 %v4675, 1.442695
  %v4679 = vpow.pop %v4678
  %v4680 = vsel %vm3787, %v4677, 0.0
  %4681 = vadd.xlane.f32.xlu0 %v4680
  %v4682 = vpop.xlane.xlu0 %4681
  %v4683 = vsel %vm3787, %v4679, 0.0
  %4684 = vadd.xlane.f32.xlu0 %v4683
  %v4685 = vpop.xlane.xlu0 %4684
  %v4686 = vrcp.pop %v4682
  %v4687 = vrcp.pop %v4685
  %v4688 = vmul.f32 %v4677, %v4686
  %v4689 = vmul.f32 %v4679, %v4687
  %v4690 = vpack.c.bf16 %v4689, %v4688
  %v4691 = vpack.c.bf16 %v4616, %v4613
  %v4693 = vsel %vm3787, %v4690, 0
  %4695 = vmatprep.subr.bf16.mxu0 0
  %4696 = vmatpush1.bf16.msra.mxu0 %v4691
  %4697 = vmatprep.subr.bf16.mxu0 0
  %4698 = vmatpush1.bf16.msra.mxu0 0
  %4699 = vmatprep.subr.bf16.mxu0 0
  %4700 = vmatpush1.bf16.msra.mxu0 0
  %4701 = vmatprep.subr.bf16.mxu0 0
  %4702 = vmatpush1.bf16.msra.mxu0 0
  %4703 = vmatprep.subr.bf16.mxu0 0
  %4704 = vmatpush1.bf16.msra.mxu0 0
  %4705 = vmatprep.subr.bf16.mxu0 0
  %4706 = vmatpush1.bf16.msra.mxu0 0
  %4707 = vmatprep.subr.bf16.mxu0 0
  %4708 = vmatpush1.bf16.msra.mxu0 0
  %4709 = vmatprep.subr.bf16.mxu0 0
  %4710 = vmatpush1.bf16.msra.mxu0 0
  %4711 = vmatprep.subr.bf16.mxu0 0
  %4712 = vmatpush1.bf16.msra.mxu0 0
  %4713 = vmatprep.subr.bf16.mxu0 0
  %4714 = vmatpush1.bf16.msra.mxu0 0
  %4715 = vmatprep.subr.bf16.mxu0 0
  %4716 = vmatpush1.bf16.msra.mxu0 0
  %4717 = vmatprep.subr.bf16.mxu0 0
  %4718 = vmatpush1.bf16.msra.mxu0 0
  %4719 = vmatprep.subr.bf16.mxu0 0
  %4720 = vmatpush1.bf16.msra.mxu0 0
  %4721 = vmatprep.subr.bf16.mxu0 0
  %4722 = vmatpush1.bf16.msra.mxu0 0
  %4723 = vmatprep.subr.bf16.mxu0 0
  %4724 = vmatpush1.bf16.msra.mxu0 0
  %4725 = vmatprep.subr.bf16.mxu0 0
  %4726 = vmatpush1.bf16.msra.mxu0 0
  %4727 = vmatprep.mubr.bf16.mxu0 0
  %4728 = vmatmul.mubr.bf16.gmra.mrb[0].mxu0 %v4693
  %v4729 = vpop.f32.mrb[0].mxu0
  %v4730 = vadd.f32 0.0, %v4729
  %v4731 = vpop.f32.mrb[0].mxu0
  %v4732 = vpop.f32.mrb[0].mxu0
  %v4733 = vadd.f32 0.0, %v4732
  %v4734 = vpop.f32.mrb[0].mxu0
  %4735 = vdwg.mxu0
  %v4736 = vpack.c.bf16 %v4733, %v4730
  %s4737 = scalar_lea.vmem %s51, 16
  %v4738 = vld [vmem:[%s4737] sm:$0xf]
  %v4739 = vld [vmem:[%s4737 + $0x4] sm:$0xf]
  %v4742 = vunpack.c.l.b16 %v4738
  %v4743 = vunpack.c.l.b16 %v4739
  %v4744 = vpack.c.b16 %v4743, %v4742
  %v4747 = vsel %vm3787, %v4736, 0
  %4749 = vmatprep.subr.bf16.mxu0 0
  %4750 = vmatpush1.bf16.msra.mxu0 %v4744
  %4751 = vmatprep.subr.bf16.mxu0 0
  %4752 = vmatpush1.bf16.msra.mxu0 0
  %4753 = vmatprep.subr.bf16.mxu0 0
  %4754 = vmatpush1.bf16.msra.mxu0 0
  %4755 = vmatprep.subr.bf16.mxu0 0
  %4756 = vmatpush1.bf16.msra.mxu0 0
  %4757 = vmatprep.subr.bf16.mxu0 0
  %4758 = vmatpush1.bf16.msra.mxu0 0
  %4759 = vmatprep.subr.bf16.mxu0 0
  %4760 = vmatpush1.bf16.msra.mxu0 0
  %4761 = vmatprep.subr.bf16.mxu0 0
  %4762 = vmatpush1.bf16.msra.mxu0 0
  %4763 = vmatprep.subr.bf16.mxu0 0
  %4764 = vmatpush1.bf16.msra.mxu0 0
  %4765 = vmatprep.subr.bf16.mxu0 0
  %4766 = vmatpush1.bf16.msra.mxu0 0
  %4767 = vmatprep.subr.bf16.mxu0 0
  %4768 = vmatpush1.bf16.msra.mxu0 0
  %4769 = vmatprep.subr.bf16.mxu0 0
  %4770 = vmatpush1.bf16.msra.mxu0 0
  %4771 = vmatprep.subr.bf16.mxu0 0
  %4772 = vmatpush1.bf16.msra.mxu0 0
  %4773 = vmatprep.subr.bf16.mxu0 0
  %4774 = vmatpush1.bf16.msra.mxu0 0
  %4775 = vmatprep.subr.bf16.mxu0 0
  %4776 = vmatpush1.bf16.msra.mxu0 0
  %4777 = vmatprep.subr.bf16.mxu0 0
  %4778 = vmatpush1.bf16.msra.mxu0 0
  %4779 = vmatprep.subr.bf16.mxu0 0
  %4780 = vmatpush1.bf16.msra.mxu0 0
  %4781 = vmatprep.mubr.bf16.mxu0 0
  %4782 = vmatmul.mubr.bf16.gmra.mrb[0].mxu0 %v4747
  %v4783 = vpop.f32.mrb[0].mxu0
  %v4784 = vadd.f32 0.0, %v4783
  %v4785 = vpop.f32.mrb[0].mxu0
  %v4786 = vpop.f32.mrb[0].mxu0
  %v4787 = vadd.f32 0.0, %v4786
  %v4788 = vpop.f32.mrb[0].mxu0
  %4789 = vdwg.mxu0
  %v4790 = vadd.f32 %v4367, %v4784
  %v4791 = vadd.f32 %v4370, %v4787
  %s4792 = scalar_lea.vmem %s39, 96
  %v4793 = vld [vmem:[%s4792] sm:$0xf]
  %v4794 = vld [vmem:[%s4792 + $0x4] sm:$0xf]
  %v4795 = vld [vmem:[%s4792 + $0x8] sm:$0xf]
  %v4796 = vld [vmem:[%s4792 + $0xc] sm:$0xf]
  %v4797 = vld [vmem:[%s4792 + $0x10] sm:$0xf]
  %v4798 = vld [vmem:[%s4792 + $0x14] sm:$0xf]
  %v4799 = vld [vmem:[%s4792 + $0x18] sm:$0xf]
  %v4800 = vld [vmem:[%s4792 + $0x1c] sm:$0xf]
  %s4801 = scalar_lea.vmem %s41, 3
  %v4802 = vld [vmem:[%s4801] sm:$0x1]
  %v4804 = vlaneseq
  %v4805 = vshrl.u32 %v4804, 7
  %v4806 = vsub.s32 0, %v4805
  %v4807 = vrot.slane %v4802, %v4806
  %v4817 = vunpack.c.l.b16 %v4793
  %v4818 = vunpack.c.l.b16 %v4794
  %v4819 = vunpack.c.l.b16 %v4795
  %v4820 = vunpack.c.l.b16 %v4796
  %v4821 = vunpack.c.l.b16 %v4797
  %v4822 = vunpack.c.l.b16 %v4798
  %v4823 = vunpack.c.l.b16 %v4799
  %v4824 = vunpack.c.l.b16 %v4800
  %v4825 = vpack.c.b16 %v4818, %v4817
  %v4826 = vpack.c.b16 %v4820, %v4819
  %v4827 = vpack.c.b16 %v4822, %v4821
  %v4828 = vpack.c.b16 %v4824, %v4823
  %4833 = vmatprep.subr.bf16.mxu0 0
  %4834 = vmatpush1.bf16.msra.mxu0 %v4825
  %4835 = vmatprep.subr.bf16.mxu0 0
  %4836 = vmatpush1.bf16.msra.mxu0 %v4826
  %4837 = vmatprep.subr.bf16.mxu0 0
  %4838 = vmatpush1.bf16.msra.mxu0 %v4827
  %4839 = vmatprep.subr.bf16.mxu0 0
  %4840 = vmatpush1.bf16.msra.mxu0 %v4828
  %4841 = vmatprep.subr.bf16.mxu0 0
  %4842 = vmatpush1.bf16.msra.mxu0 0
  %4843 = vmatprep.subr.bf16.mxu0 0
  %4844 = vmatpush1.bf16.msra.mxu0 0
  %4845 = vmatprep.subr.bf16.mxu0 0
  %4846 = vmatpush1.bf16.msra.mxu0 0
  %4847 = vmatprep.subr.bf16.mxu0 0
  %4848 = vmatpush1.bf16.msra.mxu0 0
  %4849 = vmatprep.subr.bf16.mxu0 0
  %4850 = vmatpush1.bf16.msra.mxu0 0
  %4851 = vmatprep.subr.bf16.mxu0 0
  %4852 = vmatpush1.bf16.msra.mxu0 0
  %4853 = vmatprep.subr.bf16.mxu0 0
  %4854 = vmatpush1.bf16.msra.mxu0 0
  %4855 = vmatprep.subr.bf16.mxu0 0
  %4856 = vmatpush1.bf16.msra.mxu0 0
  %4857 = vmatprep.subr.bf16.mxu0 0
  %4858 = vmatpush1.bf16.msra.mxu0 0
  %4859 = vmatprep.subr.bf16.mxu0 0
  %4860 = vmatpush1.bf16.msra.mxu0 0
  %4861 = vmatprep.subr.bf16.mxu0 0
  %4862 = vmatpush1.bf16.msra.mxu0 0
  %4863 = vmatprep.subr.bf16.mxu0 0
  %4864 = vmatpush1.bf16.msra.mxu0 0
  %4865 = vmatprep.mubr.bf16.mxu0 0
  %4866 = vmatmul.mubr.bf16.gmra.mrb[0].mxu0 %v3579
  %v4867 = vpop.f32.mrb[0].mxu0
  %v4868 = vadd.f32 %v4807, %v4867
  %v4869 = vpop.f32.mrb[0].mxu0
  %v4870 = vpop.f32.mrb[0].mxu0
  %v4871 = vadd.f32 %v4807, %v4870
  %v4872 = vpop.f32.mrb[0].mxu0
  %4873 = vdwg.mxu0
  %s4874 = scalar_lea.vmem %s43, 96
  %v4875 = vld [vmem:[%s4874] sm:$0xf]
  %v4876 = vld [vmem:[%s4874 + $0x4] sm:$0xf]
  %v4877 = vld [vmem:[%s4874 + $0x8] sm:$0xf]
  %v4878 = vld [vmem:[%s4874 + $0xc] sm:$0xf]
  %v4879 = vld [vmem:[%s4874 + $0x10] sm:$0xf]
  %v4880 = vld [vmem:[%s4874 + $0x14] sm:$0xf]
  %v4881 = vld [vmem:[%s4874 + $0x18] sm:$0xf]
  %v4882 = vld [vmem:[%s4874 + $0x1c] sm:$0xf]
  %s4883 = scalar_lea.vmem %s45, 3
  %v4884 = vld [vmem:[%s4883] sm:$0x1]
  %v4886 = vlaneseq
  %v4887 = vshrl.u32 %v4886, 7
  %v4888 = vsub.s32 0, %v4887
  %v4889 = vrot.slane %v4884, %v4888
  %v4899 = vunpack.c.l.b16 %v4875
  %v4900 = vunpack.c.l.b16 %v4876
  %v4901 = vunpack.c.l.b16 %v4877
  %v4902 = vunpack.c.l.b16 %v4878
  %v4903 = vunpack.c.l.b16 %v4879
  %v4904 = vunpack.c.l.b16 %v4880
  %v4905 = vunpack.c.l.b16 %v4881
  %v4906 = vunpack.c.l.b16 %v4882
  %v4907 = vpack.c.b16 %v4900, %v4899
  %v4908 = vpack.c.b16 %v4902, %v4901
  %v4909 = vpack.c.b16 %v4904, %v4903
  %v4910 = vpack.c.b16 %v4906, %v4905
  %4915 = vmatprep.subr.bf16.mxu0 0
  %4916 = vmatpush1.bf16.msra.mxu0 %v4907
  %4917 = vmatprep.subr.bf16.mxu0 0
  %4918 = vmatpush1.bf16.msra.mxu0 %v4908
  %4919 = vmatprep.subr.bf16.mxu0 0
  %4920 = vmatpush1.bf16.msra.mxu0 %v4909
  %4921 = vmatprep.subr.bf16.mxu0 0
  %4922 = vmatpush1.bf16.msra.mxu0 %v4910
  %4923 = vmatprep.subr.bf16.mxu0 0
  %4924 = vmatpush1.bf16.msra.mxu0 0
  %4925 = vmatprep.subr.bf16.mxu0 0
  %4926 = vmatpush1.bf16.msra.mxu0 0
  %4927 = vmatprep.subr.bf16.mxu0 0
  %4928 = vmatpush1.bf16.msra.mxu0 0
  %4929 = vmatprep.subr.bf16.mxu0 0
  %4930 = vmatpush1.bf16.msra.mxu0 0
  %4931 = vmatprep.subr.bf16.mxu0 0
  %4932 = vmatpush1.bf16.msra.mxu0 0
  %4933 = vmatprep.subr.bf16.mxu0 0
  %4934 = vmatpush1.bf16.msra.mxu0 0
  %4935 = vmatprep.subr.bf16.mxu0 0
  %4936 = vmatpush1.bf16.msra.mxu0 0
  %4937 = vmatprep.subr.bf16.mxu0 0
  %4938 = vmatpush1.bf16.msra.mxu0 0
  %4939 = vmatprep.subr.bf16.mxu0 0
  %4940 = vmatpush1.bf16.msra.mxu0 0
  %4941 = vmatprep.subr.bf16.mxu0 0
  %4942 = vmatpush1.bf16.msra.mxu0 0
  %4943 = vmatprep.subr.bf16.mxu0 0
  %4944 = vmatpush1.bf16.msra.mxu0 0
  %4945 = vmatprep.subr.bf16.mxu0 0
  %4946 = vmatpush1.bf16.msra.mxu0 0
  %4947 = vmatprep.mubr.bf16.mxu0 0
  %4948 = vmatmul.mubr.bf16.gmra.mrb[0].mxu0 %v3662
  %v4949 = vpop.f32.mrb[0].mxu0
  %v4950 = vadd.f32 %v4889, %v4949
  %v4951 = vpop.f32.mrb[0].mxu0
  %v4952 = vpop.f32.mrb[0].mxu0
  %v4953 = vadd.f32 %v4889, %v4952
  %v4954 = vpop.f32.mrb[0].mxu0
  %4955 = vdwg.mxu0
  %s4956 = scalar_lea.vmem %s47, 96
  %v4957 = vld [vmem:[%s4956] sm:$0xf]
  %v4958 = vld [vmem:[%s4956 + $0x4] sm:$0xf]
  %v4959 = vld [vmem:[%s4956 + $0x8] sm:$0xf]
  %v4960 = vld [vmem:[%s4956 + $0xc] sm:$0xf]
  %v4961 = vld [vmem:[%s4956 + $0x10] sm:$0xf]
  %v4962 = vld [vmem:[%s4956 + $0x14] sm:$0xf]
  %v4963 = vld [vmem:[%s4956 + $0x18] sm:$0xf]
  %v4964 = vld [vmem:[%s4956 + $0x1c] sm:$0xf]
  %s4965 = scalar_lea.vmem %s49, 3
  %v4966 = vld [vmem:[%s4965] sm:$0x1]
  %v4968 = vlaneseq
  %v4969 = vshrl.u32 %v4968, 7
  %v4970 = vsub.s32 0, %v4969
  %v4971 = vrot.slane %v4966, %v4970
  %v4981 = vunpack.c.l.b16 %v4957
  %v4982 = vunpack.c.l.b16 %v4958
  %v4983 = vunpack.c.l.b16 %v4959
  %v4984 = vunpack.c.l.b16 %v4960
  %v4985 = vunpack.c.l.b16 %v4961
  %v4986 = vunpack.c.l.b16 %v4962
  %v4987 = vunpack.c.l.b16 %v4963
  %v4988 = vunpack.c.l.b16 %v4964
  %v4989 = vpack.c.b16 %v4982, %v4981
  %v4990 = vpack.c.b16 %v4984, %v4983
  %v4991 = vpack.c.b16 %v4986, %v4985
  %v4992 = vpack.c.b16 %v4988, %v4987
  %4997 = vmatprep.subr.bf16.mxu0 0
  %4998 = vmatpush1.bf16.msra.mxu0 %v4989
  %4999 = vmatprep.subr.bf16.mxu0 0
  %5000 = vmatpush1.bf16.msra.mxu0 %v4990
  %5001 = vmatprep.subr.bf16.mxu0 0
  %5002 = vmatpush1.bf16.msra.mxu0 %v4991
  %5003 = vmatprep.subr.bf16.mxu0 0
  %5004 = vmatpush1.bf16.msra.mxu0 %v4992
  %5005 = vmatprep.subr.bf16.mxu0 0
  %5006 = vmatpush1.bf16.msra.mxu0 0
  %5007 = vmatprep.subr.bf16.mxu0 0
  %5008 = vmatpush1.bf16.msra.mxu0 0
  %5009 = vmatprep.subr.bf16.mxu0 0
  %5010 = vmatpush1.bf16.msra.mxu0 0
  %5011 = vmatprep.subr.bf16.mxu0 0
  %5012 = vmatpush1.bf16.msra.mxu0 0
  %5013 = vmatprep.subr.bf16.mxu0 0
  %5014 = vmatpush1.bf16.msra.mxu0 0
  %5015 = vmatprep.subr.bf16.mxu0 0
  %5016 = vmatpush1.bf16.msra.mxu0 0
  %5017 = vmatprep.subr.bf16.mxu0 0
  %5018 = vmatpush1.bf16.msra.mxu0 0
  %5019 = vmatprep.subr.bf16.mxu0 0
  %5020 = vmatpush1.bf16.msra.mxu0 0
  %5021 = vmatprep.subr.bf16.mxu0 0
  %5022 = vmatpush1.bf16.msra.mxu0 0
  %5023 = vmatprep.subr.bf16.mxu0 0
  %5024 = vmatpush1.bf16.msra.mxu0 0
  %5025 = vmatprep.subr.bf16.mxu0 0
  %5026 = vmatpush1.bf16.msra.mxu0 0
  %5027 = vmatprep.subr.bf16.mxu0 0
  %5028 = vmatpush1.bf16.msra.mxu0 0
  %5029 = vmatprep.mubr.bf16.mxu0 0
  %5030 = vmatmul.mubr.bf16.gmra.mrb[0].mxu0 %v3662
  %v5031 = vpop.f32.mrb[0].mxu0
  %v5032 = vadd.f32 %v4971, %v5031
  %v5033 = vpop.f32.mrb[0].mxu0
  %v5034 = vpop.f32.mrb[0].mxu0
  %v5035 = vadd.f32 %v4971, %v5034
  %v5036 = vpop.f32.mrb[0].mxu0
  %5037 = vdwg.mxu0
  %v5038 = vpack.c.bf16 %v4871, %v4868
  %v5039 = vpack.c.bf16 %v4953, %v4950
  %v5041 = vsel %vm3787, %v5038, 0
  %v5044 = vsel %vm3787, %v5039, 0
  %5046 = vmatprep.subr.bf16.mxu0 0
  %5047 = vmatpush1.bf16.xpose.msra.mxu0 %v5044
  %5048 = vmatprep.subr.bf16.mxu0 0
  %5049 = vmatpush1.bf16.xpose.msra.mxu0 0
  %5050 = vmatprep.subr.bf16.mxu0 0
  %5051 = vmatpush1.bf16.xpose.msra.mxu0 0
  %5052 = vmatprep.subr.bf16.mxu0 0
  %5053 = vmatpush1.bf16.xpose.msra.mxu0 0
  %5054 = vmatprep.subr.bf16.mxu0 0
  %5055 = vmatpush1.bf16.xpose.msra.mxu0 0
  %5056 = vmatprep.subr.bf16.mxu0 0
  %5057 = vmatpush1.bf16.xpose.msra.mxu0 0
  %5058 = vmatprep.subr.bf16.mxu0 0
  %5059 = vmatpush1.bf16.xpose.msra.mxu0 0
  %5060 = vmatprep.subr.bf16.mxu0 0
  %5061 = vmatpush1.bf16.xpose.msra.mxu0 0
  %5062 = vmatprep.subr.bf16.mxu0 0
  %5063 = vmatpush1.bf16.xpose.msra.mxu0 0
  %5064 = vmatprep.subr.bf16.mxu0 0
  %5065 = vmatpush1.bf16.xpose.msra.mxu0 0
  %5066 = vmatprep.subr.bf16.mxu0 0
  %5067 = vmatpush1.bf16.xpose.msra.mxu0 0
  %5068 = vmatprep.subr.bf16.mxu0 0
  %5069 = vmatpush1.bf16.xpose.msra.mxu0 0
  %5070 = vmatprep.subr.bf16.mxu0 0
  %5071 = vmatpush1.bf16.xpose.msra.mxu0 0
  %5072 = vmatprep.subr.bf16.mxu0 0
  %5073 = vmatpush1.bf16.xpose.msra.mxu0 0
  %5074 = vmatprep.subr.bf16.mxu0 0
  %5075 = vmatpush1.bf16.xpose.msra.mxu0 0
  %5076 = vmatprep.subr.bf16.mxu0 0
  %5077 = vmatpush1.bf16.xpose.msra.mxu0 0
  %5078 = vmatprep.mubr.bf16.mxu0 0
  %5079 = vmatmul.mubr.bf16.gmra.mrb[0].mxu0 %v5041
  %v5080 = vpop.f32.mrb[0].mxu0
  %v5081 = vadd.f32 %v3537, %v5080
  %v5082 = vpop.f32.mrb[0].mxu0
  %v5083 = vpop.f32.mrb[0].mxu0
  %v5084 = vadd.f32 %v3538, %v5083
  %v5085 = vpop.f32.mrb[0].mxu0
  %5086 = vdwg.mxu0
  %v5087 = vsel %vm3787, %v5081, -inf
  %5088 = vmax.xlane.f32.xlu0 %v5087
  %v5089 = vpop.xlane.xlu0 %5088
  %v5090 = vsel %vm3787, %v5084, -inf
  %5091 = vmax.xlane.f32.xlu0 %v5090
  %v5092 = vpop.xlane.xlu0 %5091
  %v5093 = vsub.f32 %v5081, %v5089
  %v5094 = vsub.f32 %v5084, %v5092
  %v5095 = vmul.f32 %v5093, 1.442695
  %v5096 = vpow.pop %v5095
  %v5097 = vmul.f32 %v5094, 1.442695
  %v5098 = vpow.pop %v5097
  %v5099 = vsel %vm3787, %v5096, 0.0
  %5100 = vadd.xlane.f32.xlu0 %v5099
  %v5101 = vpop.xlane.xlu0 %5100
  %v5102 = vsel %vm3787, %v5098, 0.0
  %5103 = vadd.xlane.f32.xlu0 %v5102
  %v5104 = vpop.xlane.xlu0 %5103
  %v5105 = vrcp.pop %v5101
  %v5106 = vrcp.pop %v5104
  %v5107 = vmul.f32 %v5096, %v5105
  %v5108 = vmul.f32 %v5098, %v5106
  %v5109 = vpack.c.bf16 %v5108, %v5107
  %v5110 = vpack.c.bf16 %v5035, %v5032
  %v5112 = vsel %vm3787, %v5109, 0
  %5114 = vmatprep.subr.bf16.mxu0 0
  %5115 = vmatpush1.bf16.msra.mxu0 %v5110
  %5116 = vmatprep.subr.bf16.mxu0 0
  %5117 = vmatpush1.bf16.msra.mxu0 0
  %5118 = vmatprep.subr.bf16.mxu0 0
  %5119 = vmatpush1.bf16.msra.mxu0 0
  %5120 = vmatprep.subr.bf16.mxu0 0
  %5121 = vmatpush1.bf16.msra.mxu0 0
  %5122 = vmatprep.subr.bf16.mxu0 0
  %5123 = vmatpush1.bf16.msra.mxu0 0
  %5124 = vmatprep.subr.bf16.mxu0 0
  %5125 = vmatpush1.bf16.msra.mxu0 0
  %5126 = vmatprep.subr.bf16.mxu0 0
  %5127 = vmatpush1.bf16.msra.mxu0 0
  %5128 = vmatprep.subr.bf16.mxu0 0
  %5129 = vmatpush1.bf16.msra.mxu0 0
  %5130 = vmatprep.subr.bf16.mxu0 0
  %5131 = vmatpush1.bf16.msra.mxu0 0
  %5132 = vmatprep.subr.bf16.mxu0 0
  %5133 = vmatpush1.bf16.msra.mxu0 0
  %5134 = vmatprep.subr.bf16.mxu0 0
  %5135 = vmatpush1.bf16.msra.mxu0 0
  %5136 = vmatprep.subr.bf16.mxu0 0
  %5137 = vmatpush1.bf16.msra.mxu0 0
  %5138 = vmatprep.subr.bf16.mxu0 0
  %5139 = vmatpush1.bf16.msra.mxu0 0
  %5140 = vmatprep.subr.bf16.mxu0 0
  %5141 = vmatpush1.bf16.msra.mxu0 0
  %5142 = vmatprep.subr.bf16.mxu0 0
  %5143 = vmatpush1.bf16.msra.mxu0 0
  %5144 = vmatprep.subr.bf16.mxu0 0
  %5145 = vmatpush1.bf16.msra.mxu0 0
  %5146 = vmatprep.mubr.bf16.mxu0 0
  %5147 = vmatmul.mubr.bf16.gmra.mrb[0].mxu0 %v5112
  %v5148 = vpop.f32.mrb[0].mxu0
  %v5149 = vadd.f32 0.0, %v5148
  %v5150 = vpop.f32.mrb[0].mxu0
  %v5151 = vpop.f32.mrb[0].mxu0
  %v5152 = vadd.f32 0.0, %v5151
  %v5153 = vpop.f32.mrb[0].mxu0
  %5154 = vdwg.mxu0
  %v5155 = vpack.c.bf16 %v5152, %v5149
  %s5156 = scalar_lea.vmem %s51, 24
  %v5157 = vld [vmem:[%s5156] sm:$0xf]
  %v5158 = vld [vmem:[%s5156 + $0x4] sm:$0xf]
  %v5161 = vunpack.c.l.b16 %v5157
  %v5162 = vunpack.c.l.b16 %v5158
  %v5163 = vpack.c.b16 %v5162, %v5161
  %v5166 = vsel %vm3787, %v5155, 0
  %5168 = vmatprep.subr.bf16.mxu0 0
  %5169 = vmatpush1.bf16.msra.mxu0 %v5163
  %5170 = vmatprep.subr.bf16.mxu0 0
  %5171 = vmatpush1.bf16.msra.mxu0 0
  %5172 = vmatprep.subr.bf16.mxu0 0
  %5173 = vmatpush1.bf16.msra.mxu0 0
  %5174 = vmatprep.subr.bf16.mxu0 0
  %5175 = vmatpush1.bf16.msra.mxu0 0
  %5176 = vmatprep.subr.bf16.mxu0 0
  %5177 = vmatpush1.bf16.msra.mxu0 0
  %5178 = vmatprep.subr.bf16.mxu0 0
  %5179 = vmatpush1.bf16.msra.mxu0 0
  %5180 = vmatprep.subr.bf16.mxu0 0
  %5181 = vmatpush1.bf16.msra.mxu0 0
  %5182 = vmatprep.subr.bf16.mxu0 0
  %5183 = vmatpush1.bf16.msra.mxu0 0
  %5184 = vmatprep.subr.bf16.mxu0 0
  %5185 = vmatpush1.bf16.msra.mxu0 0
  %5186 = vmatprep.subr.bf16.mxu0 0
  %5187 = vmatpush1.bf16.msra.mxu0 0
  %5188 = vmatprep.subr.bf16.mxu0 0
  %5189 = vmatpush1.bf16.msra.mxu0 0
  %5190 = vmatprep.subr.bf16.mxu0 0
  %5191 = vmatpush1.bf16.msra.mxu0 0
  %5192 = vmatprep.subr.bf16.mxu0 0
  %5193 = vmatpush1.bf16.msra.mxu0 0
  %5194 = vmatprep.subr.bf16.mxu0 0
  %5195 = vmatpush1.bf16.msra.mxu0 0
  %5196 = vmatprep.subr.bf16.mxu0 0
  %5197 = vmatpush1.bf16.msra.mxu0 0
  %5198 = vmatprep.subr.bf16.mxu0 0
  %5199 = vmatpush1.bf16.msra.mxu0 0
  %5200 = vmatprep.mubr.bf16.mxu0 0
  %5201 = vmatmul.mubr.bf16.gmra.mrb[0].mxu0 %v5166
  %v5202 = vpop.f32.mrb[0].mxu0
  %v5203 = vadd.f32 0.0, %v5202
  %v5204 = vpop.f32.mrb[0].mxu0
  %v5205 = vpop.f32.mrb[0].mxu0
  %v5206 = vadd.f32 0.0, %v5205
  %v5207 = vpop.f32.mrb[0].mxu0
  %5208 = vdwg.mxu0
  %v5209 = vadd.f32 %v4790, %v5203
  %v5210 = vadd.f32 %v4791, %v5206
  %v5211 = vld [vmem:[%s53] sm:$0x1]
  %v5213 = vlaneseq
  %v5214 = vshrl.u32 %v5213, 7
  %v5215 = vsub.s32 0, %v5214
  %v5216 = vrot.slane %v5211, %v5215
  %v5218 = vadd.f32 %v5209, %v5216
  %v5219 = vadd.f32 %v5210, %v5216
  %v5220 = vld [vmem:[%s55] sm:$0x1]
  %v5221 = vld [vmem:[%s57] sm:$0x1]
  %v5222 = vsel %vm699, %v5218, 0.0
  %5223 = vadd.xlane.f32.xlu0 %v5222
  %v5224 = vpop.xlane.xlu0 %5223
  %v5225 = vsel %vm699, %v5219, 0.0
  %5226 = vadd.xlane.f32.xlu0 %v5225
  %v5227 = vpop.xlane.xlu0 %5226
  %v5228 = vrcp.pop 64.0
  %v5229 = vmul.f32 %v5224, %v5228
  %v5230 = vmul.f32 %v5227, %v5228
  %v5231 = vsub.f32 %v5218, %v5229
  %v5232 = vsub.f32 %v5219, %v5230
  %v5233 = vmul.f32 %v5231, %v5231
  %v5234 = vmul.f32 %v5232, %v5232
  %v5235 = vsel %vm699, %v5233, 0.0
  %5236 = vadd.xlane.f32.xlu0 %v5235
  %v5237 = vpop.xlane.xlu0 %5236
  %v5238 = vsel %vm699, %v5234, 0.0
  %5239 = vadd.xlane.f32.xlu0 %v5238
  %v5240 = vpop.xlane.xlu0 %5239
  %v5241 = vmul.f32 %v5237, %v5228
  %v5242 = vmul.f32 %v5240, %v5228
  %v5243 = vadd.f32 %v5241, 0.001
  %v5244 = vadd.f32 %v5242, 0.001
  %v5245 = vrsqrt.pop %v5243
  %v5246 = vrsqrt.pop %v5244
  %v5247 = vmul.f32 %v5231, %v5245
  %v5248 = vmul.f32 %v5232, %v5246
  %v5250 = vlaneseq
  %v5251 = vshrl.u32 %v5250, 7
  %v5252 = vsub.s32 0, %v5251
  %v5253 = vrot.slane %v5220, %v5252
  %v5255 = vmul.f32 %v5247, %v5253
  %v5256 = vmul.f32 %v5248, %v5253
  %v5258 = vlaneseq
  %v5259 = vshrl.u32 %v5258, 7
  %v5260 = vsub.s32 0, %v5259
  %v5261 = vrot.slane %v5221, %v5260
  %v5263 = vadd.f32 %v5255, %v5261
  %v5264 = vadd.f32 %v5256, %v5261
  %v5265 = vpack.c.bf16 %v5264, %v5263
  %v5266 = vld [vmem:[%s59] sm:$0xff]
  %v5267 = vld [vmem:[%s59 + $0x8] sm:$0xff]
  %v5268 = vld [vmem:[%s59 + $0x10] sm:$0xff]
  %v5269 = vld [vmem:[%s59 + $0x18] sm:$0xff]
  %v5270 = vld [vmem:[%s59 + $0x20] sm:$0xff]
  %v5271 = vld [vmem:[%s59 + $0x28] sm:$0xff]
  %v5272 = vld [vmem:[%s59 + $0x30] sm:$0xff]
  %v5273 = vld [vmem:[%s59 + $0x38] sm:$0xff]
  %v5274 = vld [vmem:[%s61] sm:$0x3]
  %v5276 = vlaneseq
  %v5277 = vshrl.u32 %v5276, 7
  %v5278 = vsub.s32 0, %v5277
  %v5279 = vrot.slane %v5274, %v5278
  %v5280 = vlaneseq
  %v5281 = vshrl.u32 %v5280, 7
  %v5282 = vsub.s32 1, %v5281
  %v5283 = vrot.slane %v5274, %v5282
  %v5294 = vunpack.c.l.b16 %v5266
  %v5295 = vunpack.c.h.b16 %v5266
  %v5296 = vunpack.c.l.b16 %v5267
  %v5297 = vunpack.c.h.b16 %v5267
  %v5298 = vunpack.c.l.b16 %v5268
  %v5299 = vunpack.c.h.b16 %v5268
  %v5300 = vunpack.c.l.b16 %v5269
  %v5301 = vunpack.c.h.b16 %v5269
  %v5302 = vunpack.c.l.b16 %v5270
  %v5303 = vunpack.c.h.b16 %v5270
  %v5304 = vunpack.c.l.b16 %v5271
  %v5305 = vunpack.c.h.b16 %v5271
  %v5306 = vunpack.c.l.b16 %v5272
  %v5307 = vunpack.c.h.b16 %v5272
  %v5308 = vunpack.c.l.b16 %v5273
  %v5309 = vunpack.c.h.b16 %v5273
  %v5310 = vpack.c.b16 %v5296, %v5294
  %v5311 = vpack.c.b16 %v5297, %v5295
  %v5312 = vpack.c.b16 %v5300, %v5298
  %v5313 = vpack.c.b16 %v5301, %v5299
  %v5314 = vpack.c.b16 %v5304, %v5302
  %v5315 = vpack.c.b16 %v5305, %v5303
  %v5316 = vpack.c.b16 %v5308, %v5306
  %v5317 = vpack.c.b16 %v5309, %v5307
  %v5327 = vsel %vm699, %v5265, 0
  %5329 = vmatprep.subr.bf16.mxu0 %v5311
  %5330 = vmatpush1.bf16.msra.mxu0 %v5310
  %5331 = vmatprep.subr.bf16.mxu0 %v5313
  %5332 = vmatpush1.bf16.msra.mxu0 %v5312
  %5333 = vmatprep.subr.bf16.mxu0 %v5315
  %5334 = vmatpush1.bf16.msra.mxu0 %v5314
  %5335 = vmatprep.subr.bf16.mxu0 %v5317
  %5336 = vmatpush1.bf16.msra.mxu0 %v5316
  %5337 = vmatprep.subr.bf16.mxu0 0
  %5338 = vmatpush1.bf16.msra.mxu0 0
  %5339 = vmatprep.subr.bf16.mxu0 0
  %5340 = vmatpush1.bf16.msra.mxu0 0
  %5341 = vmatprep.subr.bf16.mxu0 0
  %5342 = vmatpush1.bf16.msra.mxu0 0
  %5343 = vmatprep.subr.bf16.mxu0 0
  %5344 = vmatpush1.bf16.msra.mxu0 0
  %5345 = vmatprep.subr.bf16.mxu0 0
  %5346 = vmatpush1.bf16.msra.mxu0 0
  %5347 = vmatprep.subr.bf16.mxu0 0
  %5348 = vmatpush1.bf16.msra.mxu0 0
  %5349 = vmatprep.subr.bf16.mxu0 0
  %5350 = vmatpush1.bf16.msra.mxu0 0
  %5351 = vmatprep.subr.bf16.mxu0 0
  %5352 = vmatpush1.bf16.msra.mxu0 0
  %5353 = vmatprep.subr.bf16.mxu0 0
  %5354 = vmatpush1.bf16.msra.mxu0 0
  %5355 = vmatprep.subr.bf16.mxu0 0
  %5356 = vmatpush1.bf16.msra.mxu0 0
  %5357 = vmatprep.subr.bf16.mxu0 0
  %5358 = vmatpush1.bf16.msra.mxu0 0
  %5359 = vmatprep.subr.bf16.mxu0 0
  %5360 = vmatpush1.bf16.msra.mxu0 0
  %5361 = vmatprep.mubr.bf16.mxu0 0
  %5362 = vmatmul.mubr.bf16.gmra.mrb[0].mxu0 %v5327
  %v5363 = vpop.f32.mrb[0].mxu0
  %v5364 = vadd.f32 %v5279, %v5363
  %v5365 = vpop.f32.mrb[0].mxu0
  %v5366 = vadd.f32 %v5283, %v5365
  %v5367 = vpop.f32.mrb[0].mxu0
  %v5368 = vadd.f32 %v5279, %v5367
  %v5369 = vpop.f32.mrb[0].mxu0
  %v5370 = vadd.f32 %v5283, %v5369
  %5371 = vdwg.mxu0
  %vm5372 = vcmp.gt.f32.partialorder %v5364, 0.0
  %vm5373 = vcmp.gt.f32.partialorder %v5366, 0.0
  %vm5374 = vcmp.gt.f32.partialorder %v5368, 0.0
  %vm5375 = vcmp.gt.f32.partialorder %v5370, 0.0
  %v5376 = vmul.f32 %v5364, 1.442695
  %v5377 = vpow.pop %v5376
  %v5378 = vmul.f32 %v5366, 1.442695
  %v5379 = vpow.pop %v5378
  %v5380 = vmul.f32 %v5368, 1.442695
  %v5381 = vpow.pop %v5380
  %v5382 = vmul.f32 %v5370, 1.442695
  %v5383 = vpow.pop %v5382
  %v5384 = vsub.f32 %v5377, 1.0
  %v5385 = vsub.f32 %v5379, 1.0
  %v5386 = vsub.f32 %v5381, 1.0
  %v5387 = vsub.f32 %v5383, 1.0
  %v5388 = vsel %vm5372, %v5364, %v5384
  %v5389 = vsel %vm5373, %v5366, %v5385
  %v5390 = vsel %vm5374, %v5368, %v5386
  %v5391 = vsel %vm5375, %v5370, %v5387
  %v5392 = vpack.c.bf16 %v5390, %v5388
  %v5393 = vpack.c.bf16 %v5391, %v5389
  %v5394 = vld [vmem:[%s63] sm:$0xf]
  %v5395 = vld [vmem:[%s63 + $0x4] sm:$0xf]
  %v5396 = vld [vmem:[%s63 + $0x8] sm:$0xf]
  %v5397 = vld [vmem:[%s63 + $0xc] sm:$0xf]
  %v5398 = vld [vmem:[%s63 + $0x10] sm:$0xf]
  %v5399 = vld [vmem:[%s63 + $0x14] sm:$0xf]
  %v5400 = vld [vmem:[%s63 + $0x18] sm:$0xf]
  %v5401 = vld [vmem:[%s63 + $0x1c] sm:$0xf]
  %v5402 = vld [vmem:[%s63 + $0x20] sm:$0xf]
  %v5403 = vld [vmem:[%s63 + $0x24] sm:$0xf]
  %v5404 = vld [vmem:[%s63 + $0x28] sm:$0xf]
  %v5405 = vld [vmem:[%s63 + $0x2c] sm:$0xf]
  %v5406 = vld [vmem:[%s63 + $0x30] sm:$0xf]
  %v5407 = vld [vmem:[%s63 + $0x34] sm:$0xf]
  %v5408 = vld [vmem:[%s63 + $0x38] sm:$0xf]
  %v5409 = vld [vmem:[%s63 + $0x3c] sm:$0xf]
  %v5410 = vld [vmem:[%s63 + $0x40] sm:$0xf]
  %v5411 = vld [vmem:[%s63 + $0x44] sm:$0xf]
  %v5412 = vld [vmem:[%s63 + $0x48] sm:$0xf]
  %v5413 = vld [vmem:[%s63 + $0x4c] sm:$0xf]
  %v5414 = vld [vmem:[%s63 + $0x50] sm:$0xf]
  %v5415 = vld [vmem:[%s63 + $0x54] sm:$0xf]
  %v5416 = vld [vmem:[%s63 + $0x58] sm:$0xf]
  %v5417 = vld [vmem:[%s63 + $0x5c] sm:$0xf]
  %v5418 = vld [vmem:[%s63 + $0x60] sm:$0xf]
  %v5419 = vld [vmem:[%s63 + $0x64] sm:$0xf]
  %v5420 = vld [vmem:[%s63 + $0x68] sm:$0xf]
  %v5421 = vld [vmem:[%s63 + $0x6c] sm:$0xf]
  %v5422 = vld [vmem:[%s63 + $0x70] sm:$0xf]
  %v5423 = vld [vmem:[%s63 + $0x74] sm:$0xf]
  %v5424 = vld [vmem:[%s63 + $0x78] sm:$0xf]
  %v5425 = vld [vmem:[%s63 + $0x7c] sm:$0xf]
  %v5426 = vld [vmem:[%s65] sm:$0x1]
  %v5428 = vlaneseq
  %v5429 = vshrl.u32 %v5428, 7
  %v5430 = vsub.s32 0, %v5429
  %v5431 = vrot.slane %v5426, %v5430
  %v5465 = vunpack.c.l.b16 %v5394
  %v5466 = vunpack.c.l.b16 %v5395
  %v5467 = vunpack.c.l.b16 %v5396
  %v5468 = vunpack.c.l.b16 %v5397
  %v5469 = vunpack.c.l.b16 %v5398
  %v5470 = vunpack.c.l.b16 %v5399
  %v5471 = vunpack.c.l.b16 %v5400
  %v5472 = vunpack.c.l.b16 %v5401
  %v5473 = vunpack.c.l.b16 %v5402
  %v5474 = vunpack.c.l.b16 %v5403
  %v5475 = vunpack.c.l.b16 %v5404
  %v5476 = vunpack.c.l.b16 %v5405
  %v5477 = vunpack.c.l.b16 %v5406
  %v5478 = vunpack.c.l.b16 %v5407
  %v5479 = vunpack.c.l.b16 %v5408
  %v5480 = vunpack.c.l.b16 %v5409
  %v5481 = vunpack.c.l.b16 %v5410
  %v5482 = vunpack.c.l.b16 %v5411
  %v5483 = vunpack.c.l.b16 %v5412
  %v5484 = vunpack.c.l.b16 %v5413
  %v5485 = vunpack.c.l.b16 %v5414
  %v5486 = vunpack.c.l.b16 %v5415
  %v5487 = vunpack.c.l.b16 %v5416
  %v5488 = vunpack.c.l.b16 %v5417
  %v5489 = vunpack.c.l.b16 %v5418
  %v5490 = vunpack.c.l.b16 %v5419
  %v5491 = vunpack.c.l.b16 %v5420
  %v5492 = vunpack.c.l.b16 %v5421
  %v5493 = vunpack.c.l.b16 %v5422
  %v5494 = vunpack.c.l.b16 %v5423
  %v5495 = vunpack.c.l.b16 %v5424
  %v5496 = vunpack.c.l.b16 %v5425
  %v5497 = vpack.c.b16 %v5466, %v5465
  %v5498 = vpack.c.b16 %v5468, %v5467
  %v5499 = vpack.c.b16 %v5470, %v5469
  %v5500 = vpack.c.b16 %v5472, %v5471
  %v5501 = vpack.c.b16 %v5474, %v5473
  %v5502 = vpack.c.b16 %v5476, %v5475
  %v5503 = vpack.c.b16 %v5478, %v5477
  %v5504 = vpack.c.b16 %v5480, %v5479
  %v5505 = vpack.c.b16 %v5482, %v5481
  %v5506 = vpack.c.b16 %v5484, %v5483
  %v5507 = vpack.c.b16 %v5486, %v5485
  %v5508 = vpack.c.b16 %v5488, %v5487
  %v5509 = vpack.c.b16 %v5490, %v5489
  %v5510 = vpack.c.b16 %v5492, %v5491
  %v5511 = vpack.c.b16 %v5494, %v5493
  %v5512 = vpack.c.b16 %v5496, %v5495
  %5529 = vmatprep.subr.bf16.mxu0 0
  %5530 = vmatpush1.bf16.msra.mxu0 %v5497
  %5531 = vmatprep.subr.bf16.mxu0 0
  %5532 = vmatpush1.bf16.msra.mxu0 %v5498
  %5533 = vmatprep.subr.bf16.mxu0 0
  %5534 = vmatpush1.bf16.msra.mxu0 %v5499
  %5535 = vmatprep.subr.bf16.mxu0 0
  %5536 = vmatpush1.bf16.msra.mxu0 %v5500
  %5537 = vmatprep.subr.bf16.mxu0 0
  %5538 = vmatpush1.bf16.msra.mxu0 %v5501
  %5539 = vmatprep.subr.bf16.mxu0 0
  %5540 = vmatpush1.bf16.msra.mxu0 %v5502
  %5541 = vmatprep.subr.bf16.mxu0 0
  %5542 = vmatpush1.bf16.msra.mxu0 %v5503
  %5543 = vmatprep.subr.bf16.mxu0 0
  %5544 = vmatpush1.bf16.msra.mxu0 %v5504
  %5545 = vmatprep.subr.bf16.mxu0 0
  %5546 = vmatpush1.bf16.msra.mxu0 %v5505
  %5547 = vmatprep.subr.bf16.mxu0 0
  %5548 = vmatpush1.bf16.msra.mxu0 %v5506
  %5549 = vmatprep.subr.bf16.mxu0 0
  %5550 = vmatpush1.bf16.msra.mxu0 %v5507
  %5551 = vmatprep.subr.bf16.mxu0 0
  %5552 = vmatpush1.bf16.msra.mxu0 %v5508
  %5553 = vmatprep.subr.bf16.mxu0 0
  %5554 = vmatpush1.bf16.msra.mxu0 %v5509
  %5555 = vmatprep.subr.bf16.mxu0 0
  %5556 = vmatpush1.bf16.msra.mxu0 %v5510
  %5557 = vmatprep.subr.bf16.mxu0 0
  %5558 = vmatpush1.bf16.msra.mxu0 %v5511
  %5559 = vmatprep.subr.bf16.mxu0 0
  %5560 = vmatpush1.bf16.msra.mxu0 %v5512
  %5561 = vmatprep.mubr.bf16.mxu0 %v5393
  %5562 = vmatmul.mubr.bf16.gmra.mrb[0].mxu0 %v5392
  %v5563 = vpop.f32.mrb[0].mxu0
  %v5564 = vadd.f32 %v5431, %v5563
  %v5565 = vpop.f32.mrb[0].mxu0
  %v5566 = vpop.f32.mrb[0].mxu0
  %v5567 = vadd.f32 %v5431, %v5566
  %v5568 = vpop.f32.mrb[0].mxu0
  %5569 = vdwg.mxu0
  %vm5570 = vcmp.gt.f32.partialorder %v5564, 0.0
  %vm5571 = vcmp.gt.f32.partialorder %v5567, 0.0
  %v5572 = vmul.f32 %v5564, 1.442695
  %v5573 = vpow.pop %v5572
  %v5574 = vmul.f32 %v5567, 1.442695
  %v5575 = vpow.pop %v5574
  %v5576 = vsub.f32 %v5573, 1.0
  %v5577 = vsub.f32 %v5575, 1.0
  %v5578 = vsel %vm5570, %v5564, %v5576
  %v5579 = vsel %vm5571, %v5567, %v5577
  %v5580 = vld [vmem:[%s67] sm:$0x1]
  %v5581 = vld [vmem:[%s69] sm:$0x1]
  %v5582 = vsel %vm699, %v5578, 0.0
  %5583 = vadd.xlane.f32.xlu0 %v5582
  %v5584 = vpop.xlane.xlu0 %5583
  %v5585 = vsel %vm699, %v5579, 0.0
  %5586 = vadd.xlane.f32.xlu0 %v5585
  %v5587 = vpop.xlane.xlu0 %5586
  %v5588 = vmul.f32 %v5584, %v5228
  %v5589 = vmul.f32 %v5587, %v5228
  %v5590 = vsub.f32 %v5578, %v5588
  %v5591 = vsub.f32 %v5579, %v5589
  %v5592 = vmul.f32 %v5590, %v5590
  %v5593 = vmul.f32 %v5591, %v5591
  %v5594 = vsel %vm699, %v5592, 0.0
  %5595 = vadd.xlane.f32.xlu0 %v5594
  %v5596 = vpop.xlane.xlu0 %5595
  %v5597 = vsel %vm699, %v5593, 0.0
  %5598 = vadd.xlane.f32.xlu0 %v5597
  %v5599 = vpop.xlane.xlu0 %5598
  %v5600 = vmul.f32 %v5596, %v5228
  %v5601 = vmul.f32 %v5599, %v5228
  %v5602 = vadd.f32 %v5600, 0.001
  %v5603 = vadd.f32 %v5601, 0.001
  %v5604 = vrsqrt.pop %v5602
  %v5605 = vrsqrt.pop %v5603
  %v5606 = vmul.f32 %v5590, %v5604
  %v5607 = vmul.f32 %v5591, %v5605
  %v5609 = vlaneseq
  %v5610 = vshrl.u32 %v5609, 7
  %v5611 = vsub.s32 0, %v5610
  %v5612 = vrot.slane %v5580, %v5611
  %v5614 = vmul.f32 %v5606, %v5612
  %v5615 = vmul.f32 %v5607, %v5612
  %v5617 = vlaneseq
  %v5618 = vshrl.u32 %v5617, 7
  %v5619 = vsub.s32 0, %v5618
  %v5620 = vrot.slane %v5581, %v5619
  %v5622 = vadd.f32 %v5614, %v5620
  %v5623 = vadd.f32 %v5615, %v5620
  %vm5624 = vcmp.ge.s32.totalorder %v442, 0
  %vm5625 = vcmp.ge.s32.totalorder %v443, 0
  %vm5626 = vcmp.lt.s32.totalorder %v442, 4
  %vm5627 = vcmp.lt.s32.totalorder %v443, 4
  %vm5628 = vmand %vm5624, %vm5626
  %vm5629 = vmand %vm5625, %vm5627
  %v5630 = vsel %vm5628, 1, 0
  %v5631 = vsel %vm5629, 1, 0
  %v5632 = vcvt.s32.f32 %v5630
  %v5633 = vcvt.s32.f32 %v5631
  %v5634 = vmax.f32 %v5632, 0.0
  %v5635 = vmax.f32 %v5633, 0.0
  %vm5636 = vcmp.lt.s32.totalorder %v442, 10
  %vm5637 = vcmp.lt.s32.totalorder %v443, 10
  %vm5638 = vmand %vm3504, %vm5636
  %vm5639 = vmand %vm3505, %vm5637
  %v5640 = vsel %vm5638, 1, 0
  %v5641 = vsel %vm5639, 1, 0
  %v5642 = vcvt.s32.f32 %v5640
  %v5643 = vcvt.s32.f32 %v5641
  %v5644 = vmax.f32 %v5634, %v5642
  %v5645 = vmax.f32 %v5635, %v5643
  %v5646 = vadd.f32 %v3482, %v5622
  %v5647 = vadd.f32 %v3483, %v5623
  %v5648 = vadd.f32 %v5646, %v3498
  %v5649 = vadd.f32 %v5647, %v3499
  %v5650 = vld [vmem:[%s71] sm:$0x1]
  %v5652 = vlaneseq
  %v5653 = vshrl.u32 %v5652, 7
  %v5654 = vsub.s32 0, %v5653
  %v5655 = vrot.slane %v5650, %v5654
  %v5657 = vmul.f32 %v5644, %v5655
  %v5658 = vmul.f32 %v5645, %v5655
  %v5659 = vsub.f32 1.0, %v5644
  %v5660 = vsub.f32 1.0, %v5645
  %v5661 = vld [vmem:[%s75] sm:$0x1]
  %v5663 = vlaneseq
  %v5664 = vshrl.u32 %v5663, 7
  %v5665 = vsub.s32 0, %v5664
  %v5666 = vrot.slane %v5661, %v5665
  %v5668 = vmul.f32 %v5659, %v5666
  %v5669 = vmul.f32 %v5660, %v5666
  %v5670 = vadd.f32 %v5657, %v5668
  %v5671 = vadd.f32 %v5658, %v5669
  %v5672 = vld [vmem:[%s73] sm:$0x1]
  %v5674 = vlaneseq
  %v5675 = vshrl.u32 %v5674, 7
  %v5676 = vsub.s32 0, %v5675
  %v5677 = vrot.slane %v5672, %v5676
  %v5679 = vmul.f32 %v5644, %v5677
  %v5680 = vmul.f32 %v5645, %v5677
  %v5681 = vld [vmem:[%s77] sm:$0x1]
  %v5683 = vlaneseq
  %v5684 = vshrl.u32 %v5683, 7
  %v5685 = vsub.s32 0, %v5684
  %v5686 = vrot.slane %v5681, %v5685
  %v5688 = vmul.f32 %v5659, %v5686
  %v5689 = vmul.f32 %v5660, %v5686
  %v5690 = vadd.f32 %v5679, %v5688
  %v5691 = vadd.f32 %v5680, %v5689
  %v5692 = vsel %vm699, %v5648, 0.0
  %5693 = vadd.xlane.f32.xlu0 %v5692
  %v5694 = vpop.xlane.xlu0 %5693
  %v5695 = vsel %vm699, %v5649, 0.0
  %5696 = vadd.xlane.f32.xlu0 %v5695
  %v5697 = vpop.xlane.xlu0 %5696
  %v5698 = vmul.f32 %v5694, %v5228
  %v5699 = vmul.f32 %v5697, %v5228
  %v5700 = vsub.f32 %v5648, %v5698
  %v5701 = vsub.f32 %v5649, %v5699
  %v5702 = vmul.f32 %v5700, %v5700
  %v5703 = vmul.f32 %v5701, %v5701
  %v5704 = vsel %vm699, %v5702, 0.0
  %5705 = vadd.xlane.f32.xlu0 %v5704
  %v5706 = vpop.xlane.xlu0 %5705
  %v5707 = vsel %vm699, %v5703, 0.0
  %5708 = vadd.xlane.f32.xlu0 %v5707
  %v5709 = vpop.xlane.xlu0 %5708
  %v5710 = vmul.f32 %v5706, %v5228
  %v5711 = vmul.f32 %v5709, %v5228
  %v5712 = vadd.f32 %v5710, 0.001
  %v5713 = vadd.f32 %v5711, 0.001
  %v5714 = vrsqrt.pop %v5712
  %v5715 = vrsqrt.pop %v5713
  %v5716 = vmul.f32 %v5700, %v5714
  %v5717 = vmul.f32 %v5701, %v5715
  %v5718 = vmul.f32 %v5716, %v5670
  %v5719 = vmul.f32 %v5717, %v5671
  %v5720 = vadd.f32 %v5718, %v5690
  %v5721 = vadd.f32 %v5719, %v5691
  %5722 = vst.msk [vmem:[%s79] sm:$0xff] %vm699, %v5720
  %5723 = vst.msk [vmem:[%s79 + $0x8] sm:$0xff] %vm699, %v5721
  // Predicated region
  $region158: #{trajnet_forward.1} parent=0 // pred_check
    _
  $region159: #{trajnet_forward.1} parent=0 // pred_check_branch
    %5725 = sbr.rel (0) target = $region161
  $region160: #{trajnet_forward.1} parent=0 // pred_region
    _
  $region161: #{trajnet_forward.1} parent=0 // pred_fallthru
    _
  // Predicated region
  $region162: #{trajnet_forward.1} parent=0 // pred_check
    _
  $region163: #{trajnet_forward.1} parent=0 // pred_check_branch
    %5727 = sbr.rel (0) target = $region165
  $region164: #{trajnet_forward.1} parent=0 // pred_region
    _
  $region165: #{trajnet_forward.1} parent=0 // pred_fallthru
    _

</llo_original>
